<compile_context>
chip_gen: v5e
topology: v5e:2x2
jax: 0.10.0
libtpu: 0.0.40
codegen_flags: <defaults>
</compile_context>

<pallas_src>
import functools

import jax
import jax.numpy as jnp
from jax.experimental import pallas as pl
from jax.experimental.pallas import tpu as pltpu


# ----------------------------------------------------------------------------
# Pallas kernels
# ----------------------------------------------------------------------------
def lstm_dir_kernel(x_ref, w_ih_ref, w_hh_ref, b_ref, h0_ref, c0_ref, y_ref,
                    h_sc, c_sc, y_sc, *, tb, bp, hsz, reverse):
    """One time-block of a single-direction LSTM layer.

    x_ref:    (tb*bp, IN) bf16  layer input for this time block (time-major,
                                batch nested inside each step)
    w_ih_ref: (IN, 4H)    bf16  input->gate weights   (resident in VMEM)
    w_hh_ref: (H, 4H)     bf16  hidden->gate weights  (resident in VMEM)
    b_ref:    (1, 4H)     f32   combined bias (b_ih + b_hh)
    h0/c0:    (bp, H)     f32   initial states (consumed at grid step 0 only)
    y_ref:    (tb*bp, H)  bf16  hidden outputs for this time block
    h_sc/c_sc:(bp, H)     f32   recurrent state carried across grid steps
    y_sc:     (tb*bp, H)  f32   staging buffer -> one full-block output store
    """
    @pl.when(pl.program_id(0) == 0)
    def _():
        h_sc[...] = h0_ref[...]
        c_sc[...] = c0_ref[...]

    w_ih = w_ih_ref[...]
    w_hh = w_hh_ref[...]
    b = b_ref[...]

    # Input projection for the whole time block in one bf16 MXU matmul
    # (f32 accumulation).  Never written back to HBM.
    gx = jnp.dot(x_ref[...], w_ih, preferred_element_type=jnp.float32)

    steps = range(tb - 1, -1, -1) if reverse else range(tb)
    for s in steps:                          # statically unrolled recurrence
        h = h_sc[...]
        g = (gx[s * bp:(s + 1) * bp, :] + b
             + jnp.dot(h.astype(jnp.bfloat16), w_hh,
                       preferred_element_type=jnp.float32))      # (bp, 4H)
        # PyTorch gate order: input, forget, cell, output.
        i_g = jax.nn.sigmoid(g[:, 0 * hsz:1 * hsz])
        f_g = jax.nn.sigmoid(g[:, 1 * hsz:2 * hsz])
        g_g = jnp.tanh(g[:, 2 * hsz:3 * hsz])
        o_g = jax.nn.sigmoid(g[:, 3 * hsz:4 * hsz])
        c_new = f_g * c_sc[...] + i_g * g_g
        h_new = o_g * jnp.tanh(c_new)
        c_sc[...] = c_new
        h_sc[...] = h_new
        y_sc[s * bp:(s + 1) * bp, :] = h_new
    y_ref[...] = y_sc[...].astype(y_ref.dtype)


def head_kernel(x_ref, o_ref, *, norm, bias):
    # sigmoid followed by price de-normalization: norm * sigmoid(x) - bias
    o_ref[...] = norm * jax.nn.sigmoid(x_ref[...].astype(jnp.float32)) - bias


# ----------------------------------------------------------------------------
# Pallas wrappers
# ----------------------------------------------------------------------------
def lstm_dir_pass(x_flat, w_ih, w_hh, b, h0, c0, *, seq_len, tb, bp, hsz, reverse):
    """Run one direction of one LSTM layer over the full sequence."""
    assert seq_len % tb == 0
    nt = seq_len // tb
    tbb = tb * bp
    in_dim = x_flat.shape[1]
    gh = 4 * hsz

    if reverse:
        tmap = lambda t: (nt - 1 - t, 0)     # process time blocks back-to-front
    else:
        tmap = lambda t: (t, 0)

    return pl.pallas_call(
        functools.partial(lstm_dir_kernel, tb=tb, bp=bp, hsz=hsz, reverse=reverse),
        out_shape=jax.ShapeDtypeStruct((seq_len * bp, hsz), jnp.bfloat16),
        grid_spec=pltpu.PrefetchScalarGridSpec(
            num_scalar_prefetch=0,
            grid=(nt,),
            in_specs=[
                pl.BlockSpec((tbb, in_dim), tmap),             # x (time block)
                pl.BlockSpec((in_dim, gh), lambda t: (0, 0)),  # W_ih
                pl.BlockSpec((hsz, gh), lambda t: (0, 0)),     # W_hh
                pl.BlockSpec((1, gh), lambda t: (0, 0)),       # bias
                pl.BlockSpec((bp, hsz), lambda t: (0, 0)),     # h0
                pl.BlockSpec((bp, hsz), lambda t: (0, 0)),     # c0
            ],
            out_specs=pl.BlockSpec((tbb, hsz), tmap),
            scratch_shapes=[pltpu.VMEM((bp, hsz), jnp.float32),    # h carry
                            pltpu.VMEM((bp, hsz), jnp.float32),    # c carry
                            pltpu.VMEM((tbb, hsz), jnp.float32)],  # y staging
        ),
        compiler_params=pltpu.CompilerParams(
            dimension_semantics=("arbitrary",)),   # sequential recurrence
    )(x_flat, w_ih, w_hh, b, h0, c0)


def pallas_head(x, norm, bias):
    bp, hsz = x.shape
    return pl.pallas_call(
        functools.partial(head_kernel, norm=norm, bias=bias),
        out_shape=jax.ShapeDtypeStruct((bp, hsz), jnp.float32),
        grid=(1,),
        in_specs=[pl.BlockSpec((bp, hsz), lambda i: (0, 0))],
        out_specs=pl.BlockSpec((bp, hsz), lambda i: (0, 0)),
    )(x)


# ----------------------------------------------------------------------------
# Parameters (synthetic, nn.LSTM default init) and forward pass
# ----------------------------------------------------------------------------
def init_params(key, *, input_dim, hidden, num_layers, batch, bp):
    # TODO(synk): trained torch nn.LSTM weights cannot be loaded here; weights
    # use nn.LSTM's default uniform(-1/sqrt(H), 1/sqrt(H)) init and
    # h_0/c_0 ~ N(0, 1) as in the module, generated with jax.random.
    k = 1.0 / (hidden ** 0.5)
    gh = 4 * hidden
    keys = iter(jax.random.split(key, num_layers * 2 * 4 + 2))
    layers = []
    for layer in range(num_layers):
        in_dim = input_dim if layer == 0 else 2 * hidden
        dirs = {}
        for name in ("fwd", "bwd"):
            w_ih = jax.random.uniform(next(keys), (in_dim, gh), jnp.float32, -k, k)
            w_hh = jax.random.uniform(next(keys), (hidden, gh), jnp.float32, -k, k)
            b_ih = jax.random.uniform(next(keys), (gh,), jnp.float32, -k, k)
            b_hh = jax.random.uniform(next(keys), (gh,), jnp.float32, -k, k)
            dirs[name] = {
                "w_ih": w_ih.astype(jnp.bfloat16),   # pre-cast once for the MXU
                "w_hh": w_hh.astype(jnp.bfloat16),
                "b": (b_ih + b_hh).reshape(1, gh),   # combined bias, f32
            }
        layers.append(dirs)
    h0 = jax.random.normal(next(keys), (num_layers, 2, batch, hidden), jnp.float32)
    c0 = jax.random.normal(next(keys), (num_layers, 2, batch, hidden), jnp.float32)
    pad = ((0, 0), (0, 0), (0, bp - batch), (0, 0))
    return {"layers": layers, "h0": jnp.pad(h0, pad), "c0": jnp.pad(c0, pad)}


def lst_model_forward(batch_vectors, params, *, seq_len, input_dim, hidden,
                      num_layers, bp, tb, price_norm, price_bias):
    """LSTModel.forward: re_shaper -> biLSTM -> sigmoid(output[-1,:,-1]) -> price."""
    B, T = batch_vectors.shape
    assert T <= seq_len and B <= bp

    # gaps_filler: zero-pad the time axis to L, replicate across input_dim.
    filled = jnp.pad(batch_vectors.astype(jnp.float32),
                     ((0, 0), (0, seq_len - T)))                 # (B, L)
    shaped = jnp.repeat(filled[:, :, None], input_dim, axis=-1)  # (B, L, IN)
    # re_shaper: time-major layout, as asserted in the PyTorch module.
    x = jnp.transpose(shaped, (1, 0, 2))                         # (L, B, IN)
    assert x.shape == (seq_len, B, input_dim)

    # Pad batch once to the 8-sublane tile and flatten to a lane-dense 2-D
    # layout (time-major rows, batch nested inside each step); cast to bf16.
    x = jnp.pad(x, ((0, 0), (0, bp - B), (0, 0)))
    x_flat = x.reshape(seq_len * bp, input_dim).astype(jnp.bfloat16)

    y_bwd = None
    for layer in range(num_layers):
        lp = params["layers"][layer]
        y_fwd = lstm_dir_pass(
            x_flat, lp["fwd"]["w_ih"], lp["fwd"]["w_hh"], lp["fwd"]["b"],
            params["h0"][layer, 0], params["c0"][layer, 0],
            seq_len=seq_len, tb=tb, bp=bp, hsz=hidden, reverse=False)
        y_bwd = lstm_dir_pass(
            x_flat, lp["bwd"]["w_ih"], lp["bwd"]["w_hh"], lp["bwd"]["b"],
            params["h0"][layer, 1], params["c0"][layer, 1],
            seq_len=seq_len, tb=tb, bp=bp, hsz=hidden, reverse=True)
        # Next layer's input: [forward | backward] feature concat (bf16).
        x_flat = jnp.concatenate([y_fwd, y_bwd], axis=-1)        # (L*bp, 2H)

    # output_[-1, :, -1] == channel H-1 of the top-layer *backward* hidden at
    # t = L-1 (produced at the backward pass's first recurrence step).
    last_step = y_bwd[(seq_len - 1) * bp: seq_len * bp, :]       # (bp, H)
    # TODO(synk): this tiny (bp, H) head could be fused into the final backward
    # pass's first grid step; kept as a separate kernel for clarity.
    head = pallas_head(last_step, price_norm, price_bias)        # (bp, H) f32
    return head[:B, hidden - 1]                                  # (B,)


if __name__ == "__main__":
    # Scaled-down LSTModel: seq 100->16, hidden 100->32; input_dim=10,
    # num_layers=5, bidirectional — architecture as in the module.
    BATCH, T_IN = 2, 12
    SEQ_LEN, INPUT_DIM, HIDDEN, NUM_LAYERS = 16, 10, 32, 5
    B_PAD, T_BLK = 8, 8

    key = jax.random.PRNGKey(0)
    pkey, xkey = jax.random.split(key)
    params = init_params(pkey, input_dim=INPUT_DIM, hidden=HIDDEN,
                         num_layers=NUM_LAYERS, batch=BATCH, bp=B_PAD)
    batch_vectors = jax.random.uniform(xkey, (BATCH, T_IN), dtype=jnp.float32)

    fwd = jax.jit(functools.partial(
        lst_model_forward, seq_len=SEQ_LEN, input_dim=INPUT_DIM, hidden=HIDDEN,
        num_layers=NUM_LAYERS, bp=B_PAD, tb=T_BLK,
        price_norm=2000000.0, price_bias=820000.0))

    out = fwd(batch_vectors, params)
    out = jax.block_until_ready(out)
    assert out.shape == (BATCH,)
    assert bool(jnp.all(jnp.isfinite(out)))
    print("KERNEL_OK")
</pallas_src>

<mosaic_0001>
module attributes {stable_mosaic.version = 11 : i64} {
  func.func @lstm_dir_kernel(%arg0: i32, %arg1: memref<64x10xbf16, #tpu.memory_space<vmem>>, %arg2: memref<10x128xbf16, #tpu.memory_space<vmem>>, %arg3: memref<32x128xbf16, #tpu.memory_space<vmem>>, %arg4: memref<1x128xf32, #tpu.memory_space<vmem>>, %arg5: memref<8x32xf32, #tpu.memory_space<vmem>>, %arg6: memref<8x32xf32, #tpu.memory_space<vmem>>, %arg7: memref<64x32xbf16, #tpu.memory_space<vmem>>, %arg8: memref<8x32xf32, #tpu.memory_space<vmem>>, %arg9: memref<8x32xf32, #tpu.memory_space<vmem>>, %arg10: memref<64x32xf32, #tpu.memory_space<vmem>>) attributes {dimension_semantics = [#tpu.dimension_semantics<arbitrary>], iteration_bounds = array<i64: 2>, scalar_prefetch = 0 : i64, scratch_operands = 3 : i64, tpu.core_type = #tpu.core_type<tc>, window_params = [{transform_indices = @transform_0, window_bounds = array<i64: 64, 10>}, {pipeline_mode = #tpu.pipeline_mode<synchronous>, transform_indices = @transform_1, window_bounds = array<i64: 10, 128>}, {pipeline_mode = #tpu.pipeline_mode<synchronous>, transform_indices = @transform_2, window_bounds = array<i64: 32, 128>}, {pipeline_mode = #tpu.pipeline_mode<synchronous>, transform_indices = @transform_3, window_bounds = array<i64: 1, 128>}, {pipeline_mode = #tpu.pipeline_mode<synchronous>, transform_indices = @transform_4, window_bounds = array<i64: 8, 32>}, {pipeline_mode = #tpu.pipeline_mode<synchronous>, transform_indices = @transform_5, window_bounds = array<i64: 8, 32>}, {transform_indices = @transform_6, window_bounds = array<i64: 64, 32>}]} {
    %c0_i32 = arith.constant 0 : i32
    %0 = arith.cmpi eq, %arg0, %c0_i32 : i32
    %1 = arith.extui %0 : i1 to i32
    %c0_i32_0 = arith.constant 0 : i32
    %2 = arith.cmpi ne, %1, %c0_i32_0 : i32
    scf.if %2 {
      %c0_117 = arith.constant 0 : index
      %c0_118 = arith.constant 0 : index
      %299 = vector.load %arg5[%c0_117, %c0_118] : memref<8x32xf32, #tpu.memory_space<vmem>>, vector<8x32xf32>
      %c0_119 = arith.constant 0 : index
      %c0_120 = arith.constant 0 : index
      %300 = vector.load %arg8[%c0_119, %c0_120] : memref<8x32xf32, #tpu.memory_space<vmem>>, vector<8x32xf32>
      tpu.vector_store %arg8[%c0_119, %c0_120], %299 {strides = array<i32>} : memref<8x32xf32, #tpu.memory_space<vmem>>, vector<8x32xf32>,
      %c0_121 = arith.constant 0 : index
      %c0_122 = arith.constant 0 : index
      %301 = vector.load %arg6[%c0_121, %c0_122] : memref<8x32xf32, #tpu.memory_space<vmem>>, vector<8x32xf32>
      %c0_123 = arith.constant 0 : index
      %c0_124 = arith.constant 0 : index
      %302 = vector.load %arg9[%c0_123, %c0_124] : memref<8x32xf32, #tpu.memory_space<vmem>>, vector<8x32xf32>
      tpu.vector_store %arg9[%c0_123, %c0_124], %301 {strides = array<i32>} : memref<8x32xf32, #tpu.memory_space<vmem>>, vector<8x32xf32>,
    } else {
    }
    %c0 = arith.constant 0 : index
    %c0_1 = arith.constant 0 : index
    %3 = vector.load %arg2[%c0, %c0_1] : memref<10x128xbf16, #tpu.memory_space<vmem>>, vector<10x128xbf16>
    %c0_2 = arith.constant 0 : index
    %c0_3 = arith.constant 0 : index
    %4 = vector.load %arg3[%c0_2, %c0_3] : memref<32x128xbf16, #tpu.memory_space<vmem>>, vector<32x128xbf16>
    %c0_4 = arith.constant 0 : index
    %c0_5 = arith.constant 0 : index
    %5 = vector.load %arg4[%c0_4, %c0_5] : memref<1x128xf32, #tpu.memory_space<vmem>>, vector<1x128xf32>
    %c0_6 = arith.constant 0 : index
    %c0_7 = arith.constant 0 : index
    %6 = vector.load %arg1[%c0_6, %c0_7] : memref<64x10xbf16, #tpu.memory_space<vmem>>, vector<64x10xbf16>
    %cst = arith.constant dense<0.000000e+00> : vector<64x128xf32>
    %7 = tpu.matmul %6, %3, %cst {dimension_numbers = #tpu.dot_dimension_numbers<[1], [0], [0], [1], [0, 0, 1, 1], [], []>} : vector<64x10xbf16>, vector<10x128xbf16>, vector<64x128xf32> -> vector<64x128xf32>
    %c0_8 = arith.constant 0 : index
    %c0_9 = arith.constant 0 : index
    %8 = vector.load %arg8[%c0_8, %c0_9] : memref<8x32xf32, #tpu.memory_space<vmem>>, vector<8x32xf32>
    %9 = vector.extract_strided_slice %7 {offsets = [56, 0], sizes = [8, 128], strides = [1, 1]} : vector<64x128xf32> to vector<8x128xf32>
    %10 = vector.broadcast %5 : vector<1x128xf32> to vector<8x128xf32>
    %11 = arith.addf %9, %10 : vector<8x128xf32>
    %12 = arith.truncf %8 : vector<8x32xf32> to vector<8x32xbf16>
    %cst_10 = arith.constant dense<0.000000e+00> : vector<8x128xf32>
    %13 = tpu.matmul %12, %4, %cst_10 {dimension_numbers = #tpu.dot_dimension_numbers<[1], [0], [0], [1], [0, 0, 1, 1], [], []>} : vector<8x32xbf16>, vector<32x128xbf16>, vector<8x128xf32> -> vector<8x128xf32>
    %14 = arith.addf %11, %13 : vector<8x128xf32>
    %15 = vector.extract_strided_slice %14 {offsets = [0, 0], sizes = [8, 32], strides = [1, 1]} : vector<8x128xf32> to vector<8x32xf32>
    %16 = arith.negf %15 : vector<8x32xf32>
    %17 = math.exp %16 : vector<8x32xf32>
    %cst_11 = arith.constant 1.000000e+00 : f32
    %18 = vector.broadcast %cst_11 : f32 to vector<8x32xf32>
    %19 = arith.addf %18, %17 : vector<8x32xf32>
    %20 = arith.divf %18, %19 : vector<8x32xf32>
    %21 = vector.extract_strided_slice %14 {offsets = [0, 32], sizes = [8, 32], strides = [1, 1]} : vector<8x128xf32> to vector<8x32xf32>
    %22 = arith.negf %21 : vector<8x32xf32>
    %23 = math.exp %22 : vector<8x32xf32>
    %cst_12 = arith.constant 1.000000e+00 : f32
    %24 = vector.broadcast %cst_12 : f32 to vector<8x32xf32>
    %25 = arith.addf %24, %23 : vector<8x32xf32>
    %26 = arith.divf %24, %25 : vector<8x32xf32>
    %27 = vector.extract_strided_slice %14 {offsets = [0, 64], sizes = [8, 32], strides = [1, 1]} : vector<8x128xf32> to vector<8x32xf32>
    %28 = math.tanh %27 : vector<8x32xf32>
    %29 = vector.extract_strided_slice %14 {offsets = [0, 96], sizes = [8, 32], strides = [1, 1]} : vector<8x128xf32> to vector<8x32xf32>
    %30 = arith.negf %29 : vector<8x32xf32>
    %31 = math.exp %30 : vector<8x32xf32>
    %cst_13 = arith.constant 1.000000e+00 : f32
    %32 = vector.broadcast %cst_13 : f32 to vector<8x32xf32>
    %33 = arith.addf %32, %31 : vector<8x32xf32>
    %34 = arith.divf %32, %33 : vector<8x32xf32>
    %c0_14 = arith.constant 0 : index
    %c0_15 = arith.constant 0 : index
    %35 = vector.load %arg9[%c0_14, %c0_15] : memref<8x32xf32, #tpu.memory_space<vmem>>, vector<8x32xf32>
    %36 = arith.mulf %26, %35 : vector<8x32xf32>
    %37 = arith.mulf %20, %28 : vector<8x32xf32>
    %38 = arith.addf %36, %37 : vector<8x32xf32>
    %39 = math.tanh %38 : vector<8x32xf32>
    %40 = arith.mulf %34, %39 : vector<8x32xf32>
    %c0_16 = arith.constant 0 : index
    %c0_17 = arith.constant 0 : index
    %41 = vector.load %arg9[%c0_16, %c0_17] : memref<8x32xf32, #tpu.memory_space<vmem>>, vector<8x32xf32>
    tpu.vector_store %arg9[%c0_16, %c0_17], %38 {strides = array<i32>} : memref<8x32xf32, #tpu.memory_space<vmem>>, vector<8x32xf32>,
    %c0_18 = arith.constant 0 : index
    %c0_19 = arith.constant 0 : index
    %42 = vector.load %arg8[%c0_18, %c0_19] : memref<8x32xf32, #tpu.memory_space<vmem>>, vector<8x32xf32>
    tpu.vector_store %arg8[%c0_18, %c0_19], %40 {strides = array<i32>} : memref<8x32xf32, #tpu.memory_space<vmem>>, vector<8x32xf32>,
    %c56 = arith.constant 56 : index
    %c0_20 = arith.constant 0 : index
    %43 = vector.load %arg10[%c56, %c0_20] : memref<64x32xf32, #tpu.memory_space<vmem>>, vector<8x32xf32>
    tpu.vector_store %arg10[%c56, %c0_20], %40 {strides = array<i32>} : memref<64x32xf32, #tpu.memory_space<vmem>>, vector<8x32xf32>,
    %c0_21 = arith.constant 0 : index
    %c0_22 = arith.constant 0 : index
    %44 = vector.load %arg8[%c0_21, %c0_22] : memref<8x32xf32, #tpu.memory_space<vmem>>, vector<8x32xf32>
    %45 = vector.extract_strided_slice %7 {offsets = [48, 0], sizes = [8, 128], strides = [1, 1]} : vector<64x128xf32> to vector<8x128xf32>
    %46 = vector.broadcast %5 : vector<1x128xf32> to vector<8x128xf32>
    %47 = arith.addf %45, %46 : vector<8x128xf32>
    %48 = arith.truncf %44 : vector<8x32xf32> to vector<8x32xbf16>
    %cst_23 = arith.constant dense<0.000000e+00> : vector<8x128xf32>
    %49 = tpu.matmul %48, %4, %cst_23 {dimension_numbers = #tpu.dot_dimension_numbers<[1], [0], [0], [1], [0, 0, 1, 1], [], []>} : vector<8x32xbf16>, vector<32x128xbf16>, vector<8x128xf32> -> vector<8x128xf32>
    %50 = arith.addf %47, %49 : vector<8x128xf32>
    %51 = vector.extract_strided_slice %50 {offsets = [0, 0], sizes = [8, 32], strides = [1, 1]} : vector<8x128xf32> to vector<8x32xf32>
    %52 = arith.negf %51 : vector<8x32xf32>
    %53 = math.exp %52 : vector<8x32xf32>
    %cst_24 = arith.constant 1.000000e+00 : f32
    %54 = vector.broadcast %cst_24 : f32 to vector<8x32xf32>
    %55 = arith.addf %54, %53 : vector<8x32xf32>
    %56 = arith.divf %54, %55 : vector<8x32xf32>
    %57 = vector.extract_strided_slice %50 {offsets = [0, 32], sizes = [8, 32], strides = [1, 1]} : vector<8x128xf32> to vector<8x32xf32>
    %58 = arith.negf %57 : vector<8x32xf32>
    %59 = math.exp %58 : vector<8x32xf32>
    %cst_25 = arith.constant 1.000000e+00 : f32
    %60 = vector.broadcast %cst_25 : f32 to vector<8x32xf32>
    %61 = arith.addf %60, %59 : vector<8x32xf32>
    %62 = arith.divf %60, %61 : vector<8x32xf32>
    %63 = vector.extract_strided_slice %50 {offsets = [0, 64], sizes = [8, 32], strides = [1, 1]} : vector<8x128xf32> to vector<8x32xf32>
    %64 = math.tanh %63 : vector<8x32xf32>
    %65 = vector.extract_strided_slice %50 {offsets = [0, 96], sizes = [8, 32], strides = [1, 1]} : vector<8x128xf32> to vector<8x32xf32>
    %66 = arith.negf %65 : vector<8x32xf32>
    %67 = math.exp %66 : vector<8x32xf32>
    %cst_26 = arith.constant 1.000000e+00 : f32
    %68 = vector.broadcast %cst_26 : f32 to vector<8x32xf32>
    %69 = arith.addf %68, %67 : vector<8x32xf32>
    %70 = arith.divf %68, %69 : vector<8x32xf32>
    %c0_27 = arith.constant 0 : index
    %c0_28 = arith.constant 0 : index
    %71 = vector.load %arg9[%c0_27, %c0_28] : memref<8x32xf32, #tpu.memory_space<vmem>>, vector<8x32xf32>
    %72 = arith.mulf %62, %71 : vector<8x32xf32>
    %73 = arith.mulf %56, %64 : vector<8x32xf32>
    %74 = arith.addf %72, %73 : vector<8x32xf32>
    %75 = math.tanh %74 : vector<8x32xf32>
    %76 = arith.mulf %70, %75 : vector<8x32xf32>
    %c0_29 = arith.constant 0 : index
    %c0_30 = arith.constant 0 : index
    %77 = vector.load %arg9[%c0_29, %c0_30] : memref<8x32xf32, #tpu.memory_space<vmem>>, vector<8x32xf32>
    tpu.vector_store %arg9[%c0_29, %c0_30], %74 {strides = array<i32>} : memref<8x32xf32, #tpu.memory_space<vmem>>, vector<8x32xf32>,
    %c0_31 = arith.constant 0 : index
    %c0_32 = arith.constant 0 : index
    %78 = vector.load %arg8[%c0_31, %c0_32] : memref<8x32xf32, #tpu.memory_space<vmem>>, vector<8x32xf32>
    tpu.vector_store %arg8[%c0_31, %c0_32], %76 {strides = array<i32>} : memref<8x32xf32, #tpu.memory_space<vmem>>, vector<8x32xf32>,
    %c48 = arith.constant 48 : index
    %c0_33 = arith.constant 0 : index
    %79 = vector.load %arg10[%c48, %c0_33] : memref<64x32xf32, #tpu.memory_space<vmem>>, vector<8x32xf32>
    tpu.vector_store %arg10[%c48, %c0_33], %76 {strides = array<i32>} : memref<64x32xf32, #tpu.memory_space<vmem>>, vector<8x32xf32>,
    %c0_34 = arith.constant 0 : index
    %c0_35 = arith.constant 0 : index
    %80 = vector.load %arg8[%c0_34, %c0_35] : memref<8x32xf32, #tpu.memory_space<vmem>>, vector<8x32xf32>
    %81 = vector.extract_strided_slice %7 {offsets = [40, 0], sizes = [8, 128], strides = [1, 1]} : vector<64x128xf32> to vector<8x128xf32>
    %82 = vector.broadcast %5 : vector<1x128xf32> to vector<8x128xf32>
    %83 = arith.addf %81, %82 : vector<8x128xf32>
    %84 = arith.truncf %80 : vector<8x32xf32> to vector<8x32xbf16>
    %cst_36 = arith.constant dense<0.000000e+00> : vector<8x128xf32>
    %85 = tpu.matmul %84, %4, %cst_36 {dimension_numbers = #tpu.dot_dimension_numbers<[1], [0], [0], [1], [0, 0, 1, 1], [], []>} : vector<8x32xbf16>, vector<32x128xbf16>, vector<8x128xf32> -> vector<8x128xf32>
    %86 = arith.addf %83, %85 : vector<8x128xf32>
    %87 = vector.extract_strided_slice %86 {offsets = [0, 0], sizes = [8, 32], strides = [1, 1]} : vector<8x128xf32> to vector<8x32xf32>
    %88 = arith.negf %87 : vector<8x32xf32>
    %89 = math.exp %88 : vector<8x32xf32>
    %cst_37 = arith.constant 1.000000e+00 : f32
    %90 = vector.broadcast %cst_37 : f32 to vector<8x32xf32>
    %91 = arith.addf %90, %89 : vector<8x32xf32>
    %92 = arith.divf %90, %91 : vector<8x32xf32>
    %93 = vector.extract_strided_slice %86 {offsets = [0, 32], sizes = [8, 32], strides = [1, 1]} : vector<8x128xf32> to vector<8x32xf32>
    %94 = arith.negf %93 : vector<8x32xf32>
    %95 = math.exp %94 : vector<8x32xf32>
    %cst_38 = arith.constant 1.000000e+00 : f32
    %96 = vector.broadcast %cst_38 : f32 to vector<8x32xf32>
    %97 = arith.addf %96, %95 : vector<8x32xf32>
    %98 = arith.divf %96, %97 : vector<8x32xf32>
    %99 = vector.extract_strided_slice %86 {offsets = [0, 64], sizes = [8, 32], strides = [1, 1]} : vector<8x128xf32> to vector<8x32xf32>
    %100 = math.tanh %99 : vector<8x32xf32>
    %101 = vector.extract_strided_slice %86 {offsets = [0, 96], sizes = [8, 32], strides = [1, 1]} : vector<8x128xf32> to vector<8x32xf32>
    %102 = arith.negf %101 : vector<8x32xf32>
    %103 = math.exp %102 : vector<8x32xf32>
    %cst_39 = arith.constant 1.000000e+00 : f32
    %104 = vector.broadcast %cst_39 : f32 to vector<8x32xf32>
    %105 = arith.addf %104, %103 : vector<8x32xf32>
    %106 = arith.divf %104, %105 : vector<8x32xf32>
    %c0_40 = arith.constant 0 : index
    %c0_41 = arith.constant 0 : index
    %107 = vector.load %arg9[%c0_40, %c0_41] : memref<8x32xf32, #tpu.memory_space<vmem>>, vector<8x32xf32>
    %108 = arith.mulf %98, %107 : vector<8x32xf32>
    %109 = arith.mulf %92, %100 : vector<8x32xf32>
    %110 = arith.addf %108, %109 : vector<8x32xf32>
    %111 = math.tanh %110 : vector<8x32xf32>
    %112 = arith.mulf %106, %111 : vector<8x32xf32>
    %c0_42 = arith.constant 0 : index
    %c0_43 = arith.constant 0 : index
    %113 = vector.load %arg9[%c0_42, %c0_43] : memref<8x32xf32, #tpu.memory_space<vmem>>, vector<8x32xf32>
    tpu.vector_store %arg9[%c0_42, %c0_43], %110 {strides = array<i32>} : memref<8x32xf32, #tpu.memory_space<vmem>>, vector<8x32xf32>,
    %c0_44 = arith.constant 0 : index
    %c0_45 = arith.constant 0 : index
    %114 = vector.load %arg8[%c0_44, %c0_45] : memref<8x32xf32, #tpu.memory_space<vmem>>, vector<8x32xf32>
    tpu.vector_store %arg8[%c0_44, %c0_45], %112 {strides = array<i32>} : memref<8x32xf32, #tpu.memory_space<vmem>>, vector<8x32xf32>,
    %c40 = arith.constant 40 : index
    %c0_46 = arith.constant 0 : index
    %115 = vector.load %arg10[%c40, %c0_46] : memref<64x32xf32, #tpu.memory_space<vmem>>, vector<8x32xf32>
    tpu.vector_store %arg10[%c40, %c0_46], %112 {strides = array<i32>} : memref<64x32xf32, #tpu.memory_space<vmem>>, vector<8x32xf32>,
    %c0_47 = arith.constant 0 : index
    %c0_48 = arith.constant 0 : index
    %116 = vector.load %arg8[%c0_47, %c0_48] : memref<8x32xf32, #tpu.memory_space<vmem>>, vector<8x32xf32>
    %117 = vector.extract_strided_slice %7 {offsets = [32, 0], sizes = [8, 128], strides = [1, 1]} : vector<64x128xf32> to vector<8x128xf32>
    %118 = vector.broadcast %5 : vector<1x128xf32> to vector<8x128xf32>
    %119 = arith.addf %117, %118 : vector<8x128xf32>
    %120 = arith.truncf %116 : vector<8x32xf32> to vector<8x32xbf16>
    %cst_49 = arith.constant dense<0.000000e+00> : vector<8x128xf32>
    %121 = tpu.matmul %120, %4, %cst_49 {dimension_numbers = #tpu.dot_dimension_numbers<[1], [0], [0], [1], [0, 0, 1, 1], [], []>} : vector<8x32xbf16>, vector<32x128xbf16>, vector<8x128xf32> -> vector<8x128xf32>
    %122 = arith.addf %119, %121 : vector<8x128xf32>
    %123 = vector.extract_strided_slice %122 {offsets = [0, 0], sizes = [8, 32], strides = [1, 1]} : vector<8x128xf32> to vector<8x32xf32>
    %124 = arith.negf %123 : vector<8x32xf32>
    %125 = math.exp %124 : vector<8x32xf32>
    %cst_50 = arith.constant 1.000000e+00 : f32
    %126 = vector.broadcast %cst_50 : f32 to vector<8x32xf32>
    %127 = arith.addf %126, %125 : vector<8x32xf32>
    %128 = arith.divf %126, %127 : vector<8x32xf32>
    %129 = vector.extract_strided_slice %122 {offsets = [0, 32], sizes = [8, 32], strides = [1, 1]} : vector<8x128xf32> to vector<8x32xf32>
    %130 = arith.negf %129 : vector<8x32xf32>
    %131 = math.exp %130 : vector<8x32xf32>
    %cst_51 = arith.constant 1.000000e+00 : f32
    %132 = vector.broadcast %cst_51 : f32 to vector<8x32xf32>
    %133 = arith.addf %132, %131 : vector<8x32xf32>
    %134 = arith.divf %132, %133 : vector<8x32xf32>
    %135 = vector.extract_strided_slice %122 {offsets = [0, 64], sizes = [8, 32], strides = [1, 1]} : vector<8x128xf32> to vector<8x32xf32>
    %136 = math.tanh %135 : vector<8x32xf32>
    %137 = vector.extract_strided_slice %122 {offsets = [0, 96], sizes = [8, 32], strides = [1, 1]} : vector<8x128xf32> to vector<8x32xf32>
    %138 = arith.negf %137 : vector<8x32xf32>
    %139 = math.exp %138 : vector<8x32xf32>
    %cst_52 = arith.constant 1.000000e+00 : f32
    %140 = vector.broadcast %cst_52 : f32 to vector<8x32xf32>
    %141 = arith.addf %140, %139 : vector<8x32xf32>
    %142 = arith.divf %140, %141 : vector<8x32xf32>
    %c0_53 = arith.constant 0 : index
    %c0_54 = arith.constant 0 : index
    %143 = vector.load %arg9[%c0_53, %c0_54] : memref<8x32xf32, #tpu.memory_space<vmem>>, vector<8x32xf32>
    %144 = arith.mulf %134, %143 : vector<8x32xf32>
    %145 = arith.mulf %128, %136 : vector<8x32xf32>
    %146 = arith.addf %144, %145 : vector<8x32xf32>
    %147 = math.tanh %146 : vector<8x32xf32>
    %148 = arith.mulf %142, %147 : vector<8x32xf32>
    %c0_55 = arith.constant 0 : index
    %c0_56 = arith.constant 0 : index
    %149 = vector.load %arg9[%c0_55, %c0_56] : memref<8x32xf32, #tpu.memory_space<vmem>>, vector<8x32xf32>
    tpu.vector_store %arg9[%c0_55, %c0_56], %146 {strides = array<i32>} : memref<8x32xf32, #tpu.memory_space<vmem>>, vector<8x32xf32>,
    %c0_57 = arith.constant 0 : index
    %c0_58 = arith.constant 0 : index
    %150 = vector.load %arg8[%c0_57, %c0_58] : memref<8x32xf32, #tpu.memory_space<vmem>>, vector<8x32xf32>
    tpu.vector_store %arg8[%c0_57, %c0_58], %148 {strides = array<i32>} : memref<8x32xf32, #tpu.memory_space<vmem>>, vector<8x32xf32>,
    %c32 = arith.constant 32 : index
    %c0_59 = arith.constant 0 : index
    %151 = vector.load %arg10[%c32, %c0_59] : memref<64x32xf32, #tpu.memory_space<vmem>>, vector<8x32xf32>
    tpu.vector_store %arg10[%c32, %c0_59], %148 {strides = array<i32>} : memref<64x32xf32, #tpu.memory_space<vmem>>, vector<8x32xf32>,
    %c0_60 = arith.constant 0 : index
    %c0_61 = arith.constant 0 : index
    %152 = vector.load %arg8[%c0_60, %c0_61] : memref<8x32xf32, #tpu.memory_space<vmem>>, vector<8x32xf32>
    %153 = vector.extract_strided_slice %7 {offsets = [24, 0], sizes = [8, 128], strides = [1, 1]} : vector<64x128xf32> to vector<8x128xf32>
    %154 = vector.broadcast %5 : vector<1x128xf32> to vector<8x128xf32>
    %155 = arith.addf %153, %154 : vector<8x128xf32>
    %156 = arith.truncf %152 : vector<8x32xf32> to vector<8x32xbf16>
    %cst_62 = arith.constant dense<0.000000e+00> : vector<8x128xf32>
    %157 = tpu.matmul %156, %4, %cst_62 {dimension_numbers = #tpu.dot_dimension_numbers<[1], [0], [0], [1], [0, 0, 1, 1], [], []>} : vector<8x32xbf16>, vector<32x128xbf16>, vector<8x128xf32> -> vector<8x128xf32>
    %158 = arith.addf %155, %157 : vector<8x128xf32>
    %159 = vector.extract_strided_slice %158 {offsets = [0, 0], sizes = [8, 32], strides = [1, 1]} : vector<8x128xf32> to vector<8x32xf32>
    %160 = arith.negf %159 : vector<8x32xf32>
    %161 = math.exp %160 : vector<8x32xf32>
    %cst_63 = arith.constant 1.000000e+00 : f32
    %162 = vector.broadcast %cst_63 : f32 to vector<8x32xf32>
    %163 = arith.addf %162, %161 : vector<8x32xf32>
    %164 = arith.divf %162, %163 : vector<8x32xf32>
    %165 = vector.extract_strided_slice %158 {offsets = [0, 32], sizes = [8, 32], strides = [1, 1]} : vector<8x128xf32> to vector<8x32xf32>
    %166 = arith.negf %165 : vector<8x32xf32>
    %167 = math.exp %166 : vector<8x32xf32>
    %cst_64 = arith.constant 1.000000e+00 : f32
    %168 = vector.broadcast %cst_64 : f32 to vector<8x32xf32>
    %169 = arith.addf %168, %167 : vector<8x32xf32>
    %170 = arith.divf %168, %169 : vector<8x32xf32>
    %171 = vector.extract_strided_slice %158 {offsets = [0, 64], sizes = [8, 32], strides = [1, 1]} : vector<8x128xf32> to vector<8x32xf32>
    %172 = math.tanh %171 : vector<8x32xf32>
    %173 = vector.extract_strided_slice %158 {offsets = [0, 96], sizes = [8, 32], strides = [1, 1]} : vector<8x128xf32> to vector<8x32xf32>
    %174 = arith.negf %173 : vector<8x32xf32>
    %175 = math.exp %174 : vector<8x32xf32>
    %cst_65 = arith.constant 1.000000e+00 : f32
    %176 = vector.broadcast %cst_65 : f32 to vector<8x32xf32>
    %177 = arith.addf %176, %175 : vector<8x32xf32>
    %178 = arith.divf %176, %177 : vector<8x32xf32>
    %c0_66 = arith.constant 0 : index
    %c0_67 = arith.constant 0 : index
    %179 = vector.load %arg9[%c0_66, %c0_67] : memref<8x32xf32, #tpu.memory_space<vmem>>, vector<8x32xf32>
    %180 = arith.mulf %170, %179 : vector<8x32xf32>
    %181 = arith.mulf %164, %172 : vector<8x32xf32>
    %182 = arith.addf %180, %181 : vector<8x32xf32>
    %183 = math.tanh %182 : vector<8x32xf32>
    %184 = arith.mulf %178, %183 : vector<8x32xf32>
    %c0_68 = arith.constant 0 : index
    %c0_69 = arith.constant 0 : index
    %185 = vector.load %arg9[%c0_68, %c0_69] : memref<8x32xf32, #tpu.memory_space<vmem>>, vector<8x32xf32>
    tpu.vector_store %arg9[%c0_68, %c0_69], %182 {strides = array<i32>} : memref<8x32xf32, #tpu.memory_space<vmem>>, vector<8x32xf32>,
    %c0_70 = arith.constant 0 : index
    %c0_71 = arith.constant 0 : index
    %186 = vector.load %arg8[%c0_70, %c0_71] : memref<8x32xf32, #tpu.memory_space<vmem>>, vector<8x32xf32>
    tpu.vector_store %arg8[%c0_70, %c0_71], %184 {strides = array<i32>} : memref<8x32xf32, #tpu.memory_space<vmem>>, vector<8x32xf32>,
    %c24 = arith.constant 24 : index
    %c0_72 = arith.constant 0 : index
    %187 = vector.load %arg10[%c24, %c0_72] : memref<64x32xf32, #tpu.memory_space<vmem>>, vector<8x32xf32>
    tpu.vector_store %arg10[%c24, %c0_72], %184 {strides = array<i32>} : memref<64x32xf32, #tpu.memory_space<vmem>>, vector<8x32xf32>,
    %c0_73 = arith.constant 0 : index
    %c0_74 = arith.constant 0 : index
    %188 = vector.load %arg8[%c0_73, %c0_74] : memref<8x32xf32, #tpu.memory_space<vmem>>, vector<8x32xf32>
    %189 = vector.extract_strided_slice %7 {offsets = [16, 0], sizes = [8, 128], strides = [1, 1]} : vector<64x128xf32> to vector<8x128xf32>
    %190 = vector.broadcast %5 : vector<1x128xf32> to vector<8x128xf32>
    %191 = arith.addf %189, %190 : vector<8x128xf32>
    %192 = arith.truncf %188 : vector<8x32xf32> to vector<8x32xbf16>
    %cst_75 = arith.constant dense<0.000000e+00> : vector<8x128xf32>
    %193 = tpu.matmul %192, %4, %cst_75 {dimension_numbers = #tpu.dot_dimension_numbers<[1], [0], [0], [1], [0, 0, 1, 1], [], []>} : vector<8x32xbf16>, vector<32x128xbf16>, vector<8x128xf32> -> vector<8x128xf32>
    %194 = arith.addf %191, %193 : vector<8x128xf32>
    %195 = vector.extract_strided_slice %194 {offsets = [0, 0], sizes = [8, 32], strides = [1, 1]} : vector<8x128xf32> to vector<8x32xf32>
    %196 = arith.negf %195 : vector<8x32xf32>
    %197 = math.exp %196 : vector<8x32xf32>
    %cst_76 = arith.constant 1.000000e+00 : f32
    %198 = vector.broadcast %cst_76 : f32 to vector<8x32xf32>
    %199 = arith.addf %198, %197 : vector<8x32xf32>
    %200 = arith.divf %198, %199 : vector<8x32xf32>
    %201 = vector.extract_strided_slice %194 {offsets = [0, 32], sizes = [8, 32], strides = [1, 1]} : vector<8x128xf32> to vector<8x32xf32>
    %202 = arith.negf %201 : vector<8x32xf32>
    %203 = math.exp %202 : vector<8x32xf32>
    %cst_77 = arith.constant 1.000000e+00 : f32
    %204 = vector.broadcast %cst_77 : f32 to vector<8x32xf32>
    %205 = arith.addf %204, %203 : vector<8x32xf32>
    %206 = arith.divf %204, %205 : vector<8x32xf32>
    %207 = vector.extract_strided_slice %194 {offsets = [0, 64], sizes = [8, 32], strides = [1, 1]} : vector<8x128xf32> to vector<8x32xf32>
    %208 = math.tanh %207 : vector<8x32xf32>
    %209 = vector.extract_strided_slice %194 {offsets = [0, 96], sizes = [8, 32], strides = [1, 1]} : vector<8x128xf32> to vector<8x32xf32>
    %210 = arith.negf %209 : vector<8x32xf32>
    %211 = math.exp %210 : vector<8x32xf32>
    %cst_78 = arith.constant 1.000000e+00 : f32
    %212 = vector.broadcast %cst_78 : f32 to vector<8x32xf32>
    %213 = arith.addf %212, %211 : vector<8x32xf32>
    %214 = arith.divf %212, %213 : vector<8x32xf32>
    %c0_79 = arith.constant 0 : index
    %c0_80 = arith.constant 0 : index
    %215 = vector.load %arg9[%c0_79, %c0_80] : memref<8x32xf32, #tpu.memory_space<vmem>>, vector<8x32xf32>
    %216 = arith.mulf %206, %215 : vector<8x32xf32>
    %217 = arith.mulf %200, %208 : vector<8x32xf32>
    %218 = arith.addf %216, %217 : vector<8x32xf32>
    %219 = math.tanh %218 : vector<8x32xf32>
    %220 = arith.mulf %214, %219 : vector<8x32xf32>
    %c0_81 = arith.constant 0 : index
    %c0_82 = arith.constant 0 : index
    %221 = vector.load %arg9[%c0_81, %c0_82] : memref<8x32xf32, #tpu.memory_space<vmem>>, vector<8x32xf32>
    tpu.vector_store %arg9[%c0_81, %c0_82], %218 {strides = array<i32>} : memref<8x32xf32, #tpu.memory_space<vmem>>, vector<8x32xf32>,
    %c0_83 = arith.constant 0 : index
    %c0_84 = arith.constant 0 : index
    %222 = vector.load %arg8[%c0_83, %c0_84] : memref<8x32xf32, #tpu.memory_space<vmem>>, vector<8x32xf32>
    tpu.vector_store %arg8[%c0_83, %c0_84], %220 {strides = array<i32>} : memref<8x32xf32, #tpu.memory_space<vmem>>, vector<8x32xf32>,
    %c16 = arith.constant 16 : index
    %c0_85 = arith.constant 0 : index
    %223 = vector.load %arg10[%c16, %c0_85] : memref<64x32xf32, #tpu.memory_space<vmem>>, vector<8x32xf32>
    tpu.vector_store %arg10[%c16, %c0_85], %220 {strides = array<i32>} : memref<64x32xf32, #tpu.memory_space<vmem>>, vector<8x32xf32>,
    %c0_86 = arith.constant 0 : index
    %c0_87 = arith.constant 0 : index
    %224 = vector.load %arg8[%c0_86, %c0_87] : memref<8x32xf32, #tpu.memory_space<vmem>>, vector<8x32xf32>
    %225 = vector.extract_strided_slice %7 {offsets = [8, 0], sizes = [8, 128], strides = [1, 1]} : vector<64x128xf32> to vector<8x128xf32>
    %226 = vector.broadcast %5 : vector<1x128xf32> to vector<8x128xf32>
    %227 = arith.addf %225, %226 : vector<8x128xf32>
    %228 = arith.truncf %224 : vector<8x32xf32> to vector<8x32xbf16>
    %cst_88 = arith.constant dense<0.000000e+00> : vector<8x128xf32>
    %229 = tpu.matmul %228, %4, %cst_88 {dimension_numbers = #tpu.dot_dimension_numbers<[1], [0], [0], [1], [0, 0, 1, 1], [], []>} : vector<8x32xbf16>, vector<32x128xbf16>, vector<8x128xf32> -> vector<8x128xf32>
    %230 = arith.addf %227, %229 : vector<8x128xf32>
    %231 = vector.extract_strided_slice %230 {offsets = [0, 0], sizes = [8, 32], strides = [1, 1]} : vector<8x128xf32> to vector<8x32xf32>
    %232 = arith.negf %231 : vector<8x32xf32>
    %233 = math.exp %232 : vector<8x32xf32>
    %cst_89 = arith.constant 1.000000e+00 : f32
    %234 = vector.broadcast %cst_89 : f32 to vector<8x32xf32>
    %235 = arith.addf %234, %233 : vector<8x32xf32>
    %236 = arith.divf %234, %235 : vector<8x32xf32>
    %237 = vector.extract_strided_slice %230 {offsets = [0, 32], sizes = [8, 32], strides = [1, 1]} : vector<8x128xf32> to vector<8x32xf32>
    %238 = arith.negf %237 : vector<8x32xf32>
    %239 = math.exp %238 : vector<8x32xf32>
    %cst_90 = arith.constant 1.000000e+00 : f32
    %240 = vector.broadcast %cst_90 : f32 to vector<8x32xf32>
    %241 = arith.addf %240, %239 : vector<8x32xf32>
    %242 = arith.divf %240, %241 : vector<8x32xf32>
    %243 = vector.extract_strided_slice %230 {offsets = [0, 64], sizes = [8, 32], strides = [1, 1]} : vector<8x128xf32> to vector<8x32xf32>
    %244 = math.tanh %243 : vector<8x32xf32>
    %245 = vector.extract_strided_slice %230 {offsets = [0, 96], sizes = [8, 32], strides = [1, 1]} : vector<8x128xf32> to vector<8x32xf32>
    %246 = arith.negf %245 : vector<8x32xf32>
    %247 = math.exp %246 : vector<8x32xf32>
    %cst_91 = arith.constant 1.000000e+00 : f32
    %248 = vector.broadcast %cst_91 : f32 to vector<8x32xf32>
    %249 = arith.addf %248, %247 : vector<8x32xf32>
    %250 = arith.divf %248, %249 : vector<8x32xf32>
    %c0_92 = arith.constant 0 : index
    %c0_93 = arith.constant 0 : index
    %251 = vector.load %arg9[%c0_92, %c0_93] : memref<8x32xf32, #tpu.memory_space<vmem>>, vector<8x32xf32>
    %252 = arith.mulf %242, %251 : vector<8x32xf32>
    %253 = arith.mulf %236, %244 : vector<8x32xf32>
    %254 = arith.addf %252, %253 : vector<8x32xf32>
    %255 = math.tanh %254 : vector<8x32xf32>
    %256 = arith.mulf %250, %255 : vector<8x32xf32>
    %c0_94 = arith.constant 0 : index
    %c0_95 = arith.constant 0 : index
    %257 = vector.load %arg9[%c0_94, %c0_95] : memref<8x32xf32, #tpu.memory_space<vmem>>, vector<8x32xf32>
    tpu.vector_store %arg9[%c0_94, %c0_95], %254 {strides = array<i32>} : memref<8x32xf32, #tpu.memory_space<vmem>>, vector<8x32xf32>,
    %c0_96 = arith.constant 0 : index
    %c0_97 = arith.constant 0 : index
    %258 = vector.load %arg8[%c0_96, %c0_97] : memref<8x32xf32, #tpu.memory_space<vmem>>, vector<8x32xf32>
    tpu.vector_store %arg8[%c0_96, %c0_97], %256 {strides = array<i32>} : memref<8x32xf32, #tpu.memory_space<vmem>>, vector<8x32xf32>,
    %c8 = arith.constant 8 : index
    %c0_98 = arith.constant 0 : index
    %259 = vector.load %arg10[%c8, %c0_98] : memref<64x32xf32, #tpu.memory_space<vmem>>, vector<8x32xf32>
    tpu.vector_store %arg10[%c8, %c0_98], %256 {strides = array<i32>} : memref<64x32xf32, #tpu.memory_space<vmem>>, vector<8x32xf32>,
    %c0_99 = arith.constant 0 : index
    %c0_100 = arith.constant 0 : index
    %260 = vector.load %arg8[%c0_99, %c0_100] : memref<8x32xf32, #tpu.memory_space<vmem>>, vector<8x32xf32>
    %261 = vector.extract_strided_slice %7 {offsets = [0, 0], sizes = [8, 128], strides = [1, 1]} : vector<64x128xf32> to vector<8x128xf32>
    %262 = vector.broadcast %5 : vector<1x128xf32> to vector<8x128xf32>
    %263 = arith.addf %261, %262 : vector<8x128xf32>
    %264 = arith.truncf %260 : vector<8x32xf32> to vector<8x32xbf16>
    %cst_101 = arith.constant dense<0.000000e+00> : vector<8x128xf32>
    %265 = tpu.matmul %264, %4, %cst_101 {dimension_numbers = #tpu.dot_dimension_numbers<[1], [0], [0], [1], [0, 0, 1, 1], [], []>} : vector<8x32xbf16>, vector<32x128xbf16>, vector<8x128xf32> -> vector<8x128xf32>
    %266 = arith.addf %263, %265 : vector<8x128xf32>
    %267 = vector.extract_strided_slice %266 {offsets = [0, 0], sizes = [8, 32], strides = [1, 1]} : vector<8x128xf32> to vector<8x32xf32>
    %268 = arith.negf %267 : vector<8x32xf32>
    %269 = math.exp %268 : vector<8x32xf32>
    %cst_102 = arith.constant 1.000000e+00 : f32
    %270 = vector.broadcast %cst_102 : f32 to vector<8x32xf32>
    %271 = arith.addf %270, %269 : vector<8x32xf32>
    %272 = arith.divf %270, %271 : vector<8x32xf32>
    %273 = vector.extract_strided_slice %266 {offsets = [0, 32], sizes = [8, 32], strides = [1, 1]} : vector<8x128xf32> to vector<8x32xf32>
    %274 = arith.negf %273 : vector<8x32xf32>
    %275 = math.exp %274 : vector<8x32xf32>
    %cst_103 = arith.constant 1.000000e+00 : f32
    %276 = vector.broadcast %cst_103 : f32 to vector<8x32xf32>
    %277 = arith.addf %276, %275 : vector<8x32xf32>
    %278 = arith.divf %276, %277 : vector<8x32xf32>
    %279 = vector.extract_strided_slice %266 {offsets = [0, 64], sizes = [8, 32], strides = [1, 1]} : vector<8x128xf32> to vector<8x32xf32>
    %280 = math.tanh %279 : vector<8x32xf32>
    %281 = vector.extract_strided_slice %266 {offsets = [0, 96], sizes = [8, 32], strides = [1, 1]} : vector<8x128xf32> to vector<8x32xf32>
    %282 = arith.negf %281 : vector<8x32xf32>
    %283 = math.exp %282 : vector<8x32xf32>
    %cst_104 = arith.constant 1.000000e+00 : f32
    %284 = vector.broadcast %cst_104 : f32 to vector<8x32xf32>
    %285 = arith.addf %284, %283 : vector<8x32xf32>
    %286 = arith.divf %284, %285 : vector<8x32xf32>
    %c0_105 = arith.constant 0 : index
    %c0_106 = arith.constant 0 : index
    %287 = vector.load %arg9[%c0_105, %c0_106] : memref<8x32xf32, #tpu.memory_space<vmem>>, vector<8x32xf32>
    %288 = arith.mulf %278, %287 : vector<8x32xf32>
    %289 = arith.mulf %272, %280 : vector<8x32xf32>
    %290 = arith.addf %288, %289 : vector<8x32xf32>
    %291 = math.tanh %290 : vector<8x32xf32>
    %292 = arith.mulf %286, %291 : vector<8x32xf32>
    %c0_107 = arith.constant 0 : index
    %c0_108 = arith.constant 0 : index
    %293 = vector.load %arg9[%c0_107, %c0_108] : memref<8x32xf32, #tpu.memory_space<vmem>>, vector<8x32xf32>
    tpu.vector_store %arg9[%c0_107, %c0_108], %290 {strides = array<i32>} : memref<8x32xf32, #tpu.memory_space<vmem>>, vector<8x32xf32>,
    %c0_109 = arith.constant 0 : index
    %c0_110 = arith.constant 0 : index
    %294 = vector.load %arg8[%c0_109, %c0_110] : memref<8x32xf32, #tpu.memory_space<vmem>>, vector<8x32xf32>
    tpu.vector_store %arg8[%c0_109, %c0_110], %292 {strides = array<i32>} : memref<8x32xf32, #tpu.memory_space<vmem>>, vector<8x32xf32>,
    %c0_111 = arith.constant 0 : index
    %c0_112 = arith.constant 0 : index
    %295 = vector.load %arg10[%c0_111, %c0_112] : memref<64x32xf32, #tpu.memory_space<vmem>>, vector<8x32xf32>
    tpu.vector_store %arg10[%c0_111, %c0_112], %292 {strides = array<i32>} : memref<64x32xf32, #tpu.memory_space<vmem>>, vector<8x32xf32>,
    %c0_113 = arith.constant 0 : index
    %c0_114 = arith.constant 0 : index
    %296 = vector.load %arg10[%c0_113, %c0_114] : memref<64x32xf32, #tpu.memory_space<vmem>>, vector<64x32xf32>
    %297 = arith.truncf %296 : vector<64x32xf32> to vector<64x32xbf16>
    %c0_115 = arith.constant 0 : index
    %c0_116 = arith.constant 0 : index
    %298 = vector.load %arg7[%c0_115, %c0_116] : memref<64x32xbf16, #tpu.memory_space<vmem>>, vector<64x32xbf16>
    tpu.vector_store %arg7[%c0_115, %c0_116], %297 {strides = array<i32>} : memref<64x32xbf16, #tpu.memory_space<vmem>>, vector<64x32xbf16>,
    return
  }
  func.func @transform_0(%arg0: i32) -> (i32, i32) {
    %c1_i32 = arith.constant 1 : i32
    %0 = arith.subi %c1_i32, %arg0 : i32
    %c0_i32 = arith.constant 0 : i32
    %c0_i32_0 = arith.constant 0 : i32
    return %0, %c0_i32 : i32, i32
  }
  func.func @transform_1(%arg0: i32) -> (i32, i32) {
    %c0_i32 = arith.constant 0 : i32
    %c0_i32_0 = arith.constant 0 : i32
    %c0_i32_1 = arith.constant 0 : i32
    return %c0_i32, %c0_i32_0 : i32, i32
  }
  func.func @transform_2(%arg0: i32) -> (i32, i32) {
    %c0_i32 = arith.constant 0 : i32
    %c0_i32_0 = arith.constant 0 : i32
    %c0_i32_1 = arith.constant 0 : i32
    return %c0_i32, %c0_i32_0 : i32, i32
  }
  func.func @transform_3(%arg0: i32) -> (i32, i32) {
    %c0_i32 = arith.constant 0 : i32
    %c0_i32_0 = arith.constant 0 : i32
    %c0_i32_1 = arith.constant 0 : i32
    return %c0_i32, %c0_i32_0 : i32, i32
  }
  func.func @transform_4(%arg0: i32) -> (i32, i32) {
    %c0_i32 = arith.constant 0 : i32
    %c0_i32_0 = arith.constant 0 : i32
    %c0_i32_1 = arith.constant 0 : i32
    return %c0_i32, %c0_i32_0 : i32, i32
  }
  func.func @transform_5(%arg0: i32) -> (i32, i32) {
    %c0_i32 = arith.constant 0 : i32
    %c0_i32_0 = arith.constant 0 : i32
    %c0_i32_1 = arith.constant 0 : i32
    return %c0_i32, %c0_i32_0 : i32, i32
  }
  func.func @transform_6(%arg0: i32) -> (i32, i32) {
    %c1_i32 = arith.constant 1 : i32
    %0 = arith.subi %c1_i32, %arg0 : i32
    %c0_i32 = arith.constant 0 : i32
    %c0_i32_0 = arith.constant 0 : i32
    return %0, %c0_i32 : i32, i32
  }
}

module attributes {stable_mosaic.version = 11 : i64} {
  func.func @lstm_dir_kernel(%arg0: i32, %arg1: memref<64x10xbf16, #tpu.memory_space<vmem>>, %arg2: memref<10x128xbf16, #tpu.memory_space<vmem>>, %arg3: memref<32x128xbf16, #tpu.memory_space<vmem>>, %arg4: memref<1x128xf32, #tpu.memory_space<vmem>>, %arg5: memref<8x32xf32, #tpu.memory_space<vmem>>, %arg6: memref<8x32xf32, #tpu.memory_space<vmem>>, %arg7: memref<64x32xbf16, #tpu.memory_space<vmem>>, %arg8: memref<8x32xf32, #tpu.memory_space<vmem>>, %arg9: memref<8x32xf32, #tpu.memory_space<vmem>>, %arg10: memref<64x32xf32, #tpu.memory_space<vmem>>) attributes {dimension_semantics = [#tpu.dimension_semantics<arbitrary>], iteration_bounds = array<i64: 2>, scalar_prefetch = 0 : i64, scratch_operands = 3 : i64, tpu.core_type = #tpu.core_type<tc>, window_params = [{transform_indices = @transform_0, window_bounds = array<i64: 64, 10>}, {pipeline_mode = #tpu.pipeline_mode<synchronous>, transform_indices = @transform_1, window_bounds = array<i64: 10, 128>}, {pipeline_mode = #tpu.pipeline_mode<synchronous>, transform_indices = @transform_2, window_bounds = array<i64: 32, 128>}, {pipeline_mode = #tpu.pipeline_mode<synchronous>, transform_indices = @transform_3, window_bounds = array<i64: 1, 128>}, {pipeline_mode = #tpu.pipeline_mode<synchronous>, transform_indices = @transform_4, window_bounds = array<i64: 8, 32>}, {pipeline_mode = #tpu.pipeline_mode<synchronous>, transform_indices = @transform_5, window_bounds = array<i64: 8, 32>}, {transform_indices = @transform_6, window_bounds = array<i64: 64, 32>}]} {
    %c0_i32 = arith.constant 0 : i32
    %0 = arith.cmpi eq, %arg0, %c0_i32 : i32
    %1 = arith.extui %0 : i1 to i32
    %c0_i32_0 = arith.constant 0 : i32
    %2 = arith.cmpi ne, %1, %c0_i32_0 : i32
    scf.if %2 {
      %c0_117 = arith.constant 0 : index
      %c0_118 = arith.constant 0 : index
      %299 = vector.load %arg5[%c0_117, %c0_118] : memref<8x32xf32, #tpu.memory_space<vmem>>, vector<8x32xf32>
      %c0_119 = arith.constant 0 : index
      %c0_120 = arith.constant 0 : index
      %300 = vector.load %arg8[%c0_119, %c0_120] : memref<8x32xf32, #tpu.memory_space<vmem>>, vector<8x32xf32>
      tpu.vector_store %arg8[%c0_119, %c0_120], %299 {strides = array<i32>} : memref<8x32xf32, #tpu.memory_space<vmem>>, vector<8x32xf32>,
      %c0_121 = arith.constant 0 : index
      %c0_122 = arith.constant 0 : index
      %301 = vector.load %arg6[%c0_121, %c0_122] : memref<8x32xf32, #tpu.memory_space<vmem>>, vector<8x32xf32>
      %c0_123 = arith.constant 0 : index
      %c0_124 = arith.constant 0 : index
      %302 = vector.load %arg9[%c0_123, %c0_124] : memref<8x32xf32, #tpu.memory_space<vmem>>, vector<8x32xf32>
      tpu.vector_store %arg9[%c0_123, %c0_124], %301 {strides = array<i32>} : memref<8x32xf32, #tpu.memory_space<vmem>>, vector<8x32xf32>,
    } else {
    }
    %c0 = arith.constant 0 : index
    %c0_1 = arith.constant 0 : index
    %3 = vector.load %arg2[%c0, %c0_1] : memref<10x128xbf16, #tpu.memory_space<vmem>>, vector<10x128xbf16>
    %c0_2 = arith.constant 0 : index
    %c0_3 = arith.constant 0 : index
    %4 = vector.load %arg3[%c0_2, %c0_3] : memref<32x128xbf16, #tpu.memory_space<vmem>>, vector<32x128xbf16>
    %c0_4 = arith.constant 0 : index
    %c0_5 = arith.constant 0 : index
    %5 = vector.load %arg4[%c0_4, %c0_5] : memref<1x128xf32, #tpu.memory_space<vmem>>, vector<1x128xf32>
    %c0_6 = arith.constant 0 : index
    %c0_7 = arith.constant 0 : index
    %6 = vector.load %arg1[%c0_6, %c0_7] : memref<64x10xbf16, #tpu.memory_space<vmem>>, vector<64x10xbf16>
    %cst = arith.constant dense<0.000000e+00> : vector<64x128xf32>
    %7 = tpu.matmul %6, %3, %cst {dimension_numbers = #tpu.dot_dimension_numbers<[1], [0], [0], [1], [0, 0, 1, 1], [], []>} : vector<64x10xbf16>, vector<10x128xbf16>, vector<64x128xf32> -> vector<64x128xf32>
    %c0_8 = arith.constant 0 : index
    %c0_9 = arith.constant 0 : index
    %8 = vector.load %arg8[%c0_8, %c0_9] : memref<8x32xf32, #tpu.memory_space<vmem>>, vector<8x32xf32>
    %9 = vector.extract_strided_slice %7 {offsets = [0, 0], sizes = [8, 128], strides = [1, 1]} : vector<64x128xf32> to vector<8x128xf32>
    %10 = vector.broadcast %5 : vector<1x128xf32> to vector<8x128xf32>
    %11 = arith.addf %9, %10 : vector<8x128xf32>
    %12 = arith.truncf %8 : vector<8x32xf32> to vector<8x32xbf16>
    %cst_10 = arith.constant dense<0.000000e+00> : vector<8x128xf32>
    %13 = tpu.matmul %12, %4, %cst_10 {dimension_numbers = #tpu.dot_dimension_numbers<[1], [0], [0], [1], [0, 0, 1, 1], [], []>} : vector<8x32xbf16>, vector<32x128xbf16>, vector<8x128xf32> -> vector<8x128xf32>
    %14 = arith.addf %11, %13 : vector<8x128xf32>
    %15 = vector.extract_strided_slice %14 {offsets = [0, 0], sizes = [8, 32], strides = [1, 1]} : vector<8x128xf32> to vector<8x32xf32>
    %16 = arith.negf %15 : vector<8x32xf32>
    %17 = math.exp %16 : vector<8x32xf32>
    %cst_11 = arith.constant 1.000000e+00 : f32
    %18 = vector.broadcast %cst_11 : f32 to vector<8x32xf32>
    %19 = arith.addf %18, %17 : vector<8x32xf32>
    %20 = arith.divf %18, %19 : vector<8x32xf32>
    %21 = vector.extract_strided_slice %14 {offsets = [0, 32], sizes = [8, 32], strides = [1, 1]} : vector<8x128xf32> to vector<8x32xf32>
    %22 = arith.negf %21 : vector<8x32xf32>
    %23 = math.exp %22 : vector<8x32xf32>
    %cst_12 = arith.constant 1.000000e+00 : f32
    %24 = vector.broadcast %cst_12 : f32 to vector<8x32xf32>
    %25 = arith.addf %24, %23 : vector<8x32xf32>
    %26 = arith.divf %24, %25 : vector<8x32xf32>
    %27 = vector.extract_strided_slice %14 {offsets = [0, 64], sizes = [8, 32], strides = [1, 1]} : vector<8x128xf32> to vector<8x32xf32>
    %28 = math.tanh %27 : vector<8x32xf32>
    %29 = vector.extract_strided_slice %14 {offsets = [0, 96], sizes = [8, 32], strides = [1, 1]} : vector<8x128xf32> to vector<8x32xf32>
    %30 = arith.negf %29 : vector<8x32xf32>
    %31 = math.exp %30 : vector<8x32xf32>
    %cst_13 = arith.constant 1.000000e+00 : f32
    %32 = vector.broadcast %cst_13 : f32 to vector<8x32xf32>
    %33 = arith.addf %32, %31 : vector<8x32xf32>
    %34 = arith.divf %32, %33 : vector<8x32xf32>
    %c0_14 = arith.constant 0 : index
    %c0_15 = arith.constant 0 : index
    %35 = vector.load %arg9[%c0_14, %c0_15] : memref<8x32xf32, #tpu.memory_space<vmem>>, vector<8x32xf32>
    %36 = arith.mulf %26, %35 : vector<8x32xf32>
    %37 = arith.mulf %20, %28 : vector<8x32xf32>
    %38 = arith.addf %36, %37 : vector<8x32xf32>
    %39 = math.tanh %38 : vector<8x32xf32>
    %40 = arith.mulf %34, %39 : vector<8x32xf32>
    %c0_16 = arith.constant 0 : index
    %c0_17 = arith.constant 0 : index
    %41 = vector.load %arg9[%c0_16, %c0_17] : memref<8x32xf32, #tpu.memory_space<vmem>>, vector<8x32xf32>
    tpu.vector_store %arg9[%c0_16, %c0_17], %38 {strides = array<i32>} : memref<8x32xf32, #tpu.memory_space<vmem>>, vector<8x32xf32>,
    %c0_18 = arith.constant 0 : index
    %c0_19 = arith.constant 0 : index
    %42 = vector.load %arg8[%c0_18, %c0_19] : memref<8x32xf32, #tpu.memory_space<vmem>>, vector<8x32xf32>
    tpu.vector_store %arg8[%c0_18, %c0_19], %40 {strides = array<i32>} : memref<8x32xf32, #tpu.memory_space<vmem>>, vector<8x32xf32>,
    %c0_20 = arith.constant 0 : index
    %c0_21 = arith.constant 0 : index
    %43 = vector.load %arg10[%c0_20, %c0_21] : memref<64x32xf32, #tpu.memory_space<vmem>>, vector<8x32xf32>
    tpu.vector_store %arg10[%c0_20, %c0_21], %40 {strides = array<i32>} : memref<64x32xf32, #tpu.memory_space<vmem>>, vector<8x32xf32>,
    %c0_22 = arith.constant 0 : index
    %c0_23 = arith.constant 0 : index
    %44 = vector.load %arg8[%c0_22, %c0_23] : memref<8x32xf32, #tpu.memory_space<vmem>>, vector<8x32xf32>
    %45 = vector.extract_strided_slice %7 {offsets = [8, 0], sizes = [8, 128], strides = [1, 1]} : vector<64x128xf32> to vector<8x128xf32>
    %46 = vector.broadcast %5 : vector<1x128xf32> to vector<8x128xf32>
    %47 = arith.addf %45, %46 : vector<8x128xf32>
    %48 = arith.truncf %44 : vector<8x32xf32> to vector<8x32xbf16>
    %cst_24 = arith.constant dense<0.000000e+00> : vector<8x128xf32>
    %49 = tpu.matmul %48, %4, %cst_24 {dimension_numbers = #tpu.dot_dimension_numbers<[1], [0], [0], [1], [0, 0, 1, 1], [], []>} : vector<8x32xbf16>, vector<32x128xbf16>, vector<8x128xf32> -> vector<8x128xf32>
    %50 = arith.addf %47, %49 : vector<8x128xf32>
    %51 = vector.extract_strided_slice %50 {offsets = [0, 0], sizes = [8, 32], strides = [1, 1]} : vector<8x128xf32> to vector<8x32xf32>
    %52 = arith.negf %51 : vector<8x32xf32>
    %53 = math.exp %52 : vector<8x32xf32>
    %cst_25 = arith.constant 1.000000e+00 : f32
    %54 = vector.broadcast %cst_25 : f32 to vector<8x32xf32>
    %55 = arith.addf %54, %53 : vector<8x32xf32>
    %56 = arith.divf %54, %55 : vector<8x32xf32>
    %57 = vector.extract_strided_slice %50 {offsets = [0, 32], sizes = [8, 32], strides = [1, 1]} : vector<8x128xf32> to vector<8x32xf32>
    %58 = arith.negf %57 : vector<8x32xf32>
    %59 = math.exp %58 : vector<8x32xf32>
    %cst_26 = arith.constant 1.000000e+00 : f32
    %60 = vector.broadcast %cst_26 : f32 to vector<8x32xf32>
    %61 = arith.addf %60, %59 : vector<8x32xf32>
    %62 = arith.divf %60, %61 : vector<8x32xf32>
    %63 = vector.extract_strided_slice %50 {offsets = [0, 64], sizes = [8, 32], strides = [1, 1]} : vector<8x128xf32> to vector<8x32xf32>
    %64 = math.tanh %63 : vector<8x32xf32>
    %65 = vector.extract_strided_slice %50 {offsets = [0, 96], sizes = [8, 32], strides = [1, 1]} : vector<8x128xf32> to vector<8x32xf32>
    %66 = arith.negf %65 : vector<8x32xf32>
    %67 = math.exp %66 : vector<8x32xf32>
    %cst_27 = arith.constant 1.000000e+00 : f32
    %68 = vector.broadcast %cst_27 : f32 to vector<8x32xf32>
    %69 = arith.addf %68, %67 : vector<8x32xf32>
    %70 = arith.divf %68, %69 : vector<8x32xf32>
    %c0_28 = arith.constant 0 : index
    %c0_29 = arith.constant 0 : index
    %71 = vector.load %arg9[%c0_28, %c0_29] : memref<8x32xf32, #tpu.memory_space<vmem>>, vector<8x32xf32>
    %72 = arith.mulf %62, %71 : vector<8x32xf32>
    %73 = arith.mulf %56, %64 : vector<8x32xf32>
    %74 = arith.addf %72, %73 : vector<8x32xf32>
    %75 = math.tanh %74 : vector<8x32xf32>
    %76 = arith.mulf %70, %75 : vector<8x32xf32>
    %c0_30 = arith.constant 0 : index
    %c0_31 = arith.constant 0 : index
    %77 = vector.load %arg9[%c0_30, %c0_31] : memref<8x32xf32, #tpu.memory_space<vmem>>, vector<8x32xf32>
    tpu.vector_store %arg9[%c0_30, %c0_31], %74 {strides = array<i32>} : memref<8x32xf32, #tpu.memory_space<vmem>>, vector<8x32xf32>,
    %c0_32 = arith.constant 0 : index
    %c0_33 = arith.constant 0 : index
    %78 = vector.load %arg8[%c0_32, %c0_33] : memref<8x32xf32, #tpu.memory_space<vmem>>, vector<8x32xf32>
    tpu.vector_store %arg8[%c0_32, %c0_33], %76 {strides = array<i32>} : memref<8x32xf32, #tpu.memory_space<vmem>>, vector<8x32xf32>,
    %c8 = arith.constant 8 : index
    %c0_34 = arith.constant 0 : index
    %79 = vector.load %arg10[%c8, %c0_34] : memref<64x32xf32, #tpu.memory_space<vmem>>, vector<8x32xf32>
    tpu.vector_store %arg10[%c8, %c0_34], %76 {strides = array<i32>} : memref<64x32xf32, #tpu.memory_space<vmem>>, vector<8x32xf32>,
    %c0_35 = arith.constant 0 : index
    %c0_36 = arith.constant 0 : index
    %80 = vector.load %arg8[%c0_35, %c0_36] : memref<8x32xf32, #tpu.memory_space<vmem>>, vector<8x32xf32>
    %81 = vector.extract_strided_slice %7 {offsets = [16, 0], sizes = [8, 128], strides = [1, 1]} : vector<64x128xf32> to vector<8x128xf32>
    %82 = vector.broadcast %5 : vector<1x128xf32> to vector<8x128xf32>
    %83 = arith.addf %81, %82 : vector<8x128xf32>
    %84 = arith.truncf %80 : vector<8x32xf32> to vector<8x32xbf16>
    %cst_37 = arith.constant dense<0.000000e+00> : vector<8x128xf32>
    %85 = tpu.matmul %84, %4, %cst_37 {dimension_numbers = #tpu.dot_dimension_numbers<[1], [0], [0], [1], [0, 0, 1, 1], [], []>} : vector<8x32xbf16>, vector<32x128xbf16>, vector<8x128xf32> -> vector<8x128xf32>
    %86 = arith.addf %83, %85 : vector<8x128xf32>
    %87 = vector.extract_strided_slice %86 {offsets = [0, 0], sizes = [8, 32], strides = [1, 1]} : vector<8x128xf32> to vector<8x32xf32>
    %88 = arith.negf %87 : vector<8x32xf32>
    %89 = math.exp %88 : vector<8x32xf32>
    %cst_38 = arith.constant 1.000000e+00 : f32
    %90 = vector.broadcast %cst_38 : f32 to vector<8x32xf32>
    %91 = arith.addf %90, %89 : vector<8x32xf32>
    %92 = arith.divf %90, %91 : vector<8x32xf32>
    %93 = vector.extract_strided_slice %86 {offsets = [0, 32], sizes = [8, 32], strides = [1, 1]} : vector<8x128xf32> to vector<8x32xf32>
    %94 = arith.negf %93 : vector<8x32xf32>
    %95 = math.exp %94 : vector<8x32xf32>
    %cst_39 = arith.constant 1.000000e+00 : f32
    %96 = vector.broadcast %cst_39 : f32 to vector<8x32xf32>
    %97 = arith.addf %96, %95 : vector<8x32xf32>
    %98 = arith.divf %96, %97 : vector<8x32xf32>
    %99 = vector.extract_strided_slice %86 {offsets = [0, 64], sizes = [8, 32], strides = [1, 1]} : vector<8x128xf32> to vector<8x32xf32>
    %100 = math.tanh %99 : vector<8x32xf32>
    %101 = vector.extract_strided_slice %86 {offsets = [0, 96], sizes = [8, 32], strides = [1, 1]} : vector<8x128xf32> to vector<8x32xf32>
    %102 = arith.negf %101 : vector<8x32xf32>
    %103 = math.exp %102 : vector<8x32xf32>
    %cst_40 = arith.constant 1.000000e+00 : f32
    %104 = vector.broadcast %cst_40 : f32 to vector<8x32xf32>
    %105 = arith.addf %104, %103 : vector<8x32xf32>
    %106 = arith.divf %104, %105 : vector<8x32xf32>
    %c0_41 = arith.constant 0 : index
    %c0_42 = arith.constant 0 : index
    %107 = vector.load %arg9[%c0_41, %c0_42] : memref<8x32xf32, #tpu.memory_space<vmem>>, vector<8x32xf32>
    %108 = arith.mulf %98, %107 : vector<8x32xf32>
    %109 = arith.mulf %92, %100 : vector<8x32xf32>
    %110 = arith.addf %108, %109 : vector<8x32xf32>
    %111 = math.tanh %110 : vector<8x32xf32>
    %112 = arith.mulf %106, %111 : vector<8x32xf32>
    %c0_43 = arith.constant 0 : index
    %c0_44 = arith.constant 0 : index
    %113 = vector.load %arg9[%c0_43, %c0_44] : memref<8x32xf32, #tpu.memory_space<vmem>>, vector<8x32xf32>
    tpu.vector_store %arg9[%c0_43, %c0_44], %110 {strides = array<i32>} : memref<8x32xf32, #tpu.memory_space<vmem>>, vector<8x32xf32>,
    %c0_45 = arith.constant 0 : index
    %c0_46 = arith.constant 0 : index
    %114 = vector.load %arg8[%c0_45, %c0_46] : memref<8x32xf32, #tpu.memory_space<vmem>>, vector<8x32xf32>
    tpu.vector_store %arg8[%c0_45, %c0_46], %112 {strides = array<i32>} : memref<8x32xf32, #tpu.memory_space<vmem>>, vector<8x32xf32>,
    %c16 = arith.constant 16 : index
    %c0_47 = arith.constant 0 : index
    %115 = vector.load %arg10[%c16, %c0_47] : memref<64x32xf32, #tpu.memory_space<vmem>>, vector<8x32xf32>
    tpu.vector_store %arg10[%c16, %c0_47], %112 {strides = array<i32>} : memref<64x32xf32, #tpu.memory_space<vmem>>, vector<8x32xf32>,
    %c0_48 = arith.constant 0 : index
    %c0_49 = arith.constant 0 : index
    %116 = vector.load %arg8[%c0_48, %c0_49] : memref<8x32xf32, #tpu.memory_space<vmem>>, vector<8x32xf32>
    %117 = vector.extract_strided_slice %7 {offsets = [24, 0], sizes = [8, 128], strides = [1, 1]} : vector<64x128xf32> to vector<8x128xf32>
    %118 = vector.broadcast %5 : vector<1x128xf32> to vector<8x128xf32>
    %119 = arith.addf %117, %118 : vector<8x128xf32>
    %120 = arith.truncf %116 : vector<8x32xf32> to vector<8x32xbf16>
    %cst_50 = arith.constant dense<0.000000e+00> : vector<8x128xf32>
    %121 = tpu.matmul %120, %4, %cst_50 {dimension_numbers = #tpu.dot_dimension_numbers<[1], [0], [0], [1], [0, 0, 1, 1], [], []>} : vector<8x32xbf16>, vector<32x128xbf16>, vector<8x128xf32> -> vector<8x128xf32>
    %122 = arith.addf %119, %121 : vector<8x128xf32>
    %123 = vector.extract_strided_slice %122 {offsets = [0, 0], sizes = [8, 32], strides = [1, 1]} : vector<8x128xf32> to vector<8x32xf32>
    %124 = arith.negf %123 : vector<8x32xf32>
    %125 = math.exp %124 : vector<8x32xf32>
    %cst_51 = arith.constant 1.000000e+00 : f32
    %126 = vector.broadcast %cst_51 : f32 to vector<8x32xf32>
    %127 = arith.addf %126, %125 : vector<8x32xf32>
    %128 = arith.divf %126, %127 : vector<8x32xf32>
    %129 = vector.extract_strided_slice %122 {offsets = [0, 32], sizes = [8, 32], strides = [1, 1]} : vector<8x128xf32> to vector<8x32xf32>
    %130 = arith.negf %129 : vector<8x32xf32>
    %131 = math.exp %130 : vector<8x32xf32>
    %cst_52 = arith.constant 1.000000e+00 : f32
    %132 = vector.broadcast %cst_52 : f32 to vector<8x32xf32>
    %133 = arith.addf %132, %131 : vector<8x32xf32>
    %134 = arith.divf %132, %133 : vector<8x32xf32>
    %135 = vector.extract_strided_slice %122 {offsets = [0, 64], sizes = [8, 32], strides = [1, 1]} : vector<8x128xf32> to vector<8x32xf32>
    %136 = math.tanh %135 : vector<8x32xf32>
    %137 = vector.extract_strided_slice %122 {offsets = [0, 96], sizes = [8, 32], strides = [1, 1]} : vector<8x128xf32> to vector<8x32xf32>
    %138 = arith.negf %137 : vector<8x32xf32>
    %139 = math.exp %138 : vector<8x32xf32>
    %cst_53 = arith.constant 1.000000e+00 : f32
    %140 = vector.broadcast %cst_53 : f32 to vector<8x32xf32>
    %141 = arith.addf %140, %139 : vector<8x32xf32>
    %142 = arith.divf %140, %141 : vector<8x32xf32>
    %c0_54 = arith.constant 0 : index
    %c0_55 = arith.constant 0 : index
    %143 = vector.load %arg9[%c0_54, %c0_55] : memref<8x32xf32, #tpu.memory_space<vmem>>, vector<8x32xf32>
    %144 = arith.mulf %134, %143 : vector<8x32xf32>
    %145 = arith.mulf %128, %136 : vector<8x32xf32>
    %146 = arith.addf %144, %145 : vector<8x32xf32>
    %147 = math.tanh %146 : vector<8x32xf32>
    %148 = arith.mulf %142, %147 : vector<8x32xf32>
    %c0_56 = arith.constant 0 : index
    %c0_57 = arith.constant 0 : index
    %149 = vector.load %arg9[%c0_56, %c0_57] : memref<8x32xf32, #tpu.memory_space<vmem>>, vector<8x32xf32>
    tpu.vector_store %arg9[%c0_56, %c0_57], %146 {strides = array<i32>} : memref<8x32xf32, #tpu.memory_space<vmem>>, vector<8x32xf32>,
    %c0_58 = arith.constant 0 : index
    %c0_59 = arith.constant 0 : index
    %150 = vector.load %arg8[%c0_58, %c0_59] : memref<8x32xf32, #tpu.memory_space<vmem>>, vector<8x32xf32>
    tpu.vector_store %arg8[%c0_58, %c0_59], %148 {strides = array<i32>} : memref<8x32xf32, #tpu.memory_space<vmem>>, vector<8x32xf32>,
    %c24 = arith.constant 24 : index
    %c0_60 = arith.constant 0 : index
    %151 = vector.load %arg10[%c24, %c0_60] : memref<64x32xf32, #tpu.memory_space<vmem>>, vector<8x32xf32>
    tpu.vector_store %arg10[%c24, %c0_60], %148 {strides = array<i32>} : memref<64x32xf32, #tpu.memory_space<vmem>>, vector<8x32xf32>,
    %c0_61 = arith.constant 0 : index
    %c0_62 = arith.constant 0 : index
    %152 = vector.load %arg8[%c0_61, %c0_62] : memref<8x32xf32, #tpu.memory_space<vmem>>, vector<8x32xf32>
    %153 = vector.extract_strided_slice %7 {offsets = [32, 0], sizes = [8, 128], strides = [1, 1]} : vector<64x128xf32> to vector<8x128xf32>
    %154 = vector.broadcast %5 : vector<1x128xf32> to vector<8x128xf32>
    %155 = arith.addf %153, %154 : vector<8x128xf32>
    %156 = arith.truncf %152 : vector<8x32xf32> to vector<8x32xbf16>
    %cst_63 = arith.constant dense<0.000000e+00> : vector<8x128xf32>
    %157 = tpu.matmul %156, %4, %cst_63 {dimension_numbers = #tpu.dot_dimension_numbers<[1], [0], [0], [1], [0, 0, 1, 1], [], []>} : vector<8x32xbf16>, vector<32x128xbf16>, vector<8x128xf32> -> vector<8x128xf32>
    %158 = arith.addf %155, %157 : vector<8x128xf32>
    %159 = vector.extract_strided_slice %158 {offsets = [0, 0], sizes = [8, 32], strides = [1, 1]} : vector<8x128xf32> to vector<8x32xf32>
    %160 = arith.negf %159 : vector<8x32xf32>
    %161 = math.exp %160 : vector<8x32xf32>
    %cst_64 = arith.constant 1.000000e+00 : f32
    %162 = vector.broadcast %cst_64 : f32 to vector<8x32xf32>
    %163 = arith.addf %162, %161 : vector<8x32xf32>
    %164 = arith.divf %162, %163 : vector<8x32xf32>
    %165 = vector.extract_strided_slice %158 {offsets = [0, 32], sizes = [8, 32], strides = [1, 1]} : vector<8x128xf32> to vector<8x32xf32>
    %166 = arith.negf %165 : vector<8x32xf32>
    %167 = math.exp %166 : vector<8x32xf32>
    %cst_65 = arith.constant 1.000000e+00 : f32
    %168 = vector.broadcast %cst_65 : f32 to vector<8x32xf32>
    %169 = arith.addf %168, %167 : vector<8x32xf32>
    %170 = arith.divf %168, %169 : vector<8x32xf32>
    %171 = vector.extract_strided_slice %158 {offsets = [0, 64], sizes = [8, 32], strides = [1, 1]} : vector<8x128xf32> to vector<8x32xf32>
    %172 = math.tanh %171 : vector<8x32xf32>
    %173 = vector.extract_strided_slice %158 {offsets = [0, 96], sizes = [8, 32], strides = [1, 1]} : vector<8x128xf32> to vector<8x32xf32>
    %174 = arith.negf %173 : vector<8x32xf32>
    %175 = math.exp %174 : vector<8x32xf32>
    %cst_66 = arith.constant 1.000000e+00 : f32
    %176 = vector.broadcast %cst_66 : f32 to vector<8x32xf32>
    %177 = arith.addf %176, %175 : vector<8x32xf32>
    %178 = arith.divf %176, %177 : vector<8x32xf32>
    %c0_67 = arith.constant 0 : index
    %c0_68 = arith.constant 0 : index
    %179 = vector.load %arg9[%c0_67, %c0_68] : memref<8x32xf32, #tpu.memory_space<vmem>>, vector<8x32xf32>
    %180 = arith.mulf %170, %179 : vector<8x32xf32>
    %181 = arith.mulf %164, %172 : vector<8x32xf32>
    %182 = arith.addf %180, %181 : vector<8x32xf32>
    %183 = math.tanh %182 : vector<8x32xf32>
    %184 = arith.mulf %178, %183 : vector<8x32xf32>
    %c0_69 = arith.constant 0 : index
    %c0_70 = arith.constant 0 : index
    %185 = vector.load %arg9[%c0_69, %c0_70] : memref<8x32xf32, #tpu.memory_space<vmem>>, vector<8x32xf32>
    tpu.vector_store %arg9[%c0_69, %c0_70], %182 {strides = array<i32>} : memref<8x32xf32, #tpu.memory_space<vmem>>, vector<8x32xf32>,
    %c0_71 = arith.constant 0 : index
    %c0_72 = arith.constant 0 : index
    %186 = vector.load %arg8[%c0_71, %c0_72] : memref<8x32xf32, #tpu.memory_space<vmem>>, vector<8x32xf32>
    tpu.vector_store %arg8[%c0_71, %c0_72], %184 {strides = array<i32>} : memref<8x32xf32, #tpu.memory_space<vmem>>, vector<8x32xf32>,
    %c32 = arith.constant 32 : index
    %c0_73 = arith.constant 0 : index
    %187 = vector.load %arg10[%c32, %c0_73] : memref<64x32xf32, #tpu.memory_space<vmem>>, vector<8x32xf32>
    tpu.vector_store %arg10[%c32, %c0_73], %184 {strides = array<i32>} : memref<64x32xf32, #tpu.memory_space<vmem>>, vector<8x32xf32>,
    %c0_74 = arith.constant 0 : index
    %c0_75 = arith.constant 0 : index
    %188 = vector.load %arg8[%c0_74, %c0_75] : memref<8x32xf32, #tpu.memory_space<vmem>>, vector<8x32xf32>
    %189 = vector.extract_strided_slice %7 {offsets = [40, 0], sizes = [8, 128], strides = [1, 1]} : vector<64x128xf32> to vector<8x128xf32>
    %190 = vector.broadcast %5 : vector<1x128xf32> to vector<8x128xf32>
    %191 = arith.addf %189, %190 : vector<8x128xf32>
    %192 = arith.truncf %188 : vector<8x32xf32> to vector<8x32xbf16>
    %cst_76 = arith.constant dense<0.000000e+00> : vector<8x128xf32>
    %193 = tpu.matmul %192, %4, %cst_76 {dimension_numbers = #tpu.dot_dimension_numbers<[1], [0], [0], [1], [0, 0, 1, 1], [], []>} : vector<8x32xbf16>, vector<32x128xbf16>, vector<8x128xf32> -> vector<8x128xf32>
    %194 = arith.addf %191, %193 : vector<8x128xf32>
    %195 = vector.extract_strided_slice %194 {offsets = [0, 0], sizes = [8, 32], strides = [1, 1]} : vector<8x128xf32> to vector<8x32xf32>
    %196 = arith.negf %195 : vector<8x32xf32>
    %197 = math.exp %196 : vector<8x32xf32>
    %cst_77 = arith.constant 1.000000e+00 : f32
    %198 = vector.broadcast %cst_77 : f32 to vector<8x32xf32>
    %199 = arith.addf %198, %197 : vector<8x32xf32>
    %200 = arith.divf %198, %199 : vector<8x32xf32>
    %201 = vector.extract_strided_slice %194 {offsets = [0, 32], sizes = [8, 32], strides = [1, 1]} : vector<8x128xf32> to vector<8x32xf32>
    %202 = arith.negf %201 : vector<8x32xf32>
    %203 = math.exp %202 : vector<8x32xf32>
    %cst_78 = arith.constant 1.000000e+00 : f32
    %204 = vector.broadcast %cst_78 : f32 to vector<8x32xf32>
    %205 = arith.addf %204, %203 : vector<8x32xf32>
    %206 = arith.divf %204, %205 : vector<8x32xf32>
    %207 = vector.extract_strided_slice %194 {offsets = [0, 64], sizes = [8, 32], strides = [1, 1]} : vector<8x128xf32> to vector<8x32xf32>
    %208 = math.tanh %207 : vector<8x32xf32>
    %209 = vector.extract_strided_slice %194 {offsets = [0, 96], sizes = [8, 32], strides = [1, 1]} : vector<8x128xf32> to vector<8x32xf32>
    %210 = arith.negf %209 : vector<8x32xf32>
    %211 = math.exp %210 : vector<8x32xf32>
    %cst_79 = arith.constant 1.000000e+00 : f32
    %212 = vector.broadcast %cst_79 : f32 to vector<8x32xf32>
    %213 = arith.addf %212, %211 : vector<8x32xf32>
    %214 = arith.divf %212, %213 : vector<8x32xf32>
    %c0_80 = arith.constant 0 : index
    %c0_81 = arith.constant 0 : index
    %215 = vector.load %arg9[%c0_80, %c0_81] : memref<8x32xf32, #tpu.memory_space<vmem>>, vector<8x32xf32>
    %216 = arith.mulf %206, %215 : vector<8x32xf32>
    %217 = arith.mulf %200, %208 : vector<8x32xf32>
    %218 = arith.addf %216, %217 : vector<8x32xf32>
    %219 = math.tanh %218 : vector<8x32xf32>
    %220 = arith.mulf %214, %219 : vector<8x32xf32>
    %c0_82 = arith.constant 0 : index
    %c0_83 = arith.constant 0 : index
    %221 = vector.load %arg9[%c0_82, %c0_83] : memref<8x32xf32, #tpu.memory_space<vmem>>, vector<8x32xf32>
    tpu.vector_store %arg9[%c0_82, %c0_83], %218 {strides = array<i32>} : memref<8x32xf32, #tpu.memory_space<vmem>>, vector<8x32xf32>,
    %c0_84 = arith.constant 0 : index
    %c0_85 = arith.constant 0 : index
    %222 = vector.load %arg8[%c0_84, %c0_85] : memref<8x32xf32, #tpu.memory_space<vmem>>, vector<8x32xf32>
    tpu.vector_store %arg8[%c0_84, %c0_85], %220 {strides = array<i32>} : memref<8x32xf32, #tpu.memory_space<vmem>>, vector<8x32xf32>,
    %c40 = arith.constant 40 : index
    %c0_86 = arith.constant 0 : index
    %223 = vector.load %arg10[%c40, %c0_86] : memref<64x32xf32, #tpu.memory_space<vmem>>, vector<8x32xf32>
    tpu.vector_store %arg10[%c40, %c0_86], %220 {strides = array<i32>} : memref<64x32xf32, #tpu.memory_space<vmem>>, vector<8x32xf32>,
    %c0_87 = arith.constant 0 : index
    %c0_88 = arith.constant 0 : index
    %224 = vector.load %arg8[%c0_87, %c0_88] : memref<8x32xf32, #tpu.memory_space<vmem>>, vector<8x32xf32>
    %225 = vector.extract_strided_slice %7 {offsets = [48, 0], sizes = [8, 128], strides = [1, 1]} : vector<64x128xf32> to vector<8x128xf32>
    %226 = vector.broadcast %5 : vector<1x128xf32> to vector<8x128xf32>
    %227 = arith.addf %225, %226 : vector<8x128xf32>
    %228 = arith.truncf %224 : vector<8x32xf32> to vector<8x32xbf16>
    %cst_89 = arith.constant dense<0.000000e+00> : vector<8x128xf32>
    %229 = tpu.matmul %228, %4, %cst_89 {dimension_numbers = #tpu.dot_dimension_numbers<[1], [0], [0], [1], [0, 0, 1, 1], [], []>} : vector<8x32xbf16>, vector<32x128xbf16>, vector<8x128xf32> -> vector<8x128xf32>
    %230 = arith.addf %227, %229 : vector<8x128xf32>
    %231 = vector.extract_strided_slice %230 {offsets = [0, 0], sizes = [8, 32], strides = [1, 1]} : vector<8x128xf32> to vector<8x32xf32>
    %232 = arith.negf %231 : vector<8x32xf32>
    %233 = math.exp %232 : vector<8x32xf32>
    %cst_90 = arith.constant 1.000000e+00 : f32
    %234 = vector.broadcast %cst_90 : f32 to vector<8x32xf32>
    %235 = arith.addf %234, %233 : vector<8x32xf32>
    %236 = arith.divf %234, %235 : vector<8x32xf32>
    %237 = vector.extract_strided_slice %230 {offsets = [0, 32], sizes = [8, 32], strides = [1, 1]} : vector<8x128xf32> to vector<8x32xf32>
    %238 = arith.negf %237 : vector<8x32xf32>
    %239 = math.exp %238 : vector<8x32xf32>
    %cst_91 = arith.constant 1.000000e+00 : f32
    %240 = vector.broadcast %cst_91 : f32 to vector<8x32xf32>
    %241 = arith.addf %240, %239 : vector<8x32xf32>
    %242 = arith.divf %240, %241 : vector<8x32xf32>
    %243 = vector.extract_strided_slice %230 {offsets = [0, 64], sizes = [8, 32], strides = [1, 1]} : vector<8x128xf32> to vector<8x32xf32>
    %244 = math.tanh %243 : vector<8x32xf32>
    %245 = vector.extract_strided_slice %230 {offsets = [0, 96], sizes = [8, 32], strides = [1, 1]} : vector<8x128xf32> to vector<8x32xf32>
    %246 = arith.negf %245 : vector<8x32xf32>
    %247 = math.exp %246 : vector<8x32xf32>
    %cst_92 = arith.constant 1.000000e+00 : f32
    %248 = vector.broadcast %cst_92 : f32 to vector<8x32xf32>
    %249 = arith.addf %248, %247 : vector<8x32xf32>
    %250 = arith.divf %248, %249 : vector<8x32xf32>
    %c0_93 = arith.constant 0 : index
    %c0_94 = arith.constant 0 : index
    %251 = vector.load %arg9[%c0_93, %c0_94] : memref<8x32xf32, #tpu.memory_space<vmem>>, vector<8x32xf32>
    %252 = arith.mulf %242, %251 : vector<8x32xf32>
    %253 = arith.mulf %236, %244 : vector<8x32xf32>
    %254 = arith.addf %252, %253 : vector<8x32xf32>
    %255 = math.tanh %254 : vector<8x32xf32>
    %256 = arith.mulf %250, %255 : vector<8x32xf32>
    %c0_95 = arith.constant 0 : index
    %c0_96 = arith.constant 0 : index
    %257 = vector.load %arg9[%c0_95, %c0_96] : memref<8x32xf32, #tpu.memory_space<vmem>>, vector<8x32xf32>
    tpu.vector_store %arg9[%c0_95, %c0_96], %254 {strides = array<i32>} : memref<8x32xf32, #tpu.memory_space<vmem>>, vector<8x32xf32>,
    %c0_97 = arith.constant 0 : index
    %c0_98 = arith.constant 0 : index
    %258 = vector.load %arg8[%c0_97, %c0_98] : memref<8x32xf32, #tpu.memory_space<vmem>>, vector<8x32xf32>
    tpu.vector_store %arg8[%c0_97, %c0_98], %256 {strides = array<i32>} : memref<8x32xf32, #tpu.memory_space<vmem>>, vector<8x32xf32>,
    %c48 = arith.constant 48 : index
    %c0_99 = arith.constant 0 : index
    %259 = vector.load %arg10[%c48, %c0_99] : memref<64x32xf32, #tpu.memory_space<vmem>>, vector<8x32xf32>
    tpu.vector_store %arg10[%c48, %c0_99], %256 {strides = array<i32>} : memref<64x32xf32, #tpu.memory_space<vmem>>, vector<8x32xf32>,
    %c0_100 = arith.constant 0 : index
    %c0_101 = arith.constant 0 : index
    %260 = vector.load %arg8[%c0_100, %c0_101] : memref<8x32xf32, #tpu.memory_space<vmem>>, vector<8x32xf32>
    %261 = vector.extract_strided_slice %7 {offsets = [56, 0], sizes = [8, 128], strides = [1, 1]} : vector<64x128xf32> to vector<8x128xf32>
    %262 = vector.broadcast %5 : vector<1x128xf32> to vector<8x128xf32>
    %263 = arith.addf %261, %262 : vector<8x128xf32>
    %264 = arith.truncf %260 : vector<8x32xf32> to vector<8x32xbf16>
    %cst_102 = arith.constant dense<0.000000e+00> : vector<8x128xf32>
    %265 = tpu.matmul %264, %4, %cst_102 {dimension_numbers = #tpu.dot_dimension_numbers<[1], [0], [0], [1], [0, 0, 1, 1], [], []>} : vector<8x32xbf16>, vector<32x128xbf16>, vector<8x128xf32> -> vector<8x128xf32>
    %266 = arith.addf %263, %265 : vector<8x128xf32>
    %267 = vector.extract_strided_slice %266 {offsets = [0, 0], sizes = [8, 32], strides = [1, 1]} : vector<8x128xf32> to vector<8x32xf32>
    %268 = arith.negf %267 : vector<8x32xf32>
    %269 = math.exp %268 : vector<8x32xf32>
    %cst_103 = arith.constant 1.000000e+00 : f32
    %270 = vector.broadcast %cst_103 : f32 to vector<8x32xf32>
    %271 = arith.addf %270, %269 : vector<8x32xf32>
    %272 = arith.divf %270, %271 : vector<8x32xf32>
    %273 = vector.extract_strided_slice %266 {offsets = [0, 32], sizes = [8, 32], strides = [1, 1]} : vector<8x128xf32> to vector<8x32xf32>
    %274 = arith.negf %273 : vector<8x32xf32>
    %275 = math.exp %274 : vector<8x32xf32>
    %cst_104 = arith.constant 1.000000e+00 : f32
    %276 = vector.broadcast %cst_104 : f32 to vector<8x32xf32>
    %277 = arith.addf %276, %275 : vector<8x32xf32>
    %278 = arith.divf %276, %277 : vector<8x32xf32>
    %279 = vector.extract_strided_slice %266 {offsets = [0, 64], sizes = [8, 32], strides = [1, 1]} : vector<8x128xf32> to vector<8x32xf32>
    %280 = math.tanh %279 : vector<8x32xf32>
    %281 = vector.extract_strided_slice %266 {offsets = [0, 96], sizes = [8, 32], strides = [1, 1]} : vector<8x128xf32> to vector<8x32xf32>
    %282 = arith.negf %281 : vector<8x32xf32>
    %283 = math.exp %282 : vector<8x32xf32>
    %cst_105 = arith.constant 1.000000e+00 : f32
    %284 = vector.broadcast %cst_105 : f32 to vector<8x32xf32>
    %285 = arith.addf %284, %283 : vector<8x32xf32>
    %286 = arith.divf %284, %285 : vector<8x32xf32>
    %c0_106 = arith.constant 0 : index
    %c0_107 = arith.constant 0 : index
    %287 = vector.load %arg9[%c0_106, %c0_107] : memref<8x32xf32, #tpu.memory_space<vmem>>, vector<8x32xf32>
    %288 = arith.mulf %278, %287 : vector<8x32xf32>
    %289 = arith.mulf %272, %280 : vector<8x32xf32>
    %290 = arith.addf %288, %289 : vector<8x32xf32>
    %291 = math.tanh %290 : vector<8x32xf32>
    %292 = arith.mulf %286, %291 : vector<8x32xf32>
    %c0_108 = arith.constant 0 : index
    %c0_109 = arith.constant 0 : index
    %293 = vector.load %arg9[%c0_108, %c0_109] : memref<8x32xf32, #tpu.memory_space<vmem>>, vector<8x32xf32>
    tpu.vector_store %arg9[%c0_108, %c0_109], %290 {strides = array<i32>} : memref<8x32xf32, #tpu.memory_space<vmem>>, vector<8x32xf32>,
    %c0_110 = arith.constant 0 : index
    %c0_111 = arith.constant 0 : index
    %294 = vector.load %arg8[%c0_110, %c0_111] : memref<8x32xf32, #tpu.memory_space<vmem>>, vector<8x32xf32>
    tpu.vector_store %arg8[%c0_110, %c0_111], %292 {strides = array<i32>} : memref<8x32xf32, #tpu.memory_space<vmem>>, vector<8x32xf32>,
    %c56 = arith.constant 56 : index
    %c0_112 = arith.constant 0 : index
    %295 = vector.load %arg10[%c56, %c0_112] : memref<64x32xf32, #tpu.memory_space<vmem>>, vector<8x32xf32>
    tpu.vector_store %arg10[%c56, %c0_112], %292 {strides = array<i32>} : memref<64x32xf32, #tpu.memory_space<vmem>>, vector<8x32xf32>,
    %c0_113 = arith.constant 0 : index
    %c0_114 = arith.constant 0 : index
    %296 = vector.load %arg10[%c0_113, %c0_114] : memref<64x32xf32, #tpu.memory_space<vmem>>, vector<64x32xf32>
    %297 = arith.truncf %296 : vector<64x32xf32> to vector<64x32xbf16>
    %c0_115 = arith.constant 0 : index
    %c0_116 = arith.constant 0 : index
    %298 = vector.load %arg7[%c0_115, %c0_116] : memref<64x32xbf16, #tpu.memory_space<vmem>>, vector<64x32xbf16>
    tpu.vector_store %arg7[%c0_115, %c0_116], %297 {strides = array<i32>} : memref<64x32xbf16, #tpu.memory_space<vmem>>, vector<64x32xbf16>,
    return
  }
  func.func @transform_0(%arg0: i32) -> (i32, i32) {
    %c0_i32 = arith.constant 0 : i32
    %c0_i32_0 = arith.constant 0 : i32
    return %arg0, %c0_i32 : i32, i32
  }
  func.func @transform_1(%arg0: i32) -> (i32, i32) {
    %c0_i32 = arith.constant 0 : i32
    %c0_i32_0 = arith.constant 0 : i32
    %c0_i32_1 = arith.constant 0 : i32
    return %c0_i32, %c0_i32_0 : i32, i32
  }
  func.func @transform_2(%arg0: i32) -> (i32, i32) {
    %c0_i32 = arith.constant 0 : i32
    %c0_i32_0 = arith.constant 0 : i32
    %c0_i32_1 = arith.constant 0 : i32
    return %c0_i32, %c0_i32_0 : i32, i32
  }
  func.func @transform_3(%arg0: i32) -> (i32, i32) {
    %c0_i32 = arith.constant 0 : i32
    %c0_i32_0 = arith.constant 0 : i32
    %c0_i32_1 = arith.constant 0 : i32
    return %c0_i32, %c0_i32_0 : i32, i32
  }
  func.func @transform_4(%arg0: i32) -> (i32, i32) {
    %c0_i32 = arith.constant 0 : i32
    %c0_i32_0 = arith.constant 0 : i32
    %c0_i32_1 = arith.constant 0 : i32
    return %c0_i32, %c0_i32_0 : i32, i32
  }
  func.func @transform_5(%arg0: i32) -> (i32, i32) {
    %c0_i32 = arith.constant 0 : i32
    %c0_i32_0 = arith.constant 0 : i32
    %c0_i32_1 = arith.constant 0 : i32
    return %c0_i32, %c0_i32_0 : i32, i32
  }
  func.func @transform_6(%arg0: i32) -> (i32, i32) {
    %c0_i32 = arith.constant 0 : i32
    %c0_i32_0 = arith.constant 0 : i32
    return %arg0, %c0_i32 : i32, i32
  }
}

module attributes {stable_mosaic.version = 11 : i64} {
  func.func @lstm_dir_kernel(%arg0: i32, %arg1: memref<64x64xbf16, #tpu.memory_space<vmem>>, %arg2: memref<64x128xbf16, #tpu.memory_space<vmem>>, %arg3: memref<32x128xbf16, #tpu.memory_space<vmem>>, %arg4: memref<1x128xf32, #tpu.memory_space<vmem>>, %arg5: memref<8x32xf32, #tpu.memory_space<vmem>>, %arg6: memref<8x32xf32, #tpu.memory_space<vmem>>, %arg7: memref<64x32xbf16, #tpu.memory_space<vmem>>, %arg8: memref<8x32xf32, #tpu.memory_space<vmem>>, %arg9: memref<8x32xf32, #tpu.memory_space<vmem>>, %arg10: memref<64x32xf32, #tpu.memory_space<vmem>>) attributes {dimension_semantics = [#tpu.dimension_semantics<arbitrary>], iteration_bounds = array<i64: 2>, scalar_prefetch = 0 : i64, scratch_operands = 3 : i64, tpu.core_type = #tpu.core_type<tc>, window_params = [{transform_indices = @transform_0, window_bounds = array<i64: 64, 64>}, {pipeline_mode = #tpu.pipeline_mode<synchronous>, transform_indices = @transform_1, window_bounds = array<i64: 64, 128>}, {pipeline_mode = #tpu.pipeline_mode<synchronous>, transform_indices = @transform_2, window_bounds = array<i64: 32, 128>}, {pipeline_mode = #tpu.pipeline_mode<synchronous>, transform_indices = @transform_3, window_bounds = array<i64: 1, 128>}, {pipeline_mode = #tpu.pipeline_mode<synchronous>, transform_indices = @transform_4, window_bounds = array<i64: 8, 32>}, {pipeline_mode = #tpu.pipeline_mode<synchronous>, transform_indices = @transform_5, window_bounds = array<i64: 8, 32>}, {transform_indices = @transform_6, window_bounds = array<i64: 64, 32>}]} {
    %c0_i32 = arith.constant 0 : i32
    %0 = arith.cmpi eq, %arg0, %c0_i32 : i32
    %1 = arith.extui %0 : i1 to i32
    %c0_i32_0 = arith.constant 0 : i32
    %2 = arith.cmpi ne, %1, %c0_i32_0 : i32
    scf.if %2 {
      %c0_117 = arith.constant 0 : index
      %c0_118 = arith.constant 0 : index
      %299 = vector.load %arg5[%c0_117, %c0_118] : memref<8x32xf32, #tpu.memory_space<vmem>>, vector<8x32xf32>
      %c0_119 = arith.constant 0 : index
      %c0_120 = arith.constant 0 : index
      %300 = vector.load %arg8[%c0_119, %c0_120] : memref<8x32xf32, #tpu.memory_space<vmem>>, vector<8x32xf32>
      tpu.vector_store %arg8[%c0_119, %c0_120], %299 {strides = array<i32>} : memref<8x32xf32, #tpu.memory_space<vmem>>, vector<8x32xf32>,
      %c0_121 = arith.constant 0 : index
      %c0_122 = arith.constant 0 : index
      %301 = vector.load %arg6[%c0_121, %c0_122] : memref<8x32xf32, #tpu.memory_space<vmem>>, vector<8x32xf32>
      %c0_123 = arith.constant 0 : index
      %c0_124 = arith.constant 0 : index
      %302 = vector.load %arg9[%c0_123, %c0_124] : memref<8x32xf32, #tpu.memory_space<vmem>>, vector<8x32xf32>
      tpu.vector_store %arg9[%c0_123, %c0_124], %301 {strides = array<i32>} : memref<8x32xf32, #tpu.memory_space<vmem>>, vector<8x32xf32>,
    } else {
    }
    %c0 = arith.constant 0 : index
    %c0_1 = arith.constant 0 : index
    %3 = vector.load %arg2[%c0, %c0_1] : memref<64x128xbf16, #tpu.memory_space<vmem>>, vector<64x128xbf16>
    %c0_2 = arith.constant 0 : index
    %c0_3 = arith.constant 0 : index
    %4 = vector.load %arg3[%c0_2, %c0_3] : memref<32x128xbf16, #tpu.memory_space<vmem>>, vector<32x128xbf16>
    %c0_4 = arith.constant 0 : index
    %c0_5 = arith.constant 0 : index
    %5 = vector.load %arg4[%c0_4, %c0_5] : memref<1x128xf32, #tpu.memory_space<vmem>>, vector<1x128xf32>
    %c0_6 = arith.constant 0 : index
    %c0_7 = arith.constant 0 : index
    %6 = vector.load %arg1[%c0_6, %c0_7] : memref<64x64xbf16, #tpu.memory_space<vmem>>, vector<64x64xbf16>
    %cst = arith.constant dense<0.000000e+00> : vector<64x128xf32>
    %7 = tpu.matmul %6, %3, %cst {dimension_numbers = #tpu.dot_dimension_numbers<[1], [0], [0], [1], [0, 0, 1, 1], [], []>} : vector<64x64xbf16>, vector<64x128xbf16>, vector<64x128xf32> -> vector<64x128xf32>
    %c0_8 = arith.constant 0 : index
    %c0_9 = arith.constant 0 : index
    %8 = vector.load %arg8[%c0_8, %c0_9] : memref<8x32xf32, #tpu.memory_space<vmem>>, vector<8x32xf32>
    %9 = vector.extract_strided_slice %7 {offsets = [56, 0], sizes = [8, 128], strides = [1, 1]} : vector<64x128xf32> to vector<8x128xf32>
    %10 = vector.broadcast %5 : vector<1x128xf32> to vector<8x128xf32>
    %11 = arith.addf %9, %10 : vector<8x128xf32>
    %12 = arith.truncf %8 : vector<8x32xf32> to vector<8x32xbf16>
    %cst_10 = arith.constant dense<0.000000e+00> : vector<8x128xf32>
    %13 = tpu.matmul %12, %4, %cst_10 {dimension_numbers = #tpu.dot_dimension_numbers<[1], [0], [0], [1], [0, 0, 1, 1], [], []>} : vector<8x32xbf16>, vector<32x128xbf16>, vector<8x128xf32> -> vector<8x128xf32>
    %14 = arith.addf %11, %13 : vector<8x128xf32>
    %15 = vector.extract_strided_slice %14 {offsets = [0, 0], sizes = [8, 32], strides = [1, 1]} : vector<8x128xf32> to vector<8x32xf32>
    %16 = arith.negf %15 : vector<8x32xf32>
    %17 = math.exp %16 : vector<8x32xf32>
    %cst_11 = arith.constant 1.000000e+00 : f32
    %18 = vector.broadcast %cst_11 : f32 to vector<8x32xf32>
    %19 = arith.addf %18, %17 : vector<8x32xf32>
    %20 = arith.divf %18, %19 : vector<8x32xf32>
    %21 = vector.extract_strided_slice %14 {offsets = [0, 32], sizes = [8, 32], strides = [1, 1]} : vector<8x128xf32> to vector<8x32xf32>
    %22 = arith.negf %21 : vector<8x32xf32>
    %23 = math.exp %22 : vector<8x32xf32>
    %cst_12 = arith.constant 1.000000e+00 : f32
    %24 = vector.broadcast %cst_12 : f32 to vector<8x32xf32>
    %25 = arith.addf %24, %23 : vector<8x32xf32>
    %26 = arith.divf %24, %25 : vector<8x32xf32>
    %27 = vector.extract_strided_slice %14 {offsets = [0, 64], sizes = [8, 32], strides = [1, 1]} : vector<8x128xf32> to vector<8x32xf32>
    %28 = math.tanh %27 : vector<8x32xf32>
    %29 = vector.extract_strided_slice %14 {offsets = [0, 96], sizes = [8, 32], strides = [1, 1]} : vector<8x128xf32> to vector<8x32xf32>
    %30 = arith.negf %29 : vector<8x32xf32>
    %31 = math.exp %30 : vector<8x32xf32>
    %cst_13 = arith.constant 1.000000e+00 : f32
    %32 = vector.broadcast %cst_13 : f32 to vector<8x32xf32>
    %33 = arith.addf %32, %31 : vector<8x32xf32>
    %34 = arith.divf %32, %33 : vector<8x32xf32>
    %c0_14 = arith.constant 0 : index
    %c0_15 = arith.constant 0 : index
    %35 = vector.load %arg9[%c0_14, %c0_15] : memref<8x32xf32, #tpu.memory_space<vmem>>, vector<8x32xf32>
    %36 = arith.mulf %26, %35 : vector<8x32xf32>
    %37 = arith.mulf %20, %28 : vector<8x32xf32>
    %38 = arith.addf %36, %37 : vector<8x32xf32>
    %39 = math.tanh %38 : vector<8x32xf32>
    %40 = arith.mulf %34, %39 : vector<8x32xf32>
    %c0_16 = arith.constant 0 : index
    %c0_17 = arith.constant 0 : index
    %41 = vector.load %arg9[%c0_16, %c0_17] : memref<8x32xf32, #tpu.memory_space<vmem>>, vector<8x32xf32>
    tpu.vector_store %arg9[%c0_16, %c0_17], %38 {strides = array<i32>} : memref<8x32xf32, #tpu.memory_space<vmem>>, vector<8x32xf32>,
    %c0_18 = arith.constant 0 : index
    %c0_19 = arith.constant 0 : index
    %42 = vector.load %arg8[%c0_18, %c0_19] : memref<8x32xf32, #tpu.memory_space<vmem>>, vector<8x32xf32>
    tpu.vector_store %arg8[%c0_18, %c0_19], %40 {strides = array<i32>} : memref<8x32xf32, #tpu.memory_space<vmem>>, vector<8x32xf32>,
    %c56 = arith.constant 56 : index
    %c0_20 = arith.constant 0 : index
    %43 = vector.load %arg10[%c56, %c0_20] : memref<64x32xf32, #tpu.memory_space<vmem>>, vector<8x32xf32>
    tpu.vector_store %arg10[%c56, %c0_20], %40 {strides = array<i32>} : memref<64x32xf32, #tpu.memory_space<vmem>>, vector<8x32xf32>,
    %c0_21 = arith.constant 0 : index
    %c0_22 = arith.constant 0 : index
    %44 = vector.load %arg8[%c0_21, %c0_22] : memref<8x32xf32, #tpu.memory_space<vmem>>, vector<8x32xf32>
    %45 = vector.extract_strided_slice %7 {offsets = [48, 0], sizes = [8, 128], strides = [1, 1]} : vector<64x128xf32> to vector<8x128xf32>
    %46 = vector.broadcast %5 : vector<1x128xf32> to vector<8x128xf32>
    %47 = arith.addf %45, %46 : vector<8x128xf32>
    %48 = arith.truncf %44 : vector<8x32xf32> to vector<8x32xbf16>
    %cst_23 = arith.constant dense<0.000000e+00> : vector<8x128xf32>
    %49 = tpu.matmul %48, %4, %cst_23 {dimension_numbers = #tpu.dot_dimension_numbers<[1], [0], [0], [1], [0, 0, 1, 1], [], []>} : vector<8x32xbf16>, vector<32x128xbf16>, vector<8x128xf32> -> vector<8x128xf32>
    %50 = arith.addf %47, %49 : vector<8x128xf32>
    %51 = vector.extract_strided_slice %50 {offsets = [0, 0], sizes = [8, 32], strides = [1, 1]} : vector<8x128xf32> to vector<8x32xf32>
    %52 = arith.negf %51 : vector<8x32xf32>
    %53 = math.exp %52 : vector<8x32xf32>
    %cst_24 = arith.constant 1.000000e+00 : f32
    %54 = vector.broadcast %cst_24 : f32 to vector<8x32xf32>
    %55 = arith.addf %54, %53 : vector<8x32xf32>
    %56 = arith.divf %54, %55 : vector<8x32xf32>
    %57 = vector.extract_strided_slice %50 {offsets = [0, 32], sizes = [8, 32], strides = [1, 1]} : vector<8x128xf32> to vector<8x32xf32>
    %58 = arith.negf %57 : vector<8x32xf32>
    %59 = math.exp %58 : vector<8x32xf32>
    %cst_25 = arith.constant 1.000000e+00 : f32
    %60 = vector.broadcast %cst_25 : f32 to vector<8x32xf32>
    %61 = arith.addf %60, %59 : vector<8x32xf32>
    %62 = arith.divf %60, %61 : vector<8x32xf32>
    %63 = vector.extract_strided_slice %50 {offsets = [0, 64], sizes = [8, 32], strides = [1, 1]} : vector<8x128xf32> to vector<8x32xf32>
    %64 = math.tanh %63 : vector<8x32xf32>
    %65 = vector.extract_strided_slice %50 {offsets = [0, 96], sizes = [8, 32], strides = [1, 1]} : vector<8x128xf32> to vector<8x32xf32>
    %66 = arith.negf %65 : vector<8x32xf32>
    %67 = math.exp %66 : vector<8x32xf32>
    %cst_26 = arith.constant 1.000000e+00 : f32
    %68 = vector.broadcast %cst_26 : f32 to vector<8x32xf32>
    %69 = arith.addf %68, %67 : vector<8x32xf32>
    %70 = arith.divf %68, %69 : vector<8x32xf32>
    %c0_27 = arith.constant 0 : index
    %c0_28 = arith.constant 0 : index
    %71 = vector.load %arg9[%c0_27, %c0_28] : memref<8x32xf32, #tpu.memory_space<vmem>>, vector<8x32xf32>
    %72 = arith.mulf %62, %71 : vector<8x32xf32>
    %73 = arith.mulf %56, %64 : vector<8x32xf32>
    %74 = arith.addf %72, %73 : vector<8x32xf32>
    %75 = math.tanh %74 : vector<8x32xf32>
    %76 = arith.mulf %70, %75 : vector<8x32xf32>
    %c0_29 = arith.constant 0 : index
    %c0_30 = arith.constant 0 : index
    %77 = vector.load %arg9[%c0_29, %c0_30] : memref<8x32xf32, #tpu.memory_space<vmem>>, vector<8x32xf32>
    tpu.vector_store %arg9[%c0_29, %c0_30], %74 {strides = array<i32>} : memref<8x32xf32, #tpu.memory_space<vmem>>, vector<8x32xf32>,
    %c0_31 = arith.constant 0 : index
    %c0_32 = arith.constant 0 : index
    %78 = vector.load %arg8[%c0_31, %c0_32] : memref<8x32xf32, #tpu.memory_space<vmem>>, vector<8x32xf32>
    tpu.vector_store %arg8[%c0_31, %c0_32], %76 {strides = array<i32>} : memref<8x32xf32, #tpu.memory_space<vmem>>, vector<8x32xf32>,
    %c48 = arith.constant 48 : index
    %c0_33 = arith.constant 0 : index
    %79 = vector.load %arg10[%c48, %c0_33] : memref<64x32xf32, #tpu.memory_space<vmem>>, vector<8x32xf32>
    tpu.vector_store %arg10[%c48, %c0_33], %76 {strides = array<i32>} : memref<64x32xf32, #tpu.memory_space<vmem>>, vector<8x32xf32>,
    %c0_34 = arith.constant 0 : index
    %c0_35 = arith.constant 0 : index
    %80 = vector.load %arg8[%c0_34, %c0_35] : memref<8x32xf32, #tpu.memory_space<vmem>>, vector<8x32xf32>
    %81 = vector.extract_strided_slice %7 {offsets = [40, 0], sizes = [8, 128], strides = [1, 1]} : vector<64x128xf32> to vector<8x128xf32>
    %82 = vector.broadcast %5 : vector<1x128xf32> to vector<8x128xf32>
    %83 = arith.addf %81, %82 : vector<8x128xf32>
    %84 = arith.truncf %80 : vector<8x32xf32> to vector<8x32xbf16>
    %cst_36 = arith.constant dense<0.000000e+00> : vector<8x128xf32>
    %85 = tpu.matmul %84, %4, %cst_36 {dimension_numbers = #tpu.dot_dimension_numbers<[1], [0], [0], [1], [0, 0, 1, 1], [], []>} : vector<8x32xbf16>, vector<32x128xbf16>, vector<8x128xf32> -> vector<8x128xf32>
    %86 = arith.addf %83, %85 : vector<8x128xf32>
    %87 = vector.extract_strided_slice %86 {offsets = [0, 0], sizes = [8, 32], strides = [1, 1]} : vector<8x128xf32> to vector<8x32xf32>
    %88 = arith.negf %87 : vector<8x32xf32>
    %89 = math.exp %88 : vector<8x32xf32>
    %cst_37 = arith.constant 1.000000e+00 : f32
    %90 = vector.broadcast %cst_37 : f32 to vector<8x32xf32>
    %91 = arith.addf %90, %89 : vector<8x32xf32>
    %92 = arith.divf %90, %91 : vector<8x32xf32>
    %93 = vector.extract_strided_slice %86 {offsets = [0, 32], sizes = [8, 32], strides = [1, 1]} : vector<8x128xf32> to vector<8x32xf32>
    %94 = arith.negf %93 : vector<8x32xf32>
    %95 = math.exp %94 : vector<8x32xf32>
    %cst_38 = arith.constant 1.000000e+00 : f32
    %96 = vector.broadcast %cst_38 : f32 to vector<8x32xf32>
    %97 = arith.addf %96, %95 : vector<8x32xf32>
    %98 = arith.divf %96, %97 : vector<8x32xf32>
    %99 = vector.extract_strided_slice %86 {offsets = [0, 64], sizes = [8, 32], strides = [1, 1]} : vector<8x128xf32> to vector<8x32xf32>
    %100 = math.tanh %99 : vector<8x32xf32>
    %101 = vector.extract_strided_slice %86 {offsets = [0, 96], sizes = [8, 32], strides = [1, 1]} : vector<8x128xf32> to vector<8x32xf32>
    %102 = arith.negf %101 : vector<8x32xf32>
    %103 = math.exp %102 : vector<8x32xf32>
    %cst_39 = arith.constant 1.000000e+00 : f32
    %104 = vector.broadcast %cst_39 : f32 to vector<8x32xf32>
    %105 = arith.addf %104, %103 : vector<8x32xf32>
    %106 = arith.divf %104, %105 : vector<8x32xf32>
    %c0_40 = arith.constant 0 : index
    %c0_41 = arith.constant 0 : index
    %107 = vector.load %arg9[%c0_40, %c0_41] : memref<8x32xf32, #tpu.memory_space<vmem>>, vector<8x32xf32>
    %108 = arith.mulf %98, %107 : vector<8x32xf32>
    %109 = arith.mulf %92, %100 : vector<8x32xf32>
    %110 = arith.addf %108, %109 : vector<8x32xf32>
    %111 = math.tanh %110 : vector<8x32xf32>
    %112 = arith.mulf %106, %111 : vector<8x32xf32>
    %c0_42 = arith.constant 0 : index
    %c0_43 = arith.constant 0 : index
    %113 = vector.load %arg9[%c0_42, %c0_43] : memref<8x32xf32, #tpu.memory_space<vmem>>, vector<8x32xf32>
    tpu.vector_store %arg9[%c0_42, %c0_43], %110 {strides = array<i32>} : memref<8x32xf32, #tpu.memory_space<vmem>>, vector<8x32xf32>,
    %c0_44 = arith.constant 0 : index
    %c0_45 = arith.constant 0 : index
    %114 = vector.load %arg8[%c0_44, %c0_45] : memref<8x32xf32, #tpu.memory_space<vmem>>, vector<8x32xf32>
    tpu.vector_store %arg8[%c0_44, %c0_45], %112 {strides = array<i32>} : memref<8x32xf32, #tpu.memory_space<vmem>>, vector<8x32xf32>,
    %c40 = arith.constant 40 : index
    %c0_46 = arith.constant 0 : index
    %115 = vector.load %arg10[%c40, %c0_46] : memref<64x32xf32, #tpu.memory_space<vmem>>, vector<8x32xf32>
    tpu.vector_store %arg10[%c40, %c0_46], %112 {strides = array<i32>} : memref<64x32xf32, #tpu.memory_space<vmem>>, vector<8x32xf32>,
    %c0_47 = arith.constant 0 : index
    %c0_48 = arith.constant 0 : index
    %116 = vector.load %arg8[%c0_47, %c0_48] : memref<8x32xf32, #tpu.memory_space<vmem>>, vector<8x32xf32>
    %117 = vector.extract_strided_slice %7 {offsets = [32, 0], sizes = [8, 128], strides = [1, 1]} : vector<64x128xf32> to vector<8x128xf32>
    %118 = vector.broadcast %5 : vector<1x128xf32> to vector<8x128xf32>
    %119 = arith.addf %117, %118 : vector<8x128xf32>
    %120 = arith.truncf %116 : vector<8x32xf32> to vector<8x32xbf16>
    %cst_49 = arith.constant dense<0.000000e+00> : vector<8x128xf32>
    %121 = tpu.matmul %120, %4, %cst_49 {dimension_numbers = #tpu.dot_dimension_numbers<[1], [0], [0], [1], [0, 0, 1, 1], [], []>} : vector<8x32xbf16>, vector<32x128xbf16>, vector<8x128xf32> -> vector<8x128xf32>
    %122 = arith.addf %119, %121 : vector<8x128xf32>
    %123 = vector.extract_strided_slice %122 {offsets = [0, 0], sizes = [8, 32], strides = [1, 1]} : vector<8x128xf32> to vector<8x32xf32>
    %124 = arith.negf %123 : vector<8x32xf32>
    %125 = math.exp %124 : vector<8x32xf32>
    %cst_50 = arith.constant 1.000000e+00 : f32
    %126 = vector.broadcast %cst_50 : f32 to vector<8x32xf32>
    %127 = arith.addf %126, %125 : vector<8x32xf32>
    %128 = arith.divf %126, %127 : vector<8x32xf32>
    %129 = vector.extract_strided_slice %122 {offsets = [0, 32], sizes = [8, 32], strides = [1, 1]} : vector<8x128xf32> to vector<8x32xf32>
    %130 = arith.negf %129 : vector<8x32xf32>
    %131 = math.exp %130 : vector<8x32xf32>
    %cst_51 = arith.constant 1.000000e+00 : f32
    %132 = vector.broadcast %cst_51 : f32 to vector<8x32xf32>
    %133 = arith.addf %132, %131 : vector<8x32xf32>
    %134 = arith.divf %132, %133 : vector<8x32xf32>
    %135 = vector.extract_strided_slice %122 {offsets = [0, 64], sizes = [8, 32], strides = [1, 1]} : vector<8x128xf32> to vector<8x32xf32>
    %136 = math.tanh %135 : vector<8x32xf32>
    %137 = vector.extract_strided_slice %122 {offsets = [0, 96], sizes = [8, 32], strides = [1, 1]} : vector<8x128xf32> to vector<8x32xf32>
    %138 = arith.negf %137 : vector<8x32xf32>
    %139 = math.exp %138 : vector<8x32xf32>
    %cst_52 = arith.constant 1.000000e+00 : f32
    %140 = vector.broadcast %cst_52 : f32 to vector<8x32xf32>
    %141 = arith.addf %140, %139 : vector<8x32xf32>
    %142 = arith.divf %140, %141 : vector<8x32xf32>
    %c0_53 = arith.constant 0 : index
    %c0_54 = arith.constant 0 : index
    %143 = vector.load %arg9[%c0_53, %c0_54] : memref<8x32xf32, #tpu.memory_space<vmem>>, vector<8x32xf32>
    %144 = arith.mulf %134, %143 : vector<8x32xf32>
    %145 = arith.mulf %128, %136 : vector<8x32xf32>
    %146 = arith.addf %144, %145 : vector<8x32xf32>
    %147 = math.tanh %146 : vector<8x32xf32>
    %148 = arith.mulf %142, %147 : vector<8x32xf32>
    %c0_55 = arith.constant 0 : index
    %c0_56 = arith.constant 0 : index
    %149 = vector.load %arg9[%c0_55, %c0_56] : memref<8x32xf32, #tpu.memory_space<vmem>>, vector<8x32xf32>
    tpu.vector_store %arg9[%c0_55, %c0_56], %146 {strides = array<i32>} : memref<8x32xf32, #tpu.memory_space<vmem>>, vector<8x32xf32>,
    %c0_57 = arith.constant 0 : index
    %c0_58 = arith.constant 0 : index
    %150 = vector.load %arg8[%c0_57, %c0_58] : memref<8x32xf32, #tpu.memory_space<vmem>>, vector<8x32xf32>
    tpu.vector_store %arg8[%c0_57, %c0_58], %148 {strides = array<i32>} : memref<8x32xf32, #tpu.memory_space<vmem>>, vector<8x32xf32>,
    %c32 = arith.constant 32 : index
    %c0_59 = arith.constant 0 : index
    %151 = vector.load %arg10[%c32, %c0_59] : memref<64x32xf32, #tpu.memory_space<vmem>>, vector<8x32xf32>
    tpu.vector_store %arg10[%c32, %c0_59], %148 {strides = array<i32>} : memref<64x32xf32, #tpu.memory_space<vmem>>, vector<8x32xf32>,
    %c0_60 = arith.constant 0 : index
    %c0_61 = arith.constant 0 : index
    %152 = vector.load %arg8[%c0_60, %c0_61] : memref<8x32xf32, #tpu.memory_space<vmem>>, vector<8x32xf32>
    %153 = vector.extract_strided_slice %7 {offsets = [24, 0], sizes = [8, 128], strides = [1, 1]} : vector<64x128xf32> to vector<8x128xf32>
    %154 = vector.broadcast %5 : vector<1x128xf32> to vector<8x128xf32>
    %155 = arith.addf %153, %154 : vector<8x128xf32>
    %156 = arith.truncf %152 : vector<8x32xf32> to vector<8x32xbf16>
    %cst_62 = arith.constant dense<0.000000e+00> : vector<8x128xf32>
    %157 = tpu.matmul %156, %4, %cst_62 {dimension_numbers = #tpu.dot_dimension_numbers<[1], [0], [0], [1], [0, 0, 1, 1], [], []>} : vector<8x32xbf16>, vector<32x128xbf16>, vector<8x128xf32> -> vector<8x128xf32>
    %158 = arith.addf %155, %157 : vector<8x128xf32>
    %159 = vector.extract_strided_slice %158 {offsets = [0, 0], sizes = [8, 32], strides = [1, 1]} : vector<8x128xf32> to vector<8x32xf32>
    %160 = arith.negf %159 : vector<8x32xf32>
    %161 = math.exp %160 : vector<8x32xf32>
    %cst_63 = arith.constant 1.000000e+00 : f32
    %162 = vector.broadcast %cst_63 : f32 to vector<8x32xf32>
    %163 = arith.addf %162, %161 : vector<8x32xf32>
    %164 = arith.divf %162, %163 : vector<8x32xf32>
    %165 = vector.extract_strided_slice %158 {offsets = [0, 32], sizes = [8, 32], strides = [1, 1]} : vector<8x128xf32> to vector<8x32xf32>
    %166 = arith.negf %165 : vector<8x32xf32>
    %167 = math.exp %166 : vector<8x32xf32>
    %cst_64 = arith.constant 1.000000e+00 : f32
    %168 = vector.broadcast %cst_64 : f32 to vector<8x32xf32>
    %169 = arith.addf %168, %167 : vector<8x32xf32>
    %170 = arith.divf %168, %169 : vector<8x32xf32>
    %171 = vector.extract_strided_slice %158 {offsets = [0, 64], sizes = [8, 32], strides = [1, 1]} : vector<8x128xf32> to vector<8x32xf32>
    %172 = math.tanh %171 : vector<8x32xf32>
    %173 = vector.extract_strided_slice %158 {offsets = [0, 96], sizes = [8, 32], strides = [1, 1]} : vector<8x128xf32> to vector<8x32xf32>
    %174 = arith.negf %173 : vector<8x32xf32>
    %175 = math.exp %174 : vector<8x32xf32>
    %cst_65 = arith.constant 1.000000e+00 : f32
    %176 = vector.broadcast %cst_65 : f32 to vector<8x32xf32>
    %177 = arith.addf %176, %175 : vector<8x32xf32>
    %178 = arith.divf %176, %177 : vector<8x32xf32>
    %c0_66 = arith.constant 0 : index
    %c0_67 = arith.constant 0 : index
    %179 = vector.load %arg9[%c0_66, %c0_67] : memref<8x32xf32, #tpu.memory_space<vmem>>, vector<8x32xf32>
    %180 = arith.mulf %170, %179 : vector<8x32xf32>
    %181 = arith.mulf %164, %172 : vector<8x32xf32>
    %182 = arith.addf %180, %181 : vector<8x32xf32>
    %183 = math.tanh %182 : vector<8x32xf32>
    %184 = arith.mulf %178, %183 : vector<8x32xf32>
    %c0_68 = arith.constant 0 : index
    %c0_69 = arith.constant 0 : index
    %185 = vector.load %arg9[%c0_68, %c0_69] : memref<8x32xf32, #tpu.memory_space<vmem>>, vector<8x32xf32>
    tpu.vector_store %arg9[%c0_68, %c0_69], %182 {strides = array<i32>} : memref<8x32xf32, #tpu.memory_space<vmem>>, vector<8x32xf32>,
    %c0_70 = arith.constant 0 : index
    %c0_71 = arith.constant 0 : index
    %186 = vector.load %arg8[%c0_70, %c0_71] : memref<8x32xf32, #tpu.memory_space<vmem>>, vector<8x32xf32>
    tpu.vector_store %arg8[%c0_70, %c0_71], %184 {strides = array<i32>} : memref<8x32xf32, #tpu.memory_space<vmem>>, vector<8x32xf32>,
    %c24 = arith.constant 24 : index
    %c0_72 = arith.constant 0 : index
    %187 = vector.load %arg10[%c24, %c0_72] : memref<64x32xf32, #tpu.memory_space<vmem>>, vector<8x32xf32>
    tpu.vector_store %arg10[%c24, %c0_72], %184 {strides = array<i32>} : memref<64x32xf32, #tpu.memory_space<vmem>>, vector<8x32xf32>,
    %c0_73 = arith.constant 0 : index
    %c0_74 = arith.constant 0 : index
    %188 = vector.load %arg8[%c0_73, %c0_74] : memref<8x32xf32, #tpu.memory_space<vmem>>, vector<8x32xf32>
    %189 = vector.extract_strided_slice %7 {offsets = [16, 0], sizes = [8, 128], strides = [1, 1]} : vector<64x128xf32> to vector<8x128xf32>
    %190 = vector.broadcast %5 : vector<1x128xf32> to vector<8x128xf32>
    %191 = arith.addf %189, %190 : vector<8x128xf32>
    %192 = arith.truncf %188 : vector<8x32xf32> to vector<8x32xbf16>
    %cst_75 = arith.constant dense<0.000000e+00> : vector<8x128xf32>
    %193 = tpu.matmul %192, %4, %cst_75 {dimension_numbers = #tpu.dot_dimension_numbers<[1], [0], [0], [1], [0, 0, 1, 1], [], []>} : vector<8x32xbf16>, vector<32x128xbf16>, vector<8x128xf32> -> vector<8x128xf32>
    %194 = arith.addf %191, %193 : vector<8x128xf32>
    %195 = vector.extract_strided_slice %194 {offsets = [0, 0], sizes = [8, 32], strides = [1, 1]} : vector<8x128xf32> to vector<8x32xf32>
    %196 = arith.negf %195 : vector<8x32xf32>
    %197 = math.exp %196 : vector<8x32xf32>
    %cst_76 = arith.constant 1.000000e+00 : f32
    %198 = vector.broadcast %cst_76 : f32 to vector<8x32xf32>
    %199 = arith.addf %198, %197 : vector<8x32xf32>
    %200 = arith.divf %198, %199 : vector<8x32xf32>
    %201 = vector.extract_strided_slice %194 {offsets = [0, 32], sizes = [8, 32], strides = [1, 1]} : vector<8x128xf32> to vector<8x32xf32>
    %202 = arith.negf %201 : vector<8x32xf32>
    %203 = math.exp %202 : vector<8x32xf32>
    %cst_77 = arith.constant 1.000000e+00 : f32
    %204 = vector.broadcast %cst_77 : f32 to vector<8x32xf32>
    %205 = arith.addf %204, %203 : vector<8x32xf32>
    %206 = arith.divf %204, %205 : vector<8x32xf32>
    %207 = vector.extract_strided_slice %194 {offsets = [0, 64], sizes = [8, 32], strides = [1, 1]} : vector<8x128xf32> to vector<8x32xf32>
    %208 = math.tanh %207 : vector<8x32xf32>
    %209 = vector.extract_strided_slice %194 {offsets = [0, 96], sizes = [8, 32], strides = [1, 1]} : vector<8x128xf32> to vector<8x32xf32>
    %210 = arith.negf %209 : vector<8x32xf32>
    %211 = math.exp %210 : vector<8x32xf32>
    %cst_78 = arith.constant 1.000000e+00 : f32
    %212 = vector.broadcast %cst_78 : f32 to vector<8x32xf32>
    %213 = arith.addf %212, %211 : vector<8x32xf32>
    %214 = arith.divf %212, %213 : vector<8x32xf32>
    %c0_79 = arith.constant 0 : index
    %c0_80 = arith.constant 0 : index
    %215 = vector.load %arg9[%c0_79, %c0_80] : memref<8x32xf32, #tpu.memory_space<vmem>>, vector<8x32xf32>
    %216 = arith.mulf %206, %215 : vector<8x32xf32>
    %217 = arith.mulf %200, %208 : vector<8x32xf32>
    %218 = arith.addf %216, %217 : vector<8x32xf32>
    %219 = math.tanh %218 : vector<8x32xf32>
    %220 = arith.mulf %214, %219 : vector<8x32xf32>
    %c0_81 = arith.constant 0 : index
    %c0_82 = arith.constant 0 : index
    %221 = vector.load %arg9[%c0_81, %c0_82] : memref<8x32xf32, #tpu.memory_space<vmem>>, vector<8x32xf32>
    tpu.vector_store %arg9[%c0_81, %c0_82], %218 {strides = array<i32>} : memref<8x32xf32, #tpu.memory_space<vmem>>, vector<8x32xf32>,
    %c0_83 = arith.constant 0 : index
    %c0_84 = arith.constant 0 : index
    %222 = vector.load %arg8[%c0_83, %c0_84] : memref<8x32xf32, #tpu.memory_space<vmem>>, vector<8x32xf32>
    tpu.vector_store %arg8[%c0_83, %c0_84], %220 {strides = array<i32>} : memref<8x32xf32, #tpu.memory_space<vmem>>, vector<8x32xf32>,
    %c16 = arith.constant 16 : index
    %c0_85 = arith.constant 0 : index
    %223 = vector.load %arg10[%c16, %c0_85] : memref<64x32xf32, #tpu.memory_space<vmem>>, vector<8x32xf32>
    tpu.vector_store %arg10[%c16, %c0_85], %220 {strides = array<i32>} : memref<64x32xf32, #tpu.memory_space<vmem>>, vector<8x32xf32>,
    %c0_86 = arith.constant 0 : index
    %c0_87 = arith.constant 0 : index
    %224 = vector.load %arg8[%c0_86, %c0_87] : memref<8x32xf32, #tpu.memory_space<vmem>>, vector<8x32xf32>
    %225 = vector.extract_strided_slice %7 {offsets = [8, 0], sizes = [8, 128], strides = [1, 1]} : vector<64x128xf32> to vector<8x128xf32>
    %226 = vector.broadcast %5 : vector<1x128xf32> to vector<8x128xf32>
    %227 = arith.addf %225, %226 : vector<8x128xf32>
    %228 = arith.truncf %224 : vector<8x32xf32> to vector<8x32xbf16>
    %cst_88 = arith.constant dense<0.000000e+00> : vector<8x128xf32>
    %229 = tpu.matmul %228, %4, %cst_88 {dimension_numbers = #tpu.dot_dimension_numbers<[1], [0], [0], [1], [0, 0, 1, 1], [], []>} : vector<8x32xbf16>, vector<32x128xbf16>, vector<8x128xf32> -> vector<8x128xf32>
    %230 = arith.addf %227, %229 : vector<8x128xf32>
    %231 = vector.extract_strided_slice %230 {offsets = [0, 0], sizes = [8, 32], strides = [1, 1]} : vector<8x128xf32> to vector<8x32xf32>
    %232 = arith.negf %231 : vector<8x32xf32>
    %233 = math.exp %232 : vector<8x32xf32>
    %cst_89 = arith.constant 1.000000e+00 : f32
    %234 = vector.broadcast %cst_89 : f32 to vector<8x32xf32>
    %235 = arith.addf %234, %233 : vector<8x32xf32>
    %236 = arith.divf %234, %235 : vector<8x32xf32>
    %237 = vector.extract_strided_slice %230 {offsets = [0, 32], sizes = [8, 32], strides = [1, 1]} : vector<8x128xf32> to vector<8x32xf32>
    %238 = arith.negf %237 : vector<8x32xf32>
    %239 = math.exp %238 : vector<8x32xf32>
    %cst_90 = arith.constant 1.000000e+00 : f32
    %240 = vector.broadcast %cst_90 : f32 to vector<8x32xf32>
    %241 = arith.addf %240, %239 : vector<8x32xf32>
    %242 = arith.divf %240, %241 : vector<8x32xf32>
    %243 = vector.extract_strided_slice %230 {offsets = [0, 64], sizes = [8, 32], strides = [1, 1]} : vector<8x128xf32> to vector<8x32xf32>
    %244 = math.tanh %243 : vector<8x32xf32>
    %245 = vector.extract_strided_slice %230 {offsets = [0, 96], sizes = [8, 32], strides = [1, 1]} : vector<8x128xf32> to vector<8x32xf32>
    %246 = arith.negf %245 : vector<8x32xf32>
    %247 = math.exp %246 : vector<8x32xf32>
    %cst_91 = arith.constant 1.000000e+00 : f32
    %248 = vector.broadcast %cst_91 : f32 to vector<8x32xf32>
    %249 = arith.addf %248, %247 : vector<8x32xf32>
    %250 = arith.divf %248, %249 : vector<8x32xf32>
    %c0_92 = arith.constant 0 : index
    %c0_93 = arith.constant 0 : index
    %251 = vector.load %arg9[%c0_92, %c0_93] : memref<8x32xf32, #tpu.memory_space<vmem>>, vector<8x32xf32>
    %252 = arith.mulf %242, %251 : vector<8x32xf32>
    %253 = arith.mulf %236, %244 : vector<8x32xf32>
    %254 = arith.addf %252, %253 : vector<8x32xf32>
    %255 = math.tanh %254 : vector<8x32xf32>
    %256 = arith.mulf %250, %255 : vector<8x32xf32>
    %c0_94 = arith.constant 0 : index
    %c0_95 = arith.constant 0 : index
    %257 = vector.load %arg9[%c0_94, %c0_95] : memref<8x32xf32, #tpu.memory_space<vmem>>, vector<8x32xf32>
    tpu.vector_store %arg9[%c0_94, %c0_95], %254 {strides = array<i32>} : memref<8x32xf32, #tpu.memory_space<vmem>>, vector<8x32xf32>,
    %c0_96 = arith.constant 0 : index
    %c0_97 = arith.constant 0 : index
    %258 = vector.load %arg8[%c0_96, %c0_97] : memref<8x32xf32, #tpu.memory_space<vmem>>, vector<8x32xf32>
    tpu.vector_store %arg8[%c0_96, %c0_97], %256 {strides = array<i32>} : memref<8x32xf32, #tpu.memory_space<vmem>>, vector<8x32xf32>,
    %c8 = arith.constant 8 : index
    %c0_98 = arith.constant 0 : index
    %259 = vector.load %arg10[%c8, %c0_98] : memref<64x32xf32, #tpu.memory_space<vmem>>, vector<8x32xf32>
    tpu.vector_store %arg10[%c8, %c0_98], %256 {strides = array<i32>} : memref<64x32xf32, #tpu.memory_space<vmem>>, vector<8x32xf32>,
    %c0_99 = arith.constant 0 : index
    %c0_100 = arith.constant 0 : index
    %260 = vector.load %arg8[%c0_99, %c0_100] : memref<8x32xf32, #tpu.memory_space<vmem>>, vector<8x32xf32>
    %261 = vector.extract_strided_slice %7 {offsets = [0, 0], sizes = [8, 128], strides = [1, 1]} : vector<64x128xf32> to vector<8x128xf32>
    %262 = vector.broadcast %5 : vector<1x128xf32> to vector<8x128xf32>
    %263 = arith.addf %261, %262 : vector<8x128xf32>
    %264 = arith.truncf %260 : vector<8x32xf32> to vector<8x32xbf16>
    %cst_101 = arith.constant dense<0.000000e+00> : vector<8x128xf32>
    %265 = tpu.matmul %264, %4, %cst_101 {dimension_numbers = #tpu.dot_dimension_numbers<[1], [0], [0], [1], [0, 0, 1, 1], [], []>} : vector<8x32xbf16>, vector<32x128xbf16>, vector<8x128xf32> -> vector<8x128xf32>
    %266 = arith.addf %263, %265 : vector<8x128xf32>
    %267 = vector.extract_strided_slice %266 {offsets = [0, 0], sizes = [8, 32], strides = [1, 1]} : vector<8x128xf32> to vector<8x32xf32>
    %268 = arith.negf %267 : vector<8x32xf32>
    %269 = math.exp %268 : vector<8x32xf32>
    %cst_102 = arith.constant 1.000000e+00 : f32
    %270 = vector.broadcast %cst_102 : f32 to vector<8x32xf32>
    %271 = arith.addf %270, %269 : vector<8x32xf32>
    %272 = arith.divf %270, %271 : vector<8x32xf32>
    %273 = vector.extract_strided_slice %266 {offsets = [0, 32], sizes = [8, 32], strides = [1, 1]} : vector<8x128xf32> to vector<8x32xf32>
    %274 = arith.negf %273 : vector<8x32xf32>
    %275 = math.exp %274 : vector<8x32xf32>
    %cst_103 = arith.constant 1.000000e+00 : f32
    %276 = vector.broadcast %cst_103 : f32 to vector<8x32xf32>
    %277 = arith.addf %276, %275 : vector<8x32xf32>
    %278 = arith.divf %276, %277 : vector<8x32xf32>
    %279 = vector.extract_strided_slice %266 {offsets = [0, 64], sizes = [8, 32], strides = [1, 1]} : vector<8x128xf32> to vector<8x32xf32>
    %280 = math.tanh %279 : vector<8x32xf32>
    %281 = vector.extract_strided_slice %266 {offsets = [0, 96], sizes = [8, 32], strides = [1, 1]} : vector<8x128xf32> to vector<8x32xf32>
    %282 = arith.negf %281 : vector<8x32xf32>
    %283 = math.exp %282 : vector<8x32xf32>
    %cst_104 = arith.constant 1.000000e+00 : f32
    %284 = vector.broadcast %cst_104 : f32 to vector<8x32xf32>
    %285 = arith.addf %284, %283 : vector<8x32xf32>
    %286 = arith.divf %284, %285 : vector<8x32xf32>
    %c0_105 = arith.constant 0 : index
    %c0_106 = arith.constant 0 : index
    %287 = vector.load %arg9[%c0_105, %c0_106] : memref<8x32xf32, #tpu.memory_space<vmem>>, vector<8x32xf32>
    %288 = arith.mulf %278, %287 : vector<8x32xf32>
    %289 = arith.mulf %272, %280 : vector<8x32xf32>
    %290 = arith.addf %288, %289 : vector<8x32xf32>
    %291 = math.tanh %290 : vector<8x32xf32>
    %292 = arith.mulf %286, %291 : vector<8x32xf32>
    %c0_107 = arith.constant 0 : index
    %c0_108 = arith.constant 0 : index
    %293 = vector.load %arg9[%c0_107, %c0_108] : memref<8x32xf32, #tpu.memory_space<vmem>>, vector<8x32xf32>
    tpu.vector_store %arg9[%c0_107, %c0_108], %290 {strides = array<i32>} : memref<8x32xf32, #tpu.memory_space<vmem>>, vector<8x32xf32>,
    %c0_109 = arith.constant 0 : index
    %c0_110 = arith.constant 0 : index
    %294 = vector.load %arg8[%c0_109, %c0_110] : memref<8x32xf32, #tpu.memory_space<vmem>>, vector<8x32xf32>
    tpu.vector_store %arg8[%c0_109, %c0_110], %292 {strides = array<i32>} : memref<8x32xf32, #tpu.memory_space<vmem>>, vector<8x32xf32>,
    %c0_111 = arith.constant 0 : index
    %c0_112 = arith.constant 0 : index
    %295 = vector.load %arg10[%c0_111, %c0_112] : memref<64x32xf32, #tpu.memory_space<vmem>>, vector<8x32xf32>
    tpu.vector_store %arg10[%c0_111, %c0_112], %292 {strides = array<i32>} : memref<64x32xf32, #tpu.memory_space<vmem>>, vector<8x32xf32>,
    %c0_113 = arith.constant 0 : index
    %c0_114 = arith.constant 0 : index
    %296 = vector.load %arg10[%c0_113, %c0_114] : memref<64x32xf32, #tpu.memory_space<vmem>>, vector<64x32xf32>
    %297 = arith.truncf %296 : vector<64x32xf32> to vector<64x32xbf16>
    %c0_115 = arith.constant 0 : index
    %c0_116 = arith.constant 0 : index
    %298 = vector.load %arg7[%c0_115, %c0_116] : memref<64x32xbf16, #tpu.memory_space<vmem>>, vector<64x32xbf16>
    tpu.vector_store %arg7[%c0_115, %c0_116], %297 {strides = array<i32>} : memref<64x32xbf16, #tpu.memory_space<vmem>>, vector<64x32xbf16>,
    return
  }
  func.func @transform_0(%arg0: i32) -> (i32, i32) {
    %c1_i32 = arith.constant 1 : i32
    %0 = arith.subi %c1_i32, %arg0 : i32
    %c0_i32 = arith.constant 0 : i32
    %c0_i32_0 = arith.constant 0 : i32
    return %0, %c0_i32 : i32, i32
  }
  func.func @transform_1(%arg0: i32) -> (i32, i32) {
    %c0_i32 = arith.constant 0 : i32
    %c0_i32_0 = arith.constant 0 : i32
    %c0_i32_1 = arith.constant 0 : i32
    return %c0_i32, %c0_i32_0 : i32, i32
  }
  func.func @transform_2(%arg0: i32) -> (i32, i32) {
    %c0_i32 = arith.constant 0 : i32
    %c0_i32_0 = arith.constant 0 : i32
    %c0_i32_1 = arith.constant 0 : i32
    return %c0_i32, %c0_i32_0 : i32, i32
  }
  func.func @transform_3(%arg0: i32) -> (i32, i32) {
    %c0_i32 = arith.constant 0 : i32
    %c0_i32_0 = arith.constant 0 : i32
    %c0_i32_1 = arith.constant 0 : i32
    return %c0_i32, %c0_i32_0 : i32, i32
  }
  func.func @transform_4(%arg0: i32) -> (i32, i32) {
    %c0_i32 = arith.constant 0 : i32
    %c0_i32_0 = arith.constant 0 : i32
    %c0_i32_1 = arith.constant 0 : i32
    return %c0_i32, %c0_i32_0 : i32, i32
  }
  func.func @transform_5(%arg0: i32) -> (i32, i32) {
    %c0_i32 = arith.constant 0 : i32
    %c0_i32_0 = arith.constant 0 : i32
    %c0_i32_1 = arith.constant 0 : i32
    return %c0_i32, %c0_i32_0 : i32, i32
  }
  func.func @transform_6(%arg0: i32) -> (i32, i32) {
    %c1_i32 = arith.constant 1 : i32
    %0 = arith.subi %c1_i32, %arg0 : i32
    %c0_i32 = arith.constant 0 : i32
    %c0_i32_0 = arith.constant 0 : i32
    return %0, %c0_i32 : i32, i32
  }
}

module attributes {stable_mosaic.version = 11 : i64} {
  func.func @lstm_dir_kernel(%arg0: i32, %arg1: memref<64x64xbf16, #tpu.memory_space<vmem>>, %arg2: memref<64x128xbf16, #tpu.memory_space<vmem>>, %arg3: memref<32x128xbf16, #tpu.memory_space<vmem>>, %arg4: memref<1x128xf32, #tpu.memory_space<vmem>>, %arg5: memref<8x32xf32, #tpu.memory_space<vmem>>, %arg6: memref<8x32xf32, #tpu.memory_space<vmem>>, %arg7: memref<64x32xbf16, #tpu.memory_space<vmem>>, %arg8: memref<8x32xf32, #tpu.memory_space<vmem>>, %arg9: memref<8x32xf32, #tpu.memory_space<vmem>>, %arg10: memref<64x32xf32, #tpu.memory_space<vmem>>) attributes {dimension_semantics = [#tpu.dimension_semantics<arbitrary>], iteration_bounds = array<i64: 2>, scalar_prefetch = 0 : i64, scratch_operands = 3 : i64, tpu.core_type = #tpu.core_type<tc>, window_params = [{transform_indices = @transform_0, window_bounds = array<i64: 64, 64>}, {pipeline_mode = #tpu.pipeline_mode<synchronous>, transform_indices = @transform_1, window_bounds = array<i64: 64, 128>}, {pipeline_mode = #tpu.pipeline_mode<synchronous>, transform_indices = @transform_2, window_bounds = array<i64: 32, 128>}, {pipeline_mode = #tpu.pipeline_mode<synchronous>, transform_indices = @transform_3, window_bounds = array<i64: 1, 128>}, {pipeline_mode = #tpu.pipeline_mode<synchronous>, transform_indices = @transform_4, window_bounds = array<i64: 8, 32>}, {pipeline_mode = #tpu.pipeline_mode<synchronous>, transform_indices = @transform_5, window_bounds = array<i64: 8, 32>}, {transform_indices = @transform_6, window_bounds = array<i64: 64, 32>}]} {
    %c0_i32 = arith.constant 0 : i32
    %0 = arith.cmpi eq, %arg0, %c0_i32 : i32
    %1 = arith.extui %0 : i1 to i32
    %c0_i32_0 = arith.constant 0 : i32
    %2 = arith.cmpi ne, %1, %c0_i32_0 : i32
    scf.if %2 {
      %c0_117 = arith.constant 0 : index
      %c0_118 = arith.constant 0 : index
      %299 = vector.load %arg5[%c0_117, %c0_118] : memref<8x32xf32, #tpu.memory_space<vmem>>, vector<8x32xf32>
      %c0_119 = arith.constant 0 : index
      %c0_120 = arith.constant 0 : index
      %300 = vector.load %arg8[%c0_119, %c0_120] : memref<8x32xf32, #tpu.memory_space<vmem>>, vector<8x32xf32>
      tpu.vector_store %arg8[%c0_119, %c0_120], %299 {strides = array<i32>} : memref<8x32xf32, #tpu.memory_space<vmem>>, vector<8x32xf32>,
      %c0_121 = arith.constant 0 : index
      %c0_122 = arith.constant 0 : index
      %301 = vector.load %arg6[%c0_121, %c0_122] : memref<8x32xf32, #tpu.memory_space<vmem>>, vector<8x32xf32>
      %c0_123 = arith.constant 0 : index
      %c0_124 = arith.constant 0 : index
      %302 = vector.load %arg9[%c0_123, %c0_124] : memref<8x32xf32, #tpu.memory_space<vmem>>, vector<8x32xf32>
      tpu.vector_store %arg9[%c0_123, %c0_124], %301 {strides = array<i32>} : memref<8x32xf32, #tpu.memory_space<vmem>>, vector<8x32xf32>,
    } else {
    }
    %c0 = arith.constant 0 : index
    %c0_1 = arith.constant 0 : index
    %3 = vector.load %arg2[%c0, %c0_1] : memref<64x128xbf16, #tpu.memory_space<vmem>>, vector<64x128xbf16>
    %c0_2 = arith.constant 0 : index
    %c0_3 = arith.constant 0 : index
    %4 = vector.load %arg3[%c0_2, %c0_3] : memref<32x128xbf16, #tpu.memory_space<vmem>>, vector<32x128xbf16>
    %c0_4 = arith.constant 0 : index
    %c0_5 = arith.constant 0 : index
    %5 = vector.load %arg4[%c0_4, %c0_5] : memref<1x128xf32, #tpu.memory_space<vmem>>, vector<1x128xf32>
    %c0_6 = arith.constant 0 : index
    %c0_7 = arith.constant 0 : index
    %6 = vector.load %arg1[%c0_6, %c0_7] : memref<64x64xbf16, #tpu.memory_space<vmem>>, vector<64x64xbf16>
    %cst = arith.constant dense<0.000000e+00> : vector<64x128xf32>
    %7 = tpu.matmul %6, %3, %cst {dimension_numbers = #tpu.dot_dimension_numbers<[1], [0], [0], [1], [0, 0, 1, 1], [], []>} : vector<64x64xbf16>, vector<64x128xbf16>, vector<64x128xf32> -> vector<64x128xf32>
    %c0_8 = arith.constant 0 : index
    %c0_9 = arith.constant 0 : index
    %8 = vector.load %arg8[%c0_8, %c0_9] : memref<8x32xf32, #tpu.memory_space<vmem>>, vector<8x32xf32>
    %9 = vector.extract_strided_slice %7 {offsets = [0, 0], sizes = [8, 128], strides = [1, 1]} : vector<64x128xf32> to vector<8x128xf32>
    %10 = vector.broadcast %5 : vector<1x128xf32> to vector<8x128xf32>
    %11 = arith.addf %9, %10 : vector<8x128xf32>
    %12 = arith.truncf %8 : vector<8x32xf32> to vector<8x32xbf16>
    %cst_10 = arith.constant dense<0.000000e+00> : vector<8x128xf32>
    %13 = tpu.matmul %12, %4, %cst_10 {dimension_numbers = #tpu.dot_dimension_numbers<[1], [0], [0], [1], [0, 0, 1, 1], [], []>} : vector<8x32xbf16>, vector<32x128xbf16>, vector<8x128xf32> -> vector<8x128xf32>
    %14 = arith.addf %11, %13 : vector<8x128xf32>
    %15 = vector.extract_strided_slice %14 {offsets = [0, 0], sizes = [8, 32], strides = [1, 1]} : vector<8x128xf32> to vector<8x32xf32>
    %16 = arith.negf %15 : vector<8x32xf32>
    %17 = math.exp %16 : vector<8x32xf32>
    %cst_11 = arith.constant 1.000000e+00 : f32
    %18 = vector.broadcast %cst_11 : f32 to vector<8x32xf32>
    %19 = arith.addf %18, %17 : vector<8x32xf32>
    %20 = arith.divf %18, %19 : vector<8x32xf32>
    %21 = vector.extract_strided_slice %14 {offsets = [0, 32], sizes = [8, 32], strides = [1, 1]} : vector<8x128xf32> to vector<8x32xf32>
    %22 = arith.negf %21 : vector<8x32xf32>
    %23 = math.exp %22 : vector<8x32xf32>
    %cst_12 = arith.constant 1.000000e+00 : f32
    %24 = vector.broadcast %cst_12 : f32 to vector<8x32xf32>
    %25 = arith.addf %24, %23 : vector<8x32xf32>
    %26 = arith.divf %24, %25 : vector<8x32xf32>
    %27 = vector.extract_strided_slice %14 {offsets = [0, 64], sizes = [8, 32], strides = [1, 1]} : vector<8x128xf32> to vector<8x32xf32>
    %28 = math.tanh %27 : vector<8x32xf32>
    %29 = vector.extract_strided_slice %14 {offsets = [0, 96], sizes = [8, 32], strides = [1, 1]} : vector<8x128xf32> to vector<8x32xf32>
    %30 = arith.negf %29 : vector<8x32xf32>
    %31 = math.exp %30 : vector<8x32xf32>
    %cst_13 = arith.constant 1.000000e+00 : f32
    %32 = vector.broadcast %cst_13 : f32 to vector<8x32xf32>
    %33 = arith.addf %32, %31 : vector<8x32xf32>
    %34 = arith.divf %32, %33 : vector<8x32xf32>
    %c0_14 = arith.constant 0 : index
    %c0_15 = arith.constant 0 : index
    %35 = vector.load %arg9[%c0_14, %c0_15] : memref<8x32xf32, #tpu.memory_space<vmem>>, vector<8x32xf32>
    %36 = arith.mulf %26, %35 : vector<8x32xf32>
    %37 = arith.mulf %20, %28 : vector<8x32xf32>
    %38 = arith.addf %36, %37 : vector<8x32xf32>
    %39 = math.tanh %38 : vector<8x32xf32>
    %40 = arith.mulf %34, %39 : vector<8x32xf32>
    %c0_16 = arith.constant 0 : index
    %c0_17 = arith.constant 0 : index
    %41 = vector.load %arg9[%c0_16, %c0_17] : memref<8x32xf32, #tpu.memory_space<vmem>>, vector<8x32xf32>
    tpu.vector_store %arg9[%c0_16, %c0_17], %38 {strides = array<i32>} : memref<8x32xf32, #tpu.memory_space<vmem>>, vector<8x32xf32>,
    %c0_18 = arith.constant 0 : index
    %c0_19 = arith.constant 0 : index
    %42 = vector.load %arg8[%c0_18, %c0_19] : memref<8x32xf32, #tpu.memory_space<vmem>>, vector<8x32xf32>
    tpu.vector_store %arg8[%c0_18, %c0_19], %40 {strides = array<i32>} : memref<8x32xf32, #tpu.memory_space<vmem>>, vector<8x32xf32>,
    %c0_20 = arith.constant 0 : index
    %c0_21 = arith.constant 0 : index
    %43 = vector.load %arg10[%c0_20, %c0_21] : memref<64x32xf32, #tpu.memory_space<vmem>>, vector<8x32xf32>
    tpu.vector_store %arg10[%c0_20, %c0_21], %40 {strides = array<i32>} : memref<64x32xf32, #tpu.memory_space<vmem>>, vector<8x32xf32>,
    %c0_22 = arith.constant 0 : index
    %c0_23 = arith.constant 0 : index
    %44 = vector.load %arg8[%c0_22, %c0_23] : memref<8x32xf32, #tpu.memory_space<vmem>>, vector<8x32xf32>
    %45 = vector.extract_strided_slice %7 {offsets = [8, 0], sizes = [8, 128], strides = [1, 1]} : vector<64x128xf32> to vector<8x128xf32>
    %46 = vector.broadcast %5 : vector<1x128xf32> to vector<8x128xf32>
    %47 = arith.addf %45, %46 : vector<8x128xf32>
    %48 = arith.truncf %44 : vector<8x32xf32> to vector<8x32xbf16>
    %cst_24 = arith.constant dense<0.000000e+00> : vector<8x128xf32>
    %49 = tpu.matmul %48, %4, %cst_24 {dimension_numbers = #tpu.dot_dimension_numbers<[1], [0], [0], [1], [0, 0, 1, 1], [], []>} : vector<8x32xbf16>, vector<32x128xbf16>, vector<8x128xf32> -> vector<8x128xf32>
    %50 = arith.addf %47, %49 : vector<8x128xf32>
    %51 = vector.extract_strided_slice %50 {offsets = [0, 0], sizes = [8, 32], strides = [1, 1]} : vector<8x128xf32> to vector<8x32xf32>
    %52 = arith.negf %51 : vector<8x32xf32>
    %53 = math.exp %52 : vector<8x32xf32>
    %cst_25 = arith.constant 1.000000e+00 : f32
    %54 = vector.broadcast %cst_25 : f32 to vector<8x32xf32>
    %55 = arith.addf %54, %53 : vector<8x32xf32>
    %56 = arith.divf %54, %55 : vector<8x32xf32>
    %57 = vector.extract_strided_slice %50 {offsets = [0, 32], sizes = [8, 32], strides = [1, 1]} : vector<8x128xf32> to vector<8x32xf32>
    %58 = arith.negf %57 : vector<8x32xf32>
    %59 = math.exp %58 : vector<8x32xf32>
    %cst_26 = arith.constant 1.000000e+00 : f32
    %60 = vector.broadcast %cst_26 : f32 to vector<8x32xf32>
    %61 = arith.addf %60, %59 : vector<8x32xf32>
    %62 = arith.divf %60, %61 : vector<8x32xf32>
    %63 = vector.extract_strided_slice %50 {offsets = [0, 64], sizes = [8, 32], strides = [1, 1]} : vector<8x128xf32> to vector<8x32xf32>
    %64 = math.tanh %63 : vector<8x32xf32>
    %65 = vector.extract_strided_slice %50 {offsets = [0, 96], sizes = [8, 32], strides = [1, 1]} : vector<8x128xf32> to vector<8x32xf32>
    %66 = arith.negf %65 : vector<8x32xf32>
    %67 = math.exp %66 : vector<8x32xf32>
    %cst_27 = arith.constant 1.000000e+00 : f32
    %68 = vector.broadcast %cst_27 : f32 to vector<8x32xf32>
    %69 = arith.addf %68, %67 : vector<8x32xf32>
    %70 = arith.divf %68, %69 : vector<8x32xf32>
    %c0_28 = arith.constant 0 : index
    %c0_29 = arith.constant 0 : index
    %71 = vector.load %arg9[%c0_28, %c0_29] : memref<8x32xf32, #tpu.memory_space<vmem>>, vector<8x32xf32>
    %72 = arith.mulf %62, %71 : vector<8x32xf32>
    %73 = arith.mulf %56, %64 : vector<8x32xf32>
    %74 = arith.addf %72, %73 : vector<8x32xf32>
    %75 = math.tanh %74 : vector<8x32xf32>
    %76 = arith.mulf %70, %75 : vector<8x32xf32>
    %c0_30 = arith.constant 0 : index
    %c0_31 = arith.constant 0 : index
    %77 = vector.load %arg9[%c0_30, %c0_31] : memref<8x32xf32, #tpu.memory_space<vmem>>, vector<8x32xf32>
    tpu.vector_store %arg9[%c0_30, %c0_31], %74 {strides = array<i32>} : memref<8x32xf32, #tpu.memory_space<vmem>>, vector<8x32xf32>,
    %c0_32 = arith.constant 0 : index
    %c0_33 = arith.constant 0 : index
    %78 = vector.load %arg8[%c0_32, %c0_33] : memref<8x32xf32, #tpu.memory_space<vmem>>, vector<8x32xf32>
    tpu.vector_store %arg8[%c0_32, %c0_33], %76 {strides = array<i32>} : memref<8x32xf32, #tpu.memory_space<vmem>>, vector<8x32xf32>,
    %c8 = arith.constant 8 : index
    %c0_34 = arith.constant 0 : index
    %79 = vector.load %arg10[%c8, %c0_34] : memref<64x32xf32, #tpu.memory_space<vmem>>, vector<8x32xf32>
    tpu.vector_store %arg10[%c8, %c0_34], %76 {strides = array<i32>} : memref<64x32xf32, #tpu.memory_space<vmem>>, vector<8x32xf32>,
    %c0_35 = arith.constant 0 : index
    %c0_36 = arith.constant 0 : index
    %80 = vector.load %arg8[%c0_35, %c0_36] : memref<8x32xf32, #tpu.memory_space<vmem>>, vector<8x32xf32>
    %81 = vector.extract_strided_slice %7 {offsets = [16, 0], sizes = [8, 128], strides = [1, 1]} : vector<64x128xf32> to vector<8x128xf32>
    %82 = vector.broadcast %5 : vector<1x128xf32> to vector<8x128xf32>
    %83 = arith.addf %81, %82 : vector<8x128xf32>
    %84 = arith.truncf %80 : vector<8x32xf32> to vector<8x32xbf16>
    %cst_37 = arith.constant dense<0.000000e+00> : vector<8x128xf32>
    %85 = tpu.matmul %84, %4, %cst_37 {dimension_numbers = #tpu.dot_dimension_numbers<[1], [0], [0], [1], [0, 0, 1, 1], [], []>} : vector<8x32xbf16>, vector<32x128xbf16>, vector<8x128xf32> -> vector<8x128xf32>
    %86 = arith.addf %83, %85 : vector<8x128xf32>
    %87 = vector.extract_strided_slice %86 {offsets = [0, 0], sizes = [8, 32], strides = [1, 1]} : vector<8x128xf32> to vector<8x32xf32>
    %88 = arith.negf %87 : vector<8x32xf32>
    %89 = math.exp %88 : vector<8x32xf32>
    %cst_38 = arith.constant 1.000000e+00 : f32
    %90 = vector.broadcast %cst_38 : f32 to vector<8x32xf32>
    %91 = arith.addf %90, %89 : vector<8x32xf32>
    %92 = arith.divf %90, %91 : vector<8x32xf32>
    %93 = vector.extract_strided_slice %86 {offsets = [0, 32], sizes = [8, 32], strides = [1, 1]} : vector<8x128xf32> to vector<8x32xf32>
    %94 = arith.negf %93 : vector<8x32xf32>
    %95 = math.exp %94 : vector<8x32xf32>
    %cst_39 = arith.constant 1.000000e+00 : f32
    %96 = vector.broadcast %cst_39 : f32 to vector<8x32xf32>
    %97 = arith.addf %96, %95 : vector<8x32xf32>
    %98 = arith.divf %96, %97 : vector<8x32xf32>
    %99 = vector.extract_strided_slice %86 {offsets = [0, 64], sizes = [8, 32], strides = [1, 1]} : vector<8x128xf32> to vector<8x32xf32>
    %100 = math.tanh %99 : vector<8x32xf32>
    %101 = vector.extract_strided_slice %86 {offsets = [0, 96], sizes = [8, 32], strides = [1, 1]} : vector<8x128xf32> to vector<8x32xf32>
    %102 = arith.negf %101 : vector<8x32xf32>
    %103 = math.exp %102 : vector<8x32xf32>
    %cst_40 = arith.constant 1.000000e+00 : f32
    %104 = vector.broadcast %cst_40 : f32 to vector<8x32xf32>
    %105 = arith.addf %104, %103 : vector<8x32xf32>
    %106 = arith.divf %104, %105 : vector<8x32xf32>
    %c0_41 = arith.constant 0 : index
    %c0_42 = arith.constant 0 : index
    %107 = vector.load %arg9[%c0_41, %c0_42] : memref<8x32xf32, #tpu.memory_space<vmem>>, vector<8x32xf32>
    %108 = arith.mulf %98, %107 : vector<8x32xf32>
    %109 = arith.mulf %92, %100 : vector<8x32xf32>
    %110 = arith.addf %108, %109 : vector<8x32xf32>
    %111 = math.tanh %110 : vector<8x32xf32>
    %112 = arith.mulf %106, %111 : vector<8x32xf32>
    %c0_43 = arith.constant 0 : index
    %c0_44 = arith.constant 0 : index
    %113 = vector.load %arg9[%c0_43, %c0_44] : memref<8x32xf32, #tpu.memory_space<vmem>>, vector<8x32xf32>
    tpu.vector_store %arg9[%c0_43, %c0_44], %110 {strides = array<i32>} : memref<8x32xf32, #tpu.memory_space<vmem>>, vector<8x32xf32>,
    %c0_45 = arith.constant 0 : index
    %c0_46 = arith.constant 0 : index
    %114 = vector.load %arg8[%c0_45, %c0_46] : memref<8x32xf32, #tpu.memory_space<vmem>>, vector<8x32xf32>
    tpu.vector_store %arg8[%c0_45, %c0_46], %112 {strides = array<i32>} : memref<8x32xf32, #tpu.memory_space<vmem>>, vector<8x32xf32>,
    %c16 = arith.constant 16 : index
    %c0_47 = arith.constant 0 : index
    %115 = vector.load %arg10[%c16, %c0_47] : memref<64x32xf32, #tpu.memory_space<vmem>>, vector<8x32xf32>
    tpu.vector_store %arg10[%c16, %c0_47], %112 {strides = array<i32>} : memref<64x32xf32, #tpu.memory_space<vmem>>, vector<8x32xf32>,
    %c0_48 = arith.constant 0 : index
    %c0_49 = arith.constant 0 : index
    %116 = vector.load %arg8[%c0_48, %c0_49] : memref<8x32xf32, #tpu.memory_space<vmem>>, vector<8x32xf32>
    %117 = vector.extract_strided_slice %7 {offsets = [24, 0], sizes = [8, 128], strides = [1, 1]} : vector<64x128xf32> to vector<8x128xf32>
    %118 = vector.broadcast %5 : vector<1x128xf32> to vector<8x128xf32>
    %119 = arith.addf %117, %118 : vector<8x128xf32>
    %120 = arith.truncf %116 : vector<8x32xf32> to vector<8x32xbf16>
    %cst_50 = arith.constant dense<0.000000e+00> : vector<8x128xf32>
    %121 = tpu.matmul %120, %4, %cst_50 {dimension_numbers = #tpu.dot_dimension_numbers<[1], [0], [0], [1], [0, 0, 1, 1], [], []>} : vector<8x32xbf16>, vector<32x128xbf16>, vector<8x128xf32> -> vector<8x128xf32>
    %122 = arith.addf %119, %121 : vector<8x128xf32>
    %123 = vector.extract_strided_slice %122 {offsets = [0, 0], sizes = [8, 32], strides = [1, 1]} : vector<8x128xf32> to vector<8x32xf32>
    %124 = arith.negf %123 : vector<8x32xf32>
    %125 = math.exp %124 : vector<8x32xf32>
    %cst_51 = arith.constant 1.000000e+00 : f32
    %126 = vector.broadcast %cst_51 : f32 to vector<8x32xf32>
    %127 = arith.addf %126, %125 : vector<8x32xf32>
    %128 = arith.divf %126, %127 : vector<8x32xf32>
    %129 = vector.extract_strided_slice %122 {offsets = [0, 32], sizes = [8, 32], strides = [1, 1]} : vector<8x128xf32> to vector<8x32xf32>
    %130 = arith.negf %129 : vector<8x32xf32>
    %131 = math.exp %130 : vector<8x32xf32>
    %cst_52 = arith.constant 1.000000e+00 : f32
    %132 = vector.broadcast %cst_52 : f32 to vector<8x32xf32>
    %133 = arith.addf %132, %131 : vector<8x32xf32>
    %134 = arith.divf %132, %133 : vector<8x32xf32>
    %135 = vector.extract_strided_slice %122 {offsets = [0, 64], sizes = [8, 32], strides = [1, 1]} : vector<8x128xf32> to vector<8x32xf32>
    %136 = math.tanh %135 : vector<8x32xf32>
    %137 = vector.extract_strided_slice %122 {offsets = [0, 96], sizes = [8, 32], strides = [1, 1]} : vector<8x128xf32> to vector<8x32xf32>
    %138 = arith.negf %137 : vector<8x32xf32>
    %139 = math.exp %138 : vector<8x32xf32>
    %cst_53 = arith.constant 1.000000e+00 : f32
    %140 = vector.broadcast %cst_53 : f32 to vector<8x32xf32>
    %141 = arith.addf %140, %139 : vector<8x32xf32>
    %142 = arith.divf %140, %141 : vector<8x32xf32>
    %c0_54 = arith.constant 0 : index
    %c0_55 = arith.constant 0 : index
    %143 = vector.load %arg9[%c0_54, %c0_55] : memref<8x32xf32, #tpu.memory_space<vmem>>, vector<8x32xf32>
    %144 = arith.mulf %134, %143 : vector<8x32xf32>
    %145 = arith.mulf %128, %136 : vector<8x32xf32>
    %146 = arith.addf %144, %145 : vector<8x32xf32>
    %147 = math.tanh %146 : vector<8x32xf32>
    %148 = arith.mulf %142, %147 : vector<8x32xf32>
    %c0_56 = arith.constant 0 : index
    %c0_57 = arith.constant 0 : index
    %149 = vector.load %arg9[%c0_56, %c0_57] : memref<8x32xf32, #tpu.memory_space<vmem>>, vector<8x32xf32>
    tpu.vector_store %arg9[%c0_56, %c0_57], %146 {strides = array<i32>} : memref<8x32xf32, #tpu.memory_space<vmem>>, vector<8x32xf32>,
    %c0_58 = arith.constant 0 : index
    %c0_59 = arith.constant 0 : index
    %150 = vector.load %arg8[%c0_58, %c0_59] : memref<8x32xf32, #tpu.memory_space<vmem>>, vector<8x32xf32>
    tpu.vector_store %arg8[%c0_58, %c0_59], %148 {strides = array<i32>} : memref<8x32xf32, #tpu.memory_space<vmem>>, vector<8x32xf32>,
    %c24 = arith.constant 24 : index
    %c0_60 = arith.constant 0 : index
    %151 = vector.load %arg10[%c24, %c0_60] : memref<64x32xf32, #tpu.memory_space<vmem>>, vector<8x32xf32>
    tpu.vector_store %arg10[%c24, %c0_60], %148 {strides = array<i32>} : memref<64x32xf32, #tpu.memory_space<vmem>>, vector<8x32xf32>,
    %c0_61 = arith.constant 0 : index
    %c0_62 = arith.constant 0 : index
    %152 = vector.load %arg8[%c0_61, %c0_62] : memref<8x32xf32, #tpu.memory_space<vmem>>, vector<8x32xf32>
    %153 = vector.extract_strided_slice %7 {offsets = [32, 0], sizes = [8, 128], strides = [1, 1]} : vector<64x128xf32> to vector<8x128xf32>
    %154 = vector.broadcast %5 : vector<1x128xf32> to vector<8x128xf32>
    %155 = arith.addf %153, %154 : vector<8x128xf32>
    %156 = arith.truncf %152 : vector<8x32xf32> to vector<8x32xbf16>
    %cst_63 = arith.constant dense<0.000000e+00> : vector<8x128xf32>
    %157 = tpu.matmul %156, %4, %cst_63 {dimension_numbers = #tpu.dot_dimension_numbers<[1], [0], [0], [1], [0, 0, 1, 1], [], []>} : vector<8x32xbf16>, vector<32x128xbf16>, vector<8x128xf32> -> vector<8x128xf32>
    %158 = arith.addf %155, %157 : vector<8x128xf32>
    %159 = vector.extract_strided_slice %158 {offsets = [0, 0], sizes = [8, 32], strides = [1, 1]} : vector<8x128xf32> to vector<8x32xf32>
    %160 = arith.negf %159 : vector<8x32xf32>
    %161 = math.exp %160 : vector<8x32xf32>
    %cst_64 = arith.constant 1.000000e+00 : f32
    %162 = vector.broadcast %cst_64 : f32 to vector<8x32xf32>
    %163 = arith.addf %162, %161 : vector<8x32xf32>
    %164 = arith.divf %162, %163 : vector<8x32xf32>
    %165 = vector.extract_strided_slice %158 {offsets = [0, 32], sizes = [8, 32], strides = [1, 1]} : vector<8x128xf32> to vector<8x32xf32>
    %166 = arith.negf %165 : vector<8x32xf32>
    %167 = math.exp %166 : vector<8x32xf32>
    %cst_65 = arith.constant 1.000000e+00 : f32
    %168 = vector.broadcast %cst_65 : f32 to vector<8x32xf32>
    %169 = arith.addf %168, %167 : vector<8x32xf32>
    %170 = arith.divf %168, %169 : vector<8x32xf32>
    %171 = vector.extract_strided_slice %158 {offsets = [0, 64], sizes = [8, 32], strides = [1, 1]} : vector<8x128xf32> to vector<8x32xf32>
    %172 = math.tanh %171 : vector<8x32xf32>
    %173 = vector.extract_strided_slice %158 {offsets = [0, 96], sizes = [8, 32], strides = [1, 1]} : vector<8x128xf32> to vector<8x32xf32>
    %174 = arith.negf %173 : vector<8x32xf32>
    %175 = math.exp %174 : vector<8x32xf32>
    %cst_66 = arith.constant 1.000000e+00 : f32
    %176 = vector.broadcast %cst_66 : f32 to vector<8x32xf32>
    %177 = arith.addf %176, %175 : vector<8x32xf32>
    %178 = arith.divf %176, %177 : vector<8x32xf32>
    %c0_67 = arith.constant 0 : index
    %c0_68 = arith.constant 0 : index
    %179 = vector.load %arg9[%c0_67, %c0_68] : memref<8x32xf32, #tpu.memory_space<vmem>>, vector<8x32xf32>
    %180 = arith.mulf %170, %179 : vector<8x32xf32>
    %181 = arith.mulf %164, %172 : vector<8x32xf32>
    %182 = arith.addf %180, %181 : vector<8x32xf32>
    %183 = math.tanh %182 : vector<8x32xf32>
    %184 = arith.mulf %178, %183 : vector<8x32xf32>
    %c0_69 = arith.constant 0 : index
    %c0_70 = arith.constant 0 : index
    %185 = vector.load %arg9[%c0_69, %c0_70] : memref<8x32xf32, #tpu.memory_space<vmem>>, vector<8x32xf32>
    tpu.vector_store %arg9[%c0_69, %c0_70], %182 {strides = array<i32>} : memref<8x32xf32, #tpu.memory_space<vmem>>, vector<8x32xf32>,
    %c0_71 = arith.constant 0 : index
    %c0_72 = arith.constant 0 : index
    %186 = vector.load %arg8[%c0_71, %c0_72] : memref<8x32xf32, #tpu.memory_space<vmem>>, vector<8x32xf32>
    tpu.vector_store %arg8[%c0_71, %c0_72], %184 {strides = array<i32>} : memref<8x32xf32, #tpu.memory_space<vmem>>, vector<8x32xf32>,
    %c32 = arith.constant 32 : index
    %c0_73 = arith.constant 0 : index
    %187 = vector.load %arg10[%c32, %c0_73] : memref<64x32xf32, #tpu.memory_space<vmem>>, vector<8x32xf32>
    tpu.vector_store %arg10[%c32, %c0_73], %184 {strides = array<i32>} : memref<64x32xf32, #tpu.memory_space<vmem>>, vector<8x32xf32>,
    %c0_74 = arith.constant 0 : index
    %c0_75 = arith.constant 0 : index
    %188 = vector.load %arg8[%c0_74, %c0_75] : memref<8x32xf32, #tpu.memory_space<vmem>>, vector<8x32xf32>
    %189 = vector.extract_strided_slice %7 {offsets = [40, 0], sizes = [8, 128], strides = [1, 1]} : vector<64x128xf32> to vector<8x128xf32>
    %190 = vector.broadcast %5 : vector<1x128xf32> to vector<8x128xf32>
    %191 = arith.addf %189, %190 : vector<8x128xf32>
    %192 = arith.truncf %188 : vector<8x32xf32> to vector<8x32xbf16>
    %cst_76 = arith.constant dense<0.000000e+00> : vector<8x128xf32>
    %193 = tpu.matmul %192, %4, %cst_76 {dimension_numbers = #tpu.dot_dimension_numbers<[1], [0], [0], [1], [0, 0, 1, 1], [], []>} : vector<8x32xbf16>, vector<32x128xbf16>, vector<8x128xf32> -> vector<8x128xf32>
    %194 = arith.addf %191, %193 : vector<8x128xf32>
    %195 = vector.extract_strided_slice %194 {offsets = [0, 0], sizes = [8, 32], strides = [1, 1]} : vector<8x128xf32> to vector<8x32xf32>
    %196 = arith.negf %195 : vector<8x32xf32>
    %197 = math.exp %196 : vector<8x32xf32>
    %cst_77 = arith.constant 1.000000e+00 : f32
    %198 = vector.broadcast %cst_77 : f32 to vector<8x32xf32>
    %199 = arith.addf %198, %197 : vector<8x32xf32>
    %200 = arith.divf %198, %199 : vector<8x32xf32>
    %201 = vector.extract_strided_slice %194 {offsets = [0, 32], sizes = [8, 32], strides = [1, 1]} : vector<8x128xf32> to vector<8x32xf32>
    %202 = arith.negf %201 : vector<8x32xf32>
    %203 = math.exp %202 : vector<8x32xf32>
    %cst_78 = arith.constant 1.000000e+00 : f32
    %204 = vector.broadcast %cst_78 : f32 to vector<8x32xf32>
    %205 = arith.addf %204, %203 : vector<8x32xf32>
    %206 = arith.divf %204, %205 : vector<8x32xf32>
    %207 = vector.extract_strided_slice %194 {offsets = [0, 64], sizes = [8, 32], strides = [1, 1]} : vector<8x128xf32> to vector<8x32xf32>
    %208 = math.tanh %207 : vector<8x32xf32>
    %209 = vector.extract_strided_slice %194 {offsets = [0, 96], sizes = [8, 32], strides = [1, 1]} : vector<8x128xf32> to vector<8x32xf32>
    %210 = arith.negf %209 : vector<8x32xf32>
    %211 = math.exp %210 : vector<8x32xf32>
    %cst_79 = arith.constant 1.000000e+00 : f32
    %212 = vector.broadcast %cst_79 : f32 to vector<8x32xf32>
    %213 = arith.addf %212, %211 : vector<8x32xf32>
    %214 = arith.divf %212, %213 : vector<8x32xf32>
    %c0_80 = arith.constant 0 : index
    %c0_81 = arith.constant 0 : index
    %215 = vector.load %arg9[%c0_80, %c0_81] : memref<8x32xf32, #tpu.memory_space<vmem>>, vector<8x32xf32>
    %216 = arith.mulf %206, %215 : vector<8x32xf32>
    %217 = arith.mulf %200, %208 : vector<8x32xf32>
    %218 = arith.addf %216, %217 : vector<8x32xf32>
    %219 = math.tanh %218 : vector<8x32xf32>
    %220 = arith.mulf %214, %219 : vector<8x32xf32>
    %c0_82 = arith.constant 0 : index
    %c0_83 = arith.constant 0 : index
    %221 = vector.load %arg9[%c0_82, %c0_83] : memref<8x32xf32, #tpu.memory_space<vmem>>, vector<8x32xf32>
    tpu.vector_store %arg9[%c0_82, %c0_83], %218 {strides = array<i32>} : memref<8x32xf32, #tpu.memory_space<vmem>>, vector<8x32xf32>,
    %c0_84 = arith.constant 0 : index
    %c0_85 = arith.constant 0 : index
    %222 = vector.load %arg8[%c0_84, %c0_85] : memref<8x32xf32, #tpu.memory_space<vmem>>, vector<8x32xf32>
    tpu.vector_store %arg8[%c0_84, %c0_85], %220 {strides = array<i32>} : memref<8x32xf32, #tpu.memory_space<vmem>>, vector<8x32xf32>,
    %c40 = arith.constant 40 : index
    %c0_86 = arith.constant 0 : index
    %223 = vector.load %arg10[%c40, %c0_86] : memref<64x32xf32, #tpu.memory_space<vmem>>, vector<8x32xf32>
    tpu.vector_store %arg10[%c40, %c0_86], %220 {strides = array<i32>} : memref<64x32xf32, #tpu.memory_space<vmem>>, vector<8x32xf32>,
    %c0_87 = arith.constant 0 : index
    %c0_88 = arith.constant 0 : index
    %224 = vector.load %arg8[%c0_87, %c0_88] : memref<8x32xf32, #tpu.memory_space<vmem>>, vector<8x32xf32>
    %225 = vector.extract_strided_slice %7 {offsets = [48, 0], sizes = [8, 128], strides = [1, 1]} : vector<64x128xf32> to vector<8x128xf32>
    %226 = vector.broadcast %5 : vector<1x128xf32> to vector<8x128xf32>
    %227 = arith.addf %225, %226 : vector<8x128xf32>
    %228 = arith.truncf %224 : vector<8x32xf32> to vector<8x32xbf16>
    %cst_89 = arith.constant dense<0.000000e+00> : vector<8x128xf32>
    %229 = tpu.matmul %228, %4, %cst_89 {dimension_numbers = #tpu.dot_dimension_numbers<[1], [0], [0], [1], [0, 0, 1, 1], [], []>} : vector<8x32xbf16>, vector<32x128xbf16>, vector<8x128xf32> -> vector<8x128xf32>
    %230 = arith.addf %227, %229 : vector<8x128xf32>
    %231 = vector.extract_strided_slice %230 {offsets = [0, 0], sizes = [8, 32], strides = [1, 1]} : vector<8x128xf32> to vector<8x32xf32>
    %232 = arith.negf %231 : vector<8x32xf32>
    %233 = math.exp %232 : vector<8x32xf32>
    %cst_90 = arith.constant 1.000000e+00 : f32
    %234 = vector.broadcast %cst_90 : f32 to vector<8x32xf32>
    %235 = arith.addf %234, %233 : vector<8x32xf32>
    %236 = arith.divf %234, %235 : vector<8x32xf32>
    %237 = vector.extract_strided_slice %230 {offsets = [0, 32], sizes = [8, 32], strides = [1, 1]} : vector<8x128xf32> to vector<8x32xf32>
    %238 = arith.negf %237 : vector<8x32xf32>
    %239 = math.exp %238 : vector<8x32xf32>
    %cst_91 = arith.constant 1.000000e+00 : f32
    %240 = vector.broadcast %cst_91 : f32 to vector<8x32xf32>
    %241 = arith.addf %240, %239 : vector<8x32xf32>
    %242 = arith.divf %240, %241 : vector<8x32xf32>
    %243 = vector.extract_strided_slice %230 {offsets = [0, 64], sizes = [8, 32], strides = [1, 1]} : vector<8x128xf32> to vector<8x32xf32>
    %244 = math.tanh %243 : vector<8x32xf32>
    %245 = vector.extract_strided_slice %230 {offsets = [0, 96], sizes = [8, 32], strides = [1, 1]} : vector<8x128xf32> to vector<8x32xf32>
    %246 = arith.negf %245 : vector<8x32xf32>
    %247 = math.exp %246 : vector<8x32xf32>
    %cst_92 = arith.constant 1.000000e+00 : f32
    %248 = vector.broadcast %cst_92 : f32 to vector<8x32xf32>
    %249 = arith.addf %248, %247 : vector<8x32xf32>
    %250 = arith.divf %248, %249 : vector<8x32xf32>
    %c0_93 = arith.constant 0 : index
    %c0_94 = arith.constant 0 : index
    %251 = vector.load %arg9[%c0_93, %c0_94] : memref<8x32xf32, #tpu.memory_space<vmem>>, vector<8x32xf32>
    %252 = arith.mulf %242, %251 : vector<8x32xf32>
    %253 = arith.mulf %236, %244 : vector<8x32xf32>
    %254 = arith.addf %252, %253 : vector<8x32xf32>
    %255 = math.tanh %254 : vector<8x32xf32>
    %256 = arith.mulf %250, %255 : vector<8x32xf32>
    %c0_95 = arith.constant 0 : index
    %c0_96 = arith.constant 0 : index
    %257 = vector.load %arg9[%c0_95, %c0_96] : memref<8x32xf32, #tpu.memory_space<vmem>>, vector<8x32xf32>
    tpu.vector_store %arg9[%c0_95, %c0_96], %254 {strides = array<i32>} : memref<8x32xf32, #tpu.memory_space<vmem>>, vector<8x32xf32>,
    %c0_97 = arith.constant 0 : index
    %c0_98 = arith.constant 0 : index
    %258 = vector.load %arg8[%c0_97, %c0_98] : memref<8x32xf32, #tpu.memory_space<vmem>>, vector<8x32xf32>
    tpu.vector_store %arg8[%c0_97, %c0_98], %256 {strides = array<i32>} : memref<8x32xf32, #tpu.memory_space<vmem>>, vector<8x32xf32>,
    %c48 = arith.constant 48 : index
    %c0_99 = arith.constant 0 : index
    %259 = vector.load %arg10[%c48, %c0_99] : memref<64x32xf32, #tpu.memory_space<vmem>>, vector<8x32xf32>
    tpu.vector_store %arg10[%c48, %c0_99], %256 {strides = array<i32>} : memref<64x32xf32, #tpu.memory_space<vmem>>, vector<8x32xf32>,
    %c0_100 = arith.constant 0 : index
    %c0_101 = arith.constant 0 : index
    %260 = vector.load %arg8[%c0_100, %c0_101] : memref<8x32xf32, #tpu.memory_space<vmem>>, vector<8x32xf32>
    %261 = vector.extract_strided_slice %7 {offsets = [56, 0], sizes = [8, 128], strides = [1, 1]} : vector<64x128xf32> to vector<8x128xf32>
    %262 = vector.broadcast %5 : vector<1x128xf32> to vector<8x128xf32>
    %263 = arith.addf %261, %262 : vector<8x128xf32>
    %264 = arith.truncf %260 : vector<8x32xf32> to vector<8x32xbf16>
    %cst_102 = arith.constant dense<0.000000e+00> : vector<8x128xf32>
    %265 = tpu.matmul %264, %4, %cst_102 {dimension_numbers = #tpu.dot_dimension_numbers<[1], [0], [0], [1], [0, 0, 1, 1], [], []>} : vector<8x32xbf16>, vector<32x128xbf16>, vector<8x128xf32> -> vector<8x128xf32>
    %266 = arith.addf %263, %265 : vector<8x128xf32>
    %267 = vector.extract_strided_slice %266 {offsets = [0, 0], sizes = [8, 32], strides = [1, 1]} : vector<8x128xf32> to vector<8x32xf32>
    %268 = arith.negf %267 : vector<8x32xf32>
    %269 = math.exp %268 : vector<8x32xf32>
    %cst_103 = arith.constant 1.000000e+00 : f32
    %270 = vector.broadcast %cst_103 : f32 to vector<8x32xf32>
    %271 = arith.addf %270, %269 : vector<8x32xf32>
    %272 = arith.divf %270, %271 : vector<8x32xf32>
    %273 = vector.extract_strided_slice %266 {offsets = [0, 32], sizes = [8, 32], strides = [1, 1]} : vector<8x128xf32> to vector<8x32xf32>
    %274 = arith.negf %273 : vector<8x32xf32>
    %275 = math.exp %274 : vector<8x32xf32>
    %cst_104 = arith.constant 1.000000e+00 : f32
    %276 = vector.broadcast %cst_104 : f32 to vector<8x32xf32>
    %277 = arith.addf %276, %275 : vector<8x32xf32>
    %278 = arith.divf %276, %277 : vector<8x32xf32>
    %279 = vector.extract_strided_slice %266 {offsets = [0, 64], sizes = [8, 32], strides = [1, 1]} : vector<8x128xf32> to vector<8x32xf32>
    %280 = math.tanh %279 : vector<8x32xf32>
    %281 = vector.extract_strided_slice %266 {offsets = [0, 96], sizes = [8, 32], strides = [1, 1]} : vector<8x128xf32> to vector<8x32xf32>
    %282 = arith.negf %281 : vector<8x32xf32>
    %283 = math.exp %282 : vector<8x32xf32>
    %cst_105 = arith.constant 1.000000e+00 : f32
    %284 = vector.broadcast %cst_105 : f32 to vector<8x32xf32>
    %285 = arith.addf %284, %283 : vector<8x32xf32>
    %286 = arith.divf %284, %285 : vector<8x32xf32>
    %c0_106 = arith.constant 0 : index
    %c0_107 = arith.constant 0 : index
    %287 = vector.load %arg9[%c0_106, %c0_107] : memref<8x32xf32, #tpu.memory_space<vmem>>, vector<8x32xf32>
    %288 = arith.mulf %278, %287 : vector<8x32xf32>
    %289 = arith.mulf %272, %280 : vector<8x32xf32>
    %290 = arith.addf %288, %289 : vector<8x32xf32>
    %291 = math.tanh %290 : vector<8x32xf32>
    %292 = arith.mulf %286, %291 : vector<8x32xf32>
    %c0_108 = arith.constant 0 : index
    %c0_109 = arith.constant 0 : index
    %293 = vector.load %arg9[%c0_108, %c0_109] : memref<8x32xf32, #tpu.memory_space<vmem>>, vector<8x32xf32>
    tpu.vector_store %arg9[%c0_108, %c0_109], %290 {strides = array<i32>} : memref<8x32xf32, #tpu.memory_space<vmem>>, vector<8x32xf32>,
    %c0_110 = arith.constant 0 : index
    %c0_111 = arith.constant 0 : index
    %294 = vector.load %arg8[%c0_110, %c0_111] : memref<8x32xf32, #tpu.memory_space<vmem>>, vector<8x32xf32>
    tpu.vector_store %arg8[%c0_110, %c0_111], %292 {strides = array<i32>} : memref<8x32xf32, #tpu.memory_space<vmem>>, vector<8x32xf32>,
    %c56 = arith.constant 56 : index
    %c0_112 = arith.constant 0 : index
    %295 = vector.load %arg10[%c56, %c0_112] : memref<64x32xf32, #tpu.memory_space<vmem>>, vector<8x32xf32>
    tpu.vector_store %arg10[%c56, %c0_112], %292 {strides = array<i32>} : memref<64x32xf32, #tpu.memory_space<vmem>>, vector<8x32xf32>,
    %c0_113 = arith.constant 0 : index
    %c0_114 = arith.constant 0 : index
    %296 = vector.load %arg10[%c0_113, %c0_114] : memref<64x32xf32, #tpu.memory_space<vmem>>, vector<64x32xf32>
    %297 = arith.truncf %296 : vector<64x32xf32> to vector<64x32xbf16>
    %c0_115 = arith.constant 0 : index
    %c0_116 = arith.constant 0 : index
    %298 = vector.load %arg7[%c0_115, %c0_116] : memref<64x32xbf16, #tpu.memory_space<vmem>>, vector<64x32xbf16>
    tpu.vector_store %arg7[%c0_115, %c0_116], %297 {strides = array<i32>} : memref<64x32xbf16, #tpu.memory_space<vmem>>, vector<64x32xbf16>,
    return
  }
  func.func @transform_0(%arg0: i32) -> (i32, i32) {
    %c0_i32 = arith.constant 0 : i32
    %c0_i32_0 = arith.constant 0 : i32
    return %arg0, %c0_i32 : i32, i32
  }
  func.func @transform_1(%arg0: i32) -> (i32, i32) {
    %c0_i32 = arith.constant 0 : i32
    %c0_i32_0 = arith.constant 0 : i32
    %c0_i32_1 = arith.constant 0 : i32
    return %c0_i32, %c0_i32_0 : i32, i32
  }
  func.func @transform_2(%arg0: i32) -> (i32, i32) {
    %c0_i32 = arith.constant 0 : i32
    %c0_i32_0 = arith.constant 0 : i32
    %c0_i32_1 = arith.constant 0 : i32
    return %c0_i32, %c0_i32_0 : i32, i32
  }
  func.func @transform_3(%arg0: i32) -> (i32, i32) {
    %c0_i32 = arith.constant 0 : i32
    %c0_i32_0 = arith.constant 0 : i32
    %c0_i32_1 = arith.constant 0 : i32
    return %c0_i32, %c0_i32_0 : i32, i32
  }
  func.func @transform_4(%arg0: i32) -> (i32, i32) {
    %c0_i32 = arith.constant 0 : i32
    %c0_i32_0 = arith.constant 0 : i32
    %c0_i32_1 = arith.constant 0 : i32
    return %c0_i32, %c0_i32_0 : i32, i32
  }
  func.func @transform_5(%arg0: i32) -> (i32, i32) {
    %c0_i32 = arith.constant 0 : i32
    %c0_i32_0 = arith.constant 0 : i32
    %c0_i32_1 = arith.constant 0 : i32
    return %c0_i32, %c0_i32_0 : i32, i32
  }
  func.func @transform_6(%arg0: i32) -> (i32, i32) {
    %c0_i32 = arith.constant 0 : i32
    %c0_i32_0 = arith.constant 0 : i32
    return %arg0, %c0_i32 : i32, i32
  }
}

module attributes {stable_mosaic.version = 11 : i64} {
  func.func @head_kernel(%arg0: i32, %arg1: memref<8x32xbf16, #tpu.memory_space<vmem>>, %arg2: memref<8x32xf32, #tpu.memory_space<vmem>>) attributes {dimension_semantics = [#tpu.dimension_semantics<arbitrary>], iteration_bounds = array<i64: 1>, scalar_prefetch = 0 : i64, scratch_operands = 0 : i64, tpu.core_type = #tpu.core_type<tc>, window_params = [{pipeline_mode = #tpu.pipeline_mode<synchronous>, transform_indices = @transform_0, window_bounds = array<i64: 8, 32>}, {pipeline_mode = #tpu.pipeline_mode<synchronous>, transform_indices = @transform_1, window_bounds = array<i64: 8, 32>}]} {
    %c0 = arith.constant 0 : index
    %c0_0 = arith.constant 0 : index
    %0 = vector.load %arg1[%c0, %c0_0] : memref<8x32xbf16, #tpu.memory_space<vmem>>, vector<8x32xbf16>
    %1 = arith.extf %0 : vector<8x32xbf16> to vector<8x32xf32>
    %2 = arith.negf %1 : vector<8x32xf32>
    %3 = math.exp %2 : vector<8x32xf32>
    %cst = arith.constant 1.000000e+00 : f32
    %4 = vector.broadcast %cst : f32 to vector<8x32xf32>
    %5 = arith.addf %4, %3 : vector<8x32xf32>
    %6 = arith.divf %4, %5 : vector<8x32xf32>
    %cst_1 = arith.constant 2.000000e+06 : f32
    %7 = vector.broadcast %cst_1 : f32 to vector<8x32xf32>
    %8 = arith.mulf %7, %6 : vector<8x32xf32>
    %cst_2 = arith.constant 8.200000e+05 : f32
    %9 = vector.broadcast %cst_2 : f32 to vector<8x32xf32>
    %10 = arith.subf %8, %9 : vector<8x32xf32>
    %c0_3 = arith.constant 0 : index
    %c0_4 = arith.constant 0 : index
    %11 = vector.load %arg2[%c0_3, %c0_4] : memref<8x32xf32, #tpu.memory_space<vmem>>, vector<8x32xf32>
    tpu.vector_store %arg2[%c0_3, %c0_4], %10 {strides = array<i32>} : memref<8x32xf32, #tpu.memory_space<vmem>>, vector<8x32xf32>,
    return
  }
  func.func @transform_0(%arg0: i32) -> (i32, i32) {
    %c0_i32 = arith.constant 0 : i32
    %c0_i32_0 = arith.constant 0 : i32
    %c0_i32_1 = arith.constant 0 : i32
    return %c0_i32, %c0_i32_0 : i32, i32
  }
  func.func @transform_1(%arg0: i32) -> (i32, i32) {
    %c0_i32 = arith.constant 0 : i32
    %c0_i32_0 = arith.constant 0 : i32
    %c0_i32_1 = arith.constant 0 : i32
    return %c0_i32, %c0_i32_0 : i32, i32
  }
}

</mosaic_0001>

<llo_original>
// kernel: lst_model_forward.11
$region0: #{lst_model_forward.11}
  #allocation0 [shape = 'u32[]', space=smem, size = 0x4, offset = 0x4, fixed_abs, tag = 'smem constant byte address 0x4 - core index']
  #allocation1 [shape = 'u32[72,128]{1,0:T(1,128)}', space=vmem, size = 0x9000, scoped, tag = 'internal scratch']
  #allocation2 [shape = 'f32[8,32]{1,0:T(8,128)}', space=vmem, size = 0x1000, scoped, tag = 'scratch operand']
  #allocation3 [shape = 'f32[8,32]{1,0:T(8,128)}', space=vmem, size = 0x1000, scoped, tag = 'scratch operand']
  #allocation4 [shape = 'f32[64,32]{1,0:T(8,128)}', space=vmem, size = 0x8000, scoped, tag = 'scratch operand']
  %s0 = inlined_call_operand.vmem [shape: bf16[128,10], index: 0, kind: input, shape index: {}]
  %s1 = inlined_call_operand.vmem [shape: bf16[10,128], index: 1, kind: input, shape index: {}]
  %s2 = inlined_call_operand.vmem [shape: bf16[32,128], index: 2, kind: input, shape index: {}]
  %s3 = inlined_call_operand.vmem [shape: f32[1,128], index: 3, kind: input, shape index: {}]
  %s4 = inlined_call_operand.vmem [shape: f32[8,32], index: 4, kind: input, shape index: {}]
  %s5 = inlined_call_operand.vmem [shape: f32[8,32], index: 5, kind: input, shape index: {}]
  %s6 = inlined_call_operand.vmem [shape: bf16[128,32], index: 6, kind: output, shape index: {}]
  %s7 = sld [smem:[#allocation0]]
  $region61: #{lst_model_forward.11} parent=0
    _
  %s9 = ssub.s32 1, %s7
  %s10 = scalar_select 0, %s9, %s7
  loop: start=0, step=1, limit=4
  $region2: #{lst_model_forward.11} parent=0 // loop_pre_header
    _
  $region3: #{lst_model_forward.11} parent=0 // loop_header
    %s12 = sphi 0, %s16
    %p13 = scmp.ge.s32.totalorder %s12, 4
    %s24 = sphi 0, %s26
    %s27 = sphi 0, %s24
    %s28 = sphi 0, %s27
    %s44 = sphi 0, %s28
    %s48 = sphi 0, %s48
    %s50 = sphi 0, %s48
    %s51 = sphi 0, %s50
    %s65 = sphi 0, %s51
    %s69 = sphi 0, %s69
    %s71 = sphi 0, %s69
    %s72 = sphi 0, %s71
    %s86 = sphi 0, %s72
    %s90 = sphi 0, %s90
    %s92 = sphi 0, %s90
    %s93 = sphi 0, %s92
    %s107 = sphi 0, %s93
    %s111 = sphi 0, %s111
    %s113 = sphi 0, %s111
    %s114 = sphi 0, %s113
    %s128 = sphi 0, %s114
    %s132 = sphi 0, %s132
    %s134 = sphi 0, %s132
    %s135 = sphi 0, %s134
    %s149 = sphi 0, %s135
    %s157 = sphi 0, %s159
    %s160 = sphi 0, %s157
    %s161 = sphi 0, %s160
    %s177 = sphi 0, %s161
  $region4: #{lst_model_forward.11} parent=0 // loop_header_branch
    %15 = sbr.rel (%p13) target = $region8
  $region5: #{lst_model_forward.11} parent=0 // loop_body
    %s17 = ssub.s32 %s12, 1
    %s18 = ssub.s32 %s12, 2
    %s19 = sadd.s32 %s12, 1
    %s20 = ssub.s32 1, %s12
    %s21 = ssub.s32 1, %s19
    %s22 = ssub.s32 %s20, %s21
    %p23 = scmp.eq.s32.totalorder %s22, 0
    %s25 = sadd.s32 %s24, 1
    %s26 = scalar_select %p23, %s24, %s25
    %p29 = pneg %p23
    %p30 = scmp.eq.s32.totalorder %s12, 1
    %p31 = por %p29, %p30
    %p32 = scmp.ne.s32.totalorder %s24, %s27
    %p33 = scmp.eq.s32.totalorder %s12, 0
    %p34 = por %p32, %p33
    %p35 = scmp.ne.s32.totalorder %s24, %s27
    %p36 = scmp.eq.s32.totalorder %s17, 1
    %p37 = por %p35, %p36
    %p38 = scmp.ne.s32.totalorder %s27, %s28
    %p39 = scmp.eq.s32.totalorder %s17, 0
    %p40 = por %p38, %p39
    %p41 = scmp.ne.s32.totalorder %s27, %s28
    %p42 = scmp.eq.s32.totalorder %s18, 1
    %p43 = por %p41, %p42
    %p45 = scmp.ne.s32.totalorder %s28, %s44
    %p46 = scmp.eq.s32.totalorder %s18, 0
    %p47 = por %p45, %p46
    %s49 = sadd.s32 %s48, 1
    %p52 = scmp.eq.s32.totalorder %s12, 1
    %p53 = scmp.ne.s32.totalorder %s48, %s50
    %p54 = scmp.eq.s32.totalorder %s12, 0
    %p55 = por %p53, %p54
    %p56 = scmp.ne.s32.totalorder %s48, %s50
    %p57 = scmp.eq.s32.totalorder %s17, 1
    %p58 = por %p56, %p57
    %p59 = scmp.ne.s32.totalorder %s50, %s51
    %p60 = scmp.eq.s32.totalorder %s17, 0
    %p61 = por %p59, %p60
    %p62 = scmp.ne.s32.totalorder %s50, %s51
    %p63 = scmp.eq.s32.totalorder %s18, 1
    %p64 = por %p62, %p63
    %p66 = scmp.ne.s32.totalorder %s51, %s65
    %p67 = scmp.eq.s32.totalorder %s18, 0
    %p68 = por %p66, %p67
    %s70 = sadd.s32 %s69, 1
    %p73 = scmp.eq.s32.totalorder %s12, 1
    %p74 = scmp.ne.s32.totalorder %s69, %s71
    %p75 = scmp.eq.s32.totalorder %s12, 0
    %p76 = por %p74, %p75
    %p77 = scmp.ne.s32.totalorder %s69, %s71
    %p78 = scmp.eq.s32.totalorder %s17, 1
    %p79 = por %p77, %p78
    %p80 = scmp.ne.s32.totalorder %s71, %s72
    %p81 = scmp.eq.s32.totalorder %s17, 0
    %p82 = por %p80, %p81
    %p83 = scmp.ne.s32.totalorder %s71, %s72
    %p84 = scmp.eq.s32.totalorder %s18, 1
    %p85 = por %p83, %p84
    %p87 = scmp.ne.s32.totalorder %s72, %s86
    %p88 = scmp.eq.s32.totalorder %s18, 0
    %p89 = por %p87, %p88
    %s91 = sadd.s32 %s90, 1
    %p94 = scmp.eq.s32.totalorder %s12, 1
    %p95 = scmp.ne.s32.totalorder %s90, %s92
    %p96 = scmp.eq.s32.totalorder %s12, 0
    %p97 = por %p95, %p96
    %p98 = scmp.ne.s32.totalorder %s90, %s92
    %p99 = scmp.eq.s32.totalorder %s17, 1
    %p100 = por %p98, %p99
    %p101 = scmp.ne.s32.totalorder %s92, %s93
    %p102 = scmp.eq.s32.totalorder %s17, 0
    %p103 = por %p101, %p102
    %p104 = scmp.ne.s32.totalorder %s92, %s93
    %p105 = scmp.eq.s32.totalorder %s18, 1
    %p106 = por %p104, %p105
    %p108 = scmp.ne.s32.totalorder %s93, %s107
    %p109 = scmp.eq.s32.totalorder %s18, 0
    %p110 = por %p108, %p109
    %s112 = sadd.s32 %s111, 1
    %p115 = scmp.eq.s32.totalorder %s12, 1
    %p116 = scmp.ne.s32.totalorder %s111, %s113
    %p117 = scmp.eq.s32.totalorder %s12, 0
    %p118 = por %p116, %p117
    %p119 = scmp.ne.s32.totalorder %s111, %s113
    %p120 = scmp.eq.s32.totalorder %s17, 1
    %p121 = por %p119, %p120
    %p122 = scmp.ne.s32.totalorder %s113, %s114
    %p123 = scmp.eq.s32.totalorder %s17, 0
    %p124 = por %p122, %p123
    %p125 = scmp.ne.s32.totalorder %s113, %s114
    %p126 = scmp.eq.s32.totalorder %s18, 1
    %p127 = por %p125, %p126
    %p129 = scmp.ne.s32.totalorder %s114, %s128
    %p130 = scmp.eq.s32.totalorder %s18, 0
    %p131 = por %p129, %p130
    %s133 = sadd.s32 %s132, 1
    %p136 = scmp.eq.s32.totalorder %s12, 1
    %p137 = scmp.ne.s32.totalorder %s132, %s134
    %p138 = scmp.eq.s32.totalorder %s12, 0
    %p139 = por %p137, %p138
    %p140 = scmp.ne.s32.totalorder %s132, %s134
    %p141 = scmp.eq.s32.totalorder %s17, 1
    %p142 = por %p140, %p141
    %p143 = scmp.ne.s32.totalorder %s134, %s135
    %p144 = scmp.eq.s32.totalorder %s17, 0
    %p145 = por %p143, %p144
    %p146 = scmp.ne.s32.totalorder %s134, %s135
    %p147 = scmp.eq.s32.totalorder %s18, 1
    %p148 = por %p146, %p147
    %p150 = scmp.ne.s32.totalorder %s135, %s149
    %p151 = scmp.eq.s32.totalorder %s18, 0
    %p152 = por %p150, %p151
    %s153 = ssub.s32 1, %s12
    %s154 = ssub.s32 1, %s19
    %s155 = ssub.s32 %s153, %s154
    %p156 = scmp.eq.s32.totalorder %s155, 0
    %s158 = sadd.s32 %s157, 1
    %s159 = scalar_select %p156, %s157, %s158
    %p162 = pneg %p156
    %p163 = scmp.eq.s32.totalorder %s12, 1
    %p164 = por %p162, %p163
    %p165 = scmp.ne.s32.totalorder %s157, %s160
    %p166 = scmp.eq.s32.totalorder %s12, 0
    %p167 = por %p165, %p166
    %p168 = scmp.ne.s32.totalorder %s157, %s160
    %p169 = scmp.eq.s32.totalorder %s17, 1
    %p170 = por %p168, %p169
    %p171 = scmp.ne.s32.totalorder %s160, %s161
    %p172 = scmp.eq.s32.totalorder %s17, 0
    %p173 = por %p171, %p172
    %p174 = scmp.ne.s32.totalorder %s160, %s161
    %p175 = scmp.eq.s32.totalorder %s18, 1
    %p176 = por %p174, %p175
    %p178 = scmp.ne.s32.totalorder %s161, %s177
    %p179 = scmp.eq.s32.totalorder %s18, 0
    %p180 = por %p178, %p179
    %p181 = scmp.le.s32.totalorder 1, %s12
    %p182 = scmp.lt.s32.totalorder %s12, 3
    %p183 = pnand %p181, %p182
    %p184 = pneg %p183
    // Predicated region
    $region9: #{lst_model_forward.11} parent=5 // pred_check
      _
    $region10: #{lst_model_forward.11} parent=5 // pred_check_branch
      %186 = sbr.rel (%p183) target = $region12
    $region11: #{lst_model_forward.11} parent=5 // pred_region
      %s187 = ssub.s32 %s12, 1
      // Predicated region
      $region13: #{lst_model_forward.11} parent=11 // pred_check
        %p188 = pneg %p61
      $region14: #{lst_model_forward.11} parent=11 // pred_check_branch
        %190 = sbr.rel (%p188) target = $region16
      $region15: #{lst_model_forward.11} parent=11 // pred_region
        _
      $region16: #{lst_model_forward.11} parent=11 // pred_fallthru
        _
      // Predicated region
      $region17: #{lst_model_forward.11} parent=11 // pred_check
        %p191 = pneg %p82
      $region18: #{lst_model_forward.11} parent=11 // pred_check_branch
        %193 = sbr.rel (%p191) target = $region20
      $region19: #{lst_model_forward.11} parent=11 // pred_region
        _
      $region20: #{lst_model_forward.11} parent=11 // pred_fallthru
        _
      // Predicated region
      $region21: #{lst_model_forward.11} parent=11 // pred_check
        %p194 = pneg %p103
      $region22: #{lst_model_forward.11} parent=11 // pred_check_branch
        %196 = sbr.rel (%p194) target = $region24
      $region23: #{lst_model_forward.11} parent=11 // pred_region
        _
      $region24: #{lst_model_forward.11} parent=11 // pred_fallthru
        _
      // Predicated region
      $region25: #{lst_model_forward.11} parent=11 // pred_check
        %p197 = pneg %p124
      $region26: #{lst_model_forward.11} parent=11 // pred_check_branch
        %199 = sbr.rel (%p197) target = $region28
      $region27: #{lst_model_forward.11} parent=11 // pred_region
        _
      $region28: #{lst_model_forward.11} parent=11 // pred_fallthru
        _
      // Predicated region
      $region29: #{lst_model_forward.11} parent=11 // pred_check
        %p200 = pneg %p145
      $region30: #{lst_model_forward.11} parent=11 // pred_check_branch
        %202 = sbr.rel (%p200) target = $region32
      $region31: #{lst_model_forward.11} parent=11 // pred_region
        _
      $region32: #{lst_model_forward.11} parent=11 // pred_fallthru
        _
    $region12: #{lst_model_forward.11} parent=5 // pred_fallthru
      _
    %p203 = scmp.lt.s32.totalorder %s12, 2
    // Predicated region
    $region33: #{lst_model_forward.11} parent=5 // pred_check
      %p204 = pneg %p203
    $region34: #{lst_model_forward.11} parent=5 // pred_check_branch
      %206 = sbr.rel (%p204) target = $region36
    $region35: #{lst_model_forward.11} parent=5 // pred_region
      // Predicated region
      $region37: #{lst_model_forward.11} parent=35 // pred_check
        %p207 = pneg %p34
      $region38: #{lst_model_forward.11} parent=35 // pred_check_branch
        %209 = sbr.rel (%p207) target = $region40
      $region39: #{lst_model_forward.11} parent=35 // pred_region
        %s210 = ssub.s32 1, %s12
        %s211 = smul.u32 8, %s210
        %p212 = scmp.lt.s32.totalorder %s211, 15
        %s213 = scalar_select %p212, %s211, 15
        %s214 = smul.addr %s213, 4
        %s215 = scalar_lea.vmem %s0, %s214
        %s216 = ssub.s32 1, %s12
        %s217 = smul.u32 8, %s216
      $region40: #{lst_model_forward.11} parent=35 // pred_fallthru
        _
    $region36: #{lst_model_forward.11} parent=5 // pred_fallthru
      _
    %p218 = scmp.le.s32.totalorder 1, %s12
    %p219 = scmp.lt.s32.totalorder %s12, 3
    %p220 = pnand %p218, %p219
    %p221 = pneg %p220
    // Predicated region
    $region41: #{lst_model_forward.11} parent=5 // pred_check
      _
    $region42: #{lst_model_forward.11} parent=5 // pred_check_branch
      %223 = sbr.rel (%p220) target = $region44
    $region43: #{lst_model_forward.11} parent=5 // pred_region
      %s224 = ssub.s32 %s12, 1
      %s225 = ssub.s32 1, %s17
      %s226 = smul.u32 8, %s225
      %p227 = scmp.lt.s32.totalorder %s226, 15
      %s228 = scalar_select %p227, %s226, 15
      %s229 = smul.addr %s228, 4
      %s230 = scalar_lea.vmem %s0, %s229
      %p231 = pneg %p40
      %p232 = pneg %p37
      %p233 = pneg %p61
      %p234 = pneg %p58
      %p235 = pneg %p82
      %p236 = pneg %p79
      %p237 = pneg %p103
      %p238 = pneg %p100
      %p239 = pneg %p124
      %p240 = pneg %p121
      %p241 = pneg %p145
      %p242 = pneg %p142
      %p243 = pneg %p173
      %p244 = pneg %p170
      %s245 = ssub.s32 1, %s17
      %s246 = smul.u32 8, %s245
      %p247 = scmp.lt.s32.totalorder %s246, 15
      %s248 = scalar_select %p247, %s246, 15
      %s249 = smul.addr %s248, 4
      %s250 = scalar_lea.vmem %s6, %s249
      %s251 = ssub.s32 1, %s17
      %s252 = smul.u32 8, %s251
      %p253 = scmp.lt.s32.totalorder %s252, 15
      %s254 = scalar_select %p253, %s252, 15
      %s255 = smul.addr %s254, 4
      %s256 = scalar_lea.vmem %s0, %s255
      %s257 = ssub.s32 1, %s17
      %s258 = smul.u32 8, %s257
      %s259 = ssub.s32 1, %s17
      %s260 = smul.u32 8, %s259
      %p261 = scmp.lt.s32.totalorder %s260, 15
      %s262 = scalar_select %p261, %s260, 15
      %s263 = smul.addr %s262, 4
      %s264 = scalar_lea.vmem %s6, %s263
      %s265 = ssub.s32 1, %s17
      %s266 = smul.u32 8, %s265
      %p268 = scmp.eq.s32.totalorder %s17, 0
      // Predicated region
      $region45: #{lst_model_forward.11} parent=43 // pred_check
        %p269 = pneg %p268
      $region46: #{lst_model_forward.11} parent=43 // pred_check_branch
        %271 = sbr.rel (%p269) target = $region48
      $region47: #{lst_model_forward.11} parent=43 // pred_region
        %v272 = vld [vmem:[%s4] sm:$0xff]
        %vm273 = vcmask 261120
        %274 = vst.msk [vmem:[#allocation2] sm:$0xff] %vm273, %v272
        %v275 = vld [vmem:[%s5] sm:$0xff]
        %276 = vst.msk [vmem:[#allocation3] sm:$0xff] %vm273, %v275
      $region48: #{lst_model_forward.11} parent=43 // pred_fallthru
        _
      %v277 = vld [vmem:[%s1] sm:$0xf]
      %v278 = vld [vmem:[%s1 + $0x4] sm:$0x1]
      %v279 = vld [vmem:[%s2] sm:$0xf]
      %v280 = vld [vmem:[%s2 + $0x4] sm:$0xf]
      %v281 = vld [vmem:[%s2 + $0x8] sm:$0xf]
      %v282 = vld [vmem:[%s2 + $0xc] sm:$0xf]
      %v283 = vld [vmem:[%s3] sm:$0x1]
      %v284 = vld [vmem:[%s256] sm:$0xf]
      %v285 = vld [vmem:[%s256 + $0x4] sm:$0xf]
      %v286 = vld [vmem:[%s256 + $0x8] sm:$0xf]
      %v287 = vld [vmem:[%s256 + $0xc] sm:$0xf]
      %v288 = vld [vmem:[%s256 + $0x10] sm:$0xf]
      %v289 = vld [vmem:[%s256 + $0x14] sm:$0xf]
      %v290 = vld [vmem:[%s256 + $0x18] sm:$0xf]
      %v291 = vld [vmem:[%s256 + $0x1c] sm:$0xf]
      %v300 = vunpack.c.l.b16 %v284
      %v301 = vunpack.c.l.b16 %v285
      %v302 = vunpack.c.l.b16 %v286
      %v303 = vunpack.c.l.b16 %v287
      %v304 = vunpack.c.l.b16 %v288
      %v305 = vunpack.c.l.b16 %v289
      %v306 = vunpack.c.l.b16 %v290
      %v307 = vunpack.c.l.b16 %v291
      %v308 = vpack.c.b16 %v301, %v300
      %v309 = vpack.c.b16 %v303, %v302
      %v310 = vpack.c.b16 %v305, %v304
      %v311 = vpack.c.b16 %v307, %v306
      %v314 = vunpack.c.l.b16 %v277
      %v315 = vunpack.c.l.b16 %v278
      %v316 = vpack.c.b16 %v315, %v314
      %vm317 = vcmask 80896
      %v319 = vsel %vm317, %v308, 0
      %v322 = vsel %vm317, %v309, 0
      %v325 = vsel %vm317, %v310, 0
      %v328 = vsel %vm317, %v311, 0
      %vm330 = vcmask 1044480
      %v332 = vsel %vm330, %v316, 0
      %334 = vmatpush.bf16.msra.mxu0 0
      %335 = vmatpush.bf16.msra.mxu0 0
      %336 = vmatpush.bf16.msra.mxu0 0
      %337 = vmatpush.bf16.msra.mxu0 0
      %338 = vmatpush.bf16.msra.mxu0 0
      %339 = vmatpush.bf16.msra.mxu0 0
      %340 = vmatpush.bf16.msra.mxu0 0
      %341 = vmatpush.bf16.msra.mxu0 %v332
      %342 = vmatmul.bf16.gmra.mxu0 %v319
      %v343 = vpop.f32.mrf.mxu0
      %v344 = vadd.f32 0.0, %v343
      %v345 = vpop.f32.mrf.mxu0
      %v346 = vadd.f32 0.0, %v345
      %347 = vmatmul.bf16.gmra.mxu0 %v322
      %v348 = vpop.f32.mrf.mxu0
      %v349 = vadd.f32 0.0, %v348
      %v350 = vpop.f32.mrf.mxu0
      %v351 = vadd.f32 0.0, %v350
      %352 = vmatmul.bf16.gmra.mxu0 %v325
      %v353 = vpop.f32.mrf.mxu0
      %v354 = vadd.f32 0.0, %v353
      %v355 = vpop.f32.mrf.mxu0
      %v356 = vadd.f32 0.0, %v355
      %357 = vmatmul.bf16.gmra.mxu0 %v328
      %v358 = vpop.f32.mrf.mxu0
      %v359 = vadd.f32 0.0, %v358
      %v360 = vpop.f32.mrf.mxu0
      %v361 = vadd.f32 0.0, %v360
      %362 = vdwg.mxu0
      %v363 = vld [vmem:[#allocation2] sm:$0xff]
      %v365 = vperm.slane %v283, 0
      %v367 = vadd.f32 %v361, %v365
      %v368 = vpack.c.bf16 %v363, %v363
      %v373 = vunpack.c.l.b16 %v279
      %v374 = vunpack.c.l.b16 %v280
      %v375 = vunpack.c.l.b16 %v281
      %v376 = vunpack.c.l.b16 %v282
      %v377 = vpack.c.b16 %v374, %v373
      %v378 = vpack.c.b16 %v376, %v375
      %vm381 = vcmask 261120
      %v383 = vsel %vm381, %v368, 0
      %385 = vmatpush.bf16.msra.mxu0 0
      %386 = vmatpush.bf16.msra.mxu0 0
      %387 = vmatpush.bf16.msra.mxu0 0
      %388 = vmatpush.bf16.msra.mxu0 0
      %389 = vmatpush.bf16.msra.mxu0 0
      %390 = vmatpush.bf16.msra.mxu0 0
      %391 = vmatpush.bf16.msra.mxu0 %v378
      %392 = vmatpush.bf16.msra.mxu0 %v377
      %393 = vmatmul.bf16.gmra.mxu0 %v383
      %v394 = vpop.f32.mrf.mxu0
      %v395 = vadd.f32 0.0, %v394
      %v396 = vpop.f32.mrf.mxu0
      %397 = vdwg.mxu0
      %v398 = vadd.f32 %v367, %v395
      %v399 = vxor.u32 %v398, 2147483648
      %v400 = vmul.f32 %v399, 1.442695
      %v401 = vpow.pop %v400
      %v402 = vadd.f32 %v401, 1.0
      %v403 = vrcp.pop %v402
      %v404 = vmul.f32 %v402, %v403
      %v405 = vsub.f32 1.0, %v404
      %v406 = vmul.f32 %v403, %v405
      %v407 = vadd.f32 %v403, %v406
      %vm408 = vweird.f32 %v402
      %vm409 = vweird.f32 %v403
      %vm410 = vmor %vm408, %vm409
      %v411 = vsel %vm410, %v403, %v407
      %v412 = vand.u32 2147483647, %v402
      %vm413 = vcmp.eq.f32.partialorder %v412, 8.507059e+37
      %v414 = vand.u32 %v402, 2147483648
      %v415 = vor.u32 1.1754944e-38, %v414
      %v416 = vsel %vm413, %v415, %v411
      %v417 = vmul.f32 1.0, %v416
      %v418 = vtanh.pop %v398
      %v419 = vld [vmem:[#allocation3] sm:$0xff]
      %421 = vrot.lane.b32.xlu0 %v419, 32
      %v422 = vpop.permute.xlu0 %421
      %v424 = vmul.f32 %v417, %v422
      %426 = vrot.lane.b32.xlu0 %v418, 64
      %v427 = vpop.permute.xlu0 %426
      %v429 = vmul.f32 %v417, %v427
      %431 = vrot.lane.b32.xlu0 %v429, 32
      %v432 = vpop.permute.xlu0 %431
      %v434 = vadd.f32 %v424, %v432
      %v435 = vtanh.pop %v434
      %437 = vrot.lane.b32.xlu0 %v435, 64
      %v438 = vpop.permute.xlu0 %437
      %v440 = vmul.f32 %v417, %v438
      %442 = vrot.lane.b32.xlu0 %v434, 96
      %v443 = vpop.permute.xlu0 %442
      %445 = vst.msk [vmem:[#allocation3] sm:$0xff] %vm381, %v443
      %447 = vrot.lane.b32.xlu0 %v440, 32
      %v448 = vpop.permute.xlu0 %447
      %450 = vst.msk [vmem:[#allocation2] sm:$0xff] %vm381, %v448
      %451 = vst.msk [vmem:[#allocation4 + $0x38] sm:$0xff] %vm381, %v448
      %v452 = vld [vmem:[#allocation2] sm:$0xff]
      %v453 = vadd.f32 %v359, %v365
      %v454 = vpack.c.bf16 %v452, %v452
      %v456 = vsel %vm381, %v454, 0
      %458 = vmatpush.bf16.msra.mxu0 0
      %459 = vmatpush.bf16.msra.mxu0 0
      %460 = vmatpush.bf16.msra.mxu0 0
      %461 = vmatpush.bf16.msra.mxu0 0
      %462 = vmatpush.bf16.msra.mxu0 0
      %463 = vmatpush.bf16.msra.mxu0 0
      %464 = vmatpush.bf16.msra.mxu0 %v378
      %465 = vmatpush.bf16.msra.mxu0 %v377
      %466 = vmatmul.bf16.gmra.mxu0 %v456
      %v467 = vpop.f32.mrf.mxu0
      %v468 = vadd.f32 0.0, %v467
      %v469 = vpop.f32.mrf.mxu0
      %470 = vdwg.mxu0
      %v471 = vadd.f32 %v453, %v468
      %v472 = vxor.u32 %v471, 2147483648
      %v473 = vmul.f32 %v472, 1.442695
      %v474 = vpow.pop %v473
      %v475 = vadd.f32 %v474, 1.0
      %v476 = vrcp.pop %v475
      %v477 = vmul.f32 %v475, %v476
      %v478 = vsub.f32 1.0, %v477
      %v479 = vmul.f32 %v476, %v478
      %v480 = vadd.f32 %v476, %v479
      %vm481 = vweird.f32 %v475
      %vm482 = vweird.f32 %v476
      %vm483 = vmor %vm481, %vm482
      %v484 = vsel %vm483, %v476, %v480
      %v485 = vand.u32 2147483647, %v475
      %vm486 = vcmp.eq.f32.partialorder %v485, 8.507059e+37
      %v487 = vand.u32 %v475, 2147483648
      %v488 = vor.u32 1.1754944e-38, %v487
      %v489 = vsel %vm486, %v488, %v484
      %v490 = vmul.f32 1.0, %v489
      %v491 = vtanh.pop %v471
      %v492 = vld [vmem:[#allocation3] sm:$0xff]
      %494 = vrot.lane.b32.xlu0 %v492, 32
      %v495 = vpop.permute.xlu0 %494
      %v497 = vmul.f32 %v490, %v495
      %499 = vrot.lane.b32.xlu0 %v491, 64
      %v500 = vpop.permute.xlu0 %499
      %v502 = vmul.f32 %v490, %v500
      %504 = vrot.lane.b32.xlu0 %v502, 32
      %v505 = vpop.permute.xlu0 %504
      %v507 = vadd.f32 %v497, %v505
      %v508 = vtanh.pop %v507
      %510 = vrot.lane.b32.xlu0 %v508, 64
      %v511 = vpop.permute.xlu0 %510
      %v513 = vmul.f32 %v490, %v511
      %515 = vrot.lane.b32.xlu0 %v507, 96
      %v516 = vpop.permute.xlu0 %515
      %518 = vst.msk [vmem:[#allocation3] sm:$0xff] %vm381, %v516
      %520 = vrot.lane.b32.xlu0 %v513, 32
      %v521 = vpop.permute.xlu0 %520
      %523 = vst.msk [vmem:[#allocation2] sm:$0xff] %vm381, %v521
      %524 = vst.msk [vmem:[#allocation4 + $0x30] sm:$0xff] %vm381, %v521
      %v525 = vld [vmem:[#allocation2] sm:$0xff]
      %v526 = vadd.f32 %v356, %v365
      %v527 = vpack.c.bf16 %v525, %v525
      %v529 = vsel %vm381, %v527, 0
      %531 = vmatpush.bf16.msra.mxu0 0
      %532 = vmatpush.bf16.msra.mxu0 0
      %533 = vmatpush.bf16.msra.mxu0 0
      %534 = vmatpush.bf16.msra.mxu0 0
      %535 = vmatpush.bf16.msra.mxu0 0
      %536 = vmatpush.bf16.msra.mxu0 0
      %537 = vmatpush.bf16.msra.mxu0 %v378
      %538 = vmatpush.bf16.msra.mxu0 %v377
      %539 = vmatmul.bf16.gmra.mxu0 %v529
      %v540 = vpop.f32.mrf.mxu0
      %v541 = vadd.f32 0.0, %v540
      %v542 = vpop.f32.mrf.mxu0
      %543 = vdwg.mxu0
      %v544 = vadd.f32 %v526, %v541
      %v545 = vxor.u32 %v544, 2147483648
      %v546 = vmul.f32 %v545, 1.442695
      %v547 = vpow.pop %v546
      %v548 = vadd.f32 %v547, 1.0
      %v549 = vrcp.pop %v548
      %v550 = vmul.f32 %v548, %v549
      %v551 = vsub.f32 1.0, %v550
      %v552 = vmul.f32 %v549, %v551
      %v553 = vadd.f32 %v549, %v552
      %vm554 = vweird.f32 %v548
      %vm555 = vweird.f32 %v549
      %vm556 = vmor %vm554, %vm555
      %v557 = vsel %vm556, %v549, %v553
      %v558 = vand.u32 2147483647, %v548
      %vm559 = vcmp.eq.f32.partialorder %v558, 8.507059e+37
      %v560 = vand.u32 %v548, 2147483648
      %v561 = vor.u32 1.1754944e-38, %v560
      %v562 = vsel %vm559, %v561, %v557
      %v563 = vmul.f32 1.0, %v562
      %v564 = vtanh.pop %v544
      %v565 = vld [vmem:[#allocation3] sm:$0xff]
      %567 = vrot.lane.b32.xlu0 %v565, 32
      %v568 = vpop.permute.xlu0 %567
      %v570 = vmul.f32 %v563, %v568
      %572 = vrot.lane.b32.xlu0 %v564, 64
      %v573 = vpop.permute.xlu0 %572
      %v575 = vmul.f32 %v563, %v573
      %577 = vrot.lane.b32.xlu0 %v575, 32
      %v578 = vpop.permute.xlu0 %577
      %v580 = vadd.f32 %v570, %v578
      %v581 = vtanh.pop %v580
      %583 = vrot.lane.b32.xlu0 %v581, 64
      %v584 = vpop.permute.xlu0 %583
      %v586 = vmul.f32 %v563, %v584
      %588 = vrot.lane.b32.xlu0 %v580, 96
      %v589 = vpop.permute.xlu0 %588
      %591 = vst.msk [vmem:[#allocation3] sm:$0xff] %vm381, %v589
      %593 = vrot.lane.b32.xlu0 %v586, 32
      %v594 = vpop.permute.xlu0 %593
      %596 = vst.msk [vmem:[#allocation2] sm:$0xff] %vm381, %v594
      %597 = vst.msk [vmem:[#allocation4 + $0x28] sm:$0xff] %vm381, %v594
      %v598 = vld [vmem:[#allocation2] sm:$0xff]
      %v599 = vadd.f32 %v354, %v365
      %v600 = vpack.c.bf16 %v598, %v598
      %v602 = vsel %vm381, %v600, 0
      %604 = vmatpush.bf16.msra.mxu0 0
      %605 = vmatpush.bf16.msra.mxu0 0
      %606 = vmatpush.bf16.msra.mxu0 0
      %607 = vmatpush.bf16.msra.mxu0 0
      %608 = vmatpush.bf16.msra.mxu0 0
      %609 = vmatpush.bf16.msra.mxu0 0
      %610 = vmatpush.bf16.msra.mxu0 %v378
      %611 = vmatpush.bf16.msra.mxu0 %v377
      %612 = vmatmul.bf16.gmra.mxu0 %v602
      %v613 = vpop.f32.mrf.mxu0
      %v614 = vadd.f32 0.0, %v613
      %v615 = vpop.f32.mrf.mxu0
      %616 = vdwg.mxu0
      %v617 = vadd.f32 %v599, %v614
      %v618 = vxor.u32 %v617, 2147483648
      %v619 = vmul.f32 %v618, 1.442695
      %v620 = vpow.pop %v619
      %v621 = vadd.f32 %v620, 1.0
      %v622 = vrcp.pop %v621
      %v623 = vmul.f32 %v621, %v622
      %v624 = vsub.f32 1.0, %v623
      %v625 = vmul.f32 %v622, %v624
      %v626 = vadd.f32 %v622, %v625
      %vm627 = vweird.f32 %v621
      %vm628 = vweird.f32 %v622
      %vm629 = vmor %vm627, %vm628
      %v630 = vsel %vm629, %v622, %v626
      %v631 = vand.u32 2147483647, %v621
      %vm632 = vcmp.eq.f32.partialorder %v631, 8.507059e+37
      %v633 = vand.u32 %v621, 2147483648
      %v634 = vor.u32 1.1754944e-38, %v633
      %v635 = vsel %vm632, %v634, %v630
      %v636 = vmul.f32 1.0, %v635
      %v637 = vtanh.pop %v617
      %v638 = vld [vmem:[#allocation3] sm:$0xff]
      %640 = vrot.lane.b32.xlu0 %v638, 32
      %v641 = vpop.permute.xlu0 %640
      %v643 = vmul.f32 %v636, %v641
      %645 = vrot.lane.b32.xlu0 %v637, 64
      %v646 = vpop.permute.xlu0 %645
      %v648 = vmul.f32 %v636, %v646
      %650 = vrot.lane.b32.xlu0 %v648, 32
      %v651 = vpop.permute.xlu0 %650
      %v653 = vadd.f32 %v643, %v651
      %v654 = vtanh.pop %v653
      %656 = vrot.lane.b32.xlu0 %v654, 64
      %v657 = vpop.permute.xlu0 %656
      %v659 = vmul.f32 %v636, %v657
      %661 = vrot.lane.b32.xlu0 %v653, 96
      %v662 = vpop.permute.xlu0 %661
      %664 = vst.msk [vmem:[#allocation3] sm:$0xff] %vm381, %v662
      %666 = vrot.lane.b32.xlu0 %v659, 32
      %v667 = vpop.permute.xlu0 %666
      %669 = vst.msk [vmem:[#allocation2] sm:$0xff] %vm381, %v667
      %670 = vst.msk [vmem:[#allocation4 + $0x20] sm:$0xff] %vm381, %v667
      %v671 = vld [vmem:[#allocation2] sm:$0xff]
      %v672 = vadd.f32 %v351, %v365
      %v673 = vpack.c.bf16 %v671, %v671
      %v675 = vsel %vm381, %v673, 0
      %677 = vmatpush.bf16.msra.mxu0 0
      %678 = vmatpush.bf16.msra.mxu0 0
      %679 = vmatpush.bf16.msra.mxu0 0
      %680 = vmatpush.bf16.msra.mxu0 0
      %681 = vmatpush.bf16.msra.mxu0 0
      %682 = vmatpush.bf16.msra.mxu0 0
      %683 = vmatpush.bf16.msra.mxu0 %v378
      %684 = vmatpush.bf16.msra.mxu0 %v377
      %685 = vmatmul.bf16.gmra.mxu0 %v675
      %v686 = vpop.f32.mrf.mxu0
      %v687 = vadd.f32 0.0, %v686
      %v688 = vpop.f32.mrf.mxu0
      %689 = vdwg.mxu0
      %v690 = vadd.f32 %v672, %v687
      %v691 = vxor.u32 %v690, 2147483648
      %v692 = vmul.f32 %v691, 1.442695
      %v693 = vpow.pop %v692
      %v694 = vadd.f32 %v693, 1.0
      %v695 = vrcp.pop %v694
      %v696 = vmul.f32 %v694, %v695
      %v697 = vsub.f32 1.0, %v696
      %v698 = vmul.f32 %v695, %v697
      %v699 = vadd.f32 %v695, %v698
      %vm700 = vweird.f32 %v694
      %vm701 = vweird.f32 %v695
      %vm702 = vmor %vm700, %vm701
      %v703 = vsel %vm702, %v695, %v699
      %v704 = vand.u32 2147483647, %v694
      %vm705 = vcmp.eq.f32.partialorder %v704, 8.507059e+37
      %v706 = vand.u32 %v694, 2147483648
      %v707 = vor.u32 1.1754944e-38, %v706
      %v708 = vsel %vm705, %v707, %v703
      %v709 = vmul.f32 1.0, %v708
      %v710 = vtanh.pop %v690
      %v711 = vld [vmem:[#allocation3] sm:$0xff]
      %713 = vrot.lane.b32.xlu0 %v711, 32
      %v714 = vpop.permute.xlu0 %713
      %v716 = vmul.f32 %v709, %v714
      %718 = vrot.lane.b32.xlu0 %v710, 64
      %v719 = vpop.permute.xlu0 %718
      %v721 = vmul.f32 %v709, %v719
      %723 = vrot.lane.b32.xlu0 %v721, 32
      %v724 = vpop.permute.xlu0 %723
      %v726 = vadd.f32 %v716, %v724
      %v727 = vtanh.pop %v726
      %729 = vrot.lane.b32.xlu0 %v727, 64
      %v730 = vpop.permute.xlu0 %729
      %v732 = vmul.f32 %v709, %v730
      %734 = vrot.lane.b32.xlu0 %v726, 96
      %v735 = vpop.permute.xlu0 %734
      %737 = vst.msk [vmem:[#allocation3] sm:$0xff] %vm381, %v735
      %739 = vrot.lane.b32.xlu0 %v732, 32
      %v740 = vpop.permute.xlu0 %739
      %742 = vst.msk [vmem:[#allocation2] sm:$0xff] %vm381, %v740
      %743 = vst.msk [vmem:[#allocation4 + $0x18] sm:$0xff] %vm381, %v740
      %v744 = vld [vmem:[#allocation2] sm:$0xff]
      %v745 = vadd.f32 %v349, %v365
      %v746 = vpack.c.bf16 %v744, %v744
      %v748 = vsel %vm381, %v746, 0
      %750 = vmatpush.bf16.msra.mxu0 0
      %751 = vmatpush.bf16.msra.mxu0 0
      %752 = vmatpush.bf16.msra.mxu0 0
      %753 = vmatpush.bf16.msra.mxu0 0
      %754 = vmatpush.bf16.msra.mxu0 0
      %755 = vmatpush.bf16.msra.mxu0 0
      %756 = vmatpush.bf16.msra.mxu0 %v378
      %757 = vmatpush.bf16.msra.mxu0 %v377
      %758 = vmatmul.bf16.gmra.mxu0 %v748
      %v759 = vpop.f32.mrf.mxu0
      %v760 = vadd.f32 0.0, %v759
      %v761 = vpop.f32.mrf.mxu0
      %762 = vdwg.mxu0
      %v763 = vadd.f32 %v745, %v760
      %v764 = vxor.u32 %v763, 2147483648
      %v765 = vmul.f32 %v764, 1.442695
      %v766 = vpow.pop %v765
      %v767 = vadd.f32 %v766, 1.0
      %v768 = vrcp.pop %v767
      %v769 = vmul.f32 %v767, %v768
      %v770 = vsub.f32 1.0, %v769
      %v771 = vmul.f32 %v768, %v770
      %v772 = vadd.f32 %v768, %v771
      %vm773 = vweird.f32 %v767
      %vm774 = vweird.f32 %v768
      %vm775 = vmor %vm773, %vm774
      %v776 = vsel %vm775, %v768, %v772
      %v777 = vand.u32 2147483647, %v767
      %vm778 = vcmp.eq.f32.partialorder %v777, 8.507059e+37
      %v779 = vand.u32 %v767, 2147483648
      %v780 = vor.u32 1.1754944e-38, %v779
      %v781 = vsel %vm778, %v780, %v776
      %v782 = vmul.f32 1.0, %v781
      %v783 = vtanh.pop %v763
      %v784 = vld [vmem:[#allocation3] sm:$0xff]
      %786 = vrot.lane.b32.xlu0 %v784, 32
      %v787 = vpop.permute.xlu0 %786
      %v789 = vmul.f32 %v782, %v787
      %791 = vrot.lane.b32.xlu0 %v783, 64
      %v792 = vpop.permute.xlu0 %791
      %v794 = vmul.f32 %v782, %v792
      %796 = vrot.lane.b32.xlu0 %v794, 32
      %v797 = vpop.permute.xlu0 %796
      %v799 = vadd.f32 %v789, %v797
      %v800 = vtanh.pop %v799
      %802 = vrot.lane.b32.xlu0 %v800, 64
      %v803 = vpop.permute.xlu0 %802
      %v805 = vmul.f32 %v782, %v803
      %807 = vrot.lane.b32.xlu0 %v799, 96
      %v808 = vpop.permute.xlu0 %807
      %810 = vst.msk [vmem:[#allocation3] sm:$0xff] %vm381, %v808
      %812 = vrot.lane.b32.xlu0 %v805, 32
      %v813 = vpop.permute.xlu0 %812
      %815 = vst.msk [vmem:[#allocation2] sm:$0xff] %vm381, %v813
      %816 = vst.msk [vmem:[#allocation4 + $0x10] sm:$0xff] %vm381, %v813
      %v817 = vld [vmem:[#allocation2] sm:$0xff]
      %v818 = vadd.f32 %v346, %v365
      %v819 = vpack.c.bf16 %v817, %v817
      %v821 = vsel %vm381, %v819, 0
      %823 = vmatpush.bf16.msra.mxu0 0
      %824 = vmatpush.bf16.msra.mxu0 0
      %825 = vmatpush.bf16.msra.mxu0 0
      %826 = vmatpush.bf16.msra.mxu0 0
      %827 = vmatpush.bf16.msra.mxu0 0
      %828 = vmatpush.bf16.msra.mxu0 0
      %829 = vmatpush.bf16.msra.mxu0 %v378
      %830 = vmatpush.bf16.msra.mxu0 %v377
      %831 = vmatmul.bf16.gmra.mxu0 %v821
      %v832 = vpop.f32.mrf.mxu0
      %v833 = vadd.f32 0.0, %v832
      %v834 = vpop.f32.mrf.mxu0
      %835 = vdwg.mxu0
      %v836 = vadd.f32 %v818, %v833
      %v837 = vxor.u32 %v836, 2147483648
      %v838 = vmul.f32 %v837, 1.442695
      %v839 = vpow.pop %v838
      %v840 = vadd.f32 %v839, 1.0
      %v841 = vrcp.pop %v840
      %v842 = vmul.f32 %v840, %v841
      %v843 = vsub.f32 1.0, %v842
      %v844 = vmul.f32 %v841, %v843
      %v845 = vadd.f32 %v841, %v844
      %vm846 = vweird.f32 %v840
      %vm847 = vweird.f32 %v841
      %vm848 = vmor %vm846, %vm847
      %v849 = vsel %vm848, %v841, %v845
      %v850 = vand.u32 2147483647, %v840
      %vm851 = vcmp.eq.f32.partialorder %v850, 8.507059e+37
      %v852 = vand.u32 %v840, 2147483648
      %v853 = vor.u32 1.1754944e-38, %v852
      %v854 = vsel %vm851, %v853, %v849
      %v855 = vmul.f32 1.0, %v854
      %v856 = vtanh.pop %v836
      %v857 = vld [vmem:[#allocation3] sm:$0xff]
      %859 = vrot.lane.b32.xlu0 %v857, 32
      %v860 = vpop.permute.xlu0 %859
      %v862 = vmul.f32 %v855, %v860
      %864 = vrot.lane.b32.xlu0 %v856, 64
      %v865 = vpop.permute.xlu0 %864
      %v867 = vmul.f32 %v855, %v865
      %869 = vrot.lane.b32.xlu0 %v867, 32
      %v870 = vpop.permute.xlu0 %869
      %v872 = vadd.f32 %v862, %v870
      %v873 = vtanh.pop %v872
      %875 = vrot.lane.b32.xlu0 %v873, 64
      %v876 = vpop.permute.xlu0 %875
      %v878 = vmul.f32 %v855, %v876
      %880 = vrot.lane.b32.xlu0 %v872, 96
      %v881 = vpop.permute.xlu0 %880
      %883 = vst.msk [vmem:[#allocation3] sm:$0xff] %vm381, %v881
      %885 = vrot.lane.b32.xlu0 %v878, 32
      %v886 = vpop.permute.xlu0 %885
      %888 = vst.msk [vmem:[#allocation2] sm:$0xff] %vm381, %v886
      %889 = vst.msk [vmem:[#allocation4 + $0x8] sm:$0xff] %vm381, %v886
      %v890 = vld [vmem:[#allocation2] sm:$0xff]
      %v891 = vadd.f32 %v344, %v365
      %v892 = vpack.c.bf16 %v890, %v890
      %v894 = vsel %vm381, %v892, 0
      %896 = vmatpush.bf16.msra.mxu0 0
      %897 = vmatpush.bf16.msra.mxu0 0
      %898 = vmatpush.bf16.msra.mxu0 0
      %899 = vmatpush.bf16.msra.mxu0 0
      %900 = vmatpush.bf16.msra.mxu0 0
      %901 = vmatpush.bf16.msra.mxu0 0
      %902 = vmatpush.bf16.msra.mxu0 %v378
      %903 = vmatpush.bf16.msra.mxu0 %v377
      %904 = vmatmul.bf16.gmra.mxu0 %v894
      %v905 = vpop.f32.mrf.mxu0
      %v906 = vadd.f32 0.0, %v905
      %v907 = vpop.f32.mrf.mxu0
      %908 = vdwg.mxu0
      %v909 = vadd.f32 %v891, %v906
      %v910 = vxor.u32 %v909, 2147483648
      %v911 = vmul.f32 %v910, 1.442695
      %v912 = vpow.pop %v911
      %v913 = vadd.f32 %v912, 1.0
      %v914 = vrcp.pop %v913
      %v915 = vmul.f32 %v913, %v914
      %v916 = vsub.f32 1.0, %v915
      %v917 = vmul.f32 %v914, %v916
      %v918 = vadd.f32 %v914, %v917
      %vm919 = vweird.f32 %v913
      %vm920 = vweird.f32 %v914
      %vm921 = vmor %vm919, %vm920
      %v922 = vsel %vm921, %v914, %v918
      %v923 = vand.u32 2147483647, %v913
      %vm924 = vcmp.eq.f32.partialorder %v923, 8.507059e+37
      %v925 = vand.u32 %v913, 2147483648
      %v926 = vor.u32 1.1754944e-38, %v925
      %v927 = vsel %vm924, %v926, %v922
      %v928 = vmul.f32 1.0, %v927
      %v929 = vtanh.pop %v909
      %v930 = vld [vmem:[#allocation3] sm:$0xff]
      %932 = vrot.lane.b32.xlu0 %v930, 32
      %v933 = vpop.permute.xlu0 %932
      %v935 = vmul.f32 %v928, %v933
      %937 = vrot.lane.b32.xlu0 %v929, 64
      %v938 = vpop.permute.xlu0 %937
      %v940 = vmul.f32 %v928, %v938
      %942 = vrot.lane.b32.xlu0 %v940, 32
      %v943 = vpop.permute.xlu0 %942
      %v945 = vadd.f32 %v935, %v943
      %v946 = vtanh.pop %v945
      %948 = vrot.lane.b32.xlu0 %v946, 64
      %v949 = vpop.permute.xlu0 %948
      %v951 = vmul.f32 %v928, %v949
      %953 = vrot.lane.b32.xlu0 %v945, 96
      %v954 = vpop.permute.xlu0 %953
      %956 = vst.msk [vmem:[#allocation3] sm:$0xff] %vm381, %v954
      %958 = vrot.lane.b32.xlu0 %v951, 32
      %v959 = vpop.permute.xlu0 %958
      %961 = vst.msk [vmem:[#allocation2] sm:$0xff] %vm381, %v959
      %962 = vst.msk [vmem:[#allocation4] sm:$0xff] %vm381, %v959
      %v963 = vld [vmem:[#allocation4] sm:$0xff]
      %v964 = vld [vmem:[#allocation4 + $0x8] sm:$0xff]
      %v965 = vld [vmem:[#allocation4 + $0x10] sm:$0xff]
      %v966 = vld [vmem:[#allocation4 + $0x18] sm:$0xff]
      %v967 = vld [vmem:[#allocation4 + $0x20] sm:$0xff]
      %v968 = vld [vmem:[#allocation4 + $0x28] sm:$0xff]
      %v969 = vld [vmem:[#allocation4 + $0x30] sm:$0xff]
      %v970 = vld [vmem:[#allocation4 + $0x38] sm:$0xff]
      %v971 = vpack.c.bf16 %v963, %v963
      %v972 = vpack.c.bf16 %v964, %v964
      %v973 = vpack.c.bf16 %v965, %v965
      %v974 = vpack.c.bf16 %v966, %v966
      %v975 = vpack.c.bf16 %v967, %v967
      %v976 = vpack.c.bf16 %v968, %v968
      %v977 = vpack.c.bf16 %v969, %v969
      %v978 = vpack.c.bf16 %v970, %v970
      %vm979 = vcmask 257024
      %980 = vst.msk [vmem:[%s264] sm:$0xf] %vm979, %v971
      %981 = vst.msk [vmem:[%s264 + $0x4] sm:$0xf] %vm979, %v972
      %982 = vst.msk [vmem:[%s264 + $0x8] sm:$0xf] %vm979, %v973
      %983 = vst.msk [vmem:[%s264 + $0xc] sm:$0xf] %vm979, %v974
      %984 = vst.msk [vmem:[%s264 + $0x10] sm:$0xf] %vm979, %v975
      %985 = vst.msk [vmem:[%s264 + $0x14] sm:$0xf] %vm979, %v976
      %986 = vst.msk [vmem:[%s264 + $0x18] sm:$0xf] %vm979, %v977
      %987 = vst.msk [vmem:[%s264 + $0x1c] sm:$0xf] %vm979, %v978
      %s988 = ssub.s32 1, %s17
      %s989 = smul.u32 8, %s988
      %p990 = scmp.lt.s32.totalorder %s989, 15
      %s991 = scalar_select %p990, %s989, 15
      %s992 = smul.addr %s991, 4
      %s993 = scalar_lea.vmem %s6, %s992
      // Predicated region
      $region49: #{lst_model_forward.11} parent=43 // pred_check
        %p994 = pneg %p170
      $region50: #{lst_model_forward.11} parent=43 // pred_check_branch
        %996 = sbr.rel (%p994) target = $region52
      $region51: #{lst_model_forward.11} parent=43 // pred_region
        %s997 = ssub.s32 1, %s17
        %s998 = smul.u32 8, %s997
      $region52: #{lst_model_forward.11} parent=43 // pred_fallthru
        _
    $region44: #{lst_model_forward.11} parent=5 // pred_fallthru
      _
    %p999 = scmp.le.s32.totalorder 2, %s12
    // Predicated region
    $region53: #{lst_model_forward.11} parent=5 // pred_check
      %p1000 = pneg %p999
    $region54: #{lst_model_forward.11} parent=5 // pred_check_branch
      %1002 = sbr.rel (%p1000) target = $region56
    $region55: #{lst_model_forward.11} parent=5 // pred_region
      %s1003 = ssub.s32 %s12, 2
      // Predicated region
      $region57: #{lst_model_forward.11} parent=55 // pred_check
        %p1004 = pneg %p176
      $region58: #{lst_model_forward.11} parent=55 // pred_check_branch
        %1006 = sbr.rel (%p1004) target = $region60
      $region59: #{lst_model_forward.11} parent=55 // pred_region
        %s1007 = ssub.s32 1, %s18
        %s1008 = smul.u32 8, %s1007
        %p1009 = scmp.lt.s32.totalorder %s1008, 15
        %s1010 = scalar_select %p1009, %s1008, 15
        %s1011 = smul.addr %s1010, 4
        %s1012 = scalar_lea.vmem %s6, %s1011
      $region60: #{lst_model_forward.11} parent=55 // pred_fallthru
        _
    $region56: #{lst_model_forward.11} parent=5 // pred_fallthru
      _
  $region6: #{lst_model_forward.11} parent=0 // loop_footer
    %s16 = sadd.s32 1, %s12
  $region7: #{lst_model_forward.11} parent=0 // loop_footer_branch
    %11 = sbr.rel target = $region3
  $region8: #{lst_model_forward.11} parent=0 // loop_exit
    _

// kernel: lst_model_forward.13
$region0: #{lst_model_forward.13}
  #allocation0 [shape = 'u32[]', space=smem, size = 0x4, offset = 0x4, fixed_abs, tag = 'smem constant byte address 0x4 - core index']
  #allocation1 [shape = 'u32[72,128]{1,0:T(1,128)}', space=vmem, size = 0x9000, scoped, tag = 'internal scratch']
  #allocation2 [shape = 'f32[8,32]{1,0:T(8,128)}', space=vmem, size = 0x1000, scoped, tag = 'scratch operand']
  #allocation3 [shape = 'f32[8,32]{1,0:T(8,128)}', space=vmem, size = 0x1000, scoped, tag = 'scratch operand']
  #allocation4 [shape = 'f32[64,32]{1,0:T(8,128)}', space=vmem, size = 0x8000, scoped, tag = 'scratch operand']
  %s0 = inlined_call_operand.vmem [shape: bf16[128,64], index: 0, kind: input, shape index: {}]
  %s1 = inlined_call_operand.vmem [shape: bf16[64,128], index: 1, kind: input, shape index: {}]
  %s2 = inlined_call_operand.vmem [shape: bf16[32,128], index: 2, kind: input, shape index: {}]
  %s3 = inlined_call_operand.vmem [shape: f32[1,128], index: 3, kind: input, shape index: {}]
  %s4 = inlined_call_operand.vmem [shape: f32[8,32], index: 4, kind: input, shape index: {}]
  %s5 = inlined_call_operand.vmem [shape: f32[8,32], index: 5, kind: input, shape index: {}]
  %s6 = inlined_call_operand.vmem [shape: bf16[128,32], index: 6, kind: output, shape index: {}]
  %s7 = sld [smem:[#allocation0]]
  $region61: #{lst_model_forward.13} parent=0
    _
  %s9 = ssub.s32 1, %s7
  %s10 = scalar_select 0, %s9, %s7
  loop: start=0, step=1, limit=4
  $region2: #{lst_model_forward.13} parent=0 // loop_pre_header
    _
  $region3: #{lst_model_forward.13} parent=0 // loop_header
    %s12 = sphi 0, %s16
    %p13 = scmp.ge.s32.totalorder %s12, 4
    %s24 = sphi 0, %s26
    %s27 = sphi 0, %s24
    %s28 = sphi 0, %s27
    %s44 = sphi 0, %s28
    %s48 = sphi 0, %s48
    %s50 = sphi 0, %s48
    %s51 = sphi 0, %s50
    %s65 = sphi 0, %s51
    %s69 = sphi 0, %s69
    %s71 = sphi 0, %s69
    %s72 = sphi 0, %s71
    %s86 = sphi 0, %s72
    %s90 = sphi 0, %s90
    %s92 = sphi 0, %s90
    %s93 = sphi 0, %s92
    %s107 = sphi 0, %s93
    %s111 = sphi 0, %s111
    %s113 = sphi 0, %s111
    %s114 = sphi 0, %s113
    %s128 = sphi 0, %s114
    %s132 = sphi 0, %s132
    %s134 = sphi 0, %s132
    %s135 = sphi 0, %s134
    %s149 = sphi 0, %s135
    %s157 = sphi 0, %s159
    %s160 = sphi 0, %s157
    %s161 = sphi 0, %s160
    %s177 = sphi 0, %s161
  $region4: #{lst_model_forward.13} parent=0 // loop_header_branch
    %15 = sbr.rel (%p13) target = $region8
  $region5: #{lst_model_forward.13} parent=0 // loop_body
    %s17 = ssub.s32 %s12, 1
    %s18 = ssub.s32 %s12, 2
    %s19 = sadd.s32 %s12, 1
    %s20 = ssub.s32 1, %s12
    %s21 = ssub.s32 1, %s19
    %s22 = ssub.s32 %s20, %s21
    %p23 = scmp.eq.s32.totalorder %s22, 0
    %s25 = sadd.s32 %s24, 1
    %s26 = scalar_select %p23, %s24, %s25
    %p29 = pneg %p23
    %p30 = scmp.eq.s32.totalorder %s12, 1
    %p31 = por %p29, %p30
    %p32 = scmp.ne.s32.totalorder %s24, %s27
    %p33 = scmp.eq.s32.totalorder %s12, 0
    %p34 = por %p32, %p33
    %p35 = scmp.ne.s32.totalorder %s24, %s27
    %p36 = scmp.eq.s32.totalorder %s17, 1
    %p37 = por %p35, %p36
    %p38 = scmp.ne.s32.totalorder %s27, %s28
    %p39 = scmp.eq.s32.totalorder %s17, 0
    %p40 = por %p38, %p39
    %p41 = scmp.ne.s32.totalorder %s27, %s28
    %p42 = scmp.eq.s32.totalorder %s18, 1
    %p43 = por %p41, %p42
    %p45 = scmp.ne.s32.totalorder %s28, %s44
    %p46 = scmp.eq.s32.totalorder %s18, 0
    %p47 = por %p45, %p46
    %s49 = sadd.s32 %s48, 1
    %p52 = scmp.eq.s32.totalorder %s12, 1
    %p53 = scmp.ne.s32.totalorder %s48, %s50
    %p54 = scmp.eq.s32.totalorder %s12, 0
    %p55 = por %p53, %p54
    %p56 = scmp.ne.s32.totalorder %s48, %s50
    %p57 = scmp.eq.s32.totalorder %s17, 1
    %p58 = por %p56, %p57
    %p59 = scmp.ne.s32.totalorder %s50, %s51
    %p60 = scmp.eq.s32.totalorder %s17, 0
    %p61 = por %p59, %p60
    %p62 = scmp.ne.s32.totalorder %s50, %s51
    %p63 = scmp.eq.s32.totalorder %s18, 1
    %p64 = por %p62, %p63
    %p66 = scmp.ne.s32.totalorder %s51, %s65
    %p67 = scmp.eq.s32.totalorder %s18, 0
    %p68 = por %p66, %p67
    %s70 = sadd.s32 %s69, 1
    %p73 = scmp.eq.s32.totalorder %s12, 1
    %p74 = scmp.ne.s32.totalorder %s69, %s71
    %p75 = scmp.eq.s32.totalorder %s12, 0
    %p76 = por %p74, %p75
    %p77 = scmp.ne.s32.totalorder %s69, %s71
    %p78 = scmp.eq.s32.totalorder %s17, 1
    %p79 = por %p77, %p78
    %p80 = scmp.ne.s32.totalorder %s71, %s72
    %p81 = scmp.eq.s32.totalorder %s17, 0
    %p82 = por %p80, %p81
    %p83 = scmp.ne.s32.totalorder %s71, %s72
    %p84 = scmp.eq.s32.totalorder %s18, 1
    %p85 = por %p83, %p84
    %p87 = scmp.ne.s32.totalorder %s72, %s86
    %p88 = scmp.eq.s32.totalorder %s18, 0
    %p89 = por %p87, %p88
    %s91 = sadd.s32 %s90, 1
    %p94 = scmp.eq.s32.totalorder %s12, 1
    %p95 = scmp.ne.s32.totalorder %s90, %s92
    %p96 = scmp.eq.s32.totalorder %s12, 0
    %p97 = por %p95, %p96
    %p98 = scmp.ne.s32.totalorder %s90, %s92
    %p99 = scmp.eq.s32.totalorder %s17, 1
    %p100 = por %p98, %p99
    %p101 = scmp.ne.s32.totalorder %s92, %s93
    %p102 = scmp.eq.s32.totalorder %s17, 0
    %p103 = por %p101, %p102
    %p104 = scmp.ne.s32.totalorder %s92, %s93
    %p105 = scmp.eq.s32.totalorder %s18, 1
    %p106 = por %p104, %p105
    %p108 = scmp.ne.s32.totalorder %s93, %s107
    %p109 = scmp.eq.s32.totalorder %s18, 0
    %p110 = por %p108, %p109
    %s112 = sadd.s32 %s111, 1
    %p115 = scmp.eq.s32.totalorder %s12, 1
    %p116 = scmp.ne.s32.totalorder %s111, %s113
    %p117 = scmp.eq.s32.totalorder %s12, 0
    %p118 = por %p116, %p117
    %p119 = scmp.ne.s32.totalorder %s111, %s113
    %p120 = scmp.eq.s32.totalorder %s17, 1
    %p121 = por %p119, %p120
    %p122 = scmp.ne.s32.totalorder %s113, %s114
    %p123 = scmp.eq.s32.totalorder %s17, 0
    %p124 = por %p122, %p123
    %p125 = scmp.ne.s32.totalorder %s113, %s114
    %p126 = scmp.eq.s32.totalorder %s18, 1
    %p127 = por %p125, %p126
    %p129 = scmp.ne.s32.totalorder %s114, %s128
    %p130 = scmp.eq.s32.totalorder %s18, 0
    %p131 = por %p129, %p130
    %s133 = sadd.s32 %s132, 1
    %p136 = scmp.eq.s32.totalorder %s12, 1
    %p137 = scmp.ne.s32.totalorder %s132, %s134
    %p138 = scmp.eq.s32.totalorder %s12, 0
    %p139 = por %p137, %p138
    %p140 = scmp.ne.s32.totalorder %s132, %s134
    %p141 = scmp.eq.s32.totalorder %s17, 1
    %p142 = por %p140, %p141
    %p143 = scmp.ne.s32.totalorder %s134, %s135
    %p144 = scmp.eq.s32.totalorder %s17, 0
    %p145 = por %p143, %p144
    %p146 = scmp.ne.s32.totalorder %s134, %s135
    %p147 = scmp.eq.s32.totalorder %s18, 1
    %p148 = por %p146, %p147
    %p150 = scmp.ne.s32.totalorder %s135, %s149
    %p151 = scmp.eq.s32.totalorder %s18, 0
    %p152 = por %p150, %p151
    %s153 = ssub.s32 1, %s12
    %s154 = ssub.s32 1, %s19
    %s155 = ssub.s32 %s153, %s154
    %p156 = scmp.eq.s32.totalorder %s155, 0
    %s158 = sadd.s32 %s157, 1
    %s159 = scalar_select %p156, %s157, %s158
    %p162 = pneg %p156
    %p163 = scmp.eq.s32.totalorder %s12, 1
    %p164 = por %p162, %p163
    %p165 = scmp.ne.s32.totalorder %s157, %s160
    %p166 = scmp.eq.s32.totalorder %s12, 0
    %p167 = por %p165, %p166
    %p168 = scmp.ne.s32.totalorder %s157, %s160
    %p169 = scmp.eq.s32.totalorder %s17, 1
    %p170 = por %p168, %p169
    %p171 = scmp.ne.s32.totalorder %s160, %s161
    %p172 = scmp.eq.s32.totalorder %s17, 0
    %p173 = por %p171, %p172
    %p174 = scmp.ne.s32.totalorder %s160, %s161
    %p175 = scmp.eq.s32.totalorder %s18, 1
    %p176 = por %p174, %p175
    %p178 = scmp.ne.s32.totalorder %s161, %s177
    %p179 = scmp.eq.s32.totalorder %s18, 0
    %p180 = por %p178, %p179
    %p181 = scmp.le.s32.totalorder 1, %s12
    %p182 = scmp.lt.s32.totalorder %s12, 3
    %p183 = pnand %p181, %p182
    %p184 = pneg %p183
    // Predicated region
    $region9: #{lst_model_forward.13} parent=5 // pred_check
      _
    $region10: #{lst_model_forward.13} parent=5 // pred_check_branch
      %186 = sbr.rel (%p183) target = $region12
    $region11: #{lst_model_forward.13} parent=5 // pred_region
      %s187 = ssub.s32 %s12, 1
      // Predicated region
      $region13: #{lst_model_forward.13} parent=11 // pred_check
        %p188 = pneg %p61
      $region14: #{lst_model_forward.13} parent=11 // pred_check_branch
        %190 = sbr.rel (%p188) target = $region16
      $region15: #{lst_model_forward.13} parent=11 // pred_region
        _
      $region16: #{lst_model_forward.13} parent=11 // pred_fallthru
        _
      // Predicated region
      $region17: #{lst_model_forward.13} parent=11 // pred_check
        %p191 = pneg %p82
      $region18: #{lst_model_forward.13} parent=11 // pred_check_branch
        %193 = sbr.rel (%p191) target = $region20
      $region19: #{lst_model_forward.13} parent=11 // pred_region
        _
      $region20: #{lst_model_forward.13} parent=11 // pred_fallthru
        _
      // Predicated region
      $region21: #{lst_model_forward.13} parent=11 // pred_check
        %p194 = pneg %p103
      $region22: #{lst_model_forward.13} parent=11 // pred_check_branch
        %196 = sbr.rel (%p194) target = $region24
      $region23: #{lst_model_forward.13} parent=11 // pred_region
        _
      $region24: #{lst_model_forward.13} parent=11 // pred_fallthru
        _
      // Predicated region
      $region25: #{lst_model_forward.13} parent=11 // pred_check
        %p197 = pneg %p124
      $region26: #{lst_model_forward.13} parent=11 // pred_check_branch
        %199 = sbr.rel (%p197) target = $region28
      $region27: #{lst_model_forward.13} parent=11 // pred_region
        _
      $region28: #{lst_model_forward.13} parent=11 // pred_fallthru
        _
      // Predicated region
      $region29: #{lst_model_forward.13} parent=11 // pred_check
        %p200 = pneg %p145
      $region30: #{lst_model_forward.13} parent=11 // pred_check_branch
        %202 = sbr.rel (%p200) target = $region32
      $region31: #{lst_model_forward.13} parent=11 // pred_region
        _
      $region32: #{lst_model_forward.13} parent=11 // pred_fallthru
        _
    $region12: #{lst_model_forward.13} parent=5 // pred_fallthru
      _
    %p203 = scmp.lt.s32.totalorder %s12, 2
    // Predicated region
    $region33: #{lst_model_forward.13} parent=5 // pred_check
      %p204 = pneg %p203
    $region34: #{lst_model_forward.13} parent=5 // pred_check_branch
      %206 = sbr.rel (%p204) target = $region36
    $region35: #{lst_model_forward.13} parent=5 // pred_region
      // Predicated region
      $region37: #{lst_model_forward.13} parent=35 // pred_check
        %p207 = pneg %p34
      $region38: #{lst_model_forward.13} parent=35 // pred_check_branch
        %209 = sbr.rel (%p207) target = $region40
      $region39: #{lst_model_forward.13} parent=35 // pred_region
        %s210 = ssub.s32 1, %s12
        %s211 = smul.u32 8, %s210
        %p212 = scmp.lt.s32.totalorder %s211, 15
        %s213 = scalar_select %p212, %s211, 15
        %s214 = smul.addr %s213, 4
        %s215 = scalar_lea.vmem %s0, %s214
        %s216 = ssub.s32 1, %s12
        %s217 = smul.u32 8, %s216
      $region40: #{lst_model_forward.13} parent=35 // pred_fallthru
        _
    $region36: #{lst_model_forward.13} parent=5 // pred_fallthru
      _
    %p218 = scmp.le.s32.totalorder 1, %s12
    %p219 = scmp.lt.s32.totalorder %s12, 3
    %p220 = pnand %p218, %p219
    %p221 = pneg %p220
    // Predicated region
    $region41: #{lst_model_forward.13} parent=5 // pred_check
      _
    $region42: #{lst_model_forward.13} parent=5 // pred_check_branch
      %223 = sbr.rel (%p220) target = $region44
    $region43: #{lst_model_forward.13} parent=5 // pred_region
      %s224 = ssub.s32 %s12, 1
      %s225 = ssub.s32 1, %s17
      %s226 = smul.u32 8, %s225
      %p227 = scmp.lt.s32.totalorder %s226, 15
      %s228 = scalar_select %p227, %s226, 15
      %s229 = smul.addr %s228, 4
      %s230 = scalar_lea.vmem %s0, %s229
      %p231 = pneg %p40
      %p232 = pneg %p37
      %p233 = pneg %p61
      %p234 = pneg %p58
      %p235 = pneg %p82
      %p236 = pneg %p79
      %p237 = pneg %p103
      %p238 = pneg %p100
      %p239 = pneg %p124
      %p240 = pneg %p121
      %p241 = pneg %p145
      %p242 = pneg %p142
      %p243 = pneg %p173
      %p244 = pneg %p170
      %s245 = ssub.s32 1, %s17
      %s246 = smul.u32 8, %s245
      %p247 = scmp.lt.s32.totalorder %s246, 15
      %s248 = scalar_select %p247, %s246, 15
      %s249 = smul.addr %s248, 4
      %s250 = scalar_lea.vmem %s6, %s249
      %s251 = ssub.s32 1, %s17
      %s252 = smul.u32 8, %s251
      %p253 = scmp.lt.s32.totalorder %s252, 15
      %s254 = scalar_select %p253, %s252, 15
      %s255 = smul.addr %s254, 4
      %s256 = scalar_lea.vmem %s0, %s255
      %s257 = ssub.s32 1, %s17
      %s258 = smul.u32 8, %s257
      %s259 = ssub.s32 1, %s17
      %s260 = smul.u32 8, %s259
      %p261 = scmp.lt.s32.totalorder %s260, 15
      %s262 = scalar_select %p261, %s260, 15
      %s263 = smul.addr %s262, 4
      %s264 = scalar_lea.vmem %s6, %s263
      %s265 = ssub.s32 1, %s17
      %s266 = smul.u32 8, %s265
      %p268 = scmp.eq.s32.totalorder %s17, 0
      // Predicated region
      $region45: #{lst_model_forward.13} parent=43 // pred_check
        %p269 = pneg %p268
      $region46: #{lst_model_forward.13} parent=43 // pred_check_branch
        %271 = sbr.rel (%p269) target = $region48
      $region47: #{lst_model_forward.13} parent=43 // pred_region
        %v272 = vld [vmem:[%s4] sm:$0xff]
        %vm273 = vcmask 261120
        %274 = vst.msk [vmem:[#allocation2] sm:$0xff] %vm273, %v272
        %v275 = vld [vmem:[%s5] sm:$0xff]
        %276 = vst.msk [vmem:[#allocation3] sm:$0xff] %vm273, %v275
      $region48: #{lst_model_forward.13} parent=43 // pred_fallthru
        _
      %v277 = vld [vmem:[%s1] sm:$0xf]
      %v278 = vld [vmem:[%s1 + $0x4] sm:$0xf]
      %v279 = vld [vmem:[%s1 + $0x8] sm:$0xf]
      %v280 = vld [vmem:[%s1 + $0xc] sm:$0xf]
      %v281 = vld [vmem:[%s1 + $0x10] sm:$0xf]
      %v282 = vld [vmem:[%s1 + $0x14] sm:$0xf]
      %v283 = vld [vmem:[%s1 + $0x18] sm:$0xf]
      %v284 = vld [vmem:[%s1 + $0x1c] sm:$0xf]
      %v285 = vld [vmem:[%s2] sm:$0xf]
      %v286 = vld [vmem:[%s2 + $0x4] sm:$0xf]
      %v287 = vld [vmem:[%s2 + $0x8] sm:$0xf]
      %v288 = vld [vmem:[%s2 + $0xc] sm:$0xf]
      %v289 = vld [vmem:[%s3] sm:$0x1]
      %v290 = vld [vmem:[%s256] sm:$0xf]
      %v291 = vld [vmem:[%s256 + $0x4] sm:$0xf]
      %v292 = vld [vmem:[%s256 + $0x8] sm:$0xf]
      %v293 = vld [vmem:[%s256 + $0xc] sm:$0xf]
      %v294 = vld [vmem:[%s256 + $0x10] sm:$0xf]
      %v295 = vld [vmem:[%s256 + $0x14] sm:$0xf]
      %v296 = vld [vmem:[%s256 + $0x18] sm:$0xf]
      %v297 = vld [vmem:[%s256 + $0x1c] sm:$0xf]
      %v306 = vunpack.c.l.b16 %v290
      %v307 = vunpack.c.l.b16 %v291
      %v308 = vunpack.c.l.b16 %v292
      %v309 = vunpack.c.l.b16 %v293
      %v310 = vunpack.c.l.b16 %v294
      %v311 = vunpack.c.l.b16 %v295
      %v312 = vunpack.c.l.b16 %v296
      %v313 = vunpack.c.l.b16 %v297
      %v314 = vpack.c.b16 %v307, %v306
      %v315 = vpack.c.b16 %v309, %v308
      %v316 = vpack.c.b16 %v311, %v310
      %v317 = vpack.c.b16 %v313, %v312
      %v326 = vunpack.c.l.b16 %v277
      %v327 = vunpack.c.l.b16 %v278
      %v328 = vunpack.c.l.b16 %v279
      %v329 = vunpack.c.l.b16 %v280
      %v330 = vunpack.c.l.b16 %v281
      %v331 = vunpack.c.l.b16 %v282
      %v332 = vunpack.c.l.b16 %v283
      %v333 = vunpack.c.l.b16 %v284
      %v334 = vpack.c.b16 %v327, %v326
      %v335 = vpack.c.b16 %v329, %v328
      %v336 = vpack.c.b16 %v331, %v330
      %v337 = vpack.c.b16 %v333, %v332
      %vm342 = vcmask 523264
      %v344 = vsel %vm342, %v314, 0
      %v347 = vsel %vm342, %v315, 0
      %v350 = vsel %vm342, %v316, 0
      %v353 = vsel %vm342, %v317, 0
      %355 = vmatpush.bf16.msra.mxu0 0
      %356 = vmatpush.bf16.msra.mxu0 0
      %357 = vmatpush.bf16.msra.mxu0 0
      %358 = vmatpush.bf16.msra.mxu0 0
      %359 = vmatpush.bf16.msra.mxu0 %v337
      %360 = vmatpush.bf16.msra.mxu0 %v336
      %361 = vmatpush.bf16.msra.mxu0 %v335
      %362 = vmatpush.bf16.msra.mxu0 %v334
      %363 = vmatmul.bf16.gmra.mxu0 %v344
      %v364 = vpop.f32.mrf.mxu0
      %v365 = vadd.f32 0.0, %v364
      %v366 = vpop.f32.mrf.mxu0
      %v367 = vadd.f32 0.0, %v366
      %368 = vmatmul.bf16.gmra.mxu0 %v347
      %v369 = vpop.f32.mrf.mxu0
      %v370 = vadd.f32 0.0, %v369
      %v371 = vpop.f32.mrf.mxu0
      %v372 = vadd.f32 0.0, %v371
      %373 = vmatmul.bf16.gmra.mxu0 %v350
      %v374 = vpop.f32.mrf.mxu0
      %v375 = vadd.f32 0.0, %v374
      %v376 = vpop.f32.mrf.mxu0
      %v377 = vadd.f32 0.0, %v376
      %378 = vmatmul.bf16.gmra.mxu0 %v353
      %v379 = vpop.f32.mrf.mxu0
      %v380 = vadd.f32 0.0, %v379
      %v381 = vpop.f32.mrf.mxu0
      %v382 = vadd.f32 0.0, %v381
      %383 = vdwg.mxu0
      %v384 = vld [vmem:[#allocation2] sm:$0xff]
      %v386 = vperm.slane %v289, 0
      %v388 = vadd.f32 %v382, %v386
      %v389 = vpack.c.bf16 %v384, %v384
      %v394 = vunpack.c.l.b16 %v285
      %v395 = vunpack.c.l.b16 %v286
      %v396 = vunpack.c.l.b16 %v287
      %v397 = vunpack.c.l.b16 %v288
      %v398 = vpack.c.b16 %v395, %v394
      %v399 = vpack.c.b16 %v397, %v396
      %vm402 = vcmask 261120
      %v404 = vsel %vm402, %v389, 0
      %406 = vmatpush.bf16.msra.mxu0 0
      %407 = vmatpush.bf16.msra.mxu0 0
      %408 = vmatpush.bf16.msra.mxu0 0
      %409 = vmatpush.bf16.msra.mxu0 0
      %410 = vmatpush.bf16.msra.mxu0 0
      %411 = vmatpush.bf16.msra.mxu0 0
      %412 = vmatpush.bf16.msra.mxu0 %v399
      %413 = vmatpush.bf16.msra.mxu0 %v398
      %414 = vmatmul.bf16.gmra.mxu0 %v404
      %v415 = vpop.f32.mrf.mxu0
      %v416 = vadd.f32 0.0, %v415
      %v417 = vpop.f32.mrf.mxu0
      %418 = vdwg.mxu0
      %v419 = vadd.f32 %v388, %v416
      %v420 = vxor.u32 %v419, 2147483648
      %v421 = vmul.f32 %v420, 1.442695
      %v422 = vpow.pop %v421
      %v423 = vadd.f32 %v422, 1.0
      %v424 = vrcp.pop %v423
      %v425 = vmul.f32 %v423, %v424
      %v426 = vsub.f32 1.0, %v425
      %v427 = vmul.f32 %v424, %v426
      %v428 = vadd.f32 %v424, %v427
      %vm429 = vweird.f32 %v423
      %vm430 = vweird.f32 %v424
      %vm431 = vmor %vm429, %vm430
      %v432 = vsel %vm431, %v424, %v428
      %v433 = vand.u32 2147483647, %v423
      %vm434 = vcmp.eq.f32.partialorder %v433, 8.507059e+37
      %v435 = vand.u32 %v423, 2147483648
      %v436 = vor.u32 1.1754944e-38, %v435
      %v437 = vsel %vm434, %v436, %v432
      %v438 = vmul.f32 1.0, %v437
      %v439 = vtanh.pop %v419
      %v440 = vld [vmem:[#allocation3] sm:$0xff]
      %442 = vrot.lane.b32.xlu0 %v440, 32
      %v443 = vpop.permute.xlu0 %442
      %v445 = vmul.f32 %v438, %v443
      %447 = vrot.lane.b32.xlu0 %v439, 64
      %v448 = vpop.permute.xlu0 %447
      %v450 = vmul.f32 %v438, %v448
      %452 = vrot.lane.b32.xlu0 %v450, 32
      %v453 = vpop.permute.xlu0 %452
      %v455 = vadd.f32 %v445, %v453
      %v456 = vtanh.pop %v455
      %458 = vrot.lane.b32.xlu0 %v456, 64
      %v459 = vpop.permute.xlu0 %458
      %v461 = vmul.f32 %v438, %v459
      %463 = vrot.lane.b32.xlu0 %v455, 96
      %v464 = vpop.permute.xlu0 %463
      %466 = vst.msk [vmem:[#allocation3] sm:$0xff] %vm402, %v464
      %468 = vrot.lane.b32.xlu0 %v461, 32
      %v469 = vpop.permute.xlu0 %468
      %471 = vst.msk [vmem:[#allocation2] sm:$0xff] %vm402, %v469
      %472 = vst.msk [vmem:[#allocation4 + $0x38] sm:$0xff] %vm402, %v469
      %v473 = vld [vmem:[#allocation2] sm:$0xff]
      %v474 = vadd.f32 %v380, %v386
      %v475 = vpack.c.bf16 %v473, %v473
      %v477 = vsel %vm402, %v475, 0
      %479 = vmatpush.bf16.msra.mxu0 0
      %480 = vmatpush.bf16.msra.mxu0 0
      %481 = vmatpush.bf16.msra.mxu0 0
      %482 = vmatpush.bf16.msra.mxu0 0
      %483 = vmatpush.bf16.msra.mxu0 0
      %484 = vmatpush.bf16.msra.mxu0 0
      %485 = vmatpush.bf16.msra.mxu0 %v399
      %486 = vmatpush.bf16.msra.mxu0 %v398
      %487 = vmatmul.bf16.gmra.mxu0 %v477
      %v488 = vpop.f32.mrf.mxu0
      %v489 = vadd.f32 0.0, %v488
      %v490 = vpop.f32.mrf.mxu0
      %491 = vdwg.mxu0
      %v492 = vadd.f32 %v474, %v489
      %v493 = vxor.u32 %v492, 2147483648
      %v494 = vmul.f32 %v493, 1.442695
      %v495 = vpow.pop %v494
      %v496 = vadd.f32 %v495, 1.0
      %v497 = vrcp.pop %v496
      %v498 = vmul.f32 %v496, %v497
      %v499 = vsub.f32 1.0, %v498
      %v500 = vmul.f32 %v497, %v499
      %v501 = vadd.f32 %v497, %v500
      %vm502 = vweird.f32 %v496
      %vm503 = vweird.f32 %v497
      %vm504 = vmor %vm502, %vm503
      %v505 = vsel %vm504, %v497, %v501
      %v506 = vand.u32 2147483647, %v496
      %vm507 = vcmp.eq.f32.partialorder %v506, 8.507059e+37
      %v508 = vand.u32 %v496, 2147483648
      %v509 = vor.u32 1.1754944e-38, %v508
      %v510 = vsel %vm507, %v509, %v505
      %v511 = vmul.f32 1.0, %v510
      %v512 = vtanh.pop %v492
      %v513 = vld [vmem:[#allocation3] sm:$0xff]
      %515 = vrot.lane.b32.xlu0 %v513, 32
      %v516 = vpop.permute.xlu0 %515
      %v518 = vmul.f32 %v511, %v516
      %520 = vrot.lane.b32.xlu0 %v512, 64
      %v521 = vpop.permute.xlu0 %520
      %v523 = vmul.f32 %v511, %v521
      %525 = vrot.lane.b32.xlu0 %v523, 32
      %v526 = vpop.permute.xlu0 %525
      %v528 = vadd.f32 %v518, %v526
      %v529 = vtanh.pop %v528
      %531 = vrot.lane.b32.xlu0 %v529, 64
      %v532 = vpop.permute.xlu0 %531
      %v534 = vmul.f32 %v511, %v532
      %536 = vrot.lane.b32.xlu0 %v528, 96
      %v537 = vpop.permute.xlu0 %536
      %539 = vst.msk [vmem:[#allocation3] sm:$0xff] %vm402, %v537
      %541 = vrot.lane.b32.xlu0 %v534, 32
      %v542 = vpop.permute.xlu0 %541
      %544 = vst.msk [vmem:[#allocation2] sm:$0xff] %vm402, %v542
      %545 = vst.msk [vmem:[#allocation4 + $0x30] sm:$0xff] %vm402, %v542
      %v546 = vld [vmem:[#allocation2] sm:$0xff]
      %v547 = vadd.f32 %v377, %v386
      %v548 = vpack.c.bf16 %v546, %v546
      %v550 = vsel %vm402, %v548, 0
      %552 = vmatpush.bf16.msra.mxu0 0
      %553 = vmatpush.bf16.msra.mxu0 0
      %554 = vmatpush.bf16.msra.mxu0 0
      %555 = vmatpush.bf16.msra.mxu0 0
      %556 = vmatpush.bf16.msra.mxu0 0
      %557 = vmatpush.bf16.msra.mxu0 0
      %558 = vmatpush.bf16.msra.mxu0 %v399
      %559 = vmatpush.bf16.msra.mxu0 %v398
      %560 = vmatmul.bf16.gmra.mxu0 %v550
      %v561 = vpop.f32.mrf.mxu0
      %v562 = vadd.f32 0.0, %v561
      %v563 = vpop.f32.mrf.mxu0
      %564 = vdwg.mxu0
      %v565 = vadd.f32 %v547, %v562
      %v566 = vxor.u32 %v565, 2147483648
      %v567 = vmul.f32 %v566, 1.442695
      %v568 = vpow.pop %v567
      %v569 = vadd.f32 %v568, 1.0
      %v570 = vrcp.pop %v569
      %v571 = vmul.f32 %v569, %v570
      %v572 = vsub.f32 1.0, %v571
      %v573 = vmul.f32 %v570, %v572
      %v574 = vadd.f32 %v570, %v573
      %vm575 = vweird.f32 %v569
      %vm576 = vweird.f32 %v570
      %vm577 = vmor %vm575, %vm576
      %v578 = vsel %vm577, %v570, %v574
      %v579 = vand.u32 2147483647, %v569
      %vm580 = vcmp.eq.f32.partialorder %v579, 8.507059e+37
      %v581 = vand.u32 %v569, 2147483648
      %v582 = vor.u32 1.1754944e-38, %v581
      %v583 = vsel %vm580, %v582, %v578
      %v584 = vmul.f32 1.0, %v583
      %v585 = vtanh.pop %v565
      %v586 = vld [vmem:[#allocation3] sm:$0xff]
      %588 = vrot.lane.b32.xlu0 %v586, 32
      %v589 = vpop.permute.xlu0 %588
      %v591 = vmul.f32 %v584, %v589
      %593 = vrot.lane.b32.xlu0 %v585, 64
      %v594 = vpop.permute.xlu0 %593
      %v596 = vmul.f32 %v584, %v594
      %598 = vrot.lane.b32.xlu0 %v596, 32
      %v599 = vpop.permute.xlu0 %598
      %v601 = vadd.f32 %v591, %v599
      %v602 = vtanh.pop %v601
      %604 = vrot.lane.b32.xlu0 %v602, 64
      %v605 = vpop.permute.xlu0 %604
      %v607 = vmul.f32 %v584, %v605
      %609 = vrot.lane.b32.xlu0 %v601, 96
      %v610 = vpop.permute.xlu0 %609
      %612 = vst.msk [vmem:[#allocation3] sm:$0xff] %vm402, %v610
      %614 = vrot.lane.b32.xlu0 %v607, 32
      %v615 = vpop.permute.xlu0 %614
      %617 = vst.msk [vmem:[#allocation2] sm:$0xff] %vm402, %v615
      %618 = vst.msk [vmem:[#allocation4 + $0x28] sm:$0xff] %vm402, %v615
      %v619 = vld [vmem:[#allocation2] sm:$0xff]
      %v620 = vadd.f32 %v375, %v386
      %v621 = vpack.c.bf16 %v619, %v619
      %v623 = vsel %vm402, %v621, 0
      %625 = vmatpush.bf16.msra.mxu0 0
      %626 = vmatpush.bf16.msra.mxu0 0
      %627 = vmatpush.bf16.msra.mxu0 0
      %628 = vmatpush.bf16.msra.mxu0 0
      %629 = vmatpush.bf16.msra.mxu0 0
      %630 = vmatpush.bf16.msra.mxu0 0
      %631 = vmatpush.bf16.msra.mxu0 %v399
      %632 = vmatpush.bf16.msra.mxu0 %v398
      %633 = vmatmul.bf16.gmra.mxu0 %v623
      %v634 = vpop.f32.mrf.mxu0
      %v635 = vadd.f32 0.0, %v634
      %v636 = vpop.f32.mrf.mxu0
      %637 = vdwg.mxu0
      %v638 = vadd.f32 %v620, %v635
      %v639 = vxor.u32 %v638, 2147483648
      %v640 = vmul.f32 %v639, 1.442695
      %v641 = vpow.pop %v640
      %v642 = vadd.f32 %v641, 1.0
      %v643 = vrcp.pop %v642
      %v644 = vmul.f32 %v642, %v643
      %v645 = vsub.f32 1.0, %v644
      %v646 = vmul.f32 %v643, %v645
      %v647 = vadd.f32 %v643, %v646
      %vm648 = vweird.f32 %v642
      %vm649 = vweird.f32 %v643
      %vm650 = vmor %vm648, %vm649
      %v651 = vsel %vm650, %v643, %v647
      %v652 = vand.u32 2147483647, %v642
      %vm653 = vcmp.eq.f32.partialorder %v652, 8.507059e+37
      %v654 = vand.u32 %v642, 2147483648
      %v655 = vor.u32 1.1754944e-38, %v654
      %v656 = vsel %vm653, %v655, %v651
      %v657 = vmul.f32 1.0, %v656
      %v658 = vtanh.pop %v638
      %v659 = vld [vmem:[#allocation3] sm:$0xff]
      %661 = vrot.lane.b32.xlu0 %v659, 32
      %v662 = vpop.permute.xlu0 %661
      %v664 = vmul.f32 %v657, %v662
      %666 = vrot.lane.b32.xlu0 %v658, 64
      %v667 = vpop.permute.xlu0 %666
      %v669 = vmul.f32 %v657, %v667
      %671 = vrot.lane.b32.xlu0 %v669, 32
      %v672 = vpop.permute.xlu0 %671
      %v674 = vadd.f32 %v664, %v672
      %v675 = vtanh.pop %v674
      %677 = vrot.lane.b32.xlu0 %v675, 64
      %v678 = vpop.permute.xlu0 %677
      %v680 = vmul.f32 %v657, %v678
      %682 = vrot.lane.b32.xlu0 %v674, 96
      %v683 = vpop.permute.xlu0 %682
      %685 = vst.msk [vmem:[#allocation3] sm:$0xff] %vm402, %v683
      %687 = vrot.lane.b32.xlu0 %v680, 32
      %v688 = vpop.permute.xlu0 %687
      %690 = vst.msk [vmem:[#allocation2] sm:$0xff] %vm402, %v688
      %691 = vst.msk [vmem:[#allocation4 + $0x20] sm:$0xff] %vm402, %v688
      %v692 = vld [vmem:[#allocation2] sm:$0xff]
      %v693 = vadd.f32 %v372, %v386
      %v694 = vpack.c.bf16 %v692, %v692
      %v696 = vsel %vm402, %v694, 0
      %698 = vmatpush.bf16.msra.mxu0 0
      %699 = vmatpush.bf16.msra.mxu0 0
      %700 = vmatpush.bf16.msra.mxu0 0
      %701 = vmatpush.bf16.msra.mxu0 0
      %702 = vmatpush.bf16.msra.mxu0 0
      %703 = vmatpush.bf16.msra.mxu0 0
      %704 = vmatpush.bf16.msra.mxu0 %v399
      %705 = vmatpush.bf16.msra.mxu0 %v398
      %706 = vmatmul.bf16.gmra.mxu0 %v696
      %v707 = vpop.f32.mrf.mxu0
      %v708 = vadd.f32 0.0, %v707
      %v709 = vpop.f32.mrf.mxu0
      %710 = vdwg.mxu0
      %v711 = vadd.f32 %v693, %v708
      %v712 = vxor.u32 %v711, 2147483648
      %v713 = vmul.f32 %v712, 1.442695
      %v714 = vpow.pop %v713
      %v715 = vadd.f32 %v714, 1.0
      %v716 = vrcp.pop %v715
      %v717 = vmul.f32 %v715, %v716
      %v718 = vsub.f32 1.0, %v717
      %v719 = vmul.f32 %v716, %v718
      %v720 = vadd.f32 %v716, %v719
      %vm721 = vweird.f32 %v715
      %vm722 = vweird.f32 %v716
      %vm723 = vmor %vm721, %vm722
      %v724 = vsel %vm723, %v716, %v720
      %v725 = vand.u32 2147483647, %v715
      %vm726 = vcmp.eq.f32.partialorder %v725, 8.507059e+37
      %v727 = vand.u32 %v715, 2147483648
      %v728 = vor.u32 1.1754944e-38, %v727
      %v729 = vsel %vm726, %v728, %v724
      %v730 = vmul.f32 1.0, %v729
      %v731 = vtanh.pop %v711
      %v732 = vld [vmem:[#allocation3] sm:$0xff]
      %734 = vrot.lane.b32.xlu0 %v732, 32
      %v735 = vpop.permute.xlu0 %734
      %v737 = vmul.f32 %v730, %v735
      %739 = vrot.lane.b32.xlu0 %v731, 64
      %v740 = vpop.permute.xlu0 %739
      %v742 = vmul.f32 %v730, %v740
      %744 = vrot.lane.b32.xlu0 %v742, 32
      %v745 = vpop.permute.xlu0 %744
      %v747 = vadd.f32 %v737, %v745
      %v748 = vtanh.pop %v747
      %750 = vrot.lane.b32.xlu0 %v748, 64
      %v751 = vpop.permute.xlu0 %750
      %v753 = vmul.f32 %v730, %v751
      %755 = vrot.lane.b32.xlu0 %v747, 96
      %v756 = vpop.permute.xlu0 %755
      %758 = vst.msk [vmem:[#allocation3] sm:$0xff] %vm402, %v756
      %760 = vrot.lane.b32.xlu0 %v753, 32
      %v761 = vpop.permute.xlu0 %760
      %763 = vst.msk [vmem:[#allocation2] sm:$0xff] %vm402, %v761
      %764 = vst.msk [vmem:[#allocation4 + $0x18] sm:$0xff] %vm402, %v761
      %v765 = vld [vmem:[#allocation2] sm:$0xff]
      %v766 = vadd.f32 %v370, %v386
      %v767 = vpack.c.bf16 %v765, %v765
      %v769 = vsel %vm402, %v767, 0
      %771 = vmatpush.bf16.msra.mxu0 0
      %772 = vmatpush.bf16.msra.mxu0 0
      %773 = vmatpush.bf16.msra.mxu0 0
      %774 = vmatpush.bf16.msra.mxu0 0
      %775 = vmatpush.bf16.msra.mxu0 0
      %776 = vmatpush.bf16.msra.mxu0 0
      %777 = vmatpush.bf16.msra.mxu0 %v399
      %778 = vmatpush.bf16.msra.mxu0 %v398
      %779 = vmatmul.bf16.gmra.mxu0 %v769
      %v780 = vpop.f32.mrf.mxu0
      %v781 = vadd.f32 0.0, %v780
      %v782 = vpop.f32.mrf.mxu0
      %783 = vdwg.mxu0
      %v784 = vadd.f32 %v766, %v781
      %v785 = vxor.u32 %v784, 2147483648
      %v786 = vmul.f32 %v785, 1.442695
      %v787 = vpow.pop %v786
      %v788 = vadd.f32 %v787, 1.0
      %v789 = vrcp.pop %v788
      %v790 = vmul.f32 %v788, %v789
      %v791 = vsub.f32 1.0, %v790
      %v792 = vmul.f32 %v789, %v791
      %v793 = vadd.f32 %v789, %v792
      %vm794 = vweird.f32 %v788
      %vm795 = vweird.f32 %v789
      %vm796 = vmor %vm794, %vm795
      %v797 = vsel %vm796, %v789, %v793
      %v798 = vand.u32 2147483647, %v788
      %vm799 = vcmp.eq.f32.partialorder %v798, 8.507059e+37
      %v800 = vand.u32 %v788, 2147483648
      %v801 = vor.u32 1.1754944e-38, %v800
      %v802 = vsel %vm799, %v801, %v797
      %v803 = vmul.f32 1.0, %v802
      %v804 = vtanh.pop %v784
      %v805 = vld [vmem:[#allocation3] sm:$0xff]
      %807 = vrot.lane.b32.xlu0 %v805, 32
      %v808 = vpop.permute.xlu0 %807
      %v810 = vmul.f32 %v803, %v808
      %812 = vrot.lane.b32.xlu0 %v804, 64
      %v813 = vpop.permute.xlu0 %812
      %v815 = vmul.f32 %v803, %v813
      %817 = vrot.lane.b32.xlu0 %v815, 32
      %v818 = vpop.permute.xlu0 %817
      %v820 = vadd.f32 %v810, %v818
      %v821 = vtanh.pop %v820
      %823 = vrot.lane.b32.xlu0 %v821, 64
      %v824 = vpop.permute.xlu0 %823
      %v826 = vmul.f32 %v803, %v824
      %828 = vrot.lane.b32.xlu0 %v820, 96
      %v829 = vpop.permute.xlu0 %828
      %831 = vst.msk [vmem:[#allocation3] sm:$0xff] %vm402, %v829
      %833 = vrot.lane.b32.xlu0 %v826, 32
      %v834 = vpop.permute.xlu0 %833
      %836 = vst.msk [vmem:[#allocation2] sm:$0xff] %vm402, %v834
      %837 = vst.msk [vmem:[#allocation4 + $0x10] sm:$0xff] %vm402, %v834
      %v838 = vld [vmem:[#allocation2] sm:$0xff]
      %v839 = vadd.f32 %v367, %v386
      %v840 = vpack.c.bf16 %v838, %v838
      %v842 = vsel %vm402, %v840, 0
      %844 = vmatpush.bf16.msra.mxu0 0
      %845 = vmatpush.bf16.msra.mxu0 0
      %846 = vmatpush.bf16.msra.mxu0 0
      %847 = vmatpush.bf16.msra.mxu0 0
      %848 = vmatpush.bf16.msra.mxu0 0
      %849 = vmatpush.bf16.msra.mxu0 0
      %850 = vmatpush.bf16.msra.mxu0 %v399
      %851 = vmatpush.bf16.msra.mxu0 %v398
      %852 = vmatmul.bf16.gmra.mxu0 %v842
      %v853 = vpop.f32.mrf.mxu0
      %v854 = vadd.f32 0.0, %v853
      %v855 = vpop.f32.mrf.mxu0
      %856 = vdwg.mxu0
      %v857 = vadd.f32 %v839, %v854
      %v858 = vxor.u32 %v857, 2147483648
      %v859 = vmul.f32 %v858, 1.442695
      %v860 = vpow.pop %v859
      %v861 = vadd.f32 %v860, 1.0
      %v862 = vrcp.pop %v861
      %v863 = vmul.f32 %v861, %v862
      %v864 = vsub.f32 1.0, %v863
      %v865 = vmul.f32 %v862, %v864
      %v866 = vadd.f32 %v862, %v865
      %vm867 = vweird.f32 %v861
      %vm868 = vweird.f32 %v862
      %vm869 = vmor %vm867, %vm868
      %v870 = vsel %vm869, %v862, %v866
      %v871 = vand.u32 2147483647, %v861
      %vm872 = vcmp.eq.f32.partialorder %v871, 8.507059e+37
      %v873 = vand.u32 %v861, 2147483648
      %v874 = vor.u32 1.1754944e-38, %v873
      %v875 = vsel %vm872, %v874, %v870
      %v876 = vmul.f32 1.0, %v875
      %v877 = vtanh.pop %v857
      %v878 = vld [vmem:[#allocation3] sm:$0xff]
      %880 = vrot.lane.b32.xlu0 %v878, 32
      %v881 = vpop.permute.xlu0 %880
      %v883 = vmul.f32 %v876, %v881
      %885 = vrot.lane.b32.xlu0 %v877, 64
      %v886 = vpop.permute.xlu0 %885
      %v888 = vmul.f32 %v876, %v886
      %890 = vrot.lane.b32.xlu0 %v888, 32
      %v891 = vpop.permute.xlu0 %890
      %v893 = vadd.f32 %v883, %v891
      %v894 = vtanh.pop %v893
      %896 = vrot.lane.b32.xlu0 %v894, 64
      %v897 = vpop.permute.xlu0 %896
      %v899 = vmul.f32 %v876, %v897
      %901 = vrot.lane.b32.xlu0 %v893, 96
      %v902 = vpop.permute.xlu0 %901
      %904 = vst.msk [vmem:[#allocation3] sm:$0xff] %vm402, %v902
      %906 = vrot.lane.b32.xlu0 %v899, 32
      %v907 = vpop.permute.xlu0 %906
      %909 = vst.msk [vmem:[#allocation2] sm:$0xff] %vm402, %v907
      %910 = vst.msk [vmem:[#allocation4 + $0x8] sm:$0xff] %vm402, %v907
      %v911 = vld [vmem:[#allocation2] sm:$0xff]
      %v912 = vadd.f32 %v365, %v386
      %v913 = vpack.c.bf16 %v911, %v911
      %v915 = vsel %vm402, %v913, 0
      %917 = vmatpush.bf16.msra.mxu0 0
      %918 = vmatpush.bf16.msra.mxu0 0
      %919 = vmatpush.bf16.msra.mxu0 0
      %920 = vmatpush.bf16.msra.mxu0 0
      %921 = vmatpush.bf16.msra.mxu0 0
      %922 = vmatpush.bf16.msra.mxu0 0
      %923 = vmatpush.bf16.msra.mxu0 %v399
      %924 = vmatpush.bf16.msra.mxu0 %v398
      %925 = vmatmul.bf16.gmra.mxu0 %v915
      %v926 = vpop.f32.mrf.mxu0
      %v927 = vadd.f32 0.0, %v926
      %v928 = vpop.f32.mrf.mxu0
      %929 = vdwg.mxu0
      %v930 = vadd.f32 %v912, %v927
      %v931 = vxor.u32 %v930, 2147483648
      %v932 = vmul.f32 %v931, 1.442695
      %v933 = vpow.pop %v932
      %v934 = vadd.f32 %v933, 1.0
      %v935 = vrcp.pop %v934
      %v936 = vmul.f32 %v934, %v935
      %v937 = vsub.f32 1.0, %v936
      %v938 = vmul.f32 %v935, %v937
      %v939 = vadd.f32 %v935, %v938
      %vm940 = vweird.f32 %v934
      %vm941 = vweird.f32 %v935
      %vm942 = vmor %vm940, %vm941
      %v943 = vsel %vm942, %v935, %v939
      %v944 = vand.u32 2147483647, %v934
      %vm945 = vcmp.eq.f32.partialorder %v944, 8.507059e+37
      %v946 = vand.u32 %v934, 2147483648
      %v947 = vor.u32 1.1754944e-38, %v946
      %v948 = vsel %vm945, %v947, %v943
      %v949 = vmul.f32 1.0, %v948
      %v950 = vtanh.pop %v930
      %v951 = vld [vmem:[#allocation3] sm:$0xff]
      %953 = vrot.lane.b32.xlu0 %v951, 32
      %v954 = vpop.permute.xlu0 %953
      %v956 = vmul.f32 %v949, %v954
      %958 = vrot.lane.b32.xlu0 %v950, 64
      %v959 = vpop.permute.xlu0 %958
      %v961 = vmul.f32 %v949, %v959
      %963 = vrot.lane.b32.xlu0 %v961, 32
      %v964 = vpop.permute.xlu0 %963
      %v966 = vadd.f32 %v956, %v964
      %v967 = vtanh.pop %v966
      %969 = vrot.lane.b32.xlu0 %v967, 64
      %v970 = vpop.permute.xlu0 %969
      %v972 = vmul.f32 %v949, %v970
      %974 = vrot.lane.b32.xlu0 %v966, 96
      %v975 = vpop.permute.xlu0 %974
      %977 = vst.msk [vmem:[#allocation3] sm:$0xff] %vm402, %v975
      %979 = vrot.lane.b32.xlu0 %v972, 32
      %v980 = vpop.permute.xlu0 %979
      %982 = vst.msk [vmem:[#allocation2] sm:$0xff] %vm402, %v980
      %983 = vst.msk [vmem:[#allocation4] sm:$0xff] %vm402, %v980
      %v984 = vld [vmem:[#allocation4] sm:$0xff]
      %v985 = vld [vmem:[#allocation4 + $0x8] sm:$0xff]
      %v986 = vld [vmem:[#allocation4 + $0x10] sm:$0xff]
      %v987 = vld [vmem:[#allocation4 + $0x18] sm:$0xff]
      %v988 = vld [vmem:[#allocation4 + $0x20] sm:$0xff]
      %v989 = vld [vmem:[#allocation4 + $0x28] sm:$0xff]
      %v990 = vld [vmem:[#allocation4 + $0x30] sm:$0xff]
      %v991 = vld [vmem:[#allocation4 + $0x38] sm:$0xff]
      %v992 = vpack.c.bf16 %v984, %v984
      %v993 = vpack.c.bf16 %v985, %v985
      %v994 = vpack.c.bf16 %v986, %v986
      %v995 = vpack.c.bf16 %v987, %v987
      %v996 = vpack.c.bf16 %v988, %v988
      %v997 = vpack.c.bf16 %v989, %v989
      %v998 = vpack.c.bf16 %v990, %v990
      %v999 = vpack.c.bf16 %v991, %v991
      %vm1000 = vcmask 257024
      %1001 = vst.msk [vmem:[%s264] sm:$0xf] %vm1000, %v992
      %1002 = vst.msk [vmem:[%s264 + $0x4] sm:$0xf] %vm1000, %v993
      %1003 = vst.msk [vmem:[%s264 + $0x8] sm:$0xf] %vm1000, %v994
      %1004 = vst.msk [vmem:[%s264 + $0xc] sm:$0xf] %vm1000, %v995
      %1005 = vst.msk [vmem:[%s264 + $0x10] sm:$0xf] %vm1000, %v996
      %1006 = vst.msk [vmem:[%s264 + $0x14] sm:$0xf] %vm1000, %v997
      %1007 = vst.msk [vmem:[%s264 + $0x18] sm:$0xf] %vm1000, %v998
      %1008 = vst.msk [vmem:[%s264 + $0x1c] sm:$0xf] %vm1000, %v999
      %s1009 = ssub.s32 1, %s17
      %s1010 = smul.u32 8, %s1009
      %p1011 = scmp.lt.s32.totalorder %s1010, 15
      %s1012 = scalar_select %p1011, %s1010, 15
      %s1013 = smul.addr %s1012, 4
      %s1014 = scalar_lea.vmem %s6, %s1013
      // Predicated region
      $region49: #{lst_model_forward.13} parent=43 // pred_check
        %p1015 = pneg %p170
      $region50: #{lst_model_forward.13} parent=43 // pred_check_branch
        %1017 = sbr.rel (%p1015) target = $region52
      $region51: #{lst_model_forward.13} parent=43 // pred_region
        %s1018 = ssub.s32 1, %s17
        %s1019 = smul.u32 8, %s1018
      $region52: #{lst_model_forward.13} parent=43 // pred_fallthru
        _
    $region44: #{lst_model_forward.13} parent=5 // pred_fallthru
      _
    %p1020 = scmp.le.s32.totalorder 2, %s12
    // Predicated region
    $region53: #{lst_model_forward.13} parent=5 // pred_check
      %p1021 = pneg %p1020
    $region54: #{lst_model_forward.13} parent=5 // pred_check_branch
      %1023 = sbr.rel (%p1021) target = $region56
    $region55: #{lst_model_forward.13} parent=5 // pred_region
      %s1024 = ssub.s32 %s12, 2
      // Predicated region
      $region57: #{lst_model_forward.13} parent=55 // pred_check
        %p1025 = pneg %p176
      $region58: #{lst_model_forward.13} parent=55 // pred_check_branch
        %1027 = sbr.rel (%p1025) target = $region60
      $region59: #{lst_model_forward.13} parent=55 // pred_region
        %s1028 = ssub.s32 1, %s18
        %s1029 = smul.u32 8, %s1028
        %p1030 = scmp.lt.s32.totalorder %s1029, 15
        %s1031 = scalar_select %p1030, %s1029, 15
        %s1032 = smul.addr %s1031, 4
        %s1033 = scalar_lea.vmem %s6, %s1032
      $region60: #{lst_model_forward.13} parent=55 // pred_fallthru
        _
    $region56: #{lst_model_forward.13} parent=5 // pred_fallthru
      _
  $region6: #{lst_model_forward.13} parent=0 // loop_footer
    %s16 = sadd.s32 1, %s12
  $region7: #{lst_model_forward.13} parent=0 // loop_footer_branch
    %11 = sbr.rel target = $region3
  $region8: #{lst_model_forward.13} parent=0 // loop_exit
    _

// kernel: lst_model_forward.10
$region0: #{lst_model_forward.10}
  #allocation0 [shape = 'u32[]', space=smem, size = 0x4, offset = 0x4, fixed_abs, tag = 'smem constant byte address 0x4 - core index']
  #allocation1 [shape = 'u32[72,128]{1,0:T(1,128)}', space=vmem, size = 0x9000, scoped, tag = 'internal scratch']
  #allocation2 [shape = 'f32[8,32]{1,0:T(8,128)}', space=vmem, size = 0x1000, scoped, tag = 'scratch operand']
  #allocation3 [shape = 'f32[8,32]{1,0:T(8,128)}', space=vmem, size = 0x1000, scoped, tag = 'scratch operand']
  #allocation4 [shape = 'f32[64,32]{1,0:T(8,128)}', space=vmem, size = 0x8000, scoped, tag = 'scratch operand']
  %s0 = inlined_call_operand.vmem [shape: bf16[128,10], index: 0, kind: input, shape index: {}]
  %s1 = inlined_call_operand.vmem [shape: bf16[10,128], index: 1, kind: input, shape index: {}]
  %s2 = inlined_call_operand.vmem [shape: bf16[32,128], index: 2, kind: input, shape index: {}]
  %s3 = inlined_call_operand.vmem [shape: f32[1,128], index: 3, kind: input, shape index: {}]
  %s4 = inlined_call_operand.vmem [shape: f32[8,32], index: 4, kind: input, shape index: {}]
  %s5 = inlined_call_operand.vmem [shape: f32[8,32], index: 5, kind: input, shape index: {}]
  %s6 = inlined_call_operand.vmem [shape: bf16[128,32], index: 6, kind: output, shape index: {}]
  %s7 = sld [smem:[#allocation0]]
  $region61: #{lst_model_forward.10} parent=0
    _
  %s9 = ssub.s32 1, %s7
  %s10 = scalar_select 0, %s9, %s7
  loop: start=0, step=1, limit=4
  $region2: #{lst_model_forward.10} parent=0 // loop_pre_header
    _
  $region3: #{lst_model_forward.10} parent=0 // loop_header
    %s12 = sphi 0, %s16
    %p13 = scmp.ge.s32.totalorder %s12, 4
    %s22 = sphi 0, %s24
    %s25 = sphi 0, %s22
    %s26 = sphi 0, %s25
    %s42 = sphi 0, %s26
    %s46 = sphi 0, %s46
    %s48 = sphi 0, %s46
    %s49 = sphi 0, %s48
    %s63 = sphi 0, %s49
    %s67 = sphi 0, %s67
    %s69 = sphi 0, %s67
    %s70 = sphi 0, %s69
    %s84 = sphi 0, %s70
    %s88 = sphi 0, %s88
    %s90 = sphi 0, %s88
    %s91 = sphi 0, %s90
    %s105 = sphi 0, %s91
    %s109 = sphi 0, %s109
    %s111 = sphi 0, %s109
    %s112 = sphi 0, %s111
    %s126 = sphi 0, %s112
    %s130 = sphi 0, %s130
    %s132 = sphi 0, %s130
    %s133 = sphi 0, %s132
    %s147 = sphi 0, %s133
    %s153 = sphi 0, %s155
    %s156 = sphi 0, %s153
    %s157 = sphi 0, %s156
    %s173 = sphi 0, %s157
  $region4: #{lst_model_forward.10} parent=0 // loop_header_branch
    %15 = sbr.rel (%p13) target = $region8
  $region5: #{lst_model_forward.10} parent=0 // loop_body
    %s17 = ssub.s32 %s12, 1
    %s18 = ssub.s32 %s12, 2
    %s19 = sadd.s32 %s12, 1
    %s20 = ssub.s32 %s12, %s19
    %p21 = scmp.eq.s32.totalorder %s20, 0
    %s23 = sadd.s32 %s22, 1
    %s24 = scalar_select %p21, %s22, %s23
    %p27 = pneg %p21
    %p28 = scmp.eq.s32.totalorder %s12, 1
    %p29 = por %p27, %p28
    %p30 = scmp.ne.s32.totalorder %s22, %s25
    %p31 = scmp.eq.s32.totalorder %s12, 0
    %p32 = por %p30, %p31
    %p33 = scmp.ne.s32.totalorder %s22, %s25
    %p34 = scmp.eq.s32.totalorder %s17, 1
    %p35 = por %p33, %p34
    %p36 = scmp.ne.s32.totalorder %s25, %s26
    %p37 = scmp.eq.s32.totalorder %s17, 0
    %p38 = por %p36, %p37
    %p39 = scmp.ne.s32.totalorder %s25, %s26
    %p40 = scmp.eq.s32.totalorder %s18, 1
    %p41 = por %p39, %p40
    %p43 = scmp.ne.s32.totalorder %s26, %s42
    %p44 = scmp.eq.s32.totalorder %s18, 0
    %p45 = por %p43, %p44
    %s47 = sadd.s32 %s46, 1
    %p50 = scmp.eq.s32.totalorder %s12, 1
    %p51 = scmp.ne.s32.totalorder %s46, %s48
    %p52 = scmp.eq.s32.totalorder %s12, 0
    %p53 = por %p51, %p52
    %p54 = scmp.ne.s32.totalorder %s46, %s48
    %p55 = scmp.eq.s32.totalorder %s17, 1
    %p56 = por %p54, %p55
    %p57 = scmp.ne.s32.totalorder %s48, %s49
    %p58 = scmp.eq.s32.totalorder %s17, 0
    %p59 = por %p57, %p58
    %p60 = scmp.ne.s32.totalorder %s48, %s49
    %p61 = scmp.eq.s32.totalorder %s18, 1
    %p62 = por %p60, %p61
    %p64 = scmp.ne.s32.totalorder %s49, %s63
    %p65 = scmp.eq.s32.totalorder %s18, 0
    %p66 = por %p64, %p65
    %s68 = sadd.s32 %s67, 1
    %p71 = scmp.eq.s32.totalorder %s12, 1
    %p72 = scmp.ne.s32.totalorder %s67, %s69
    %p73 = scmp.eq.s32.totalorder %s12, 0
    %p74 = por %p72, %p73
    %p75 = scmp.ne.s32.totalorder %s67, %s69
    %p76 = scmp.eq.s32.totalorder %s17, 1
    %p77 = por %p75, %p76
    %p78 = scmp.ne.s32.totalorder %s69, %s70
    %p79 = scmp.eq.s32.totalorder %s17, 0
    %p80 = por %p78, %p79
    %p81 = scmp.ne.s32.totalorder %s69, %s70
    %p82 = scmp.eq.s32.totalorder %s18, 1
    %p83 = por %p81, %p82
    %p85 = scmp.ne.s32.totalorder %s70, %s84
    %p86 = scmp.eq.s32.totalorder %s18, 0
    %p87 = por %p85, %p86
    %s89 = sadd.s32 %s88, 1
    %p92 = scmp.eq.s32.totalorder %s12, 1
    %p93 = scmp.ne.s32.totalorder %s88, %s90
    %p94 = scmp.eq.s32.totalorder %s12, 0
    %p95 = por %p93, %p94
    %p96 = scmp.ne.s32.totalorder %s88, %s90
    %p97 = scmp.eq.s32.totalorder %s17, 1
    %p98 = por %p96, %p97
    %p99 = scmp.ne.s32.totalorder %s90, %s91
    %p100 = scmp.eq.s32.totalorder %s17, 0
    %p101 = por %p99, %p100
    %p102 = scmp.ne.s32.totalorder %s90, %s91
    %p103 = scmp.eq.s32.totalorder %s18, 1
    %p104 = por %p102, %p103
    %p106 = scmp.ne.s32.totalorder %s91, %s105
    %p107 = scmp.eq.s32.totalorder %s18, 0
    %p108 = por %p106, %p107
    %s110 = sadd.s32 %s109, 1
    %p113 = scmp.eq.s32.totalorder %s12, 1
    %p114 = scmp.ne.s32.totalorder %s109, %s111
    %p115 = scmp.eq.s32.totalorder %s12, 0
    %p116 = por %p114, %p115
    %p117 = scmp.ne.s32.totalorder %s109, %s111
    %p118 = scmp.eq.s32.totalorder %s17, 1
    %p119 = por %p117, %p118
    %p120 = scmp.ne.s32.totalorder %s111, %s112
    %p121 = scmp.eq.s32.totalorder %s17, 0
    %p122 = por %p120, %p121
    %p123 = scmp.ne.s32.totalorder %s111, %s112
    %p124 = scmp.eq.s32.totalorder %s18, 1
    %p125 = por %p123, %p124
    %p127 = scmp.ne.s32.totalorder %s112, %s126
    %p128 = scmp.eq.s32.totalorder %s18, 0
    %p129 = por %p127, %p128
    %s131 = sadd.s32 %s130, 1
    %p134 = scmp.eq.s32.totalorder %s12, 1
    %p135 = scmp.ne.s32.totalorder %s130, %s132
    %p136 = scmp.eq.s32.totalorder %s12, 0
    %p137 = por %p135, %p136
    %p138 = scmp.ne.s32.totalorder %s130, %s132
    %p139 = scmp.eq.s32.totalorder %s17, 1
    %p140 = por %p138, %p139
    %p141 = scmp.ne.s32.totalorder %s132, %s133
    %p142 = scmp.eq.s32.totalorder %s17, 0
    %p143 = por %p141, %p142
    %p144 = scmp.ne.s32.totalorder %s132, %s133
    %p145 = scmp.eq.s32.totalorder %s18, 1
    %p146 = por %p144, %p145
    %p148 = scmp.ne.s32.totalorder %s133, %s147
    %p149 = scmp.eq.s32.totalorder %s18, 0
    %p150 = por %p148, %p149
    %s151 = ssub.s32 %s12, %s19
    %p152 = scmp.eq.s32.totalorder %s151, 0
    %s154 = sadd.s32 %s153, 1
    %s155 = scalar_select %p152, %s153, %s154
    %p158 = pneg %p152
    %p159 = scmp.eq.s32.totalorder %s12, 1
    %p160 = por %p158, %p159
    %p161 = scmp.ne.s32.totalorder %s153, %s156
    %p162 = scmp.eq.s32.totalorder %s12, 0
    %p163 = por %p161, %p162
    %p164 = scmp.ne.s32.totalorder %s153, %s156
    %p165 = scmp.eq.s32.totalorder %s17, 1
    %p166 = por %p164, %p165
    %p167 = scmp.ne.s32.totalorder %s156, %s157
    %p168 = scmp.eq.s32.totalorder %s17, 0
    %p169 = por %p167, %p168
    %p170 = scmp.ne.s32.totalorder %s156, %s157
    %p171 = scmp.eq.s32.totalorder %s18, 1
    %p172 = por %p170, %p171
    %p174 = scmp.ne.s32.totalorder %s157, %s173
    %p175 = scmp.eq.s32.totalorder %s18, 0
    %p176 = por %p174, %p175
    %p177 = scmp.le.s32.totalorder 1, %s12
    %p178 = scmp.lt.s32.totalorder %s12, 3
    %p179 = pnand %p177, %p178
    %p180 = pneg %p179
    // Predicated region
    $region9: #{lst_model_forward.10} parent=5 // pred_check
      _
    $region10: #{lst_model_forward.10} parent=5 // pred_check_branch
      %182 = sbr.rel (%p179) target = $region12
    $region11: #{lst_model_forward.10} parent=5 // pred_region
      %s183 = ssub.s32 %s12, 1
      // Predicated region
      $region13: #{lst_model_forward.10} parent=11 // pred_check
        %p184 = pneg %p59
      $region14: #{lst_model_forward.10} parent=11 // pred_check_branch
        %186 = sbr.rel (%p184) target = $region16
      $region15: #{lst_model_forward.10} parent=11 // pred_region
        _
      $region16: #{lst_model_forward.10} parent=11 // pred_fallthru
        _
      // Predicated region
      $region17: #{lst_model_forward.10} parent=11 // pred_check
        %p187 = pneg %p80
      $region18: #{lst_model_forward.10} parent=11 // pred_check_branch
        %189 = sbr.rel (%p187) target = $region20
      $region19: #{lst_model_forward.10} parent=11 // pred_region
        _
      $region20: #{lst_model_forward.10} parent=11 // pred_fallthru
        _
      // Predicated region
      $region21: #{lst_model_forward.10} parent=11 // pred_check
        %p190 = pneg %p101
      $region22: #{lst_model_forward.10} parent=11 // pred_check_branch
        %192 = sbr.rel (%p190) target = $region24
      $region23: #{lst_model_forward.10} parent=11 // pred_region
        _
      $region24: #{lst_model_forward.10} parent=11 // pred_fallthru
        _
      // Predicated region
      $region25: #{lst_model_forward.10} parent=11 // pred_check
        %p193 = pneg %p122
      $region26: #{lst_model_forward.10} parent=11 // pred_check_branch
        %195 = sbr.rel (%p193) target = $region28
      $region27: #{lst_model_forward.10} parent=11 // pred_region
        _
      $region28: #{lst_model_forward.10} parent=11 // pred_fallthru
        _
      // Predicated region
      $region29: #{lst_model_forward.10} parent=11 // pred_check
        %p196 = pneg %p143
      $region30: #{lst_model_forward.10} parent=11 // pred_check_branch
        %198 = sbr.rel (%p196) target = $region32
      $region31: #{lst_model_forward.10} parent=11 // pred_region
        _
      $region32: #{lst_model_forward.10} parent=11 // pred_fallthru
        _
    $region12: #{lst_model_forward.10} parent=5 // pred_fallthru
      _
    %p199 = scmp.lt.s32.totalorder %s12, 2
    // Predicated region
    $region33: #{lst_model_forward.10} parent=5 // pred_check
      %p200 = pneg %p199
    $region34: #{lst_model_forward.10} parent=5 // pred_check_branch
      %202 = sbr.rel (%p200) target = $region36
    $region35: #{lst_model_forward.10} parent=5 // pred_region
      // Predicated region
      $region37: #{lst_model_forward.10} parent=35 // pred_check
        %p203 = pneg %p32
      $region38: #{lst_model_forward.10} parent=35 // pred_check_branch
        %205 = sbr.rel (%p203) target = $region40
      $region39: #{lst_model_forward.10} parent=35 // pred_region
        %s206 = smul.u32 8, %s12
        %p207 = scmp.lt.s32.totalorder %s206, 15
        %s208 = scalar_select %p207, %s206, 15
        %s209 = smul.addr %s208, 4
        %s210 = scalar_lea.vmem %s0, %s209
        %s211 = smul.u32 8, %s12
      $region40: #{lst_model_forward.10} parent=35 // pred_fallthru
        _
    $region36: #{lst_model_forward.10} parent=5 // pred_fallthru
      _
    %p212 = scmp.le.s32.totalorder 1, %s12
    %p213 = scmp.lt.s32.totalorder %s12, 3
    %p214 = pnand %p212, %p213
    %p215 = pneg %p214
    // Predicated region
    $region41: #{lst_model_forward.10} parent=5 // pred_check
      _
    $region42: #{lst_model_forward.10} parent=5 // pred_check_branch
      %217 = sbr.rel (%p214) target = $region44
    $region43: #{lst_model_forward.10} parent=5 // pred_region
      %s218 = ssub.s32 %s12, 1
      %s219 = smul.u32 8, %s17
      %p220 = scmp.lt.s32.totalorder %s219, 15
      %s221 = scalar_select %p220, %s219, 15
      %s222 = smul.addr %s221, 4
      %s223 = scalar_lea.vmem %s0, %s222
      %p224 = pneg %p38
      %p225 = pneg %p35
      %p226 = pneg %p59
      %p227 = pneg %p56
      %p228 = pneg %p80
      %p229 = pneg %p77
      %p230 = pneg %p101
      %p231 = pneg %p98
      %p232 = pneg %p122
      %p233 = pneg %p119
      %p234 = pneg %p143
      %p235 = pneg %p140
      %p236 = pneg %p169
      %p237 = pneg %p166
      %s238 = smul.u32 8, %s17
      %p239 = scmp.lt.s32.totalorder %s238, 15
      %s240 = scalar_select %p239, %s238, 15
      %s241 = smul.addr %s240, 4
      %s242 = scalar_lea.vmem %s6, %s241
      %s243 = smul.u32 8, %s17
      %p244 = scmp.lt.s32.totalorder %s243, 15
      %s245 = scalar_select %p244, %s243, 15
      %s246 = smul.addr %s245, 4
      %s247 = scalar_lea.vmem %s0, %s246
      %s248 = smul.u32 8, %s17
      %s249 = smul.u32 8, %s17
      %p250 = scmp.lt.s32.totalorder %s249, 15
      %s251 = scalar_select %p250, %s249, 15
      %s252 = smul.addr %s251, 4
      %s253 = scalar_lea.vmem %s6, %s252
      %s254 = smul.u32 8, %s17
      %p256 = scmp.eq.s32.totalorder %s17, 0
      // Predicated region
      $region45: #{lst_model_forward.10} parent=43 // pred_check
        %p257 = pneg %p256
      $region46: #{lst_model_forward.10} parent=43 // pred_check_branch
        %259 = sbr.rel (%p257) target = $region48
      $region47: #{lst_model_forward.10} parent=43 // pred_region
        %v260 = vld [vmem:[%s4] sm:$0xff]
        %vm261 = vcmask 261120
        %262 = vst.msk [vmem:[#allocation2] sm:$0xff] %vm261, %v260
        %v263 = vld [vmem:[%s5] sm:$0xff]
        %264 = vst.msk [vmem:[#allocation3] sm:$0xff] %vm261, %v263
      $region48: #{lst_model_forward.10} parent=43 // pred_fallthru
        _
      %v265 = vld [vmem:[%s1] sm:$0xf]
      %v266 = vld [vmem:[%s1 + $0x4] sm:$0x1]
      %v267 = vld [vmem:[%s2] sm:$0xf]
      %v268 = vld [vmem:[%s2 + $0x4] sm:$0xf]
      %v269 = vld [vmem:[%s2 + $0x8] sm:$0xf]
      %v270 = vld [vmem:[%s2 + $0xc] sm:$0xf]
      %v271 = vld [vmem:[%s3] sm:$0x1]
      %v272 = vld [vmem:[%s247] sm:$0xf]
      %v273 = vld [vmem:[%s247 + $0x4] sm:$0xf]
      %v274 = vld [vmem:[%s247 + $0x8] sm:$0xf]
      %v275 = vld [vmem:[%s247 + $0xc] sm:$0xf]
      %v276 = vld [vmem:[%s247 + $0x10] sm:$0xf]
      %v277 = vld [vmem:[%s247 + $0x14] sm:$0xf]
      %v278 = vld [vmem:[%s247 + $0x18] sm:$0xf]
      %v279 = vld [vmem:[%s247 + $0x1c] sm:$0xf]
      %v288 = vunpack.c.l.b16 %v272
      %v289 = vunpack.c.l.b16 %v273
      %v290 = vunpack.c.l.b16 %v274
      %v291 = vunpack.c.l.b16 %v275
      %v292 = vunpack.c.l.b16 %v276
      %v293 = vunpack.c.l.b16 %v277
      %v294 = vunpack.c.l.b16 %v278
      %v295 = vunpack.c.l.b16 %v279
      %v296 = vpack.c.b16 %v289, %v288
      %v297 = vpack.c.b16 %v291, %v290
      %v298 = vpack.c.b16 %v293, %v292
      %v299 = vpack.c.b16 %v295, %v294
      %v302 = vunpack.c.l.b16 %v265
      %v303 = vunpack.c.l.b16 %v266
      %v304 = vpack.c.b16 %v303, %v302
      %vm305 = vcmask 80896
      %v307 = vsel %vm305, %v296, 0
      %v310 = vsel %vm305, %v297, 0
      %v313 = vsel %vm305, %v298, 0
      %v316 = vsel %vm305, %v299, 0
      %vm318 = vcmask 1044480
      %v320 = vsel %vm318, %v304, 0
      %322 = vmatpush.bf16.msra.mxu0 0
      %323 = vmatpush.bf16.msra.mxu0 0
      %324 = vmatpush.bf16.msra.mxu0 0
      %325 = vmatpush.bf16.msra.mxu0 0
      %326 = vmatpush.bf16.msra.mxu0 0
      %327 = vmatpush.bf16.msra.mxu0 0
      %328 = vmatpush.bf16.msra.mxu0 0
      %329 = vmatpush.bf16.msra.mxu0 %v320
      %330 = vmatmul.bf16.gmra.mxu0 %v307
      %v331 = vpop.f32.mrf.mxu0
      %v332 = vadd.f32 0.0, %v331
      %v333 = vpop.f32.mrf.mxu0
      %v334 = vadd.f32 0.0, %v333
      %335 = vmatmul.bf16.gmra.mxu0 %v310
      %v336 = vpop.f32.mrf.mxu0
      %v337 = vadd.f32 0.0, %v336
      %v338 = vpop.f32.mrf.mxu0
      %v339 = vadd.f32 0.0, %v338
      %340 = vmatmul.bf16.gmra.mxu0 %v313
      %v341 = vpop.f32.mrf.mxu0
      %v342 = vadd.f32 0.0, %v341
      %v343 = vpop.f32.mrf.mxu0
      %v344 = vadd.f32 0.0, %v343
      %345 = vmatmul.bf16.gmra.mxu0 %v316
      %v346 = vpop.f32.mrf.mxu0
      %v347 = vadd.f32 0.0, %v346
      %v348 = vpop.f32.mrf.mxu0
      %v349 = vadd.f32 0.0, %v348
      %350 = vdwg.mxu0
      %v351 = vld [vmem:[#allocation2] sm:$0xff]
      %v353 = vperm.slane %v271, 0
      %v355 = vadd.f32 %v332, %v353
      %v356 = vpack.c.bf16 %v351, %v351
      %v361 = vunpack.c.l.b16 %v267
      %v362 = vunpack.c.l.b16 %v268
      %v363 = vunpack.c.l.b16 %v269
      %v364 = vunpack.c.l.b16 %v270
      %v365 = vpack.c.b16 %v362, %v361
      %v366 = vpack.c.b16 %v364, %v363
      %vm369 = vcmask 261120
      %v371 = vsel %vm369, %v356, 0
      %373 = vmatpush.bf16.msra.mxu0 0
      %374 = vmatpush.bf16.msra.mxu0 0
      %375 = vmatpush.bf16.msra.mxu0 0
      %376 = vmatpush.bf16.msra.mxu0 0
      %377 = vmatpush.bf16.msra.mxu0 0
      %378 = vmatpush.bf16.msra.mxu0 0
      %379 = vmatpush.bf16.msra.mxu0 %v366
      %380 = vmatpush.bf16.msra.mxu0 %v365
      %381 = vmatmul.bf16.gmra.mxu0 %v371
      %v382 = vpop.f32.mrf.mxu0
      %v383 = vadd.f32 0.0, %v382
      %v384 = vpop.f32.mrf.mxu0
      %385 = vdwg.mxu0
      %v386 = vadd.f32 %v355, %v383
      %v387 = vxor.u32 %v386, 2147483648
      %v388 = vmul.f32 %v387, 1.442695
      %v389 = vpow.pop %v388
      %v390 = vadd.f32 %v389, 1.0
      %v391 = vrcp.pop %v390
      %v392 = vmul.f32 %v390, %v391
      %v393 = vsub.f32 1.0, %v392
      %v394 = vmul.f32 %v391, %v393
      %v395 = vadd.f32 %v391, %v394
      %vm396 = vweird.f32 %v390
      %vm397 = vweird.f32 %v391
      %vm398 = vmor %vm396, %vm397
      %v399 = vsel %vm398, %v391, %v395
      %v400 = vand.u32 2147483647, %v390
      %vm401 = vcmp.eq.f32.partialorder %v400, 8.507059e+37
      %v402 = vand.u32 %v390, 2147483648
      %v403 = vor.u32 1.1754944e-38, %v402
      %v404 = vsel %vm401, %v403, %v399
      %v405 = vmul.f32 1.0, %v404
      %v406 = vtanh.pop %v386
      %v407 = vld [vmem:[#allocation3] sm:$0xff]
      %409 = vrot.lane.b32.xlu0 %v407, 32
      %v410 = vpop.permute.xlu0 %409
      %v412 = vmul.f32 %v405, %v410
      %414 = vrot.lane.b32.xlu0 %v406, 64
      %v415 = vpop.permute.xlu0 %414
      %v417 = vmul.f32 %v405, %v415
      %419 = vrot.lane.b32.xlu0 %v417, 32
      %v420 = vpop.permute.xlu0 %419
      %v422 = vadd.f32 %v412, %v420
      %v423 = vtanh.pop %v422
      %425 = vrot.lane.b32.xlu0 %v423, 64
      %v426 = vpop.permute.xlu0 %425
      %v428 = vmul.f32 %v405, %v426
      %430 = vrot.lane.b32.xlu0 %v422, 96
      %v431 = vpop.permute.xlu0 %430
      %433 = vst.msk [vmem:[#allocation3] sm:$0xff] %vm369, %v431
      %435 = vrot.lane.b32.xlu0 %v428, 32
      %v436 = vpop.permute.xlu0 %435
      %438 = vst.msk [vmem:[#allocation2] sm:$0xff] %vm369, %v436
      %439 = vst.msk [vmem:[#allocation4] sm:$0xff] %vm369, %v436
      %v440 = vld [vmem:[#allocation2] sm:$0xff]
      %v441 = vadd.f32 %v334, %v353
      %v442 = vpack.c.bf16 %v440, %v440
      %v444 = vsel %vm369, %v442, 0
      %446 = vmatpush.bf16.msra.mxu0 0
      %447 = vmatpush.bf16.msra.mxu0 0
      %448 = vmatpush.bf16.msra.mxu0 0
      %449 = vmatpush.bf16.msra.mxu0 0
      %450 = vmatpush.bf16.msra.mxu0 0
      %451 = vmatpush.bf16.msra.mxu0 0
      %452 = vmatpush.bf16.msra.mxu0 %v366
      %453 = vmatpush.bf16.msra.mxu0 %v365
      %454 = vmatmul.bf16.gmra.mxu0 %v444
      %v455 = vpop.f32.mrf.mxu0
      %v456 = vadd.f32 0.0, %v455
      %v457 = vpop.f32.mrf.mxu0
      %458 = vdwg.mxu0
      %v459 = vadd.f32 %v441, %v456
      %v460 = vxor.u32 %v459, 2147483648
      %v461 = vmul.f32 %v460, 1.442695
      %v462 = vpow.pop %v461
      %v463 = vadd.f32 %v462, 1.0
      %v464 = vrcp.pop %v463
      %v465 = vmul.f32 %v463, %v464
      %v466 = vsub.f32 1.0, %v465
      %v467 = vmul.f32 %v464, %v466
      %v468 = vadd.f32 %v464, %v467
      %vm469 = vweird.f32 %v463
      %vm470 = vweird.f32 %v464
      %vm471 = vmor %vm469, %vm470
      %v472 = vsel %vm471, %v464, %v468
      %v473 = vand.u32 2147483647, %v463
      %vm474 = vcmp.eq.f32.partialorder %v473, 8.507059e+37
      %v475 = vand.u32 %v463, 2147483648
      %v476 = vor.u32 1.1754944e-38, %v475
      %v477 = vsel %vm474, %v476, %v472
      %v478 = vmul.f32 1.0, %v477
      %v479 = vtanh.pop %v459
      %v480 = vld [vmem:[#allocation3] sm:$0xff]
      %482 = vrot.lane.b32.xlu0 %v480, 32
      %v483 = vpop.permute.xlu0 %482
      %v485 = vmul.f32 %v478, %v483
      %487 = vrot.lane.b32.xlu0 %v479, 64
      %v488 = vpop.permute.xlu0 %487
      %v490 = vmul.f32 %v478, %v488
      %492 = vrot.lane.b32.xlu0 %v490, 32
      %v493 = vpop.permute.xlu0 %492
      %v495 = vadd.f32 %v485, %v493
      %v496 = vtanh.pop %v495
      %498 = vrot.lane.b32.xlu0 %v496, 64
      %v499 = vpop.permute.xlu0 %498
      %v501 = vmul.f32 %v478, %v499
      %503 = vrot.lane.b32.xlu0 %v495, 96
      %v504 = vpop.permute.xlu0 %503
      %506 = vst.msk [vmem:[#allocation3] sm:$0xff] %vm369, %v504
      %508 = vrot.lane.b32.xlu0 %v501, 32
      %v509 = vpop.permute.xlu0 %508
      %511 = vst.msk [vmem:[#allocation2] sm:$0xff] %vm369, %v509
      %512 = vst.msk [vmem:[#allocation4 + $0x8] sm:$0xff] %vm369, %v509
      %v513 = vld [vmem:[#allocation2] sm:$0xff]
      %v514 = vadd.f32 %v337, %v353
      %v515 = vpack.c.bf16 %v513, %v513
      %v517 = vsel %vm369, %v515, 0
      %519 = vmatpush.bf16.msra.mxu0 0
      %520 = vmatpush.bf16.msra.mxu0 0
      %521 = vmatpush.bf16.msra.mxu0 0
      %522 = vmatpush.bf16.msra.mxu0 0
      %523 = vmatpush.bf16.msra.mxu0 0
      %524 = vmatpush.bf16.msra.mxu0 0
      %525 = vmatpush.bf16.msra.mxu0 %v366
      %526 = vmatpush.bf16.msra.mxu0 %v365
      %527 = vmatmul.bf16.gmra.mxu0 %v517
      %v528 = vpop.f32.mrf.mxu0
      %v529 = vadd.f32 0.0, %v528
      %v530 = vpop.f32.mrf.mxu0
      %531 = vdwg.mxu0
      %v532 = vadd.f32 %v514, %v529
      %v533 = vxor.u32 %v532, 2147483648
      %v534 = vmul.f32 %v533, 1.442695
      %v535 = vpow.pop %v534
      %v536 = vadd.f32 %v535, 1.0
      %v537 = vrcp.pop %v536
      %v538 = vmul.f32 %v536, %v537
      %v539 = vsub.f32 1.0, %v538
      %v540 = vmul.f32 %v537, %v539
      %v541 = vadd.f32 %v537, %v540
      %vm542 = vweird.f32 %v536
      %vm543 = vweird.f32 %v537
      %vm544 = vmor %vm542, %vm543
      %v545 = vsel %vm544, %v537, %v541
      %v546 = vand.u32 2147483647, %v536
      %vm547 = vcmp.eq.f32.partialorder %v546, 8.507059e+37
      %v548 = vand.u32 %v536, 2147483648
      %v549 = vor.u32 1.1754944e-38, %v548
      %v550 = vsel %vm547, %v549, %v545
      %v551 = vmul.f32 1.0, %v550
      %v552 = vtanh.pop %v532
      %v553 = vld [vmem:[#allocation3] sm:$0xff]
      %555 = vrot.lane.b32.xlu0 %v553, 32
      %v556 = vpop.permute.xlu0 %555
      %v558 = vmul.f32 %v551, %v556
      %560 = vrot.lane.b32.xlu0 %v552, 64
      %v561 = vpop.permute.xlu0 %560
      %v563 = vmul.f32 %v551, %v561
      %565 = vrot.lane.b32.xlu0 %v563, 32
      %v566 = vpop.permute.xlu0 %565
      %v568 = vadd.f32 %v558, %v566
      %v569 = vtanh.pop %v568
      %571 = vrot.lane.b32.xlu0 %v569, 64
      %v572 = vpop.permute.xlu0 %571
      %v574 = vmul.f32 %v551, %v572
      %576 = vrot.lane.b32.xlu0 %v568, 96
      %v577 = vpop.permute.xlu0 %576
      %579 = vst.msk [vmem:[#allocation3] sm:$0xff] %vm369, %v577
      %581 = vrot.lane.b32.xlu0 %v574, 32
      %v582 = vpop.permute.xlu0 %581
      %584 = vst.msk [vmem:[#allocation2] sm:$0xff] %vm369, %v582
      %585 = vst.msk [vmem:[#allocation4 + $0x10] sm:$0xff] %vm369, %v582
      %v586 = vld [vmem:[#allocation2] sm:$0xff]
      %v587 = vadd.f32 %v339, %v353
      %v588 = vpack.c.bf16 %v586, %v586
      %v590 = vsel %vm369, %v588, 0
      %592 = vmatpush.bf16.msra.mxu0 0
      %593 = vmatpush.bf16.msra.mxu0 0
      %594 = vmatpush.bf16.msra.mxu0 0
      %595 = vmatpush.bf16.msra.mxu0 0
      %596 = vmatpush.bf16.msra.mxu0 0
      %597 = vmatpush.bf16.msra.mxu0 0
      %598 = vmatpush.bf16.msra.mxu0 %v366
      %599 = vmatpush.bf16.msra.mxu0 %v365
      %600 = vmatmul.bf16.gmra.mxu0 %v590
      %v601 = vpop.f32.mrf.mxu0
      %v602 = vadd.f32 0.0, %v601
      %v603 = vpop.f32.mrf.mxu0
      %604 = vdwg.mxu0
      %v605 = vadd.f32 %v587, %v602
      %v606 = vxor.u32 %v605, 2147483648
      %v607 = vmul.f32 %v606, 1.442695
      %v608 = vpow.pop %v607
      %v609 = vadd.f32 %v608, 1.0
      %v610 = vrcp.pop %v609
      %v611 = vmul.f32 %v609, %v610
      %v612 = vsub.f32 1.0, %v611
      %v613 = vmul.f32 %v610, %v612
      %v614 = vadd.f32 %v610, %v613
      %vm615 = vweird.f32 %v609
      %vm616 = vweird.f32 %v610
      %vm617 = vmor %vm615, %vm616
      %v618 = vsel %vm617, %v610, %v614
      %v619 = vand.u32 2147483647, %v609
      %vm620 = vcmp.eq.f32.partialorder %v619, 8.507059e+37
      %v621 = vand.u32 %v609, 2147483648
      %v622 = vor.u32 1.1754944e-38, %v621
      %v623 = vsel %vm620, %v622, %v618
      %v624 = vmul.f32 1.0, %v623
      %v625 = vtanh.pop %v605
      %v626 = vld [vmem:[#allocation3] sm:$0xff]
      %628 = vrot.lane.b32.xlu0 %v626, 32
      %v629 = vpop.permute.xlu0 %628
      %v631 = vmul.f32 %v624, %v629
      %633 = vrot.lane.b32.xlu0 %v625, 64
      %v634 = vpop.permute.xlu0 %633
      %v636 = vmul.f32 %v624, %v634
      %638 = vrot.lane.b32.xlu0 %v636, 32
      %v639 = vpop.permute.xlu0 %638
      %v641 = vadd.f32 %v631, %v639
      %v642 = vtanh.pop %v641
      %644 = vrot.lane.b32.xlu0 %v642, 64
      %v645 = vpop.permute.xlu0 %644
      %v647 = vmul.f32 %v624, %v645
      %649 = vrot.lane.b32.xlu0 %v641, 96
      %v650 = vpop.permute.xlu0 %649
      %652 = vst.msk [vmem:[#allocation3] sm:$0xff] %vm369, %v650
      %654 = vrot.lane.b32.xlu0 %v647, 32
      %v655 = vpop.permute.xlu0 %654
      %657 = vst.msk [vmem:[#allocation2] sm:$0xff] %vm369, %v655
      %658 = vst.msk [vmem:[#allocation4 + $0x18] sm:$0xff] %vm369, %v655
      %v659 = vld [vmem:[#allocation2] sm:$0xff]
      %v660 = vadd.f32 %v342, %v353
      %v661 = vpack.c.bf16 %v659, %v659
      %v663 = vsel %vm369, %v661, 0
      %665 = vmatpush.bf16.msra.mxu0 0
      %666 = vmatpush.bf16.msra.mxu0 0
      %667 = vmatpush.bf16.msra.mxu0 0
      %668 = vmatpush.bf16.msra.mxu0 0
      %669 = vmatpush.bf16.msra.mxu0 0
      %670 = vmatpush.bf16.msra.mxu0 0
      %671 = vmatpush.bf16.msra.mxu0 %v366
      %672 = vmatpush.bf16.msra.mxu0 %v365
      %673 = vmatmul.bf16.gmra.mxu0 %v663
      %v674 = vpop.f32.mrf.mxu0
      %v675 = vadd.f32 0.0, %v674
      %v676 = vpop.f32.mrf.mxu0
      %677 = vdwg.mxu0
      %v678 = vadd.f32 %v660, %v675
      %v679 = vxor.u32 %v678, 2147483648
      %v680 = vmul.f32 %v679, 1.442695
      %v681 = vpow.pop %v680
      %v682 = vadd.f32 %v681, 1.0
      %v683 = vrcp.pop %v682
      %v684 = vmul.f32 %v682, %v683
      %v685 = vsub.f32 1.0, %v684
      %v686 = vmul.f32 %v683, %v685
      %v687 = vadd.f32 %v683, %v686
      %vm688 = vweird.f32 %v682
      %vm689 = vweird.f32 %v683
      %vm690 = vmor %vm688, %vm689
      %v691 = vsel %vm690, %v683, %v687
      %v692 = vand.u32 2147483647, %v682
      %vm693 = vcmp.eq.f32.partialorder %v692, 8.507059e+37
      %v694 = vand.u32 %v682, 2147483648
      %v695 = vor.u32 1.1754944e-38, %v694
      %v696 = vsel %vm693, %v695, %v691
      %v697 = vmul.f32 1.0, %v696
      %v698 = vtanh.pop %v678
      %v699 = vld [vmem:[#allocation3] sm:$0xff]
      %701 = vrot.lane.b32.xlu0 %v699, 32
      %v702 = vpop.permute.xlu0 %701
      %v704 = vmul.f32 %v697, %v702
      %706 = vrot.lane.b32.xlu0 %v698, 64
      %v707 = vpop.permute.xlu0 %706
      %v709 = vmul.f32 %v697, %v707
      %711 = vrot.lane.b32.xlu0 %v709, 32
      %v712 = vpop.permute.xlu0 %711
      %v714 = vadd.f32 %v704, %v712
      %v715 = vtanh.pop %v714
      %717 = vrot.lane.b32.xlu0 %v715, 64
      %v718 = vpop.permute.xlu0 %717
      %v720 = vmul.f32 %v697, %v718
      %722 = vrot.lane.b32.xlu0 %v714, 96
      %v723 = vpop.permute.xlu0 %722
      %725 = vst.msk [vmem:[#allocation3] sm:$0xff] %vm369, %v723
      %727 = vrot.lane.b32.xlu0 %v720, 32
      %v728 = vpop.permute.xlu0 %727
      %730 = vst.msk [vmem:[#allocation2] sm:$0xff] %vm369, %v728
      %731 = vst.msk [vmem:[#allocation4 + $0x20] sm:$0xff] %vm369, %v728
      %v732 = vld [vmem:[#allocation2] sm:$0xff]
      %v733 = vadd.f32 %v344, %v353
      %v734 = vpack.c.bf16 %v732, %v732
      %v736 = vsel %vm369, %v734, 0
      %738 = vmatpush.bf16.msra.mxu0 0
      %739 = vmatpush.bf16.msra.mxu0 0
      %740 = vmatpush.bf16.msra.mxu0 0
      %741 = vmatpush.bf16.msra.mxu0 0
      %742 = vmatpush.bf16.msra.mxu0 0
      %743 = vmatpush.bf16.msra.mxu0 0
      %744 = vmatpush.bf16.msra.mxu0 %v366
      %745 = vmatpush.bf16.msra.mxu0 %v365
      %746 = vmatmul.bf16.gmra.mxu0 %v736
      %v747 = vpop.f32.mrf.mxu0
      %v748 = vadd.f32 0.0, %v747
      %v749 = vpop.f32.mrf.mxu0
      %750 = vdwg.mxu0
      %v751 = vadd.f32 %v733, %v748
      %v752 = vxor.u32 %v751, 2147483648
      %v753 = vmul.f32 %v752, 1.442695
      %v754 = vpow.pop %v753
      %v755 = vadd.f32 %v754, 1.0
      %v756 = vrcp.pop %v755
      %v757 = vmul.f32 %v755, %v756
      %v758 = vsub.f32 1.0, %v757
      %v759 = vmul.f32 %v756, %v758
      %v760 = vadd.f32 %v756, %v759
      %vm761 = vweird.f32 %v755
      %vm762 = vweird.f32 %v756
      %vm763 = vmor %vm761, %vm762
      %v764 = vsel %vm763, %v756, %v760
      %v765 = vand.u32 2147483647, %v755
      %vm766 = vcmp.eq.f32.partialorder %v765, 8.507059e+37
      %v767 = vand.u32 %v755, 2147483648
      %v768 = vor.u32 1.1754944e-38, %v767
      %v769 = vsel %vm766, %v768, %v764
      %v770 = vmul.f32 1.0, %v769
      %v771 = vtanh.pop %v751
      %v772 = vld [vmem:[#allocation3] sm:$0xff]
      %774 = vrot.lane.b32.xlu0 %v772, 32
      %v775 = vpop.permute.xlu0 %774
      %v777 = vmul.f32 %v770, %v775
      %779 = vrot.lane.b32.xlu0 %v771, 64
      %v780 = vpop.permute.xlu0 %779
      %v782 = vmul.f32 %v770, %v780
      %784 = vrot.lane.b32.xlu0 %v782, 32
      %v785 = vpop.permute.xlu0 %784
      %v787 = vadd.f32 %v777, %v785
      %v788 = vtanh.pop %v787
      %790 = vrot.lane.b32.xlu0 %v788, 64
      %v791 = vpop.permute.xlu0 %790
      %v793 = vmul.f32 %v770, %v791
      %795 = vrot.lane.b32.xlu0 %v787, 96
      %v796 = vpop.permute.xlu0 %795
      %798 = vst.msk [vmem:[#allocation3] sm:$0xff] %vm369, %v796
      %800 = vrot.lane.b32.xlu0 %v793, 32
      %v801 = vpop.permute.xlu0 %800
      %803 = vst.msk [vmem:[#allocation2] sm:$0xff] %vm369, %v801
      %804 = vst.msk [vmem:[#allocation4 + $0x28] sm:$0xff] %vm369, %v801
      %v805 = vld [vmem:[#allocation2] sm:$0xff]
      %v806 = vadd.f32 %v347, %v353
      %v807 = vpack.c.bf16 %v805, %v805
      %v809 = vsel %vm369, %v807, 0
      %811 = vmatpush.bf16.msra.mxu0 0
      %812 = vmatpush.bf16.msra.mxu0 0
      %813 = vmatpush.bf16.msra.mxu0 0
      %814 = vmatpush.bf16.msra.mxu0 0
      %815 = vmatpush.bf16.msra.mxu0 0
      %816 = vmatpush.bf16.msra.mxu0 0
      %817 = vmatpush.bf16.msra.mxu0 %v366
      %818 = vmatpush.bf16.msra.mxu0 %v365
      %819 = vmatmul.bf16.gmra.mxu0 %v809
      %v820 = vpop.f32.mrf.mxu0
      %v821 = vadd.f32 0.0, %v820
      %v822 = vpop.f32.mrf.mxu0
      %823 = vdwg.mxu0
      %v824 = vadd.f32 %v806, %v821
      %v825 = vxor.u32 %v824, 2147483648
      %v826 = vmul.f32 %v825, 1.442695
      %v827 = vpow.pop %v826
      %v828 = vadd.f32 %v827, 1.0
      %v829 = vrcp.pop %v828
      %v830 = vmul.f32 %v828, %v829
      %v831 = vsub.f32 1.0, %v830
      %v832 = vmul.f32 %v829, %v831
      %v833 = vadd.f32 %v829, %v832
      %vm834 = vweird.f32 %v828
      %vm835 = vweird.f32 %v829
      %vm836 = vmor %vm834, %vm835
      %v837 = vsel %vm836, %v829, %v833
      %v838 = vand.u32 2147483647, %v828
      %vm839 = vcmp.eq.f32.partialorder %v838, 8.507059e+37
      %v840 = vand.u32 %v828, 2147483648
      %v841 = vor.u32 1.1754944e-38, %v840
      %v842 = vsel %vm839, %v841, %v837
      %v843 = vmul.f32 1.0, %v842
      %v844 = vtanh.pop %v824
      %v845 = vld [vmem:[#allocation3] sm:$0xff]
      %847 = vrot.lane.b32.xlu0 %v845, 32
      %v848 = vpop.permute.xlu0 %847
      %v850 = vmul.f32 %v843, %v848
      %852 = vrot.lane.b32.xlu0 %v844, 64
      %v853 = vpop.permute.xlu0 %852
      %v855 = vmul.f32 %v843, %v853
      %857 = vrot.lane.b32.xlu0 %v855, 32
      %v858 = vpop.permute.xlu0 %857
      %v860 = vadd.f32 %v850, %v858
      %v861 = vtanh.pop %v860
      %863 = vrot.lane.b32.xlu0 %v861, 64
      %v864 = vpop.permute.xlu0 %863
      %v866 = vmul.f32 %v843, %v864
      %868 = vrot.lane.b32.xlu0 %v860, 96
      %v869 = vpop.permute.xlu0 %868
      %871 = vst.msk [vmem:[#allocation3] sm:$0xff] %vm369, %v869
      %873 = vrot.lane.b32.xlu0 %v866, 32
      %v874 = vpop.permute.xlu0 %873
      %876 = vst.msk [vmem:[#allocation2] sm:$0xff] %vm369, %v874
      %877 = vst.msk [vmem:[#allocation4 + $0x30] sm:$0xff] %vm369, %v874
      %v878 = vld [vmem:[#allocation2] sm:$0xff]
      %v879 = vadd.f32 %v349, %v353
      %v880 = vpack.c.bf16 %v878, %v878
      %v882 = vsel %vm369, %v880, 0
      %884 = vmatpush.bf16.msra.mxu0 0
      %885 = vmatpush.bf16.msra.mxu0 0
      %886 = vmatpush.bf16.msra.mxu0 0
      %887 = vmatpush.bf16.msra.mxu0 0
      %888 = vmatpush.bf16.msra.mxu0 0
      %889 = vmatpush.bf16.msra.mxu0 0
      %890 = vmatpush.bf16.msra.mxu0 %v366
      %891 = vmatpush.bf16.msra.mxu0 %v365
      %892 = vmatmul.bf16.gmra.mxu0 %v882
      %v893 = vpop.f32.mrf.mxu0
      %v894 = vadd.f32 0.0, %v893
      %v895 = vpop.f32.mrf.mxu0
      %896 = vdwg.mxu0
      %v897 = vadd.f32 %v879, %v894
      %v898 = vxor.u32 %v897, 2147483648
      %v899 = vmul.f32 %v898, 1.442695
      %v900 = vpow.pop %v899
      %v901 = vadd.f32 %v900, 1.0
      %v902 = vrcp.pop %v901
      %v903 = vmul.f32 %v901, %v902
      %v904 = vsub.f32 1.0, %v903
      %v905 = vmul.f32 %v902, %v904
      %v906 = vadd.f32 %v902, %v905
      %vm907 = vweird.f32 %v901
      %vm908 = vweird.f32 %v902
      %vm909 = vmor %vm907, %vm908
      %v910 = vsel %vm909, %v902, %v906
      %v911 = vand.u32 2147483647, %v901
      %vm912 = vcmp.eq.f32.partialorder %v911, 8.507059e+37
      %v913 = vand.u32 %v901, 2147483648
      %v914 = vor.u32 1.1754944e-38, %v913
      %v915 = vsel %vm912, %v914, %v910
      %v916 = vmul.f32 1.0, %v915
      %v917 = vtanh.pop %v897
      %v918 = vld [vmem:[#allocation3] sm:$0xff]
      %920 = vrot.lane.b32.xlu0 %v918, 32
      %v921 = vpop.permute.xlu0 %920
      %v923 = vmul.f32 %v916, %v921
      %925 = vrot.lane.b32.xlu0 %v917, 64
      %v926 = vpop.permute.xlu0 %925
      %v928 = vmul.f32 %v916, %v926
      %930 = vrot.lane.b32.xlu0 %v928, 32
      %v931 = vpop.permute.xlu0 %930
      %v933 = vadd.f32 %v923, %v931
      %v934 = vtanh.pop %v933
      %936 = vrot.lane.b32.xlu0 %v934, 64
      %v937 = vpop.permute.xlu0 %936
      %v939 = vmul.f32 %v916, %v937
      %941 = vrot.lane.b32.xlu0 %v933, 96
      %v942 = vpop.permute.xlu0 %941
      %944 = vst.msk [vmem:[#allocation3] sm:$0xff] %vm369, %v942
      %946 = vrot.lane.b32.xlu0 %v939, 32
      %v947 = vpop.permute.xlu0 %946
      %949 = vst.msk [vmem:[#allocation2] sm:$0xff] %vm369, %v947
      %950 = vst.msk [vmem:[#allocation4 + $0x38] sm:$0xff] %vm369, %v947
      %v951 = vld [vmem:[#allocation4] sm:$0xff]
      %v952 = vld [vmem:[#allocation4 + $0x8] sm:$0xff]
      %v953 = vld [vmem:[#allocation4 + $0x10] sm:$0xff]
      %v954 = vld [vmem:[#allocation4 + $0x18] sm:$0xff]
      %v955 = vld [vmem:[#allocation4 + $0x20] sm:$0xff]
      %v956 = vld [vmem:[#allocation4 + $0x28] sm:$0xff]
      %v957 = vld [vmem:[#allocation4 + $0x30] sm:$0xff]
      %v958 = vld [vmem:[#allocation4 + $0x38] sm:$0xff]
      %v959 = vpack.c.bf16 %v951, %v951
      %v960 = vpack.c.bf16 %v952, %v952
      %v961 = vpack.c.bf16 %v953, %v953
      %v962 = vpack.c.bf16 %v954, %v954
      %v963 = vpack.c.bf16 %v955, %v955
      %v964 = vpack.c.bf16 %v956, %v956
      %v965 = vpack.c.bf16 %v957, %v957
      %v966 = vpack.c.bf16 %v958, %v958
      %vm967 = vcmask 257024
      %968 = vst.msk [vmem:[%s253] sm:$0xf] %vm967, %v959
      %969 = vst.msk [vmem:[%s253 + $0x4] sm:$0xf] %vm967, %v960
      %970 = vst.msk [vmem:[%s253 + $0x8] sm:$0xf] %vm967, %v961
      %971 = vst.msk [vmem:[%s253 + $0xc] sm:$0xf] %vm967, %v962
      %972 = vst.msk [vmem:[%s253 + $0x10] sm:$0xf] %vm967, %v963
      %973 = vst.msk [vmem:[%s253 + $0x14] sm:$0xf] %vm967, %v964
      %974 = vst.msk [vmem:[%s253 + $0x18] sm:$0xf] %vm967, %v965
      %975 = vst.msk [vmem:[%s253 + $0x1c] sm:$0xf] %vm967, %v966
      %s976 = smul.u32 8, %s17
      %p977 = scmp.lt.s32.totalorder %s976, 15
      %s978 = scalar_select %p977, %s976, 15
      %s979 = smul.addr %s978, 4
      %s980 = scalar_lea.vmem %s6, %s979
      // Predicated region
      $region49: #{lst_model_forward.10} parent=43 // pred_check
        %p981 = pneg %p166
      $region50: #{lst_model_forward.10} parent=43 // pred_check_branch
        %983 = sbr.rel (%p981) target = $region52
      $region51: #{lst_model_forward.10} parent=43 // pred_region
        %s984 = smul.u32 8, %s17
      $region52: #{lst_model_forward.10} parent=43 // pred_fallthru
        _
    $region44: #{lst_model_forward.10} parent=5 // pred_fallthru
      _
    %p985 = scmp.le.s32.totalorder 2, %s12
    // Predicated region
    $region53: #{lst_model_forward.10} parent=5 // pred_check
      %p986 = pneg %p985
    $region54: #{lst_model_forward.10} parent=5 // pred_check_branch
      %988 = sbr.rel (%p986) target = $region56
    $region55: #{lst_model_forward.10} parent=5 // pred_region
      %s989 = ssub.s32 %s12, 2
      // Predicated region
      $region57: #{lst_model_forward.10} parent=55 // pred_check
        %p990 = pneg %p172
      $region58: #{lst_model_forward.10} parent=55 // pred_check_branch
        %992 = sbr.rel (%p990) target = $region60
      $region59: #{lst_model_forward.10} parent=55 // pred_region
        %s993 = smul.u32 8, %s18
        %p994 = scmp.lt.s32.totalorder %s993, 15
        %s995 = scalar_select %p994, %s993, 15
        %s996 = smul.addr %s995, 4
        %s997 = scalar_lea.vmem %s6, %s996
      $region60: #{lst_model_forward.10} parent=55 // pred_fallthru
        _
    $region56: #{lst_model_forward.10} parent=5 // pred_fallthru
      _
  $region6: #{lst_model_forward.10} parent=0 // loop_footer
    %s16 = sadd.s32 1, %s12
  $region7: #{lst_model_forward.10} parent=0 // loop_footer_branch
    %11 = sbr.rel target = $region3
  $region8: #{lst_model_forward.10} parent=0 // loop_exit
    _

// kernel: lst_model_forward.12
$region0: #{lst_model_forward.12}
  #allocation0 [shape = 'u32[]', space=smem, size = 0x4, offset = 0x4, fixed_abs, tag = 'smem constant byte address 0x4 - core index']
  #allocation1 [shape = 'u32[72,128]{1,0:T(1,128)}', space=vmem, size = 0x9000, scoped, tag = 'internal scratch']
  #allocation2 [shape = 'f32[8,32]{1,0:T(8,128)}', space=vmem, size = 0x1000, scoped, tag = 'scratch operand']
  #allocation3 [shape = 'f32[8,32]{1,0:T(8,128)}', space=vmem, size = 0x1000, scoped, tag = 'scratch operand']
  #allocation4 [shape = 'f32[64,32]{1,0:T(8,128)}', space=vmem, size = 0x8000, scoped, tag = 'scratch operand']
  %s0 = inlined_call_operand.vmem [shape: bf16[128,64], index: 0, kind: input, shape index: {}]
  %s1 = inlined_call_operand.vmem [shape: bf16[64,128], index: 1, kind: input, shape index: {}]
  %s2 = inlined_call_operand.vmem [shape: bf16[32,128], index: 2, kind: input, shape index: {}]
  %s3 = inlined_call_operand.vmem [shape: f32[1,128], index: 3, kind: input, shape index: {}]
  %s4 = inlined_call_operand.vmem [shape: f32[8,32], index: 4, kind: input, shape index: {}]
  %s5 = inlined_call_operand.vmem [shape: f32[8,32], index: 5, kind: input, shape index: {}]
  %s6 = inlined_call_operand.vmem [shape: bf16[128,32], index: 6, kind: output, shape index: {}]
  %s7 = sld [smem:[#allocation0]]
  $region61: #{lst_model_forward.12} parent=0
    _
  %s9 = ssub.s32 1, %s7
  %s10 = scalar_select 0, %s9, %s7
  loop: start=0, step=1, limit=4
  $region2: #{lst_model_forward.12} parent=0 // loop_pre_header
    _
  $region3: #{lst_model_forward.12} parent=0 // loop_header
    %s12 = sphi 0, %s16
    %p13 = scmp.ge.s32.totalorder %s12, 4
    %s22 = sphi 0, %s24
    %s25 = sphi 0, %s22
    %s26 = sphi 0, %s25
    %s42 = sphi 0, %s26
    %s46 = sphi 0, %s46
    %s48 = sphi 0, %s46
    %s49 = sphi 0, %s48
    %s63 = sphi 0, %s49
    %s67 = sphi 0, %s67
    %s69 = sphi 0, %s67
    %s70 = sphi 0, %s69
    %s84 = sphi 0, %s70
    %s88 = sphi 0, %s88
    %s90 = sphi 0, %s88
    %s91 = sphi 0, %s90
    %s105 = sphi 0, %s91
    %s109 = sphi 0, %s109
    %s111 = sphi 0, %s109
    %s112 = sphi 0, %s111
    %s126 = sphi 0, %s112
    %s130 = sphi 0, %s130
    %s132 = sphi 0, %s130
    %s133 = sphi 0, %s132
    %s147 = sphi 0, %s133
    %s153 = sphi 0, %s155
    %s156 = sphi 0, %s153
    %s157 = sphi 0, %s156
    %s173 = sphi 0, %s157
  $region4: #{lst_model_forward.12} parent=0 // loop_header_branch
    %15 = sbr.rel (%p13) target = $region8
  $region5: #{lst_model_forward.12} parent=0 // loop_body
    %s17 = ssub.s32 %s12, 1
    %s18 = ssub.s32 %s12, 2
    %s19 = sadd.s32 %s12, 1
    %s20 = ssub.s32 %s12, %s19
    %p21 = scmp.eq.s32.totalorder %s20, 0
    %s23 = sadd.s32 %s22, 1
    %s24 = scalar_select %p21, %s22, %s23
    %p27 = pneg %p21
    %p28 = scmp.eq.s32.totalorder %s12, 1
    %p29 = por %p27, %p28
    %p30 = scmp.ne.s32.totalorder %s22, %s25
    %p31 = scmp.eq.s32.totalorder %s12, 0
    %p32 = por %p30, %p31
    %p33 = scmp.ne.s32.totalorder %s22, %s25
    %p34 = scmp.eq.s32.totalorder %s17, 1
    %p35 = por %p33, %p34
    %p36 = scmp.ne.s32.totalorder %s25, %s26
    %p37 = scmp.eq.s32.totalorder %s17, 0
    %p38 = por %p36, %p37
    %p39 = scmp.ne.s32.totalorder %s25, %s26
    %p40 = scmp.eq.s32.totalorder %s18, 1
    %p41 = por %p39, %p40
    %p43 = scmp.ne.s32.totalorder %s26, %s42
    %p44 = scmp.eq.s32.totalorder %s18, 0
    %p45 = por %p43, %p44
    %s47 = sadd.s32 %s46, 1
    %p50 = scmp.eq.s32.totalorder %s12, 1
    %p51 = scmp.ne.s32.totalorder %s46, %s48
    %p52 = scmp.eq.s32.totalorder %s12, 0
    %p53 = por %p51, %p52
    %p54 = scmp.ne.s32.totalorder %s46, %s48
    %p55 = scmp.eq.s32.totalorder %s17, 1
    %p56 = por %p54, %p55
    %p57 = scmp.ne.s32.totalorder %s48, %s49
    %p58 = scmp.eq.s32.totalorder %s17, 0
    %p59 = por %p57, %p58
    %p60 = scmp.ne.s32.totalorder %s48, %s49
    %p61 = scmp.eq.s32.totalorder %s18, 1
    %p62 = por %p60, %p61
    %p64 = scmp.ne.s32.totalorder %s49, %s63
    %p65 = scmp.eq.s32.totalorder %s18, 0
    %p66 = por %p64, %p65
    %s68 = sadd.s32 %s67, 1
    %p71 = scmp.eq.s32.totalorder %s12, 1
    %p72 = scmp.ne.s32.totalorder %s67, %s69
    %p73 = scmp.eq.s32.totalorder %s12, 0
    %p74 = por %p72, %p73
    %p75 = scmp.ne.s32.totalorder %s67, %s69
    %p76 = scmp.eq.s32.totalorder %s17, 1
    %p77 = por %p75, %p76
    %p78 = scmp.ne.s32.totalorder %s69, %s70
    %p79 = scmp.eq.s32.totalorder %s17, 0
    %p80 = por %p78, %p79
    %p81 = scmp.ne.s32.totalorder %s69, %s70
    %p82 = scmp.eq.s32.totalorder %s18, 1
    %p83 = por %p81, %p82
    %p85 = scmp.ne.s32.totalorder %s70, %s84
    %p86 = scmp.eq.s32.totalorder %s18, 0
    %p87 = por %p85, %p86
    %s89 = sadd.s32 %s88, 1
    %p92 = scmp.eq.s32.totalorder %s12, 1
    %p93 = scmp.ne.s32.totalorder %s88, %s90
    %p94 = scmp.eq.s32.totalorder %s12, 0
    %p95 = por %p93, %p94
    %p96 = scmp.ne.s32.totalorder %s88, %s90
    %p97 = scmp.eq.s32.totalorder %s17, 1
    %p98 = por %p96, %p97
    %p99 = scmp.ne.s32.totalorder %s90, %s91
    %p100 = scmp.eq.s32.totalorder %s17, 0
    %p101 = por %p99, %p100
    %p102 = scmp.ne.s32.totalorder %s90, %s91
    %p103 = scmp.eq.s32.totalorder %s18, 1
    %p104 = por %p102, %p103
    %p106 = scmp.ne.s32.totalorder %s91, %s105
    %p107 = scmp.eq.s32.totalorder %s18, 0
    %p108 = por %p106, %p107
    %s110 = sadd.s32 %s109, 1
    %p113 = scmp.eq.s32.totalorder %s12, 1
    %p114 = scmp.ne.s32.totalorder %s109, %s111
    %p115 = scmp.eq.s32.totalorder %s12, 0
    %p116 = por %p114, %p115
    %p117 = scmp.ne.s32.totalorder %s109, %s111
    %p118 = scmp.eq.s32.totalorder %s17, 1
    %p119 = por %p117, %p118
    %p120 = scmp.ne.s32.totalorder %s111, %s112
    %p121 = scmp.eq.s32.totalorder %s17, 0
    %p122 = por %p120, %p121
    %p123 = scmp.ne.s32.totalorder %s111, %s112
    %p124 = scmp.eq.s32.totalorder %s18, 1
    %p125 = por %p123, %p124
    %p127 = scmp.ne.s32.totalorder %s112, %s126
    %p128 = scmp.eq.s32.totalorder %s18, 0
    %p129 = por %p127, %p128
    %s131 = sadd.s32 %s130, 1
    %p134 = scmp.eq.s32.totalorder %s12, 1
    %p135 = scmp.ne.s32.totalorder %s130, %s132
    %p136 = scmp.eq.s32.totalorder %s12, 0
    %p137 = por %p135, %p136
    %p138 = scmp.ne.s32.totalorder %s130, %s132
    %p139 = scmp.eq.s32.totalorder %s17, 1
    %p140 = por %p138, %p139
    %p141 = scmp.ne.s32.totalorder %s132, %s133
    %p142 = scmp.eq.s32.totalorder %s17, 0
    %p143 = por %p141, %p142
    %p144 = scmp.ne.s32.totalorder %s132, %s133
    %p145 = scmp.eq.s32.totalorder %s18, 1
    %p146 = por %p144, %p145
    %p148 = scmp.ne.s32.totalorder %s133, %s147
    %p149 = scmp.eq.s32.totalorder %s18, 0
    %p150 = por %p148, %p149
    %s151 = ssub.s32 %s12, %s19
    %p152 = scmp.eq.s32.totalorder %s151, 0
    %s154 = sadd.s32 %s153, 1
    %s155 = scalar_select %p152, %s153, %s154
    %p158 = pneg %p152
    %p159 = scmp.eq.s32.totalorder %s12, 1
    %p160 = por %p158, %p159
    %p161 = scmp.ne.s32.totalorder %s153, %s156
    %p162 = scmp.eq.s32.totalorder %s12, 0
    %p163 = por %p161, %p162
    %p164 = scmp.ne.s32.totalorder %s153, %s156
    %p165 = scmp.eq.s32.totalorder %s17, 1
    %p166 = por %p164, %p165
    %p167 = scmp.ne.s32.totalorder %s156, %s157
    %p168 = scmp.eq.s32.totalorder %s17, 0
    %p169 = por %p167, %p168
    %p170 = scmp.ne.s32.totalorder %s156, %s157
    %p171 = scmp.eq.s32.totalorder %s18, 1
    %p172 = por %p170, %p171
    %p174 = scmp.ne.s32.totalorder %s157, %s173
    %p175 = scmp.eq.s32.totalorder %s18, 0
    %p176 = por %p174, %p175
    %p177 = scmp.le.s32.totalorder 1, %s12
    %p178 = scmp.lt.s32.totalorder %s12, 3
    %p179 = pnand %p177, %p178
    %p180 = pneg %p179
    // Predicated region
    $region9: #{lst_model_forward.12} parent=5 // pred_check
      _
    $region10: #{lst_model_forward.12} parent=5 // pred_check_branch
      %182 = sbr.rel (%p179) target = $region12
    $region11: #{lst_model_forward.12} parent=5 // pred_region
      %s183 = ssub.s32 %s12, 1
      // Predicated region
      $region13: #{lst_model_forward.12} parent=11 // pred_check
        %p184 = pneg %p59
      $region14: #{lst_model_forward.12} parent=11 // pred_check_branch
        %186 = sbr.rel (%p184) target = $region16
      $region15: #{lst_model_forward.12} parent=11 // pred_region
        _
      $region16: #{lst_model_forward.12} parent=11 // pred_fallthru
        _
      // Predicated region
      $region17: #{lst_model_forward.12} parent=11 // pred_check
        %p187 = pneg %p80
      $region18: #{lst_model_forward.12} parent=11 // pred_check_branch
        %189 = sbr.rel (%p187) target = $region20
      $region19: #{lst_model_forward.12} parent=11 // pred_region
        _
      $region20: #{lst_model_forward.12} parent=11 // pred_fallthru
        _
      // Predicated region
      $region21: #{lst_model_forward.12} parent=11 // pred_check
        %p190 = pneg %p101
      $region22: #{lst_model_forward.12} parent=11 // pred_check_branch
        %192 = sbr.rel (%p190) target = $region24
      $region23: #{lst_model_forward.12} parent=11 // pred_region
        _
      $region24: #{lst_model_forward.12} parent=11 // pred_fallthru
        _
      // Predicated region
      $region25: #{lst_model_forward.12} parent=11 // pred_check
        %p193 = pneg %p122
      $region26: #{lst_model_forward.12} parent=11 // pred_check_branch
        %195 = sbr.rel (%p193) target = $region28
      $region27: #{lst_model_forward.12} parent=11 // pred_region
        _
      $region28: #{lst_model_forward.12} parent=11 // pred_fallthru
        _
      // Predicated region
      $region29: #{lst_model_forward.12} parent=11 // pred_check
        %p196 = pneg %p143
      $region30: #{lst_model_forward.12} parent=11 // pred_check_branch
        %198 = sbr.rel (%p196) target = $region32
      $region31: #{lst_model_forward.12} parent=11 // pred_region
        _
      $region32: #{lst_model_forward.12} parent=11 // pred_fallthru
        _
    $region12: #{lst_model_forward.12} parent=5 // pred_fallthru
      _
    %p199 = scmp.lt.s32.totalorder %s12, 2
    // Predicated region
    $region33: #{lst_model_forward.12} parent=5 // pred_check
      %p200 = pneg %p199
    $region34: #{lst_model_forward.12} parent=5 // pred_check_branch
      %202 = sbr.rel (%p200) target = $region36
    $region35: #{lst_model_forward.12} parent=5 // pred_region
      // Predicated region
      $region37: #{lst_model_forward.12} parent=35 // pred_check
        %p203 = pneg %p32
      $region38: #{lst_model_forward.12} parent=35 // pred_check_branch
        %205 = sbr.rel (%p203) target = $region40
      $region39: #{lst_model_forward.12} parent=35 // pred_region
        %s206 = smul.u32 8, %s12
        %p207 = scmp.lt.s32.totalorder %s206, 15
        %s208 = scalar_select %p207, %s206, 15
        %s209 = smul.addr %s208, 4
        %s210 = scalar_lea.vmem %s0, %s209
        %s211 = smul.u32 8, %s12
      $region40: #{lst_model_forward.12} parent=35 // pred_fallthru
        _
    $region36: #{lst_model_forward.12} parent=5 // pred_fallthru
      _
    %p212 = scmp.le.s32.totalorder 1, %s12
    %p213 = scmp.lt.s32.totalorder %s12, 3
    %p214 = pnand %p212, %p213
    %p215 = pneg %p214
    // Predicated region
    $region41: #{lst_model_forward.12} parent=5 // pred_check
      _
    $region42: #{lst_model_forward.12} parent=5 // pred_check_branch
      %217 = sbr.rel (%p214) target = $region44
    $region43: #{lst_model_forward.12} parent=5 // pred_region
      %s218 = ssub.s32 %s12, 1
      %s219 = smul.u32 8, %s17
      %p220 = scmp.lt.s32.totalorder %s219, 15
      %s221 = scalar_select %p220, %s219, 15
      %s222 = smul.addr %s221, 4
      %s223 = scalar_lea.vmem %s0, %s222
      %p224 = pneg %p38
      %p225 = pneg %p35
      %p226 = pneg %p59
      %p227 = pneg %p56
      %p228 = pneg %p80
      %p229 = pneg %p77
      %p230 = pneg %p101
      %p231 = pneg %p98
      %p232 = pneg %p122
      %p233 = pneg %p119
      %p234 = pneg %p143
      %p235 = pneg %p140
      %p236 = pneg %p169
      %p237 = pneg %p166
      %s238 = smul.u32 8, %s17
      %p239 = scmp.lt.s32.totalorder %s238, 15
      %s240 = scalar_select %p239, %s238, 15
      %s241 = smul.addr %s240, 4
      %s242 = scalar_lea.vmem %s6, %s241
      %s243 = smul.u32 8, %s17
      %p244 = scmp.lt.s32.totalorder %s243, 15
      %s245 = scalar_select %p244, %s243, 15
      %s246 = smul.addr %s245, 4
      %s247 = scalar_lea.vmem %s0, %s246
      %s248 = smul.u32 8, %s17
      %s249 = smul.u32 8, %s17
      %p250 = scmp.lt.s32.totalorder %s249, 15
      %s251 = scalar_select %p250, %s249, 15
      %s252 = smul.addr %s251, 4
      %s253 = scalar_lea.vmem %s6, %s252
      %s254 = smul.u32 8, %s17
      %p256 = scmp.eq.s32.totalorder %s17, 0
      // Predicated region
      $region45: #{lst_model_forward.12} parent=43 // pred_check
        %p257 = pneg %p256
      $region46: #{lst_model_forward.12} parent=43 // pred_check_branch
        %259 = sbr.rel (%p257) target = $region48
      $region47: #{lst_model_forward.12} parent=43 // pred_region
        %v260 = vld [vmem:[%s4] sm:$0xff]
        %vm261 = vcmask 261120
        %262 = vst.msk [vmem:[#allocation2] sm:$0xff] %vm261, %v260
        %v263 = vld [vmem:[%s5] sm:$0xff]
        %264 = vst.msk [vmem:[#allocation3] sm:$0xff] %vm261, %v263
      $region48: #{lst_model_forward.12} parent=43 // pred_fallthru
        _
      %v265 = vld [vmem:[%s1] sm:$0xf]
      %v266 = vld [vmem:[%s1 + $0x4] sm:$0xf]
      %v267 = vld [vmem:[%s1 + $0x8] sm:$0xf]
      %v268 = vld [vmem:[%s1 + $0xc] sm:$0xf]
      %v269 = vld [vmem:[%s1 + $0x10] sm:$0xf]
      %v270 = vld [vmem:[%s1 + $0x14] sm:$0xf]
      %v271 = vld [vmem:[%s1 + $0x18] sm:$0xf]
      %v272 = vld [vmem:[%s1 + $0x1c] sm:$0xf]
      %v273 = vld [vmem:[%s2] sm:$0xf]
      %v274 = vld [vmem:[%s2 + $0x4] sm:$0xf]
      %v275 = vld [vmem:[%s2 + $0x8] sm:$0xf]
      %v276 = vld [vmem:[%s2 + $0xc] sm:$0xf]
      %v277 = vld [vmem:[%s3] sm:$0x1]
      %v278 = vld [vmem:[%s247] sm:$0xf]
      %v279 = vld [vmem:[%s247 + $0x4] sm:$0xf]
      %v280 = vld [vmem:[%s247 + $0x8] sm:$0xf]
      %v281 = vld [vmem:[%s247 + $0xc] sm:$0xf]
      %v282 = vld [vmem:[%s247 + $0x10] sm:$0xf]
      %v283 = vld [vmem:[%s247 + $0x14] sm:$0xf]
      %v284 = vld [vmem:[%s247 + $0x18] sm:$0xf]
      %v285 = vld [vmem:[%s247 + $0x1c] sm:$0xf]
      %v294 = vunpack.c.l.b16 %v278
      %v295 = vunpack.c.l.b16 %v279
      %v296 = vunpack.c.l.b16 %v280
      %v297 = vunpack.c.l.b16 %v281
      %v298 = vunpack.c.l.b16 %v282
      %v299 = vunpack.c.l.b16 %v283
      %v300 = vunpack.c.l.b16 %v284
      %v301 = vunpack.c.l.b16 %v285
      %v302 = vpack.c.b16 %v295, %v294
      %v303 = vpack.c.b16 %v297, %v296
      %v304 = vpack.c.b16 %v299, %v298
      %v305 = vpack.c.b16 %v301, %v300
      %v314 = vunpack.c.l.b16 %v265
      %v315 = vunpack.c.l.b16 %v266
      %v316 = vunpack.c.l.b16 %v267
      %v317 = vunpack.c.l.b16 %v268
      %v318 = vunpack.c.l.b16 %v269
      %v319 = vunpack.c.l.b16 %v270
      %v320 = vunpack.c.l.b16 %v271
      %v321 = vunpack.c.l.b16 %v272
      %v322 = vpack.c.b16 %v315, %v314
      %v323 = vpack.c.b16 %v317, %v316
      %v324 = vpack.c.b16 %v319, %v318
      %v325 = vpack.c.b16 %v321, %v320
      %vm330 = vcmask 523264
      %v332 = vsel %vm330, %v302, 0
      %v335 = vsel %vm330, %v303, 0
      %v338 = vsel %vm330, %v304, 0
      %v341 = vsel %vm330, %v305, 0
      %343 = vmatpush.bf16.msra.mxu0 0
      %344 = vmatpush.bf16.msra.mxu0 0
      %345 = vmatpush.bf16.msra.mxu0 0
      %346 = vmatpush.bf16.msra.mxu0 0
      %347 = vmatpush.bf16.msra.mxu0 %v325
      %348 = vmatpush.bf16.msra.mxu0 %v324
      %349 = vmatpush.bf16.msra.mxu0 %v323
      %350 = vmatpush.bf16.msra.mxu0 %v322
      %351 = vmatmul.bf16.gmra.mxu0 %v332
      %v352 = vpop.f32.mrf.mxu0
      %v353 = vadd.f32 0.0, %v352
      %v354 = vpop.f32.mrf.mxu0
      %v355 = vadd.f32 0.0, %v354
      %356 = vmatmul.bf16.gmra.mxu0 %v335
      %v357 = vpop.f32.mrf.mxu0
      %v358 = vadd.f32 0.0, %v357
      %v359 = vpop.f32.mrf.mxu0
      %v360 = vadd.f32 0.0, %v359
      %361 = vmatmul.bf16.gmra.mxu0 %v338
      %v362 = vpop.f32.mrf.mxu0
      %v363 = vadd.f32 0.0, %v362
      %v364 = vpop.f32.mrf.mxu0
      %v365 = vadd.f32 0.0, %v364
      %366 = vmatmul.bf16.gmra.mxu0 %v341
      %v367 = vpop.f32.mrf.mxu0
      %v368 = vadd.f32 0.0, %v367
      %v369 = vpop.f32.mrf.mxu0
      %v370 = vadd.f32 0.0, %v369
      %371 = vdwg.mxu0
      %v372 = vld [vmem:[#allocation2] sm:$0xff]
      %v374 = vperm.slane %v277, 0
      %v376 = vadd.f32 %v353, %v374
      %v377 = vpack.c.bf16 %v372, %v372
      %v382 = vunpack.c.l.b16 %v273
      %v383 = vunpack.c.l.b16 %v274
      %v384 = vunpack.c.l.b16 %v275
      %v385 = vunpack.c.l.b16 %v276
      %v386 = vpack.c.b16 %v383, %v382
      %v387 = vpack.c.b16 %v385, %v384
      %vm390 = vcmask 261120
      %v392 = vsel %vm390, %v377, 0
      %394 = vmatpush.bf16.msra.mxu0 0
      %395 = vmatpush.bf16.msra.mxu0 0
      %396 = vmatpush.bf16.msra.mxu0 0
      %397 = vmatpush.bf16.msra.mxu0 0
      %398 = vmatpush.bf16.msra.mxu0 0
      %399 = vmatpush.bf16.msra.mxu0 0
      %400 = vmatpush.bf16.msra.mxu0 %v387
      %401 = vmatpush.bf16.msra.mxu0 %v386
      %402 = vmatmul.bf16.gmra.mxu0 %v392
      %v403 = vpop.f32.mrf.mxu0
      %v404 = vadd.f32 0.0, %v403
      %v405 = vpop.f32.mrf.mxu0
      %406 = vdwg.mxu0
      %v407 = vadd.f32 %v376, %v404
      %v408 = vxor.u32 %v407, 2147483648
      %v409 = vmul.f32 %v408, 1.442695
      %v410 = vpow.pop %v409
      %v411 = vadd.f32 %v410, 1.0
      %v412 = vrcp.pop %v411
      %v413 = vmul.f32 %v411, %v412
      %v414 = vsub.f32 1.0, %v413
      %v415 = vmul.f32 %v412, %v414
      %v416 = vadd.f32 %v412, %v415
      %vm417 = vweird.f32 %v411
      %vm418 = vweird.f32 %v412
      %vm419 = vmor %vm417, %vm418
      %v420 = vsel %vm419, %v412, %v416
      %v421 = vand.u32 2147483647, %v411
      %vm422 = vcmp.eq.f32.partialorder %v421, 8.507059e+37
      %v423 = vand.u32 %v411, 2147483648
      %v424 = vor.u32 1.1754944e-38, %v423
      %v425 = vsel %vm422, %v424, %v420
      %v426 = vmul.f32 1.0, %v425
      %v427 = vtanh.pop %v407
      %v428 = vld [vmem:[#allocation3] sm:$0xff]
      %430 = vrot.lane.b32.xlu0 %v428, 32
      %v431 = vpop.permute.xlu0 %430
      %v433 = vmul.f32 %v426, %v431
      %435 = vrot.lane.b32.xlu0 %v427, 64
      %v436 = vpop.permute.xlu0 %435
      %v438 = vmul.f32 %v426, %v436
      %440 = vrot.lane.b32.xlu0 %v438, 32
      %v441 = vpop.permute.xlu0 %440
      %v443 = vadd.f32 %v433, %v441
      %v444 = vtanh.pop %v443
      %446 = vrot.lane.b32.xlu0 %v444, 64
      %v447 = vpop.permute.xlu0 %446
      %v449 = vmul.f32 %v426, %v447
      %451 = vrot.lane.b32.xlu0 %v443, 96
      %v452 = vpop.permute.xlu0 %451
      %454 = vst.msk [vmem:[#allocation3] sm:$0xff] %vm390, %v452
      %456 = vrot.lane.b32.xlu0 %v449, 32
      %v457 = vpop.permute.xlu0 %456
      %459 = vst.msk [vmem:[#allocation2] sm:$0xff] %vm390, %v457
      %460 = vst.msk [vmem:[#allocation4] sm:$0xff] %vm390, %v457
      %v461 = vld [vmem:[#allocation2] sm:$0xff]
      %v462 = vadd.f32 %v355, %v374
      %v463 = vpack.c.bf16 %v461, %v461
      %v465 = vsel %vm390, %v463, 0
      %467 = vmatpush.bf16.msra.mxu0 0
      %468 = vmatpush.bf16.msra.mxu0 0
      %469 = vmatpush.bf16.msra.mxu0 0
      %470 = vmatpush.bf16.msra.mxu0 0
      %471 = vmatpush.bf16.msra.mxu0 0
      %472 = vmatpush.bf16.msra.mxu0 0
      %473 = vmatpush.bf16.msra.mxu0 %v387
      %474 = vmatpush.bf16.msra.mxu0 %v386
      %475 = vmatmul.bf16.gmra.mxu0 %v465
      %v476 = vpop.f32.mrf.mxu0
      %v477 = vadd.f32 0.0, %v476
      %v478 = vpop.f32.mrf.mxu0
      %479 = vdwg.mxu0
      %v480 = vadd.f32 %v462, %v477
      %v481 = vxor.u32 %v480, 2147483648
      %v482 = vmul.f32 %v481, 1.442695
      %v483 = vpow.pop %v482
      %v484 = vadd.f32 %v483, 1.0
      %v485 = vrcp.pop %v484
      %v486 = vmul.f32 %v484, %v485
      %v487 = vsub.f32 1.0, %v486
      %v488 = vmul.f32 %v485, %v487
      %v489 = vadd.f32 %v485, %v488
      %vm490 = vweird.f32 %v484
      %vm491 = vweird.f32 %v485
      %vm492 = vmor %vm490, %vm491
      %v493 = vsel %vm492, %v485, %v489
      %v494 = vand.u32 2147483647, %v484
      %vm495 = vcmp.eq.f32.partialorder %v494, 8.507059e+37
      %v496 = vand.u32 %v484, 2147483648
      %v497 = vor.u32 1.1754944e-38, %v496
      %v498 = vsel %vm495, %v497, %v493
      %v499 = vmul.f32 1.0, %v498
      %v500 = vtanh.pop %v480
      %v501 = vld [vmem:[#allocation3] sm:$0xff]
      %503 = vrot.lane.b32.xlu0 %v501, 32
      %v504 = vpop.permute.xlu0 %503
      %v506 = vmul.f32 %v499, %v504
      %508 = vrot.lane.b32.xlu0 %v500, 64
      %v509 = vpop.permute.xlu0 %508
      %v511 = vmul.f32 %v499, %v509
      %513 = vrot.lane.b32.xlu0 %v511, 32
      %v514 = vpop.permute.xlu0 %513
      %v516 = vadd.f32 %v506, %v514
      %v517 = vtanh.pop %v516
      %519 = vrot.lane.b32.xlu0 %v517, 64
      %v520 = vpop.permute.xlu0 %519
      %v522 = vmul.f32 %v499, %v520
      %524 = vrot.lane.b32.xlu0 %v516, 96
      %v525 = vpop.permute.xlu0 %524
      %527 = vst.msk [vmem:[#allocation3] sm:$0xff] %vm390, %v525
      %529 = vrot.lane.b32.xlu0 %v522, 32
      %v530 = vpop.permute.xlu0 %529
      %532 = vst.msk [vmem:[#allocation2] sm:$0xff] %vm390, %v530
      %533 = vst.msk [vmem:[#allocation4 + $0x8] sm:$0xff] %vm390, %v530
      %v534 = vld [vmem:[#allocation2] sm:$0xff]
      %v535 = vadd.f32 %v358, %v374
      %v536 = vpack.c.bf16 %v534, %v534
      %v538 = vsel %vm390, %v536, 0
      %540 = vmatpush.bf16.msra.mxu0 0
      %541 = vmatpush.bf16.msra.mxu0 0
      %542 = vmatpush.bf16.msra.mxu0 0
      %543 = vmatpush.bf16.msra.mxu0 0
      %544 = vmatpush.bf16.msra.mxu0 0
      %545 = vmatpush.bf16.msra.mxu0 0
      %546 = vmatpush.bf16.msra.mxu0 %v387
      %547 = vmatpush.bf16.msra.mxu0 %v386
      %548 = vmatmul.bf16.gmra.mxu0 %v538
      %v549 = vpop.f32.mrf.mxu0
      %v550 = vadd.f32 0.0, %v549
      %v551 = vpop.f32.mrf.mxu0
      %552 = vdwg.mxu0
      %v553 = vadd.f32 %v535, %v550
      %v554 = vxor.u32 %v553, 2147483648
      %v555 = vmul.f32 %v554, 1.442695
      %v556 = vpow.pop %v555
      %v557 = vadd.f32 %v556, 1.0
      %v558 = vrcp.pop %v557
      %v559 = vmul.f32 %v557, %v558
      %v560 = vsub.f32 1.0, %v559
      %v561 = vmul.f32 %v558, %v560
      %v562 = vadd.f32 %v558, %v561
      %vm563 = vweird.f32 %v557
      %vm564 = vweird.f32 %v558
      %vm565 = vmor %vm563, %vm564
      %v566 = vsel %vm565, %v558, %v562
      %v567 = vand.u32 2147483647, %v557
      %vm568 = vcmp.eq.f32.partialorder %v567, 8.507059e+37
      %v569 = vand.u32 %v557, 2147483648
      %v570 = vor.u32 1.1754944e-38, %v569
      %v571 = vsel %vm568, %v570, %v566
      %v572 = vmul.f32 1.0, %v571
      %v573 = vtanh.pop %v553
      %v574 = vld [vmem:[#allocation3] sm:$0xff]
      %576 = vrot.lane.b32.xlu0 %v574, 32
      %v577 = vpop.permute.xlu0 %576
      %v579 = vmul.f32 %v572, %v577
      %581 = vrot.lane.b32.xlu0 %v573, 64
      %v582 = vpop.permute.xlu0 %581
      %v584 = vmul.f32 %v572, %v582
      %586 = vrot.lane.b32.xlu0 %v584, 32
      %v587 = vpop.permute.xlu0 %586
      %v589 = vadd.f32 %v579, %v587
      %v590 = vtanh.pop %v589
      %592 = vrot.lane.b32.xlu0 %v590, 64
      %v593 = vpop.permute.xlu0 %592
      %v595 = vmul.f32 %v572, %v593
      %597 = vrot.lane.b32.xlu0 %v589, 96
      %v598 = vpop.permute.xlu0 %597
      %600 = vst.msk [vmem:[#allocation3] sm:$0xff] %vm390, %v598
      %602 = vrot.lane.b32.xlu0 %v595, 32
      %v603 = vpop.permute.xlu0 %602
      %605 = vst.msk [vmem:[#allocation2] sm:$0xff] %vm390, %v603
      %606 = vst.msk [vmem:[#allocation4 + $0x10] sm:$0xff] %vm390, %v603
      %v607 = vld [vmem:[#allocation2] sm:$0xff]
      %v608 = vadd.f32 %v360, %v374
      %v609 = vpack.c.bf16 %v607, %v607
      %v611 = vsel %vm390, %v609, 0
      %613 = vmatpush.bf16.msra.mxu0 0
      %614 = vmatpush.bf16.msra.mxu0 0
      %615 = vmatpush.bf16.msra.mxu0 0
      %616 = vmatpush.bf16.msra.mxu0 0
      %617 = vmatpush.bf16.msra.mxu0 0
      %618 = vmatpush.bf16.msra.mxu0 0
      %619 = vmatpush.bf16.msra.mxu0 %v387
      %620 = vmatpush.bf16.msra.mxu0 %v386
      %621 = vmatmul.bf16.gmra.mxu0 %v611
      %v622 = vpop.f32.mrf.mxu0
      %v623 = vadd.f32 0.0, %v622
      %v624 = vpop.f32.mrf.mxu0
      %625 = vdwg.mxu0
      %v626 = vadd.f32 %v608, %v623
      %v627 = vxor.u32 %v626, 2147483648
      %v628 = vmul.f32 %v627, 1.442695
      %v629 = vpow.pop %v628
      %v630 = vadd.f32 %v629, 1.0
      %v631 = vrcp.pop %v630
      %v632 = vmul.f32 %v630, %v631
      %v633 = vsub.f32 1.0, %v632
      %v634 = vmul.f32 %v631, %v633
      %v635 = vadd.f32 %v631, %v634
      %vm636 = vweird.f32 %v630
      %vm637 = vweird.f32 %v631
      %vm638 = vmor %vm636, %vm637
      %v639 = vsel %vm638, %v631, %v635
      %v640 = vand.u32 2147483647, %v630
      %vm641 = vcmp.eq.f32.partialorder %v640, 8.507059e+37
      %v642 = vand.u32 %v630, 2147483648
      %v643 = vor.u32 1.1754944e-38, %v642
      %v644 = vsel %vm641, %v643, %v639
      %v645 = vmul.f32 1.0, %v644
      %v646 = vtanh.pop %v626
      %v647 = vld [vmem:[#allocation3] sm:$0xff]
      %649 = vrot.lane.b32.xlu0 %v647, 32
      %v650 = vpop.permute.xlu0 %649
      %v652 = vmul.f32 %v645, %v650
      %654 = vrot.lane.b32.xlu0 %v646, 64
      %v655 = vpop.permute.xlu0 %654
      %v657 = vmul.f32 %v645, %v655
      %659 = vrot.lane.b32.xlu0 %v657, 32
      %v660 = vpop.permute.xlu0 %659
      %v662 = vadd.f32 %v652, %v660
      %v663 = vtanh.pop %v662
      %665 = vrot.lane.b32.xlu0 %v663, 64
      %v666 = vpop.permute.xlu0 %665
      %v668 = vmul.f32 %v645, %v666
      %670 = vrot.lane.b32.xlu0 %v662, 96
      %v671 = vpop.permute.xlu0 %670
      %673 = vst.msk [vmem:[#allocation3] sm:$0xff] %vm390, %v671
      %675 = vrot.lane.b32.xlu0 %v668, 32
      %v676 = vpop.permute.xlu0 %675
      %678 = vst.msk [vmem:[#allocation2] sm:$0xff] %vm390, %v676
      %679 = vst.msk [vmem:[#allocation4 + $0x18] sm:$0xff] %vm390, %v676
      %v680 = vld [vmem:[#allocation2] sm:$0xff]
      %v681 = vadd.f32 %v363, %v374
      %v682 = vpack.c.bf16 %v680, %v680
      %v684 = vsel %vm390, %v682, 0
      %686 = vmatpush.bf16.msra.mxu0 0
      %687 = vmatpush.bf16.msra.mxu0 0
      %688 = vmatpush.bf16.msra.mxu0 0
      %689 = vmatpush.bf16.msra.mxu0 0
      %690 = vmatpush.bf16.msra.mxu0 0
      %691 = vmatpush.bf16.msra.mxu0 0
      %692 = vmatpush.bf16.msra.mxu0 %v387
      %693 = vmatpush.bf16.msra.mxu0 %v386
      %694 = vmatmul.bf16.gmra.mxu0 %v684
      %v695 = vpop.f32.mrf.mxu0
      %v696 = vadd.f32 0.0, %v695
      %v697 = vpop.f32.mrf.mxu0
      %698 = vdwg.mxu0
      %v699 = vadd.f32 %v681, %v696
      %v700 = vxor.u32 %v699, 2147483648
      %v701 = vmul.f32 %v700, 1.442695
      %v702 = vpow.pop %v701
      %v703 = vadd.f32 %v702, 1.0
      %v704 = vrcp.pop %v703
      %v705 = vmul.f32 %v703, %v704
      %v706 = vsub.f32 1.0, %v705
      %v707 = vmul.f32 %v704, %v706
      %v708 = vadd.f32 %v704, %v707
      %vm709 = vweird.f32 %v703
      %vm710 = vweird.f32 %v704
      %vm711 = vmor %vm709, %vm710
      %v712 = vsel %vm711, %v704, %v708
      %v713 = vand.u32 2147483647, %v703
      %vm714 = vcmp.eq.f32.partialorder %v713, 8.507059e+37
      %v715 = vand.u32 %v703, 2147483648
      %v716 = vor.u32 1.1754944e-38, %v715
      %v717 = vsel %vm714, %v716, %v712
      %v718 = vmul.f32 1.0, %v717
      %v719 = vtanh.pop %v699
      %v720 = vld [vmem:[#allocation3] sm:$0xff]
      %722 = vrot.lane.b32.xlu0 %v720, 32
      %v723 = vpop.permute.xlu0 %722
      %v725 = vmul.f32 %v718, %v723
      %727 = vrot.lane.b32.xlu0 %v719, 64
      %v728 = vpop.permute.xlu0 %727
      %v730 = vmul.f32 %v718, %v728
      %732 = vrot.lane.b32.xlu0 %v730, 32
      %v733 = vpop.permute.xlu0 %732
      %v735 = vadd.f32 %v725, %v733
      %v736 = vtanh.pop %v735
      %738 = vrot.lane.b32.xlu0 %v736, 64
      %v739 = vpop.permute.xlu0 %738
      %v741 = vmul.f32 %v718, %v739
      %743 = vrot.lane.b32.xlu0 %v735, 96
      %v744 = vpop.permute.xlu0 %743
      %746 = vst.msk [vmem:[#allocation3] sm:$0xff] %vm390, %v744
      %748 = vrot.lane.b32.xlu0 %v741, 32
      %v749 = vpop.permute.xlu0 %748
      %751 = vst.msk [vmem:[#allocation2] sm:$0xff] %vm390, %v749
      %752 = vst.msk [vmem:[#allocation4 + $0x20] sm:$0xff] %vm390, %v749
      %v753 = vld [vmem:[#allocation2] sm:$0xff]
      %v754 = vadd.f32 %v365, %v374
      %v755 = vpack.c.bf16 %v753, %v753
      %v757 = vsel %vm390, %v755, 0
      %759 = vmatpush.bf16.msra.mxu0 0
      %760 = vmatpush.bf16.msra.mxu0 0
      %761 = vmatpush.bf16.msra.mxu0 0
      %762 = vmatpush.bf16.msra.mxu0 0
      %763 = vmatpush.bf16.msra.mxu0 0
      %764 = vmatpush.bf16.msra.mxu0 0
      %765 = vmatpush.bf16.msra.mxu0 %v387
      %766 = vmatpush.bf16.msra.mxu0 %v386
      %767 = vmatmul.bf16.gmra.mxu0 %v757
      %v768 = vpop.f32.mrf.mxu0
      %v769 = vadd.f32 0.0, %v768
      %v770 = vpop.f32.mrf.mxu0
      %771 = vdwg.mxu0
      %v772 = vadd.f32 %v754, %v769
      %v773 = vxor.u32 %v772, 2147483648
      %v774 = vmul.f32 %v773, 1.442695
      %v775 = vpow.pop %v774
      %v776 = vadd.f32 %v775, 1.0
      %v777 = vrcp.pop %v776
      %v778 = vmul.f32 %v776, %v777
      %v779 = vsub.f32 1.0, %v778
      %v780 = vmul.f32 %v777, %v779
      %v781 = vadd.f32 %v777, %v780
      %vm782 = vweird.f32 %v776
      %vm783 = vweird.f32 %v777
      %vm784 = vmor %vm782, %vm783
      %v785 = vsel %vm784, %v777, %v781
      %v786 = vand.u32 2147483647, %v776
      %vm787 = vcmp.eq.f32.partialorder %v786, 8.507059e+37
      %v788 = vand.u32 %v776, 2147483648
      %v789 = vor.u32 1.1754944e-38, %v788
      %v790 = vsel %vm787, %v789, %v785
      %v791 = vmul.f32 1.0, %v790
      %v792 = vtanh.pop %v772
      %v793 = vld [vmem:[#allocation3] sm:$0xff]
      %795 = vrot.lane.b32.xlu0 %v793, 32
      %v796 = vpop.permute.xlu0 %795
      %v798 = vmul.f32 %v791, %v796
      %800 = vrot.lane.b32.xlu0 %v792, 64
      %v801 = vpop.permute.xlu0 %800
      %v803 = vmul.f32 %v791, %v801
      %805 = vrot.lane.b32.xlu0 %v803, 32
      %v806 = vpop.permute.xlu0 %805
      %v808 = vadd.f32 %v798, %v806
      %v809 = vtanh.pop %v808
      %811 = vrot.lane.b32.xlu0 %v809, 64
      %v812 = vpop.permute.xlu0 %811
      %v814 = vmul.f32 %v791, %v812
      %816 = vrot.lane.b32.xlu0 %v808, 96
      %v817 = vpop.permute.xlu0 %816
      %819 = vst.msk [vmem:[#allocation3] sm:$0xff] %vm390, %v817
      %821 = vrot.lane.b32.xlu0 %v814, 32
      %v822 = vpop.permute.xlu0 %821
      %824 = vst.msk [vmem:[#allocation2] sm:$0xff] %vm390, %v822
      %825 = vst.msk [vmem:[#allocation4 + $0x28] sm:$0xff] %vm390, %v822
      %v826 = vld [vmem:[#allocation2] sm:$0xff]
      %v827 = vadd.f32 %v368, %v374
      %v828 = vpack.c.bf16 %v826, %v826
      %v830 = vsel %vm390, %v828, 0
      %832 = vmatpush.bf16.msra.mxu0 0
      %833 = vmatpush.bf16.msra.mxu0 0
      %834 = vmatpush.bf16.msra.mxu0 0
      %835 = vmatpush.bf16.msra.mxu0 0
      %836 = vmatpush.bf16.msra.mxu0 0
      %837 = vmatpush.bf16.msra.mxu0 0
      %838 = vmatpush.bf16.msra.mxu0 %v387
      %839 = vmatpush.bf16.msra.mxu0 %v386
      %840 = vmatmul.bf16.gmra.mxu0 %v830
      %v841 = vpop.f32.mrf.mxu0
      %v842 = vadd.f32 0.0, %v841
      %v843 = vpop.f32.mrf.mxu0
      %844 = vdwg.mxu0
      %v845 = vadd.f32 %v827, %v842
      %v846 = vxor.u32 %v845, 2147483648
      %v847 = vmul.f32 %v846, 1.442695
      %v848 = vpow.pop %v847
      %v849 = vadd.f32 %v848, 1.0
      %v850 = vrcp.pop %v849
      %v851 = vmul.f32 %v849, %v850
      %v852 = vsub.f32 1.0, %v851
      %v853 = vmul.f32 %v850, %v852
      %v854 = vadd.f32 %v850, %v853
      %vm855 = vweird.f32 %v849
      %vm856 = vweird.f32 %v850
      %vm857 = vmor %vm855, %vm856
      %v858 = vsel %vm857, %v850, %v854
      %v859 = vand.u32 2147483647, %v849
      %vm860 = vcmp.eq.f32.partialorder %v859, 8.507059e+37
      %v861 = vand.u32 %v849, 2147483648
      %v862 = vor.u32 1.1754944e-38, %v861
      %v863 = vsel %vm860, %v862, %v858
      %v864 = vmul.f32 1.0, %v863
      %v865 = vtanh.pop %v845
      %v866 = vld [vmem:[#allocation3] sm:$0xff]
      %868 = vrot.lane.b32.xlu0 %v866, 32
      %v869 = vpop.permute.xlu0 %868
      %v871 = vmul.f32 %v864, %v869
      %873 = vrot.lane.b32.xlu0 %v865, 64
      %v874 = vpop.permute.xlu0 %873
      %v876 = vmul.f32 %v864, %v874
      %878 = vrot.lane.b32.xlu0 %v876, 32
      %v879 = vpop.permute.xlu0 %878
      %v881 = vadd.f32 %v871, %v879
      %v882 = vtanh.pop %v881
      %884 = vrot.lane.b32.xlu0 %v882, 64
      %v885 = vpop.permute.xlu0 %884
      %v887 = vmul.f32 %v864, %v885
      %889 = vrot.lane.b32.xlu0 %v881, 96
      %v890 = vpop.permute.xlu0 %889
      %892 = vst.msk [vmem:[#allocation3] sm:$0xff] %vm390, %v890
      %894 = vrot.lane.b32.xlu0 %v887, 32
      %v895 = vpop.permute.xlu0 %894
      %897 = vst.msk [vmem:[#allocation2] sm:$0xff] %vm390, %v895
      %898 = vst.msk [vmem:[#allocation4 + $0x30] sm:$0xff] %vm390, %v895
      %v899 = vld [vmem:[#allocation2] sm:$0xff]
      %v900 = vadd.f32 %v370, %v374
      %v901 = vpack.c.bf16 %v899, %v899
      %v903 = vsel %vm390, %v901, 0
      %905 = vmatpush.bf16.msra.mxu0 0
      %906 = vmatpush.bf16.msra.mxu0 0
      %907 = vmatpush.bf16.msra.mxu0 0
      %908 = vmatpush.bf16.msra.mxu0 0
      %909 = vmatpush.bf16.msra.mxu0 0
      %910 = vmatpush.bf16.msra.mxu0 0
      %911 = vmatpush.bf16.msra.mxu0 %v387
      %912 = vmatpush.bf16.msra.mxu0 %v386
      %913 = vmatmul.bf16.gmra.mxu0 %v903
      %v914 = vpop.f32.mrf.mxu0
      %v915 = vadd.f32 0.0, %v914
      %v916 = vpop.f32.mrf.mxu0
      %917 = vdwg.mxu0
      %v918 = vadd.f32 %v900, %v915
      %v919 = vxor.u32 %v918, 2147483648
      %v920 = vmul.f32 %v919, 1.442695
      %v921 = vpow.pop %v920
      %v922 = vadd.f32 %v921, 1.0
      %v923 = vrcp.pop %v922
      %v924 = vmul.f32 %v922, %v923
      %v925 = vsub.f32 1.0, %v924
      %v926 = vmul.f32 %v923, %v925
      %v927 = vadd.f32 %v923, %v926
      %vm928 = vweird.f32 %v922
      %vm929 = vweird.f32 %v923
      %vm930 = vmor %vm928, %vm929
      %v931 = vsel %vm930, %v923, %v927
      %v932 = vand.u32 2147483647, %v922
      %vm933 = vcmp.eq.f32.partialorder %v932, 8.507059e+37
      %v934 = vand.u32 %v922, 2147483648
      %v935 = vor.u32 1.1754944e-38, %v934
      %v936 = vsel %vm933, %v935, %v931
      %v937 = vmul.f32 1.0, %v936
      %v938 = vtanh.pop %v918
      %v939 = vld [vmem:[#allocation3] sm:$0xff]
      %941 = vrot.lane.b32.xlu0 %v939, 32
      %v942 = vpop.permute.xlu0 %941
      %v944 = vmul.f32 %v937, %v942
      %946 = vrot.lane.b32.xlu0 %v938, 64
      %v947 = vpop.permute.xlu0 %946
      %v949 = vmul.f32 %v937, %v947
      %951 = vrot.lane.b32.xlu0 %v949, 32
      %v952 = vpop.permute.xlu0 %951
      %v954 = vadd.f32 %v944, %v952
      %v955 = vtanh.pop %v954
      %957 = vrot.lane.b32.xlu0 %v955, 64
      %v958 = vpop.permute.xlu0 %957
      %v960 = vmul.f32 %v937, %v958
      %962 = vrot.lane.b32.xlu0 %v954, 96
      %v963 = vpop.permute.xlu0 %962
      %965 = vst.msk [vmem:[#allocation3] sm:$0xff] %vm390, %v963
      %967 = vrot.lane.b32.xlu0 %v960, 32
      %v968 = vpop.permute.xlu0 %967
      %970 = vst.msk [vmem:[#allocation2] sm:$0xff] %vm390, %v968
      %971 = vst.msk [vmem:[#allocation4 + $0x38] sm:$0xff] %vm390, %v968
      %v972 = vld [vmem:[#allocation4] sm:$0xff]
      %v973 = vld [vmem:[#allocation4 + $0x8] sm:$0xff]
      %v974 = vld [vmem:[#allocation4 + $0x10] sm:$0xff]
      %v975 = vld [vmem:[#allocation4 + $0x18] sm:$0xff]
      %v976 = vld [vmem:[#allocation4 + $0x20] sm:$0xff]
      %v977 = vld [vmem:[#allocation4 + $0x28] sm:$0xff]
      %v978 = vld [vmem:[#allocation4 + $0x30] sm:$0xff]
      %v979 = vld [vmem:[#allocation4 + $0x38] sm:$0xff]
      %v980 = vpack.c.bf16 %v972, %v972
      %v981 = vpack.c.bf16 %v973, %v973
      %v982 = vpack.c.bf16 %v974, %v974
      %v983 = vpack.c.bf16 %v975, %v975
      %v984 = vpack.c.bf16 %v976, %v976
      %v985 = vpack.c.bf16 %v977, %v977
      %v986 = vpack.c.bf16 %v978, %v978
      %v987 = vpack.c.bf16 %v979, %v979
      %vm988 = vcmask 257024
      %989 = vst.msk [vmem:[%s253] sm:$0xf] %vm988, %v980
      %990 = vst.msk [vmem:[%s253 + $0x4] sm:$0xf] %vm988, %v981
      %991 = vst.msk [vmem:[%s253 + $0x8] sm:$0xf] %vm988, %v982
      %992 = vst.msk [vmem:[%s253 + $0xc] sm:$0xf] %vm988, %v983
      %993 = vst.msk [vmem:[%s253 + $0x10] sm:$0xf] %vm988, %v984
      %994 = vst.msk [vmem:[%s253 + $0x14] sm:$0xf] %vm988, %v985
      %995 = vst.msk [vmem:[%s253 + $0x18] sm:$0xf] %vm988, %v986
      %996 = vst.msk [vmem:[%s253 + $0x1c] sm:$0xf] %vm988, %v987
      %s997 = smul.u32 8, %s17
      %p998 = scmp.lt.s32.totalorder %s997, 15
      %s999 = scalar_select %p998, %s997, 15
      %s1000 = smul.addr %s999, 4
      %s1001 = scalar_lea.vmem %s6, %s1000
      // Predicated region
      $region49: #{lst_model_forward.12} parent=43 // pred_check
        %p1002 = pneg %p166
      $region50: #{lst_model_forward.12} parent=43 // pred_check_branch
        %1004 = sbr.rel (%p1002) target = $region52
      $region51: #{lst_model_forward.12} parent=43 // pred_region
        %s1005 = smul.u32 8, %s17
      $region52: #{lst_model_forward.12} parent=43 // pred_fallthru
        _
    $region44: #{lst_model_forward.12} parent=5 // pred_fallthru
      _
    %p1006 = scmp.le.s32.totalorder 2, %s12
    // Predicated region
    $region53: #{lst_model_forward.12} parent=5 // pred_check
      %p1007 = pneg %p1006
    $region54: #{lst_model_forward.12} parent=5 // pred_check_branch
      %1009 = sbr.rel (%p1007) target = $region56
    $region55: #{lst_model_forward.12} parent=5 // pred_region
      %s1010 = ssub.s32 %s12, 2
      // Predicated region
      $region57: #{lst_model_forward.12} parent=55 // pred_check
        %p1011 = pneg %p172
      $region58: #{lst_model_forward.12} parent=55 // pred_check_branch
        %1013 = sbr.rel (%p1011) target = $region60
      $region59: #{lst_model_forward.12} parent=55 // pred_region
        %s1014 = smul.u32 8, %s18
        %p1015 = scmp.lt.s32.totalorder %s1014, 15
        %s1016 = scalar_select %p1015, %s1014, 15
        %s1017 = smul.addr %s1016, 4
        %s1018 = scalar_lea.vmem %s6, %s1017
      $region60: #{lst_model_forward.12} parent=55 // pred_fallthru
        _
    $region56: #{lst_model_forward.12} parent=5 // pred_fallthru
      _
  $region6: #{lst_model_forward.12} parent=0 // loop_footer
    %s16 = sadd.s32 1, %s12
  $region7: #{lst_model_forward.12} parent=0 // loop_footer_branch
    %11 = sbr.rel target = $region3
  $region8: #{lst_model_forward.12} parent=0 // loop_exit
    _

// kernel: lst_model_forward.19
$region0: #{lst_model_forward.19}
  #allocation0 [shape = 'u32[]', space=smem, size = 0x4, offset = 0x4, fixed_abs, tag = 'smem constant byte address 0x4 - core index']
  #allocation1 [shape = 'u32[72,128]{1,0:T(1,128)}', space=vmem, size = 0x9000, scoped, tag = 'internal scratch']
  %s0 = inlined_call_operand.vmem [shape: bf16[8,32], index: 0, kind: input, shape index: {}]
  %s1 = inlined_call_operand.vmem [shape: f32[8,32], index: 1, kind: output, shape index: {}]
  %s2 = sld [smem:[#allocation0]]
  $region14: #{lst_model_forward.19} parent=0
    _
  %s4 = ssub.s32 1, %s2
  %s5 = scalar_select 0, %s4, %s2
  // Predicated region
  $region2: #{lst_model_forward.19} parent=0 // pred_check
    _
  $region3: #{lst_model_forward.19} parent=0 // pred_check_branch
    %7 = sbr.rel (0) target = $region5
  $region4: #{lst_model_forward.19} parent=0 // pred_region
    _
  $region5: #{lst_model_forward.19} parent=0 // pred_fallthru
    _
  %v8 = vld [vmem:[%s0] sm:$0xf]
  %v9 = vunpack.c.l.bf16 %v8
  %v10 = vxor.u32 %v9, 2147483648
  %v11 = vmul.f32 %v10, 1.442695
  %v12 = vpow.pop %v11
  %v13 = vadd.f32 %v12, 1.0
  %v14 = vrcp.pop %v13
  %v15 = vmul.f32 %v13, %v14
  %v16 = vsub.f32 1.0, %v15
  %v17 = vmul.f32 %v14, %v16
  %v18 = vadd.f32 %v14, %v17
  %vm19 = vweird.f32 %v13
  %vm20 = vweird.f32 %v14
  %vm21 = vmor %vm19, %vm20
  %v22 = vsel %vm21, %v14, %v18
  %v23 = vand.u32 2147483647, %v13
  %vm24 = vcmp.eq.f32.partialorder %v23, 8.507059e+37
  %v25 = vand.u32 %v13, 2147483648
  %v26 = vor.u32 1.1754944e-38, %v25
  %v27 = vsel %vm24, %v26, %v22
  %v28 = vmul.f32 1.0, %v27
  %v29 = vmul.f32 %v28, 2000000.0
  %v30 = vsub.f32 %v29, 820000.0
  %vm31 = vcmask 261120
  %32 = vst.msk [vmem:[%s1] sm:$0xff] %vm31, %v30
  // Predicated region
  $region6: #{lst_model_forward.19} parent=0 // pred_check
    _
  $region7: #{lst_model_forward.19} parent=0 // pred_check_branch
    %34 = sbr.rel (0) target = $region9
  $region8: #{lst_model_forward.19} parent=0 // pred_region
    _
  $region9: #{lst_model_forward.19} parent=0 // pred_fallthru
    _
  // Predicated region
  $region10: #{lst_model_forward.19} parent=0 // pred_check
    _
  $region11: #{lst_model_forward.19} parent=0 // pred_check_branch
    %36 = sbr.rel (0) target = $region13
  $region12: #{lst_model_forward.19} parent=0 // pred_region
    _
  $region13: #{lst_model_forward.19} parent=0 // pred_fallthru
    _

</llo_original>
